<compile_context>
chip_gen: v5e
topology: v5e:2x2
jax: 0.10.0
libtpu: 0.0.40
codegen_flags: <defaults>
</compile_context>

<pallas_src>
import functools

import jax
import jax.numpy as jnp
import numpy as np
from jax.experimental import pallas as pl
from jax.experimental.pallas import tpu as pltpu

_COL0 = 8    # sublane-aligned column where the image interior starts in scratch
_PADW = 16   # scratch width padding: 8 (left halo + alignment) + 8 (right halo)


# ----------------------------------------------------------------------------
# In-kernel helper: 3x3 "same" conv as one wide MXU matmul
# ----------------------------------------------------------------------------
def _conv3x3_im2col(pad_ref, w9_ref, H, W):
    """pad_ref : (H+2, W+_PADW, C) f32 VMEM scratch; interior at rows [1, H+1),
                 cols [_COL0, _COL0+W); halo is zero.
       w9_ref  : (9*C, Cout) bf16 weights in (kh, kw, ci) im2col order.
       returns (H*W, Cout) f32."""
    taps = []
    for kh in range(3):
        for kw in range(3):
            c0 = _COL0 - 1 + kw
            taps.append(pad_ref[kh:kh + H, c0:c0 + W, :].reshape(H * W, -1))
    patches = jnp.concatenate(taps, axis=-1).astype(jnp.bfloat16)  # (HW, 9C)
    return jnp.dot(patches, w9_ref[...], preferred_element_type=jnp.float32)


# ----------------------------------------------------------------------------
# Fused kernel: netK (conv+ReLU+conv)  then  netDe (conv+ReLU+conv + residual)
# One grid step = one batch element; hidden activations & K stay in VMEM.
# ----------------------------------------------------------------------------
def _deblur_sr_kernel(x_ref, wk1, bk1, wk2, bk2,
                      wd1x, wd1k, bd1, wd2, bd2,
                      sr_ref, k_ref,
                      xpad, kpad, hpad, *, H, W):
    x = x_ref[0]                                           # (H, W, Cin) f32
    x_flat = x.reshape(H * W, -1)

    # Zero halos in VMEM (no HBM pad pass); interiors are overwritten below.
    xpad[...] = jnp.zeros_like(xpad)
    kpad[...] = jnp.zeros_like(kpad)
    hpad[...] = jnp.zeros_like(hpad)
    xpad[1:H + 1, _COL0:_COL0 + W, :] = x                  # aligned store

    # ---- netK: conv3x3(Cin->HID) + ReLU + conv3x3(HID->KCH) ----------------
    h = jnp.maximum(_conv3x3_im2col(xpad, wk1, H, W) + bk1[...], 0.0)
    hpad[1:H + 1, _COL0:_COL0 + W, :] = h.reshape(H, W, -1)
    k = _conv3x3_im2col(hpad, wk2, H, W) + bk2[...]        # (H*W, KCH) f32
    k_ref[0] = k.reshape(H, W, -1).astype(k_ref.dtype)

    # ---- netDe: conv3x3(concat[x, K]->HID) + ReLU + conv3x3(HID->Cin) + x ---
    # (K.detach() only affects backward; forward value is identical.)
    kpad[1:H + 1, _COL0:_COL0 + W, :] = k.reshape(H, W, -1)
    h2 = jnp.maximum(_conv3x3_im2col(xpad, wd1x, H, W)
                     + _conv3x3_im2col(kpad, wd1k, H, W) + bd1[...], 0.0)
    hpad[1:H + 1, _COL0:_COL0 + W, :] = h2.reshape(H, W, -1)   # reuse scratch
    sr = _conv3x3_im2col(hpad, wd2, H, W) + bd2[...] + x_flat  # fused residual
    sr_ref[0] = sr.reshape(H, W, -1).astype(sr_ref.dtype)


def deblur_sr_fused_nhwc(kp, x_nhwc):
    N, H, W, Cin = x_nhwc.shape
    pk, pd = kp["netK"], kp["netDe"]
    HID = pk["w1"].shape[-1]
    KCH = pk["w2"].shape[-1]

    flops = 2 * N * H * W * 9 * (Cin * HID + HID * KCH
                                 + (Cin + KCH) * HID + HID * Cin)
    bytes_acc = (4 * (x_nhwc.size + N * H * W * (Cin + KCH))
                 + 2 * (pk["w1"].size + pk["w2"].size + pd["w1x"].size
                        + pd["w1k"].size + pd["w2"].size)
                 + 4 * (pk["b1"].size + pk["b2"].size
                        + pd["b1"].size + pd["b2"].size))

    def full(shape):
        return pl.BlockSpec(shape, lambda n: (0,) * len(shape))

    kern = functools.partial(_deblur_sr_kernel, H=H, W=W)
    sr, k = pl.pallas_call(
        kern,
        out_shape=(jax.ShapeDtypeStruct((N, H, W, Cin), jnp.float32),
                   jax.ShapeDtypeStruct((N, H, W, KCH), jnp.float32)),
        grid=(N,),
        in_specs=[
            pl.BlockSpec((1, H, W, Cin), lambda n: (n, 0, 0, 0)),
            full(pk["w1"].shape), full(pk["b1"].shape),
            full(pk["w2"].shape), full(pk["b2"].shape),
            full(pd["w1x"].shape), full(pd["w1k"].shape), full(pd["b1"].shape),
            full(pd["w2"].shape), full(pd["b2"].shape),
        ],
        out_specs=[
            pl.BlockSpec((1, H, W, Cin), lambda n: (n, 0, 0, 0)),
            pl.BlockSpec((1, H, W, KCH), lambda n: (n, 0, 0, 0)),
        ],
        scratch_shapes=[
            pltpu.VMEM((H + 2, W + _PADW, Cin), jnp.float32),
            pltpu.VMEM((H + 2, W + _PADW, KCH), jnp.float32),
            pltpu.VMEM((H + 2, W + _PADW, HID), jnp.float32),
        ],
        compiler_params=pltpu.CompilerParams(
            dimension_semantics=("parallel",)),
        cost_estimate=pl.CostEstimate(flops=flops, transcendentals=0,
                                      bytes_accessed=bytes_acc),
    )(x_nhwc, pk["w1"], pk["b1"], pk["w2"], pk["b2"],
      pd["w1x"], pd["w1k"], pd["b1"], pd["w2"], pd["b2"])
    return sr, k


def deblur_sr_resdnet_forward(kparams, x_nchw):
    """Mirrors DEblurSRResDNet.forward: returns (sr, K) in NCHW."""
    x_nhwc = jnp.transpose(x_nchw, (0, 2, 3, 1))           # NCHW -> NHWC
    sr_nhwc, k_nhwc = deblur_sr_fused_nhwc(kparams, x_nhwc)
    sr = jnp.transpose(sr_nhwc, (0, 3, 1, 2))              # NHWC -> NCHW
    k = jnp.transpose(k_nhwc, (0, 3, 1, 2))
    return sr, k


# ----------------------------------------------------------------------------
# Parameters (HWIO/f32 reference layout  +  im2col/bf16 kernel layout)
# ----------------------------------------------------------------------------
def init_params(key, cin, hid, kch):
    ks = jax.random.split(key, 9)

    def conv_w(k, ci, co):
        return (jax.random.normal(k, (3, 3, ci, co), jnp.float32)
                / jnp.sqrt(9.0 * ci))

    def bias(k, co):
        return (0.01 * jax.random.normal(k, (co,), jnp.float32)).reshape(1, co)

    return {
        "netK": {"w1": conv_w(ks[0], cin, hid), "b1": bias(ks[1], hid),
                 "w2": conv_w(ks[2], hid, kch), "b2": bias(ks[3], kch)},
        "netDe": {"w1x": conv_w(ks[4], cin, hid),
                  "w1k": conv_w(ks[5], kch, hid), "b1": bias(ks[6], hid),
                  "w2": conv_w(ks[7], hid, cin), "b2": bias(ks[8], cin)},
    }


def kernelize_params(p):
    """HWIO f32 -> im2col (9*Cin, Cout) bf16 (biases stay f32)."""
    def conv(w):
        return w.reshape(9 * w.shape[2], w.shape[3]).astype(jnp.bfloat16)
    return {
        "netK": {"w1": conv(p["netK"]["w1"]), "b1": p["netK"]["b1"],
                 "w2": conv(p["netK"]["w2"]), "b2": p["netK"]["b2"]},
        "netDe": {"w1x": conv(p["netDe"]["w1x"]), "w1k": conv(p["netDe"]["w1k"]),
                  "b1": p["netDe"]["b1"],
                  "w2": conv(p["netDe"]["w2"]), "b2": p["netDe"]["b2"]},
    }


# ----------------------------------------------------------------------------
# Pure-JAX reference (same bf16-rounded weights, f32 activations)
# ----------------------------------------------------------------------------
def _conv3x3_ref(x, w, b):
    w = w.astype(jnp.bfloat16).astype(jnp.float32)
    y = jax.lax.conv_general_dilated(
        x, w, window_strides=(1, 1), padding="SAME",
        dimension_numbers=("NHWC", "HWIO", "NHWC"))
    return y + b.reshape(1, 1, 1, -1)


def forward_ref(p, x_nhwc):
    pk, pd = p["netK"], p["netDe"]
    h = jax.nn.relu(_conv3x3_ref(x_nhwc, pk["w1"], pk["b1"]))
    k = _conv3x3_ref(h, pk["w2"], pk["b2"])
    xk = jnp.concatenate([x_nhwc, k], axis=-1)
    w1 = jnp.concatenate([pd["w1x"], pd["w1k"]], axis=2)
    h2 = jax.nn.relu(_conv3x3_ref(xk, w1, pd["b1"]))
    sr = _conv3x3_ref(h2, pd["w2"], pd["b2"]) + x_nhwc
    return sr, k


if __name__ == "__main__":
    N, C, H, W = 2, 4, 16, 16
    HID, KCH = 32, 8

    key = jax.random.PRNGKey(0)
    k_params, k_input = jax.random.split(key)

    params = init_params(k_params, C, HID, KCH)
    kparams = kernelize_params(params)
    x = jax.random.normal(k_input, (N, C, H, W), jnp.float32)

    sr, K = jax.jit(deblur_sr_resdnet_forward)(kparams, x)
    jax.block_until_ready((sr, K))

    assert sr.shape == (N, C, H, W), sr.shape
    assert K.shape == (N, KCH, H, W), K.shape

    # correctness vs pure-JAX reference (bf16 activation rounding only)
    sr_ref, k_ref = forward_ref(params, jnp.transpose(x, (0, 2, 3, 1)))
    np.testing.assert_allclose(np.asarray(K),
                               np.asarray(jnp.transpose(k_ref, (0, 3, 1, 2))),
                               atol=5e-2, rtol=5e-2)
    np.testing.assert_allclose(np.asarray(sr),
                               np.asarray(jnp.transpose(sr_ref, (0, 3, 1, 2))),
                               atol=5e-2, rtol=5e-2)
    print("KERNEL_OK")
</pallas_src>

<mosaic_0001>
module attributes {stable_mosaic.version = 11 : i64} {
  func.func @_deblur_sr_kernel(%arg0: i32, %arg1: memref<1x16x16x4xf32, #tpu.memory_space<vmem>>, %arg2: memref<36x32xbf16, #tpu.memory_space<vmem>>, %arg3: memref<1x32xf32, #tpu.memory_space<vmem>>, %arg4: memref<288x8xbf16, #tpu.memory_space<vmem>>, %arg5: memref<1x8xf32, #tpu.memory_space<vmem>>, %arg6: memref<36x32xbf16, #tpu.memory_space<vmem>>, %arg7: memref<72x32xbf16, #tpu.memory_space<vmem>>, %arg8: memref<1x32xf32, #tpu.memory_space<vmem>>, %arg9: memref<288x4xbf16, #tpu.memory_space<vmem>>, %arg10: memref<1x4xf32, #tpu.memory_space<vmem>>, %arg11: memref<1x16x16x4xf32, #tpu.memory_space<vmem>>, %arg12: memref<1x16x16x8xf32, #tpu.memory_space<vmem>>, %arg13: memref<18x32x4xf32, #tpu.memory_space<vmem>>, %arg14: memref<18x32x8xf32, #tpu.memory_space<vmem>>, %arg15: memref<18x32x32xf32, #tpu.memory_space<vmem>>) attributes {dimension_semantics = [#tpu.dimension_semantics<parallel>], iteration_bounds = array<i64: 2>, scalar_prefetch = 0 : i64, scratch_operands = 3 : i64, tpu.core_type = #tpu.core_type<tc>, window_params = [{transform_indices = @transform_0, window_bounds = array<i64: 1, 16, 16, 4>}, {pipeline_mode = #tpu.pipeline_mode<synchronous>, transform_indices = @transform_1, window_bounds = array<i64: 36, 32>}, {pipeline_mode = #tpu.pipeline_mode<synchronous>, transform_indices = @transform_2, window_bounds = array<i64: 1, 32>}, {pipeline_mode = #tpu.pipeline_mode<synchronous>, transform_indices = @transform_3, window_bounds = array<i64: 288, 8>}, {pipeline_mode = #tpu.pipeline_mode<synchronous>, transform_indices = @transform_4, window_bounds = array<i64: 1, 8>}, {pipeline_mode = #tpu.pipeline_mode<synchronous>, transform_indices = @transform_5, window_bounds = array<i64: 36, 32>}, {pipeline_mode = #tpu.pipeline_mode<synchronous>, transform_indices = @transform_6, window_bounds = array<i64: 72, 32>}, {pipeline_mode = #tpu.pipeline_mode<synchronous>, transform_indices = @transform_7, window_bounds = array<i64: 1, 32>}, {pipeline_mode = #tpu.pipeline_mode<synchronous>, transform_indices = @transform_8, window_bounds = array<i64: 288, 4>}, {pipeline_mode = #tpu.pipeline_mode<synchronous>, transform_indices = @transform_9, window_bounds = array<i64: 1, 4>}, {transform_indices = @transform_10, window_bounds = array<i64: 1, 16, 16, 4>}, {transform_indices = @transform_11, window_bounds = array<i64: 1, 16, 16, 8>}]} {
    %c0 = arith.constant 0 : index
    %c0_0 = arith.constant 0 : index
    %c0_1 = arith.constant 0 : index
    %c0_2 = arith.constant 0 : index
    %0 = vector.load %arg1[%c0, %c0_0, %c0_1, %c0_2] : memref<1x16x16x4xf32, #tpu.memory_space<vmem>>, vector<1x16x16x4xf32>
    %1 = vector.shape_cast %0 : vector<1x16x16x4xf32> to vector<16x16x4xf32>
    %2 = vector.shape_cast %1 : vector<16x16x4xf32> to vector<256x4xf32>
    %cst = arith.constant 0.000000e+00 : f32
    %3 = vector.broadcast %cst : f32 to vector<18x32x4xf32>
    %c0_3 = arith.constant 0 : index
    %c0_4 = arith.constant 0 : index
    %c0_5 = arith.constant 0 : index
    %4 = vector.load %arg13[%c0_3, %c0_4, %c0_5] : memref<18x32x4xf32, #tpu.memory_space<vmem>>, vector<18x32x4xf32>
    tpu.vector_store %arg13[%c0_3, %c0_4, %c0_5], %3 {strides = array<i32>} : memref<18x32x4xf32, #tpu.memory_space<vmem>>, vector<18x32x4xf32>,
    %cst_6 = arith.constant 0.000000e+00 : f32
    %5 = vector.broadcast %cst_6 : f32 to vector<18x32x8xf32>
    %c0_7 = arith.constant 0 : index
    %c0_8 = arith.constant 0 : index
    %c0_9 = arith.constant 0 : index
    %6 = vector.load %arg14[%c0_7, %c0_8, %c0_9] : memref<18x32x8xf32, #tpu.memory_space<vmem>>, vector<18x32x8xf32>
    tpu.vector_store %arg14[%c0_7, %c0_8, %c0_9], %5 {strides = array<i32>} : memref<18x32x8xf32, #tpu.memory_space<vmem>>, vector<18x32x8xf32>,
    %cst_10 = arith.constant 0.000000e+00 : f32
    %7 = vector.broadcast %cst_10 : f32 to vector<18x32x32xf32>
    %c0_11 = arith.constant 0 : index
    %c0_12 = arith.constant 0 : index
    %c0_13 = arith.constant 0 : index
    %8 = vector.load %arg15[%c0_11, %c0_12, %c0_13] : memref<18x32x32xf32, #tpu.memory_space<vmem>>, vector<18x32x32xf32>
    tpu.vector_store %arg15[%c0_11, %c0_12, %c0_13], %7 {strides = array<i32>} : memref<18x32x32xf32, #tpu.memory_space<vmem>>, vector<18x32x32xf32>,
    %c1 = arith.constant 1 : index
    %c8 = arith.constant 8 : index
    %c0_14 = arith.constant 0 : index
    %9 = vector.load %arg13[%c1, %c8, %c0_14] : memref<18x32x4xf32, #tpu.memory_space<vmem>>, vector<16x16x4xf32>
    tpu.vector_store %arg13[%c1, %c8, %c0_14], %1 {strides = array<i32>} : memref<18x32x4xf32, #tpu.memory_space<vmem>>, vector<16x16x4xf32>,
    %c0_15 = arith.constant 0 : index
    %c7 = arith.constant 7 : index
    %c0_16 = arith.constant 0 : index
    %10 = vector.load %arg13[%c0_15, %c7, %c0_16] : memref<18x32x4xf32, #tpu.memory_space<vmem>>, vector<16x16x4xf32>
    %11 = vector.shape_cast %10 : vector<16x16x4xf32> to vector<256x4xf32>
    %c0_17 = arith.constant 0 : index
    %c8_18 = arith.constant 8 : index
    %c0_19 = arith.constant 0 : index
    %12 = vector.load %arg13[%c0_17, %c8_18, %c0_19] : memref<18x32x4xf32, #tpu.memory_space<vmem>>, vector<16x16x4xf32>
    %13 = vector.shape_cast %12 : vector<16x16x4xf32> to vector<256x4xf32>
    %c0_20 = arith.constant 0 : index
    %c9 = arith.constant 9 : index
    %c0_21 = arith.constant 0 : index
    %14 = vector.load %arg13[%c0_20, %c9, %c0_21] : memref<18x32x4xf32, #tpu.memory_space<vmem>>, vector<16x16x4xf32>
    %15 = vector.shape_cast %14 : vector<16x16x4xf32> to vector<256x4xf32>
    %c1_22 = arith.constant 1 : index
    %c7_23 = arith.constant 7 : index
    %c0_24 = arith.constant 0 : index
    %16 = vector.load %arg13[%c1_22, %c7_23, %c0_24] : memref<18x32x4xf32, #tpu.memory_space<vmem>>, vector<16x16x4xf32>
    %17 = vector.shape_cast %16 : vector<16x16x4xf32> to vector<256x4xf32>
    %c1_25 = arith.constant 1 : index
    %c8_26 = arith.constant 8 : index
    %c0_27 = arith.constant 0 : index
    %18 = vector.load %arg13[%c1_25, %c8_26, %c0_27] : memref<18x32x4xf32, #tpu.memory_space<vmem>>, vector<16x16x4xf32>
    %19 = vector.shape_cast %18 : vector<16x16x4xf32> to vector<256x4xf32>
    %c1_28 = arith.constant 1 : index
    %c9_29 = arith.constant 9 : index
    %c0_30 = arith.constant 0 : index
    %20 = vector.load %arg13[%c1_28, %c9_29, %c0_30] : memref<18x32x4xf32, #tpu.memory_space<vmem>>, vector<16x16x4xf32>
    %21 = vector.shape_cast %20 : vector<16x16x4xf32> to vector<256x4xf32>
    %c2 = arith.constant 2 : index
    %c7_31 = arith.constant 7 : index
    %c0_32 = arith.constant 0 : index
    %22 = vector.load %arg13[%c2, %c7_31, %c0_32] : memref<18x32x4xf32, #tpu.memory_space<vmem>>, vector<16x16x4xf32>
    %23 = vector.shape_cast %22 : vector<16x16x4xf32> to vector<256x4xf32>
    %c2_33 = arith.constant 2 : index
    %c8_34 = arith.constant 8 : index
    %c0_35 = arith.constant 0 : index
    %24 = vector.load %arg13[%c2_33, %c8_34, %c0_35] : memref<18x32x4xf32, #tpu.memory_space<vmem>>, vector<16x16x4xf32>
    %25 = vector.shape_cast %24 : vector<16x16x4xf32> to vector<256x4xf32>
    %c2_36 = arith.constant 2 : index
    %c9_37 = arith.constant 9 : index
    %c0_38 = arith.constant 0 : index
    %26 = vector.load %arg13[%c2_36, %c9_37, %c0_38] : memref<18x32x4xf32, #tpu.memory_space<vmem>>, vector<16x16x4xf32>
    %27 = vector.shape_cast %26 : vector<16x16x4xf32> to vector<256x4xf32>
    %28 = tpu.concatenate %11, %13, %15, %17, %19, %21, %23, %25, %27 in 1 : vector<256x4xf32>, vector<256x4xf32>, vector<256x4xf32>, vector<256x4xf32>, vector<256x4xf32>, vector<256x4xf32>, vector<256x4xf32>, vector<256x4xf32>, vector<256x4xf32> -> vector<256x36xf32>
    %29 = arith.truncf %28 : vector<256x36xf32> to vector<256x36xbf16>
    %c0_39 = arith.constant 0 : index
    %c0_40 = arith.constant 0 : index
    %30 = vector.load %arg2[%c0_39, %c0_40] : memref<36x32xbf16, #tpu.memory_space<vmem>>, vector<36x32xbf16>
    %cst_41 = arith.constant dense<0.000000e+00> : vector<256x32xf32>
    %31 = tpu.matmul %29, %30, %cst_41 {dimension_numbers = #tpu.dot_dimension_numbers<[1], [0], [0], [1], [0, 0, 1, 1], [], []>} : vector<256x36xbf16>, vector<36x32xbf16>, vector<256x32xf32> -> vector<256x32xf32>
    %c0_42 = arith.constant 0 : index
    %c0_43 = arith.constant 0 : index
    %32 = vector.load %arg3[%c0_42, %c0_43] : memref<1x32xf32, #tpu.memory_space<vmem>>, vector<1x32xf32>
    %33 = vector.broadcast %32 : vector<1x32xf32> to vector<256x32xf32>
    %34 = arith.addf %31, %33 : vector<256x32xf32>
    %cst_44 = arith.constant 0.000000e+00 : f32
    %35 = vector.broadcast %cst_44 : f32 to vector<256x32xf32>
    %36 = arith.maximumf %34, %35 : vector<256x32xf32>
    %37 = vector.shape_cast %36 : vector<256x32xf32> to vector<16x16x32xf32>
    %c1_45 = arith.constant 1 : index
    %c8_46 = arith.constant 8 : index
    %c0_47 = arith.constant 0 : index
    %38 = vector.load %arg15[%c1_45, %c8_46, %c0_47] : memref<18x32x32xf32, #tpu.memory_space<vmem>>, vector<16x16x32xf32>
    tpu.vector_store %arg15[%c1_45, %c8_46, %c0_47], %37 {strides = array<i32>} : memref<18x32x32xf32, #tpu.memory_space<vmem>>, vector<16x16x32xf32>,
    %c0_48 = arith.constant 0 : index
    %c7_49 = arith.constant 7 : index
    %c0_50 = arith.constant 0 : index
    %39 = vector.load %arg15[%c0_48, %c7_49, %c0_50] : memref<18x32x32xf32, #tpu.memory_space<vmem>>, vector<16x16x32xf32>
    %40 = vector.shape_cast %39 : vector<16x16x32xf32> to vector<256x32xf32>
    %c0_51 = arith.constant 0 : index
    %c8_52 = arith.constant 8 : index
    %c0_53 = arith.constant 0 : index
    %41 = vector.load %arg15[%c0_51, %c8_52, %c0_53] : memref<18x32x32xf32, #tpu.memory_space<vmem>>, vector<16x16x32xf32>
    %42 = vector.shape_cast %41 : vector<16x16x32xf32> to vector<256x32xf32>
    %c0_54 = arith.constant 0 : index
    %c9_55 = arith.constant 9 : index
    %c0_56 = arith.constant 0 : index
    %43 = vector.load %arg15[%c0_54, %c9_55, %c0_56] : memref<18x32x32xf32, #tpu.memory_space<vmem>>, vector<16x16x32xf32>
    %44 = vector.shape_cast %43 : vector<16x16x32xf32> to vector<256x32xf32>
    %c1_57 = arith.constant 1 : index
    %c7_58 = arith.constant 7 : index
    %c0_59 = arith.constant 0 : index
    %45 = vector.load %arg15[%c1_57, %c7_58, %c0_59] : memref<18x32x32xf32, #tpu.memory_space<vmem>>, vector<16x16x32xf32>
    %46 = vector.shape_cast %45 : vector<16x16x32xf32> to vector<256x32xf32>
    %c1_60 = arith.constant 1 : index
    %c8_61 = arith.constant 8 : index
    %c0_62 = arith.constant 0 : index
    %47 = vector.load %arg15[%c1_60, %c8_61, %c0_62] : memref<18x32x32xf32, #tpu.memory_space<vmem>>, vector<16x16x32xf32>
    %48 = vector.shape_cast %47 : vector<16x16x32xf32> to vector<256x32xf32>
    %c1_63 = arith.constant 1 : index
    %c9_64 = arith.constant 9 : index
    %c0_65 = arith.constant 0 : index
    %49 = vector.load %arg15[%c1_63, %c9_64, %c0_65] : memref<18x32x32xf32, #tpu.memory_space<vmem>>, vector<16x16x32xf32>
    %50 = vector.shape_cast %49 : vector<16x16x32xf32> to vector<256x32xf32>
    %c2_66 = arith.constant 2 : index
    %c7_67 = arith.constant 7 : index
    %c0_68 = arith.constant 0 : index
    %51 = vector.load %arg15[%c2_66, %c7_67, %c0_68] : memref<18x32x32xf32, #tpu.memory_space<vmem>>, vector<16x16x32xf32>
    %52 = vector.shape_cast %51 : vector<16x16x32xf32> to vector<256x32xf32>
    %c2_69 = arith.constant 2 : index
    %c8_70 = arith.constant 8 : index
    %c0_71 = arith.constant 0 : index
    %53 = vector.load %arg15[%c2_69, %c8_70, %c0_71] : memref<18x32x32xf32, #tpu.memory_space<vmem>>, vector<16x16x32xf32>
    %54 = vector.shape_cast %53 : vector<16x16x32xf32> to vector<256x32xf32>
    %c2_72 = arith.constant 2 : index
    %c9_73 = arith.constant 9 : index
    %c0_74 = arith.constant 0 : index
    %55 = vector.load %arg15[%c2_72, %c9_73, %c0_74] : memref<18x32x32xf32, #tpu.memory_space<vmem>>, vector<16x16x32xf32>
    %56 = vector.shape_cast %55 : vector<16x16x32xf32> to vector<256x32xf32>
    %57 = tpu.concatenate %40, %42, %44, %46, %48, %50, %52, %54, %56 in 1 : vector<256x32xf32>, vector<256x32xf32>, vector<256x32xf32>, vector<256x32xf32>, vector<256x32xf32>, vector<256x32xf32>, vector<256x32xf32>, vector<256x32xf32>, vector<256x32xf32> -> vector<256x288xf32>
    %58 = arith.truncf %57 : vector<256x288xf32> to vector<256x288xbf16>
    %c0_75 = arith.constant 0 : index
    %c0_76 = arith.constant 0 : index
    %59 = vector.load %arg4[%c0_75, %c0_76] : memref<288x8xbf16, #tpu.memory_space<vmem>>, vector<288x8xbf16>
    %cst_77 = arith.constant dense<0.000000e+00> : vector<256x8xf32>
    %60 = tpu.matmul %58, %59, %cst_77 {dimension_numbers = #tpu.dot_dimension_numbers<[1], [0], [0], [1], [0, 0, 1, 1], [], []>} : vector<256x288xbf16>, vector<288x8xbf16>, vector<256x8xf32> -> vector<256x8xf32>
    %c0_78 = arith.constant 0 : index
    %c0_79 = arith.constant 0 : index
    %61 = vector.load %arg5[%c0_78, %c0_79] : memref<1x8xf32, #tpu.memory_space<vmem>>, vector<1x8xf32>
    %62 = vector.broadcast %61 : vector<1x8xf32> to vector<256x8xf32>
    %63 = arith.addf %60, %62 : vector<256x8xf32>
    %64 = vector.shape_cast %63 : vector<256x8xf32> to vector<16x16x8xf32>
    %c0_80 = arith.constant 0 : index
    %c0_81 = arith.constant 0 : index
    %c0_82 = arith.constant 0 : index
    %c0_83 = arith.constant 0 : index
    %65 = vector.load %arg12[%c0_80, %c0_81, %c0_82, %c0_83] : memref<1x16x16x8xf32, #tpu.memory_space<vmem>>, vector<1x16x16x8xf32>
    %66 = vector.shape_cast %65 : vector<1x16x16x8xf32> to vector<16x16x8xf32>
    %67 = vector.shape_cast %64 : vector<16x16x8xf32> to vector<1x16x16x8xf32>
    tpu.vector_store %arg12[%c0_80, %c0_81, %c0_82, %c0_83], %67 {strides = array<i32>} : memref<1x16x16x8xf32, #tpu.memory_space<vmem>>, vector<1x16x16x8xf32>,
    %68 = vector.shape_cast %63 : vector<256x8xf32> to vector<16x16x8xf32>
    %c1_84 = arith.constant 1 : index
    %c8_85 = arith.constant 8 : index
    %c0_86 = arith.constant 0 : index
    %69 = vector.load %arg14[%c1_84, %c8_85, %c0_86] : memref<18x32x8xf32, #tpu.memory_space<vmem>>, vector<16x16x8xf32>
    tpu.vector_store %arg14[%c1_84, %c8_85, %c0_86], %68 {strides = array<i32>} : memref<18x32x8xf32, #tpu.memory_space<vmem>>, vector<16x16x8xf32>,
    %c0_87 = arith.constant 0 : index
    %c7_88 = arith.constant 7 : index
    %c0_89 = arith.constant 0 : index
    %70 = vector.load %arg13[%c0_87, %c7_88, %c0_89] : memref<18x32x4xf32, #tpu.memory_space<vmem>>, vector<16x16x4xf32>
    %71 = vector.shape_cast %70 : vector<16x16x4xf32> to vector<256x4xf32>
    %c0_90 = arith.constant 0 : index
    %c8_91 = arith.constant 8 : index
    %c0_92 = arith.constant 0 : index
    %72 = vector.load %arg13[%c0_90, %c8_91, %c0_92] : memref<18x32x4xf32, #tpu.memory_space<vmem>>, vector<16x16x4xf32>
    %73 = vector.shape_cast %72 : vector<16x16x4xf32> to vector<256x4xf32>
    %c0_93 = arith.constant 0 : index
    %c9_94 = arith.constant 9 : index
    %c0_95 = arith.constant 0 : index
    %74 = vector.load %arg13[%c0_93, %c9_94, %c0_95] : memref<18x32x4xf32, #tpu.memory_space<vmem>>, vector<16x16x4xf32>
    %75 = vector.shape_cast %74 : vector<16x16x4xf32> to vector<256x4xf32>
    %c1_96 = arith.constant 1 : index
    %c7_97 = arith.constant 7 : index
    %c0_98 = arith.constant 0 : index
    %76 = vector.load %arg13[%c1_96, %c7_97, %c0_98] : memref<18x32x4xf32, #tpu.memory_space<vmem>>, vector<16x16x4xf32>
    %77 = vector.shape_cast %76 : vector<16x16x4xf32> to vector<256x4xf32>
    %c1_99 = arith.constant 1 : index
    %c8_100 = arith.constant 8 : index
    %c0_101 = arith.constant 0 : index
    %78 = vector.load %arg13[%c1_99, %c8_100, %c0_101] : memref<18x32x4xf32, #tpu.memory_space<vmem>>, vector<16x16x4xf32>
    %79 = vector.shape_cast %78 : vector<16x16x4xf32> to vector<256x4xf32>
    %c1_102 = arith.constant 1 : index
    %c9_103 = arith.constant 9 : index
    %c0_104 = arith.constant 0 : index
    %80 = vector.load %arg13[%c1_102, %c9_103, %c0_104] : memref<18x32x4xf32, #tpu.memory_space<vmem>>, vector<16x16x4xf32>
    %81 = vector.shape_cast %80 : vector<16x16x4xf32> to vector<256x4xf32>
    %c2_105 = arith.constant 2 : index
    %c7_106 = arith.constant 7 : index
    %c0_107 = arith.constant 0 : index
    %82 = vector.load %arg13[%c2_105, %c7_106, %c0_107] : memref<18x32x4xf32, #tpu.memory_space<vmem>>, vector<16x16x4xf32>
    %83 = vector.shape_cast %82 : vector<16x16x4xf32> to vector<256x4xf32>
    %c2_108 = arith.constant 2 : index
    %c8_109 = arith.constant 8 : index
    %c0_110 = arith.constant 0 : index
    %84 = vector.load %arg13[%c2_108, %c8_109, %c0_110] : memref<18x32x4xf32, #tpu.memory_space<vmem>>, vector<16x16x4xf32>
    %85 = vector.shape_cast %84 : vector<16x16x4xf32> to vector<256x4xf32>
    %c2_111 = arith.constant 2 : index
    %c9_112 = arith.constant 9 : index
    %c0_113 = arith.constant 0 : index
    %86 = vector.load %arg13[%c2_111, %c9_112, %c0_113] : memref<18x32x4xf32, #tpu.memory_space<vmem>>, vector<16x16x4xf32>
    %87 = vector.shape_cast %86 : vector<16x16x4xf32> to vector<256x4xf32>
    %88 = tpu.concatenate %71, %73, %75, %77, %79, %81, %83, %85, %87 in 1 : vector<256x4xf32>, vector<256x4xf32>, vector<256x4xf32>, vector<256x4xf32>, vector<256x4xf32>, vector<256x4xf32>, vector<256x4xf32>, vector<256x4xf32>, vector<256x4xf32> -> vector<256x36xf32>
    %89 = arith.truncf %88 : vector<256x36xf32> to vector<256x36xbf16>
    %c0_114 = arith.constant 0 : index
    %c0_115 = arith.constant 0 : index
    %90 = vector.load %arg6[%c0_114, %c0_115] : memref<36x32xbf16, #tpu.memory_space<vmem>>, vector<36x32xbf16>
    %cst_116 = arith.constant dense<0.000000e+00> : vector<256x32xf32>
    %91 = tpu.matmul %89, %90, %cst_116 {dimension_numbers = #tpu.dot_dimension_numbers<[1], [0], [0], [1], [0, 0, 1, 1], [], []>} : vector<256x36xbf16>, vector<36x32xbf16>, vector<256x32xf32> -> vector<256x32xf32>
    %c0_117 = arith.constant 0 : index
    %c7_118 = arith.constant 7 : index
    %c0_119 = arith.constant 0 : index
    %92 = vector.load %arg14[%c0_117, %c7_118, %c0_119] : memref<18x32x8xf32, #tpu.memory_space<vmem>>, vector<16x16x8xf32>
    %93 = vector.shape_cast %92 : vector<16x16x8xf32> to vector<256x8xf32>
    %c0_120 = arith.constant 0 : index
    %c8_121 = arith.constant 8 : index
    %c0_122 = arith.constant 0 : index
    %94 = vector.load %arg14[%c0_120, %c8_121, %c0_122] : memref<18x32x8xf32, #tpu.memory_space<vmem>>, vector<16x16x8xf32>
    %95 = vector.shape_cast %94 : vector<16x16x8xf32> to vector<256x8xf32>
    %c0_123 = arith.constant 0 : index
    %c9_124 = arith.constant 9 : index
    %c0_125 = arith.constant 0 : index
    %96 = vector.load %arg14[%c0_123, %c9_124, %c0_125] : memref<18x32x8xf32, #tpu.memory_space<vmem>>, vector<16x16x8xf32>
    %97 = vector.shape_cast %96 : vector<16x16x8xf32> to vector<256x8xf32>
    %c1_126 = arith.constant 1 : index
    %c7_127 = arith.constant 7 : index
    %c0_128 = arith.constant 0 : index
    %98 = vector.load %arg14[%c1_126, %c7_127, %c0_128] : memref<18x32x8xf32, #tpu.memory_space<vmem>>, vector<16x16x8xf32>
    %99 = vector.shape_cast %98 : vector<16x16x8xf32> to vector<256x8xf32>
    %c1_129 = arith.constant 1 : index
    %c8_130 = arith.constant 8 : index
    %c0_131 = arith.constant 0 : index
    %100 = vector.load %arg14[%c1_129, %c8_130, %c0_131] : memref<18x32x8xf32, #tpu.memory_space<vmem>>, vector<16x16x8xf32>
    %101 = vector.shape_cast %100 : vector<16x16x8xf32> to vector<256x8xf32>
    %c1_132 = arith.constant 1 : index
    %c9_133 = arith.constant 9 : index
    %c0_134 = arith.constant 0 : index
    %102 = vector.load %arg14[%c1_132, %c9_133, %c0_134] : memref<18x32x8xf32, #tpu.memory_space<vmem>>, vector<16x16x8xf32>
    %103 = vector.shape_cast %102 : vector<16x16x8xf32> to vector<256x8xf32>
    %c2_135 = arith.constant 2 : index
    %c7_136 = arith.constant 7 : index
    %c0_137 = arith.constant 0 : index
    %104 = vector.load %arg14[%c2_135, %c7_136, %c0_137] : memref<18x32x8xf32, #tpu.memory_space<vmem>>, vector<16x16x8xf32>
    %105 = vector.shape_cast %104 : vector<16x16x8xf32> to vector<256x8xf32>
    %c2_138 = arith.constant 2 : index
    %c8_139 = arith.constant 8 : index
    %c0_140 = arith.constant 0 : index
    %106 = vector.load %arg14[%c2_138, %c8_139, %c0_140] : memref<18x32x8xf32, #tpu.memory_space<vmem>>, vector<16x16x8xf32>
    %107 = vector.shape_cast %106 : vector<16x16x8xf32> to vector<256x8xf32>
    %c2_141 = arith.constant 2 : index
    %c9_142 = arith.constant 9 : index
    %c0_143 = arith.constant 0 : index
    %108 = vector.load %arg14[%c2_141, %c9_142, %c0_143] : memref<18x32x8xf32, #tpu.memory_space<vmem>>, vector<16x16x8xf32>
    %109 = vector.shape_cast %108 : vector<16x16x8xf32> to vector<256x8xf32>
    %110 = tpu.concatenate %93, %95, %97, %99, %101, %103, %105, %107, %109 in 1 : vector<256x8xf32>, vector<256x8xf32>, vector<256x8xf32>, vector<256x8xf32>, vector<256x8xf32>, vector<256x8xf32>, vector<256x8xf32>, vector<256x8xf32>, vector<256x8xf32> -> vector<256x72xf32>
    %111 = arith.truncf %110 : vector<256x72xf32> to vector<256x72xbf16>
    %c0_144 = arith.constant 0 : index
    %c0_145 = arith.constant 0 : index
    %112 = vector.load %arg7[%c0_144, %c0_145] : memref<72x32xbf16, #tpu.memory_space<vmem>>, vector<72x32xbf16>
    %cst_146 = arith.constant dense<0.000000e+00> : vector<256x32xf32>
    %113 = tpu.matmul %111, %112, %cst_146 {dimension_numbers = #tpu.dot_dimension_numbers<[1], [0], [0], [1], [0, 0, 1, 1], [], []>} : vector<256x72xbf16>, vector<72x32xbf16>, vector<256x32xf32> -> vector<256x32xf32>
    %114 = arith.addf %91, %113 : vector<256x32xf32>
    %c0_147 = arith.constant 0 : index
    %c0_148 = arith.constant 0 : index
    %115 = vector.load %arg8[%c0_147, %c0_148] : memref<1x32xf32, #tpu.memory_space<vmem>>, vector<1x32xf32>
    %116 = vector.broadcast %115 : vector<1x32xf32> to vector<256x32xf32>
    %117 = arith.addf %114, %116 : vector<256x32xf32>
    %cst_149 = arith.constant 0.000000e+00 : f32
    %118 = vector.broadcast %cst_149 : f32 to vector<256x32xf32>
    %119 = arith.maximumf %117, %118 : vector<256x32xf32>
    %120 = vector.shape_cast %119 : vector<256x32xf32> to vector<16x16x32xf32>
    %c1_150 = arith.constant 1 : index
    %c8_151 = arith.constant 8 : index
    %c0_152 = arith.constant 0 : index
    %121 = vector.load %arg15[%c1_150, %c8_151, %c0_152] : memref<18x32x32xf32, #tpu.memory_space<vmem>>, vector<16x16x32xf32>
    tpu.vector_store %arg15[%c1_150, %c8_151, %c0_152], %120 {strides = array<i32>} : memref<18x32x32xf32, #tpu.memory_space<vmem>>, vector<16x16x32xf32>,
    %c0_153 = arith.constant 0 : index
    %c7_154 = arith.constant 7 : index
    %c0_155 = arith.constant 0 : index
    %122 = vector.load %arg15[%c0_153, %c7_154, %c0_155] : memref<18x32x32xf32, #tpu.memory_space<vmem>>, vector<16x16x32xf32>
    %123 = vector.shape_cast %122 : vector<16x16x32xf32> to vector<256x32xf32>
    %c0_156 = arith.constant 0 : index
    %c8_157 = arith.constant 8 : index
    %c0_158 = arith.constant 0 : index
    %124 = vector.load %arg15[%c0_156, %c8_157, %c0_158] : memref<18x32x32xf32, #tpu.memory_space<vmem>>, vector<16x16x32xf32>
    %125 = vector.shape_cast %124 : vector<16x16x32xf32> to vector<256x32xf32>
    %c0_159 = arith.constant 0 : index
    %c9_160 = arith.constant 9 : index
    %c0_161 = arith.constant 0 : index
    %126 = vector.load %arg15[%c0_159, %c9_160, %c0_161] : memref<18x32x32xf32, #tpu.memory_space<vmem>>, vector<16x16x32xf32>
    %127 = vector.shape_cast %126 : vector<16x16x32xf32> to vector<256x32xf32>
    %c1_162 = arith.constant 1 : index
    %c7_163 = arith.constant 7 : index
    %c0_164 = arith.constant 0 : index
    %128 = vector.load %arg15[%c1_162, %c7_163, %c0_164] : memref<18x32x32xf32, #tpu.memory_space<vmem>>, vector<16x16x32xf32>
    %129 = vector.shape_cast %128 : vector<16x16x32xf32> to vector<256x32xf32>
    %c1_165 = arith.constant 1 : index
    %c8_166 = arith.constant 8 : index
    %c0_167 = arith.constant 0 : index
    %130 = vector.load %arg15[%c1_165, %c8_166, %c0_167] : memref<18x32x32xf32, #tpu.memory_space<vmem>>, vector<16x16x32xf32>
    %131 = vector.shape_cast %130 : vector<16x16x32xf32> to vector<256x32xf32>
    %c1_168 = arith.constant 1 : index
    %c9_169 = arith.constant 9 : index
    %c0_170 = arith.constant 0 : index
    %132 = vector.load %arg15[%c1_168, %c9_169, %c0_170] : memref<18x32x32xf32, #tpu.memory_space<vmem>>, vector<16x16x32xf32>
    %133 = vector.shape_cast %132 : vector<16x16x32xf32> to vector<256x32xf32>
    %c2_171 = arith.constant 2 : index
    %c7_172 = arith.constant 7 : index
    %c0_173 = arith.constant 0 : index
    %134 = vector.load %arg15[%c2_171, %c7_172, %c0_173] : memref<18x32x32xf32, #tpu.memory_space<vmem>>, vector<16x16x32xf32>
    %135 = vector.shape_cast %134 : vector<16x16x32xf32> to vector<256x32xf32>
    %c2_174 = arith.constant 2 : index
    %c8_175 = arith.constant 8 : index
    %c0_176 = arith.constant 0 : index
    %136 = vector.load %arg15[%c2_174, %c8_175, %c0_176] : memref<18x32x32xf32, #tpu.memory_space<vmem>>, vector<16x16x32xf32>
    %137 = vector.shape_cast %136 : vector<16x16x32xf32> to vector<256x32xf32>
    %c2_177 = arith.constant 2 : index
    %c9_178 = arith.constant 9 : index
    %c0_179 = arith.constant 0 : index
    %138 = vector.load %arg15[%c2_177, %c9_178, %c0_179] : memref<18x32x32xf32, #tpu.memory_space<vmem>>, vector<16x16x32xf32>
    %139 = vector.shape_cast %138 : vector<16x16x32xf32> to vector<256x32xf32>
    %140 = tpu.concatenate %123, %125, %127, %129, %131, %133, %135, %137, %139 in 1 : vector<256x32xf32>, vector<256x32xf32>, vector<256x32xf32>, vector<256x32xf32>, vector<256x32xf32>, vector<256x32xf32>, vector<256x32xf32>, vector<256x32xf32>, vector<256x32xf32> -> vector<256x288xf32>
    %141 = arith.truncf %140 : vector<256x288xf32> to vector<256x288xbf16>
    %c0_180 = arith.constant 0 : index
    %c0_181 = arith.constant 0 : index
    %142 = vector.load %arg9[%c0_180, %c0_181] : memref<288x4xbf16, #tpu.memory_space<vmem>>, vector<288x4xbf16>
    %cst_182 = arith.constant dense<0.000000e+00> : vector<256x4xf32>
    %143 = tpu.matmul %141, %142, %cst_182 {dimension_numbers = #tpu.dot_dimension_numbers<[1], [0], [0], [1], [0, 0, 1, 1], [], []>} : vector<256x288xbf16>, vector<288x4xbf16>, vector<256x4xf32> -> vector<256x4xf32>
    %c0_183 = arith.constant 0 : index
    %c0_184 = arith.constant 0 : index
    %144 = vector.load %arg10[%c0_183, %c0_184] : memref<1x4xf32, #tpu.memory_space<vmem>>, vector<1x4xf32>
    %145 = vector.broadcast %144 : vector<1x4xf32> to vector<256x4xf32>
    %146 = arith.addf %143, %145 : vector<256x4xf32>
    %147 = arith.addf %146, %2 : vector<256x4xf32>
    %148 = vector.shape_cast %147 : vector<256x4xf32> to vector<16x16x4xf32>
    %c0_185 = arith.constant 0 : index
    %c0_186 = arith.constant 0 : index
    %c0_187 = arith.constant 0 : index
    %c0_188 = arith.constant 0 : index
    %149 = vector.load %arg11[%c0_185, %c0_186, %c0_187, %c0_188] : memref<1x16x16x4xf32, #tpu.memory_space<vmem>>, vector<1x16x16x4xf32>
    %150 = vector.shape_cast %149 : vector<1x16x16x4xf32> to vector<16x16x4xf32>
    %151 = vector.shape_cast %148 : vector<16x16x4xf32> to vector<1x16x16x4xf32>
    tpu.vector_store %arg11[%c0_185, %c0_186, %c0_187, %c0_188], %151 {strides = array<i32>} : memref<1x16x16x4xf32, #tpu.memory_space<vmem>>, vector<1x16x16x4xf32>,
    return
  }
  func.func @transform_0(%arg0: i32) -> (i32, i32, i32, i32) {
    %c0_i32 = arith.constant 0 : i32
    %c0_i32_0 = arith.constant 0 : i32
    %c0_i32_1 = arith.constant 0 : i32
    %c0_i32_2 = arith.constant 0 : i32
    return %arg0, %c0_i32, %c0_i32_0, %c0_i32_1 : i32, i32, i32, i32
  }
  func.func @transform_1(%arg0: i32) -> (i32, i32) {
    %c0_i32 = arith.constant 0 : i32
    %c0_i32_0 = arith.constant 0 : i32
    %c0_i32_1 = arith.constant 0 : i32
    return %c0_i32, %c0_i32_0 : i32, i32
  }
  func.func @transform_2(%arg0: i32) -> (i32, i32) {
    %c0_i32 = arith.constant 0 : i32
    %c0_i32_0 = arith.constant 0 : i32
    %c0_i32_1 = arith.constant 0 : i32
    return %c0_i32, %c0_i32_0 : i32, i32
  }
  func.func @transform_3(%arg0: i32) -> (i32, i32) {
    %c0_i32 = arith.constant 0 : i32
    %c0_i32_0 = arith.constant 0 : i32
    %c0_i32_1 = arith.constant 0 : i32
    return %c0_i32, %c0_i32_0 : i32, i32
  }
  func.func @transform_4(%arg0: i32) -> (i32, i32) {
    %c0_i32 = arith.constant 0 : i32
    %c0_i32_0 = arith.constant 0 : i32
    %c0_i32_1 = arith.constant 0 : i32
    return %c0_i32, %c0_i32_0 : i32, i32
  }
  func.func @transform_5(%arg0: i32) -> (i32, i32) {
    %c0_i32 = arith.constant 0 : i32
    %c0_i32_0 = arith.constant 0 : i32
    %c0_i32_1 = arith.constant 0 : i32
    return %c0_i32, %c0_i32_0 : i32, i32
  }
  func.func @transform_6(%arg0: i32) -> (i32, i32) {
    %c0_i32 = arith.constant 0 : i32
    %c0_i32_0 = arith.constant 0 : i32
    %c0_i32_1 = arith.constant 0 : i32
    return %c0_i32, %c0_i32_0 : i32, i32
  }
  func.func @transform_7(%arg0: i32) -> (i32, i32) {
    %c0_i32 = arith.constant 0 : i32
    %c0_i32_0 = arith.constant 0 : i32
    %c0_i32_1 = arith.constant 0 : i32
    return %c0_i32, %c0_i32_0 : i32, i32
  }
  func.func @transform_8(%arg0: i32) -> (i32, i32) {
    %c0_i32 = arith.constant 0 : i32
    %c0_i32_0 = arith.constant 0 : i32
    %c0_i32_1 = arith.constant 0 : i32
    return %c0_i32, %c0_i32_0 : i32, i32
  }
  func.func @transform_9(%arg0: i32) -> (i32, i32) {
    %c0_i32 = arith.constant 0 : i32
    %c0_i32_0 = arith.constant 0 : i32
    %c0_i32_1 = arith.constant 0 : i32
    return %c0_i32, %c0_i32_0 : i32, i32
  }
  func.func @transform_10(%arg0: i32) -> (i32, i32, i32, i32) {
    %c0_i32 = arith.constant 0 : i32
    %c0_i32_0 = arith.constant 0 : i32
    %c0_i32_1 = arith.constant 0 : i32
    %c0_i32_2 = arith.constant 0 : i32
    return %arg0, %c0_i32, %c0_i32_0, %c0_i32_1 : i32, i32, i32, i32
  }
  func.func @transform_11(%arg0: i32) -> (i32, i32, i32, i32) {
    %c0_i32 = arith.constant 0 : i32
    %c0_i32_0 = arith.constant 0 : i32
    %c0_i32_1 = arith.constant 0 : i32
    %c0_i32_2 = arith.constant 0 : i32
    return %arg0, %c0_i32, %c0_i32_0, %c0_i32_1 : i32, i32, i32, i32
  }
}

</mosaic_0001>

<llo_original>
// kernel: deblur_sr_resdnet_forward.1
$region0: #{deblur_sr_resdnet_forward.1}
  #allocation0 [shape = 'u32[]', space=smem, size = 0x4, offset = 0x4, fixed_abs, tag = 'smem constant byte address 0x4 - core index']
  #allocation1 [shape = 'u32[72,128]{1,0:T(1,128)}', space=vmem, size = 0x9000, scoped, tag = 'internal scratch']
  #allocation2 [shape = 'f32[18,32,4]{2,1,0:T(8,128)}', space=vmem, size = 0x48000, scoped, tag = 'scratch operand']
  #allocation3 [shape = 'f32[18,32,8]{2,1,0:T(8,128)}', space=vmem, size = 0x48000, scoped, tag = 'scratch operand']
  #allocation4 [shape = 'f32[18,32,32]{2,1,0:T(8,128)}', space=vmem, size = 0x48000, scoped, tag = 'scratch operand']
  %s0 = inlined_call_operand.vmem [shape: f32[2,16,16,4], index: 0, kind: input, shape index: {}]
  %s1 = inlined_call_operand.vmem [shape: bf16[36,32], index: 1, kind: input, shape index: {}]
  %s2 = inlined_call_operand.vmem [shape: f32[1,32], index: 2, kind: input, shape index: {}]
  %s3 = inlined_call_operand.vmem [shape: bf16[288,8], index: 3, kind: input, shape index: {}]
  %s4 = inlined_call_operand.vmem [shape: f32[1,8], index: 4, kind: input, shape index: {}]
  %s5 = inlined_call_operand.vmem [shape: bf16[36,32], index: 5, kind: input, shape index: {}]
  %s6 = inlined_call_operand.vmem [shape: bf16[72,32], index: 6, kind: input, shape index: {}]
  %s7 = inlined_call_operand.vmem [shape: f32[1,32], index: 7, kind: input, shape index: {}]
  %s8 = inlined_call_operand.vmem [shape: bf16[288,4], index: 8, kind: input, shape index: {}]
  %s9 = inlined_call_operand.vmem [shape: f32[1,4], index: 9, kind: input, shape index: {}]
  %s10 = inlined_call_operand.vmem [shape: f32[2,16,16,4], index: 10, kind: output, shape index: {0}]
  %s11 = inlined_call_operand.vmem [shape: f32[2,16,16,8], index: 11, kind: output, shape index: {1}]
  %12 = xla_tuple %s10, %s11
  %s13 = sld [smem:[#allocation0]]
  $region81: #{deblur_sr_resdnet_forward.1} parent=0
    _
  %s15 = ssub.s32 1, %s13
  %s16 = scalar_select 0, %s15, %s13
  loop: start=0, step=1, limit=4
  $region2: #{deblur_sr_resdnet_forward.1} parent=0 // loop_pre_header
    _
  $region3: #{deblur_sr_resdnet_forward.1} parent=0 // loop_header
    %s18 = sphi 0, %s22
    %p19 = scmp.ge.s32.totalorder %s18, 4
    %s28 = sphi 0, %s30
    %s31 = sphi 0, %s28
    %s32 = sphi 0, %s31
    %s48 = sphi 0, %s32
    %s52 = sphi 0, %s52
    %s54 = sphi 0, %s52
    %s55 = sphi 0, %s54
    %s69 = sphi 0, %s55
    %s73 = sphi 0, %s73
    %s75 = sphi 0, %s73
    %s76 = sphi 0, %s75
    %s90 = sphi 0, %s76
    %s94 = sphi 0, %s94
    %s96 = sphi 0, %s94
    %s97 = sphi 0, %s96
    %s111 = sphi 0, %s97
    %s115 = sphi 0, %s115
    %s117 = sphi 0, %s115
    %s118 = sphi 0, %s117
    %s132 = sphi 0, %s118
    %s136 = sphi 0, %s136
    %s138 = sphi 0, %s136
    %s139 = sphi 0, %s138
    %s153 = sphi 0, %s139
    %s157 = sphi 0, %s157
    %s159 = sphi 0, %s157
    %s160 = sphi 0, %s159
    %s174 = sphi 0, %s160
    %s178 = sphi 0, %s178
    %s180 = sphi 0, %s178
    %s181 = sphi 0, %s180
    %s195 = sphi 0, %s181
    %s199 = sphi 0, %s199
    %s201 = sphi 0, %s199
    %s202 = sphi 0, %s201
    %s216 = sphi 0, %s202
    %s220 = sphi 0, %s220
    %s222 = sphi 0, %s220
    %s223 = sphi 0, %s222
    %s237 = sphi 0, %s223
    %s243 = sphi 0, %s245
    %s246 = sphi 0, %s243
    %s247 = sphi 0, %s246
    %s263 = sphi 0, %s247
    %s269 = sphi 0, %s271
    %s272 = sphi 0, %s269
    %s273 = sphi 0, %s272
    %s289 = sphi 0, %s273
  $region4: #{deblur_sr_resdnet_forward.1} parent=0 // loop_header_branch
    %21 = sbr.rel (%p19) target = $region8
  $region5: #{deblur_sr_resdnet_forward.1} parent=0 // loop_body
    %s23 = ssub.s32 %s18, 1
    %s24 = ssub.s32 %s18, 2
    %s25 = sadd.s32 %s18, 1
    %s26 = ssub.s32 %s18, %s25
    %p27 = scmp.eq.s32.totalorder %s26, 0
    %s29 = sadd.s32 %s28, 1
    %s30 = scalar_select %p27, %s28, %s29
    %p33 = pneg %p27
    %p34 = scmp.eq.s32.totalorder %s18, 1
    %p35 = por %p33, %p34
    %p36 = scmp.ne.s32.totalorder %s28, %s31
    %p37 = scmp.eq.s32.totalorder %s18, 0
    %p38 = por %p36, %p37
    %p39 = scmp.ne.s32.totalorder %s28, %s31
    %p40 = scmp.eq.s32.totalorder %s23, 1
    %p41 = por %p39, %p40
    %p42 = scmp.ne.s32.totalorder %s31, %s32
    %p43 = scmp.eq.s32.totalorder %s23, 0
    %p44 = por %p42, %p43
    %p45 = scmp.ne.s32.totalorder %s31, %s32
    %p46 = scmp.eq.s32.totalorder %s24, 1
    %p47 = por %p45, %p46
    %p49 = scmp.ne.s32.totalorder %s32, %s48
    %p50 = scmp.eq.s32.totalorder %s24, 0
    %p51 = por %p49, %p50
    %s53 = sadd.s32 %s52, 1
    %p56 = scmp.eq.s32.totalorder %s18, 1
    %p57 = scmp.ne.s32.totalorder %s52, %s54
    %p58 = scmp.eq.s32.totalorder %s18, 0
    %p59 = por %p57, %p58
    %p60 = scmp.ne.s32.totalorder %s52, %s54
    %p61 = scmp.eq.s32.totalorder %s23, 1
    %p62 = por %p60, %p61
    %p63 = scmp.ne.s32.totalorder %s54, %s55
    %p64 = scmp.eq.s32.totalorder %s23, 0
    %p65 = por %p63, %p64
    %p66 = scmp.ne.s32.totalorder %s54, %s55
    %p67 = scmp.eq.s32.totalorder %s24, 1
    %p68 = por %p66, %p67
    %p70 = scmp.ne.s32.totalorder %s55, %s69
    %p71 = scmp.eq.s32.totalorder %s24, 0
    %p72 = por %p70, %p71
    %s74 = sadd.s32 %s73, 1
    %p77 = scmp.eq.s32.totalorder %s18, 1
    %p78 = scmp.ne.s32.totalorder %s73, %s75
    %p79 = scmp.eq.s32.totalorder %s18, 0
    %p80 = por %p78, %p79
    %p81 = scmp.ne.s32.totalorder %s73, %s75
    %p82 = scmp.eq.s32.totalorder %s23, 1
    %p83 = por %p81, %p82
    %p84 = scmp.ne.s32.totalorder %s75, %s76
    %p85 = scmp.eq.s32.totalorder %s23, 0
    %p86 = por %p84, %p85
    %p87 = scmp.ne.s32.totalorder %s75, %s76
    %p88 = scmp.eq.s32.totalorder %s24, 1
    %p89 = por %p87, %p88
    %p91 = scmp.ne.s32.totalorder %s76, %s90
    %p92 = scmp.eq.s32.totalorder %s24, 0
    %p93 = por %p91, %p92
    %s95 = sadd.s32 %s94, 1
    %p98 = scmp.eq.s32.totalorder %s18, 1
    %p99 = scmp.ne.s32.totalorder %s94, %s96
    %p100 = scmp.eq.s32.totalorder %s18, 0
    %p101 = por %p99, %p100
    %p102 = scmp.ne.s32.totalorder %s94, %s96
    %p103 = scmp.eq.s32.totalorder %s23, 1
    %p104 = por %p102, %p103
    %p105 = scmp.ne.s32.totalorder %s96, %s97
    %p106 = scmp.eq.s32.totalorder %s23, 0
    %p107 = por %p105, %p106
    %p108 = scmp.ne.s32.totalorder %s96, %s97
    %p109 = scmp.eq.s32.totalorder %s24, 1
    %p110 = por %p108, %p109
    %p112 = scmp.ne.s32.totalorder %s97, %s111
    %p113 = scmp.eq.s32.totalorder %s24, 0
    %p114 = por %p112, %p113
    %s116 = sadd.s32 %s115, 1
    %p119 = scmp.eq.s32.totalorder %s18, 1
    %p120 = scmp.ne.s32.totalorder %s115, %s117
    %p121 = scmp.eq.s32.totalorder %s18, 0
    %p122 = por %p120, %p121
    %p123 = scmp.ne.s32.totalorder %s115, %s117
    %p124 = scmp.eq.s32.totalorder %s23, 1
    %p125 = por %p123, %p124
    %p126 = scmp.ne.s32.totalorder %s117, %s118
    %p127 = scmp.eq.s32.totalorder %s23, 0
    %p128 = por %p126, %p127
    %p129 = scmp.ne.s32.totalorder %s117, %s118
    %p130 = scmp.eq.s32.totalorder %s24, 1
    %p131 = por %p129, %p130
    %p133 = scmp.ne.s32.totalorder %s118, %s132
    %p134 = scmp.eq.s32.totalorder %s24, 0
    %p135 = por %p133, %p134
    %s137 = sadd.s32 %s136, 1
    %p140 = scmp.eq.s32.totalorder %s18, 1
    %p141 = scmp.ne.s32.totalorder %s136, %s138
    %p142 = scmp.eq.s32.totalorder %s18, 0
    %p143 = por %p141, %p142
    %p144 = scmp.ne.s32.totalorder %s136, %s138
    %p145 = scmp.eq.s32.totalorder %s23, 1
    %p146 = por %p144, %p145
    %p147 = scmp.ne.s32.totalorder %s138, %s139
    %p148 = scmp.eq.s32.totalorder %s23, 0
    %p149 = por %p147, %p148
    %p150 = scmp.ne.s32.totalorder %s138, %s139
    %p151 = scmp.eq.s32.totalorder %s24, 1
    %p152 = por %p150, %p151
    %p154 = scmp.ne.s32.totalorder %s139, %s153
    %p155 = scmp.eq.s32.totalorder %s24, 0
    %p156 = por %p154, %p155
    %s158 = sadd.s32 %s157, 1
    %p161 = scmp.eq.s32.totalorder %s18, 1
    %p162 = scmp.ne.s32.totalorder %s157, %s159
    %p163 = scmp.eq.s32.totalorder %s18, 0
    %p164 = por %p162, %p163
    %p165 = scmp.ne.s32.totalorder %s157, %s159
    %p166 = scmp.eq.s32.totalorder %s23, 1
    %p167 = por %p165, %p166
    %p168 = scmp.ne.s32.totalorder %s159, %s160
    %p169 = scmp.eq.s32.totalorder %s23, 0
    %p170 = por %p168, %p169
    %p171 = scmp.ne.s32.totalorder %s159, %s160
    %p172 = scmp.eq.s32.totalorder %s24, 1
    %p173 = por %p171, %p172
    %p175 = scmp.ne.s32.totalorder %s160, %s174
    %p176 = scmp.eq.s32.totalorder %s24, 0
    %p177 = por %p175, %p176
    %s179 = sadd.s32 %s178, 1
    %p182 = scmp.eq.s32.totalorder %s18, 1
    %p183 = scmp.ne.s32.totalorder %s178, %s180
    %p184 = scmp.eq.s32.totalorder %s18, 0
    %p185 = por %p183, %p184
    %p186 = scmp.ne.s32.totalorder %s178, %s180
    %p187 = scmp.eq.s32.totalorder %s23, 1
    %p188 = por %p186, %p187
    %p189 = scmp.ne.s32.totalorder %s180, %s181
    %p190 = scmp.eq.s32.totalorder %s23, 0
    %p191 = por %p189, %p190
    %p192 = scmp.ne.s32.totalorder %s180, %s181
    %p193 = scmp.eq.s32.totalorder %s24, 1
    %p194 = por %p192, %p193
    %p196 = scmp.ne.s32.totalorder %s181, %s195
    %p197 = scmp.eq.s32.totalorder %s24, 0
    %p198 = por %p196, %p197
    %s200 = sadd.s32 %s199, 1
    %p203 = scmp.eq.s32.totalorder %s18, 1
    %p204 = scmp.ne.s32.totalorder %s199, %s201
    %p205 = scmp.eq.s32.totalorder %s18, 0
    %p206 = por %p204, %p205
    %p207 = scmp.ne.s32.totalorder %s199, %s201
    %p208 = scmp.eq.s32.totalorder %s23, 1
    %p209 = por %p207, %p208
    %p210 = scmp.ne.s32.totalorder %s201, %s202
    %p211 = scmp.eq.s32.totalorder %s23, 0
    %p212 = por %p210, %p211
    %p213 = scmp.ne.s32.totalorder %s201, %s202
    %p214 = scmp.eq.s32.totalorder %s24, 1
    %p215 = por %p213, %p214
    %p217 = scmp.ne.s32.totalorder %s202, %s216
    %p218 = scmp.eq.s32.totalorder %s24, 0
    %p219 = por %p217, %p218
    %s221 = sadd.s32 %s220, 1
    %p224 = scmp.eq.s32.totalorder %s18, 1
    %p225 = scmp.ne.s32.totalorder %s220, %s222
    %p226 = scmp.eq.s32.totalorder %s18, 0
    %p227 = por %p225, %p226
    %p228 = scmp.ne.s32.totalorder %s220, %s222
    %p229 = scmp.eq.s32.totalorder %s23, 1
    %p230 = por %p228, %p229
    %p231 = scmp.ne.s32.totalorder %s222, %s223
    %p232 = scmp.eq.s32.totalorder %s23, 0
    %p233 = por %p231, %p232
    %p234 = scmp.ne.s32.totalorder %s222, %s223
    %p235 = scmp.eq.s32.totalorder %s24, 1
    %p236 = por %p234, %p235
    %p238 = scmp.ne.s32.totalorder %s223, %s237
    %p239 = scmp.eq.s32.totalorder %s24, 0
    %p240 = por %p238, %p239
    %s241 = ssub.s32 %s18, %s25
    %p242 = scmp.eq.s32.totalorder %s241, 0
    %s244 = sadd.s32 %s243, 1
    %s245 = scalar_select %p242, %s243, %s244
    %p248 = pneg %p242
    %p249 = scmp.eq.s32.totalorder %s18, 1
    %p250 = por %p248, %p249
    %p251 = scmp.ne.s32.totalorder %s243, %s246
    %p252 = scmp.eq.s32.totalorder %s18, 0
    %p253 = por %p251, %p252
    %p254 = scmp.ne.s32.totalorder %s243, %s246
    %p255 = scmp.eq.s32.totalorder %s23, 1
    %p256 = por %p254, %p255
    %p257 = scmp.ne.s32.totalorder %s246, %s247
    %p258 = scmp.eq.s32.totalorder %s23, 0
    %p259 = por %p257, %p258
    %p260 = scmp.ne.s32.totalorder %s246, %s247
    %p261 = scmp.eq.s32.totalorder %s24, 1
    %p262 = por %p260, %p261
    %p264 = scmp.ne.s32.totalorder %s247, %s263
    %p265 = scmp.eq.s32.totalorder %s24, 0
    %p266 = por %p264, %p265
    %s267 = ssub.s32 %s18, %s25
    %p268 = scmp.eq.s32.totalorder %s267, 0
    %s270 = sadd.s32 %s269, 1
    %s271 = scalar_select %p268, %s269, %s270
    %p274 = pneg %p268
    %p275 = scmp.eq.s32.totalorder %s18, 1
    %p276 = por %p274, %p275
    %p277 = scmp.ne.s32.totalorder %s269, %s272
    %p278 = scmp.eq.s32.totalorder %s18, 0
    %p279 = por %p277, %p278
    %p280 = scmp.ne.s32.totalorder %s269, %s272
    %p281 = scmp.eq.s32.totalorder %s23, 1
    %p282 = por %p280, %p281
    %p283 = scmp.ne.s32.totalorder %s272, %s273
    %p284 = scmp.eq.s32.totalorder %s23, 0
    %p285 = por %p283, %p284
    %p286 = scmp.ne.s32.totalorder %s272, %s273
    %p287 = scmp.eq.s32.totalorder %s24, 1
    %p288 = por %p286, %p287
    %p290 = scmp.ne.s32.totalorder %s273, %s289
    %p291 = scmp.eq.s32.totalorder %s24, 0
    %p292 = por %p290, %p291
    %p293 = scmp.le.s32.totalorder 1, %s18
    %p294 = scmp.lt.s32.totalorder %s18, 3
    %p295 = pnand %p293, %p294
    %p296 = pneg %p295
    // Predicated region
    $region9: #{deblur_sr_resdnet_forward.1} parent=5 // pred_check
      _
    $region10: #{deblur_sr_resdnet_forward.1} parent=5 // pred_check_branch
      %298 = sbr.rel (%p295) target = $region12
    $region11: #{deblur_sr_resdnet_forward.1} parent=5 // pred_region
      %s299 = ssub.s32 %s18, 1
      // Predicated region
      $region13: #{deblur_sr_resdnet_forward.1} parent=11 // pred_check
        %p300 = pneg %p65
      $region14: #{deblur_sr_resdnet_forward.1} parent=11 // pred_check_branch
        %302 = sbr.rel (%p300) target = $region16
      $region15: #{deblur_sr_resdnet_forward.1} parent=11 // pred_region
        _
      $region16: #{deblur_sr_resdnet_forward.1} parent=11 // pred_fallthru
        _
      // Predicated region
      $region17: #{deblur_sr_resdnet_forward.1} parent=11 // pred_check
        %p303 = pneg %p86
      $region18: #{deblur_sr_resdnet_forward.1} parent=11 // pred_check_branch
        %305 = sbr.rel (%p303) target = $region20
      $region19: #{deblur_sr_resdnet_forward.1} parent=11 // pred_region
        _
      $region20: #{deblur_sr_resdnet_forward.1} parent=11 // pred_fallthru
        _
      // Predicated region
      $region21: #{deblur_sr_resdnet_forward.1} parent=11 // pred_check
        %p306 = pneg %p107
      $region22: #{deblur_sr_resdnet_forward.1} parent=11 // pred_check_branch
        %308 = sbr.rel (%p306) target = $region24
      $region23: #{deblur_sr_resdnet_forward.1} parent=11 // pred_region
        _
      $region24: #{deblur_sr_resdnet_forward.1} parent=11 // pred_fallthru
        _
      // Predicated region
      $region25: #{deblur_sr_resdnet_forward.1} parent=11 // pred_check
        %p309 = pneg %p128
      $region26: #{deblur_sr_resdnet_forward.1} parent=11 // pred_check_branch
        %311 = sbr.rel (%p309) target = $region28
      $region27: #{deblur_sr_resdnet_forward.1} parent=11 // pred_region
        _
      $region28: #{deblur_sr_resdnet_forward.1} parent=11 // pred_fallthru
        _
      // Predicated region
      $region29: #{deblur_sr_resdnet_forward.1} parent=11 // pred_check
        %p312 = pneg %p149
      $region30: #{deblur_sr_resdnet_forward.1} parent=11 // pred_check_branch
        %314 = sbr.rel (%p312) target = $region32
      $region31: #{deblur_sr_resdnet_forward.1} parent=11 // pred_region
        _
      $region32: #{deblur_sr_resdnet_forward.1} parent=11 // pred_fallthru
        _
      // Predicated region
      $region33: #{deblur_sr_resdnet_forward.1} parent=11 // pred_check
        %p315 = pneg %p170
      $region34: #{deblur_sr_resdnet_forward.1} parent=11 // pred_check_branch
        %317 = sbr.rel (%p315) target = $region36
      $region35: #{deblur_sr_resdnet_forward.1} parent=11 // pred_region
        _
      $region36: #{deblur_sr_resdnet_forward.1} parent=11 // pred_fallthru
        _
      // Predicated region
      $region37: #{deblur_sr_resdnet_forward.1} parent=11 // pred_check
        %p318 = pneg %p191
      $region38: #{deblur_sr_resdnet_forward.1} parent=11 // pred_check_branch
        %320 = sbr.rel (%p318) target = $region40
      $region39: #{deblur_sr_resdnet_forward.1} parent=11 // pred_region
        _
      $region40: #{deblur_sr_resdnet_forward.1} parent=11 // pred_fallthru
        _
      // Predicated region
      $region41: #{deblur_sr_resdnet_forward.1} parent=11 // pred_check
        %p321 = pneg %p212
      $region42: #{deblur_sr_resdnet_forward.1} parent=11 // pred_check_branch
        %323 = sbr.rel (%p321) target = $region44
      $region43: #{deblur_sr_resdnet_forward.1} parent=11 // pred_region
        _
      $region44: #{deblur_sr_resdnet_forward.1} parent=11 // pred_fallthru
        _
      // Predicated region
      $region45: #{deblur_sr_resdnet_forward.1} parent=11 // pred_check
        %p324 = pneg %p233
      $region46: #{deblur_sr_resdnet_forward.1} parent=11 // pred_check_branch
        %326 = sbr.rel (%p324) target = $region48
      $region47: #{deblur_sr_resdnet_forward.1} parent=11 // pred_region
        _
      $region48: #{deblur_sr_resdnet_forward.1} parent=11 // pred_fallthru
        _
    $region12: #{deblur_sr_resdnet_forward.1} parent=5 // pred_fallthru
      _
    %p327 = scmp.lt.s32.totalorder %s18, 2
    // Predicated region
    $region49: #{deblur_sr_resdnet_forward.1} parent=5 // pred_check
      %p328 = pneg %p327
    $region50: #{deblur_sr_resdnet_forward.1} parent=5 // pred_check_branch
      %330 = sbr.rel (%p328) target = $region52
    $region51: #{deblur_sr_resdnet_forward.1} parent=5 // pred_region
      // Predicated region
      $region53: #{deblur_sr_resdnet_forward.1} parent=51 // pred_check
        %p331 = pneg %p38
      $region54: #{deblur_sr_resdnet_forward.1} parent=51 // pred_check_branch
        %333 = sbr.rel (%p331) target = $region56
      $region55: #{deblur_sr_resdnet_forward.1} parent=51 // pred_region
        %p334 = scmp.lt.s32.totalorder %s18, 1
        %s335 = scalar_select %p334, %s18, 1
        %s336 = smul.addr %s335, 32
        %s337 = smul.addr %s336, 8
        %s338 = scalar_lea.vmem %s0, %s337
      $region56: #{deblur_sr_resdnet_forward.1} parent=51 // pred_fallthru
        _
    $region52: #{deblur_sr_resdnet_forward.1} parent=5 // pred_fallthru
      _
    %p339 = scmp.le.s32.totalorder 1, %s18
    %p340 = scmp.lt.s32.totalorder %s18, 3
    %p341 = pnand %p339, %p340
    %p342 = pneg %p341
    // Predicated region
    $region57: #{deblur_sr_resdnet_forward.1} parent=5 // pred_check
      _
    $region58: #{deblur_sr_resdnet_forward.1} parent=5 // pred_check_branch
      %344 = sbr.rel (%p341) target = $region60
    $region59: #{deblur_sr_resdnet_forward.1} parent=5 // pred_region
      %s345 = ssub.s32 %s18, 1
      %p346 = scmp.lt.s32.totalorder %s23, 1
      %s347 = scalar_select %p346, %s23, 1
      %s348 = smul.addr %s347, 32
      %s349 = smul.addr %s348, 8
      %s350 = scalar_lea.vmem %s0, %s349
      %p351 = pneg %p44
      %p352 = pneg %p41
      %p353 = pneg %p65
      %p354 = pneg %p62
      %p355 = pneg %p86
      %p356 = pneg %p83
      %p357 = pneg %p107
      %p358 = pneg %p104
      %p359 = pneg %p128
      %p360 = pneg %p125
      %p361 = pneg %p149
      %p362 = pneg %p146
      %p363 = pneg %p170
      %p364 = pneg %p167
      %p365 = pneg %p191
      %p366 = pneg %p188
      %p367 = pneg %p212
      %p368 = pneg %p209
      %p369 = pneg %p233
      %p370 = pneg %p230
      %p371 = pneg %p259
      %p372 = pneg %p256
      %p373 = scmp.lt.s32.totalorder %s23, 1
      %s374 = scalar_select %p373, %s23, 1
      %s375 = smul.addr %s374, 32
      %s376 = smul.addr %s375, 8
      %s377 = scalar_lea.vmem %s10, %s376
      %p378 = pneg %p285
      %p379 = pneg %p282
      %p380 = scmp.lt.s32.totalorder %s23, 1
      %s381 = scalar_select %p380, %s23, 1
      %s382 = smul.addr %s381, 32
      %s383 = smul.addr %s382, 8
      %s384 = scalar_lea.vmem %s11, %s383
      %p385 = scmp.lt.s32.totalorder %s23, 1
      %s386 = scalar_select %p385, %s23, 1
      %s387 = smul.addr %s386, 32
      %s388 = smul.addr %s387, 8
      %s389 = scalar_lea.vmem %s0, %s388
      %p390 = scmp.lt.s32.totalorder %s23, 1
      %s391 = scalar_select %p390, %s23, 1
      %s392 = smul.addr %s391, 32
      %s393 = smul.addr %s392, 8
      %s394 = scalar_lea.vmem %s10, %s393
      %p395 = scmp.lt.s32.totalorder %s23, 1
      %s396 = scalar_select %p395, %s23, 1
      %s397 = smul.addr %s396, 32
      %s398 = smul.addr %s397, 8
      %s399 = scalar_lea.vmem %s11, %s398
      %v401 = vld [vmem:[%s389] sm:$0xff]
      %v402 = vld [vmem:[%s389 + $0x8] sm:$0xff]
      %v403 = vld [vmem:[%s389 + $0x10] sm:$0xff]
      %v404 = vld [vmem:[%s389 + $0x18] sm:$0xff]
      %v405 = vld [vmem:[%s389 + $0x20] sm:$0xff]
      %v406 = vld [vmem:[%s389 + $0x28] sm:$0xff]
      %v407 = vld [vmem:[%s389 + $0x30] sm:$0xff]
      %v408 = vld [vmem:[%s389 + $0x38] sm:$0xff]
      %v409 = vld [vmem:[%s389 + $0x40] sm:$0xff]
      %v410 = vld [vmem:[%s389 + $0x48] sm:$0xff]
      %v411 = vld [vmem:[%s389 + $0x50] sm:$0xff]
      %v412 = vld [vmem:[%s389 + $0x58] sm:$0xff]
      %v413 = vld [vmem:[%s389 + $0x60] sm:$0xff]
      %v414 = vld [vmem:[%s389 + $0x68] sm:$0xff]
      %v415 = vld [vmem:[%s389 + $0x70] sm:$0xff]
      %v416 = vld [vmem:[%s389 + $0x78] sm:$0xff]
      %v417 = vld [vmem:[%s389 + $0x80] sm:$0xff]
      %v418 = vld [vmem:[%s389 + $0x88] sm:$0xff]
      %v419 = vld [vmem:[%s389 + $0x90] sm:$0xff]
      %v420 = vld [vmem:[%s389 + $0x98] sm:$0xff]
      %v421 = vld [vmem:[%s389 + $0xa0] sm:$0xff]
      %v422 = vld [vmem:[%s389 + $0xa8] sm:$0xff]
      %v423 = vld [vmem:[%s389 + $0xb0] sm:$0xff]
      %v424 = vld [vmem:[%s389 + $0xb8] sm:$0xff]
      %v425 = vld [vmem:[%s389 + $0xc0] sm:$0xff]
      %v426 = vld [vmem:[%s389 + $0xc8] sm:$0xff]
      %v427 = vld [vmem:[%s389 + $0xd0] sm:$0xff]
      %v428 = vld [vmem:[%s389 + $0xd8] sm:$0xff]
      %v429 = vld [vmem:[%s389 + $0xe0] sm:$0xff]
      %v430 = vld [vmem:[%s389 + $0xe8] sm:$0xff]
      %v431 = vld [vmem:[%s389 + $0xf0] sm:$0xff]
      %v432 = vld [vmem:[%s389 + $0xf8] sm:$0xff]
      %vm433 = vcmask 31744
      %434 = vst.msk [vmem:[#allocation2] sm:$0xff] %vm433, 0.0
      %435 = vst.msk [vmem:[#allocation2 + $0x8] sm:$0xff] %vm433, 0.0
      %436 = vst.msk [vmem:[#allocation2 + $0x10] sm:$0xff] %vm433, 0.0
      %437 = vst.msk [vmem:[#allocation2 + $0x18] sm:$0xff] %vm433, 0.0
      %438 = vst.msk [vmem:[#allocation2 + $0x20] sm:$0xff] %vm433, 0.0
      %439 = vst.msk [vmem:[#allocation2 + $0x28] sm:$0xff] %vm433, 0.0
      %440 = vst.msk [vmem:[#allocation2 + $0x30] sm:$0xff] %vm433, 0.0
      %441 = vst.msk [vmem:[#allocation2 + $0x38] sm:$0xff] %vm433, 0.0
      %442 = vst.msk [vmem:[#allocation2 + $0x40] sm:$0xff] %vm433, 0.0
      %443 = vst.msk [vmem:[#allocation2 + $0x48] sm:$0xff] %vm433, 0.0
      %444 = vst.msk [vmem:[#allocation2 + $0x50] sm:$0xff] %vm433, 0.0
      %445 = vst.msk [vmem:[#allocation2 + $0x58] sm:$0xff] %vm433, 0.0
      %446 = vst.msk [vmem:[#allocation2 + $0x60] sm:$0xff] %vm433, 0.0
      %447 = vst.msk [vmem:[#allocation2 + $0x68] sm:$0xff] %vm433, 0.0
      %448 = vst.msk [vmem:[#allocation2 + $0x70] sm:$0xff] %vm433, 0.0
      %449 = vst.msk [vmem:[#allocation2 + $0x78] sm:$0xff] %vm433, 0.0
      %450 = vst.msk [vmem:[#allocation2 + $0x80] sm:$0xff] %vm433, 0.0
      %451 = vst.msk [vmem:[#allocation2 + $0x88] sm:$0xff] %vm433, 0.0
      %452 = vst.msk [vmem:[#allocation2 + $0x90] sm:$0xff] %vm433, 0.0
      %453 = vst.msk [vmem:[#allocation2 + $0x98] sm:$0xff] %vm433, 0.0
      %454 = vst.msk [vmem:[#allocation2 + $0xa0] sm:$0xff] %vm433, 0.0
      %455 = vst.msk [vmem:[#allocation2 + $0xa8] sm:$0xff] %vm433, 0.0
      %456 = vst.msk [vmem:[#allocation2 + $0xb0] sm:$0xff] %vm433, 0.0
      %457 = vst.msk [vmem:[#allocation2 + $0xb8] sm:$0xff] %vm433, 0.0
      %458 = vst.msk [vmem:[#allocation2 + $0xc0] sm:$0xff] %vm433, 0.0
      %459 = vst.msk [vmem:[#allocation2 + $0xc8] sm:$0xff] %vm433, 0.0
      %460 = vst.msk [vmem:[#allocation2 + $0xd0] sm:$0xff] %vm433, 0.0
      %461 = vst.msk [vmem:[#allocation2 + $0xd8] sm:$0xff] %vm433, 0.0
      %462 = vst.msk [vmem:[#allocation2 + $0xe0] sm:$0xff] %vm433, 0.0
      %463 = vst.msk [vmem:[#allocation2 + $0xe8] sm:$0xff] %vm433, 0.0
      %464 = vst.msk [vmem:[#allocation2 + $0xf0] sm:$0xff] %vm433, 0.0
      %465 = vst.msk [vmem:[#allocation2 + $0xf8] sm:$0xff] %vm433, 0.0
      %466 = vst.msk [vmem:[#allocation2 + $0x100] sm:$0xff] %vm433, 0.0
      %467 = vst.msk [vmem:[#allocation2 + $0x108] sm:$0xff] %vm433, 0.0
      %468 = vst.msk [vmem:[#allocation2 + $0x110] sm:$0xff] %vm433, 0.0
      %469 = vst.msk [vmem:[#allocation2 + $0x118] sm:$0xff] %vm433, 0.0
      %470 = vst.msk [vmem:[#allocation2 + $0x120] sm:$0xff] %vm433, 0.0
      %471 = vst.msk [vmem:[#allocation2 + $0x128] sm:$0xff] %vm433, 0.0
      %472 = vst.msk [vmem:[#allocation2 + $0x130] sm:$0xff] %vm433, 0.0
      %473 = vst.msk [vmem:[#allocation2 + $0x138] sm:$0xff] %vm433, 0.0
      %474 = vst.msk [vmem:[#allocation2 + $0x140] sm:$0xff] %vm433, 0.0
      %475 = vst.msk [vmem:[#allocation2 + $0x148] sm:$0xff] %vm433, 0.0
      %476 = vst.msk [vmem:[#allocation2 + $0x150] sm:$0xff] %vm433, 0.0
      %477 = vst.msk [vmem:[#allocation2 + $0x158] sm:$0xff] %vm433, 0.0
      %478 = vst.msk [vmem:[#allocation2 + $0x160] sm:$0xff] %vm433, 0.0
      %479 = vst.msk [vmem:[#allocation2 + $0x168] sm:$0xff] %vm433, 0.0
      %480 = vst.msk [vmem:[#allocation2 + $0x170] sm:$0xff] %vm433, 0.0
      %481 = vst.msk [vmem:[#allocation2 + $0x178] sm:$0xff] %vm433, 0.0
      %482 = vst.msk [vmem:[#allocation2 + $0x180] sm:$0xff] %vm433, 0.0
      %483 = vst.msk [vmem:[#allocation2 + $0x188] sm:$0xff] %vm433, 0.0
      %484 = vst.msk [vmem:[#allocation2 + $0x190] sm:$0xff] %vm433, 0.0
      %485 = vst.msk [vmem:[#allocation2 + $0x198] sm:$0xff] %vm433, 0.0
      %486 = vst.msk [vmem:[#allocation2 + $0x1a0] sm:$0xff] %vm433, 0.0
      %487 = vst.msk [vmem:[#allocation2 + $0x1a8] sm:$0xff] %vm433, 0.0
      %488 = vst.msk [vmem:[#allocation2 + $0x1b0] sm:$0xff] %vm433, 0.0
      %489 = vst.msk [vmem:[#allocation2 + $0x1b8] sm:$0xff] %vm433, 0.0
      %490 = vst.msk [vmem:[#allocation2 + $0x1c0] sm:$0xff] %vm433, 0.0
      %491 = vst.msk [vmem:[#allocation2 + $0x1c8] sm:$0xff] %vm433, 0.0
      %492 = vst.msk [vmem:[#allocation2 + $0x1d0] sm:$0xff] %vm433, 0.0
      %493 = vst.msk [vmem:[#allocation2 + $0x1d8] sm:$0xff] %vm433, 0.0
      %494 = vst.msk [vmem:[#allocation2 + $0x1e0] sm:$0xff] %vm433, 0.0
      %495 = vst.msk [vmem:[#allocation2 + $0x1e8] sm:$0xff] %vm433, 0.0
      %496 = vst.msk [vmem:[#allocation2 + $0x1f0] sm:$0xff] %vm433, 0.0
      %497 = vst.msk [vmem:[#allocation2 + $0x1f8] sm:$0xff] %vm433, 0.0
      %498 = vst.msk [vmem:[#allocation2 + $0x200] sm:$0xff] %vm433, 0.0
      %499 = vst.msk [vmem:[#allocation2 + $0x208] sm:$0xff] %vm433, 0.0
      %500 = vst.msk [vmem:[#allocation2 + $0x210] sm:$0xff] %vm433, 0.0
      %501 = vst.msk [vmem:[#allocation2 + $0x218] sm:$0xff] %vm433, 0.0
      %502 = vst.msk [vmem:[#allocation2 + $0x220] sm:$0xff] %vm433, 0.0
      %503 = vst.msk [vmem:[#allocation2 + $0x228] sm:$0xff] %vm433, 0.0
      %504 = vst.msk [vmem:[#allocation2 + $0x230] sm:$0xff] %vm433, 0.0
      %505 = vst.msk [vmem:[#allocation2 + $0x238] sm:$0xff] %vm433, 0.0
      %vm506 = vcmask 64512
      %507 = vst.msk [vmem:[#allocation3] sm:$0xff] %vm506, 0.0
      %508 = vst.msk [vmem:[#allocation3 + $0x8] sm:$0xff] %vm506, 0.0
      %509 = vst.msk [vmem:[#allocation3 + $0x10] sm:$0xff] %vm506, 0.0
      %510 = vst.msk [vmem:[#allocation3 + $0x18] sm:$0xff] %vm506, 0.0
      %511 = vst.msk [vmem:[#allocation3 + $0x20] sm:$0xff] %vm506, 0.0
      %512 = vst.msk [vmem:[#allocation3 + $0x28] sm:$0xff] %vm506, 0.0
      %513 = vst.msk [vmem:[#allocation3 + $0x30] sm:$0xff] %vm506, 0.0
      %514 = vst.msk [vmem:[#allocation3 + $0x38] sm:$0xff] %vm506, 0.0
      %515 = vst.msk [vmem:[#allocation3 + $0x40] sm:$0xff] %vm506, 0.0
      %516 = vst.msk [vmem:[#allocation3 + $0x48] sm:$0xff] %vm506, 0.0
      %517 = vst.msk [vmem:[#allocation3 + $0x50] sm:$0xff] %vm506, 0.0
      %518 = vst.msk [vmem:[#allocation3 + $0x58] sm:$0xff] %vm506, 0.0
      %519 = vst.msk [vmem:[#allocation3 + $0x60] sm:$0xff] %vm506, 0.0
      %520 = vst.msk [vmem:[#allocation3 + $0x68] sm:$0xff] %vm506, 0.0
      %521 = vst.msk [vmem:[#allocation3 + $0x70] sm:$0xff] %vm506, 0.0
      %522 = vst.msk [vmem:[#allocation3 + $0x78] sm:$0xff] %vm506, 0.0
      %523 = vst.msk [vmem:[#allocation3 + $0x80] sm:$0xff] %vm506, 0.0
      %524 = vst.msk [vmem:[#allocation3 + $0x88] sm:$0xff] %vm506, 0.0
      %525 = vst.msk [vmem:[#allocation3 + $0x90] sm:$0xff] %vm506, 0.0
      %526 = vst.msk [vmem:[#allocation3 + $0x98] sm:$0xff] %vm506, 0.0
      %527 = vst.msk [vmem:[#allocation3 + $0xa0] sm:$0xff] %vm506, 0.0
      %528 = vst.msk [vmem:[#allocation3 + $0xa8] sm:$0xff] %vm506, 0.0
      %529 = vst.msk [vmem:[#allocation3 + $0xb0] sm:$0xff] %vm506, 0.0
      %530 = vst.msk [vmem:[#allocation3 + $0xb8] sm:$0xff] %vm506, 0.0
      %531 = vst.msk [vmem:[#allocation3 + $0xc0] sm:$0xff] %vm506, 0.0
      %532 = vst.msk [vmem:[#allocation3 + $0xc8] sm:$0xff] %vm506, 0.0
      %533 = vst.msk [vmem:[#allocation3 + $0xd0] sm:$0xff] %vm506, 0.0
      %534 = vst.msk [vmem:[#allocation3 + $0xd8] sm:$0xff] %vm506, 0.0
      %535 = vst.msk [vmem:[#allocation3 + $0xe0] sm:$0xff] %vm506, 0.0
      %536 = vst.msk [vmem:[#allocation3 + $0xe8] sm:$0xff] %vm506, 0.0
      %537 = vst.msk [vmem:[#allocation3 + $0xf0] sm:$0xff] %vm506, 0.0
      %538 = vst.msk [vmem:[#allocation3 + $0xf8] sm:$0xff] %vm506, 0.0
      %539 = vst.msk [vmem:[#allocation3 + $0x100] sm:$0xff] %vm506, 0.0
      %540 = vst.msk [vmem:[#allocation3 + $0x108] sm:$0xff] %vm506, 0.0
      %541 = vst.msk [vmem:[#allocation3 + $0x110] sm:$0xff] %vm506, 0.0
      %542 = vst.msk [vmem:[#allocation3 + $0x118] sm:$0xff] %vm506, 0.0
      %543 = vst.msk [vmem:[#allocation3 + $0x120] sm:$0xff] %vm506, 0.0
      %544 = vst.msk [vmem:[#allocation3 + $0x128] sm:$0xff] %vm506, 0.0
      %545 = vst.msk [vmem:[#allocation3 + $0x130] sm:$0xff] %vm506, 0.0
      %546 = vst.msk [vmem:[#allocation3 + $0x138] sm:$0xff] %vm506, 0.0
      %547 = vst.msk [vmem:[#allocation3 + $0x140] sm:$0xff] %vm506, 0.0
      %548 = vst.msk [vmem:[#allocation3 + $0x148] sm:$0xff] %vm506, 0.0
      %549 = vst.msk [vmem:[#allocation3 + $0x150] sm:$0xff] %vm506, 0.0
      %550 = vst.msk [vmem:[#allocation3 + $0x158] sm:$0xff] %vm506, 0.0
      %551 = vst.msk [vmem:[#allocation3 + $0x160] sm:$0xff] %vm506, 0.0
      %552 = vst.msk [vmem:[#allocation3 + $0x168] sm:$0xff] %vm506, 0.0
      %553 = vst.msk [vmem:[#allocation3 + $0x170] sm:$0xff] %vm506, 0.0
      %554 = vst.msk [vmem:[#allocation3 + $0x178] sm:$0xff] %vm506, 0.0
      %555 = vst.msk [vmem:[#allocation3 + $0x180] sm:$0xff] %vm506, 0.0
      %556 = vst.msk [vmem:[#allocation3 + $0x188] sm:$0xff] %vm506, 0.0
      %557 = vst.msk [vmem:[#allocation3 + $0x190] sm:$0xff] %vm506, 0.0
      %558 = vst.msk [vmem:[#allocation3 + $0x198] sm:$0xff] %vm506, 0.0
      %559 = vst.msk [vmem:[#allocation3 + $0x1a0] sm:$0xff] %vm506, 0.0
      %560 = vst.msk [vmem:[#allocation3 + $0x1a8] sm:$0xff] %vm506, 0.0
      %561 = vst.msk [vmem:[#allocation3 + $0x1b0] sm:$0xff] %vm506, 0.0
      %562 = vst.msk [vmem:[#allocation3 + $0x1b8] sm:$0xff] %vm506, 0.0
      %563 = vst.msk [vmem:[#allocation3 + $0x1c0] sm:$0xff] %vm506, 0.0
      %564 = vst.msk [vmem:[#allocation3 + $0x1c8] sm:$0xff] %vm506, 0.0
      %565 = vst.msk [vmem:[#allocation3 + $0x1d0] sm:$0xff] %vm506, 0.0
      %566 = vst.msk [vmem:[#allocation3 + $0x1d8] sm:$0xff] %vm506, 0.0
      %567 = vst.msk [vmem:[#allocation3 + $0x1e0] sm:$0xff] %vm506, 0.0
      %568 = vst.msk [vmem:[#allocation3 + $0x1e8] sm:$0xff] %vm506, 0.0
      %569 = vst.msk [vmem:[#allocation3 + $0x1f0] sm:$0xff] %vm506, 0.0
      %570 = vst.msk [vmem:[#allocation3 + $0x1f8] sm:$0xff] %vm506, 0.0
      %571 = vst.msk [vmem:[#allocation3 + $0x200] sm:$0xff] %vm506, 0.0
      %572 = vst.msk [vmem:[#allocation3 + $0x208] sm:$0xff] %vm506, 0.0
      %573 = vst.msk [vmem:[#allocation3 + $0x210] sm:$0xff] %vm506, 0.0
      %574 = vst.msk [vmem:[#allocation3 + $0x218] sm:$0xff] %vm506, 0.0
      %575 = vst.msk [vmem:[#allocation3 + $0x220] sm:$0xff] %vm506, 0.0
      %576 = vst.msk [vmem:[#allocation3 + $0x228] sm:$0xff] %vm506, 0.0
      %577 = vst.msk [vmem:[#allocation3 + $0x230] sm:$0xff] %vm506, 0.0
      %578 = vst.msk [vmem:[#allocation3 + $0x238] sm:$0xff] %vm506, 0.0
      %vm579 = vcmask 261120
      %580 = vst.msk [vmem:[#allocation4] sm:$0xff] %vm579, 0.0
      %581 = vst.msk [vmem:[#allocation4 + $0x8] sm:$0xff] %vm579, 0.0
      %582 = vst.msk [vmem:[#allocation4 + $0x10] sm:$0xff] %vm579, 0.0
      %583 = vst.msk [vmem:[#allocation4 + $0x18] sm:$0xff] %vm579, 0.0
      %584 = vst.msk [vmem:[#allocation4 + $0x20] sm:$0xff] %vm579, 0.0
      %585 = vst.msk [vmem:[#allocation4 + $0x28] sm:$0xff] %vm579, 0.0
      %586 = vst.msk [vmem:[#allocation4 + $0x30] sm:$0xff] %vm579, 0.0
      %587 = vst.msk [vmem:[#allocation4 + $0x38] sm:$0xff] %vm579, 0.0
      %588 = vst.msk [vmem:[#allocation4 + $0x40] sm:$0xff] %vm579, 0.0
      %589 = vst.msk [vmem:[#allocation4 + $0x48] sm:$0xff] %vm579, 0.0
      %590 = vst.msk [vmem:[#allocation4 + $0x50] sm:$0xff] %vm579, 0.0
      %591 = vst.msk [vmem:[#allocation4 + $0x58] sm:$0xff] %vm579, 0.0
      %592 = vst.msk [vmem:[#allocation4 + $0x60] sm:$0xff] %vm579, 0.0
      %593 = vst.msk [vmem:[#allocation4 + $0x68] sm:$0xff] %vm579, 0.0
      %594 = vst.msk [vmem:[#allocation4 + $0x70] sm:$0xff] %vm579, 0.0
      %595 = vst.msk [vmem:[#allocation4 + $0x78] sm:$0xff] %vm579, 0.0
      %596 = vst.msk [vmem:[#allocation4 + $0x80] sm:$0xff] %vm579, 0.0
      %597 = vst.msk [vmem:[#allocation4 + $0x88] sm:$0xff] %vm579, 0.0
      %598 = vst.msk [vmem:[#allocation4 + $0x90] sm:$0xff] %vm579, 0.0
      %599 = vst.msk [vmem:[#allocation4 + $0x98] sm:$0xff] %vm579, 0.0
      %600 = vst.msk [vmem:[#allocation4 + $0xa0] sm:$0xff] %vm579, 0.0
      %601 = vst.msk [vmem:[#allocation4 + $0xa8] sm:$0xff] %vm579, 0.0
      %602 = vst.msk [vmem:[#allocation4 + $0xb0] sm:$0xff] %vm579, 0.0
      %603 = vst.msk [vmem:[#allocation4 + $0xb8] sm:$0xff] %vm579, 0.0
      %604 = vst.msk [vmem:[#allocation4 + $0xc0] sm:$0xff] %vm579, 0.0
      %605 = vst.msk [vmem:[#allocation4 + $0xc8] sm:$0xff] %vm579, 0.0
      %606 = vst.msk [vmem:[#allocation4 + $0xd0] sm:$0xff] %vm579, 0.0
      %607 = vst.msk [vmem:[#allocation4 + $0xd8] sm:$0xff] %vm579, 0.0
      %608 = vst.msk [vmem:[#allocation4 + $0xe0] sm:$0xff] %vm579, 0.0
      %609 = vst.msk [vmem:[#allocation4 + $0xe8] sm:$0xff] %vm579, 0.0
      %610 = vst.msk [vmem:[#allocation4 + $0xf0] sm:$0xff] %vm579, 0.0
      %611 = vst.msk [vmem:[#allocation4 + $0xf8] sm:$0xff] %vm579, 0.0
      %612 = vst.msk [vmem:[#allocation4 + $0x100] sm:$0xff] %vm579, 0.0
      %613 = vst.msk [vmem:[#allocation4 + $0x108] sm:$0xff] %vm579, 0.0
      %614 = vst.msk [vmem:[#allocation4 + $0x110] sm:$0xff] %vm579, 0.0
      %615 = vst.msk [vmem:[#allocation4 + $0x118] sm:$0xff] %vm579, 0.0
      %616 = vst.msk [vmem:[#allocation4 + $0x120] sm:$0xff] %vm579, 0.0
      %617 = vst.msk [vmem:[#allocation4 + $0x128] sm:$0xff] %vm579, 0.0
      %618 = vst.msk [vmem:[#allocation4 + $0x130] sm:$0xff] %vm579, 0.0
      %619 = vst.msk [vmem:[#allocation4 + $0x138] sm:$0xff] %vm579, 0.0
      %620 = vst.msk [vmem:[#allocation4 + $0x140] sm:$0xff] %vm579, 0.0
      %621 = vst.msk [vmem:[#allocation4 + $0x148] sm:$0xff] %vm579, 0.0
      %622 = vst.msk [vmem:[#allocation4 + $0x150] sm:$0xff] %vm579, 0.0
      %623 = vst.msk [vmem:[#allocation4 + $0x158] sm:$0xff] %vm579, 0.0
      %624 = vst.msk [vmem:[#allocation4 + $0x160] sm:$0xff] %vm579, 0.0
      %625 = vst.msk [vmem:[#allocation4 + $0x168] sm:$0xff] %vm579, 0.0
      %626 = vst.msk [vmem:[#allocation4 + $0x170] sm:$0xff] %vm579, 0.0
      %627 = vst.msk [vmem:[#allocation4 + $0x178] sm:$0xff] %vm579, 0.0
      %628 = vst.msk [vmem:[#allocation4 + $0x180] sm:$0xff] %vm579, 0.0
      %629 = vst.msk [vmem:[#allocation4 + $0x188] sm:$0xff] %vm579, 0.0
      %630 = vst.msk [vmem:[#allocation4 + $0x190] sm:$0xff] %vm579, 0.0
      %631 = vst.msk [vmem:[#allocation4 + $0x198] sm:$0xff] %vm579, 0.0
      %632 = vst.msk [vmem:[#allocation4 + $0x1a0] sm:$0xff] %vm579, 0.0
      %633 = vst.msk [vmem:[#allocation4 + $0x1a8] sm:$0xff] %vm579, 0.0
      %634 = vst.msk [vmem:[#allocation4 + $0x1b0] sm:$0xff] %vm579, 0.0
      %635 = vst.msk [vmem:[#allocation4 + $0x1b8] sm:$0xff] %vm579, 0.0
      %636 = vst.msk [vmem:[#allocation4 + $0x1c0] sm:$0xff] %vm579, 0.0
      %637 = vst.msk [vmem:[#allocation4 + $0x1c8] sm:$0xff] %vm579, 0.0
      %638 = vst.msk [vmem:[#allocation4 + $0x1d0] sm:$0xff] %vm579, 0.0
      %639 = vst.msk [vmem:[#allocation4 + $0x1d8] sm:$0xff] %vm579, 0.0
      %640 = vst.msk [vmem:[#allocation4 + $0x1e0] sm:$0xff] %vm579, 0.0
      %641 = vst.msk [vmem:[#allocation4 + $0x1e8] sm:$0xff] %vm579, 0.0
      %642 = vst.msk [vmem:[#allocation4 + $0x1f0] sm:$0xff] %vm579, 0.0
      %643 = vst.msk [vmem:[#allocation4 + $0x1f8] sm:$0xff] %vm579, 0.0
      %644 = vst.msk [vmem:[#allocation4 + $0x200] sm:$0xff] %vm579, 0.0
      %645 = vst.msk [vmem:[#allocation4 + $0x208] sm:$0xff] %vm579, 0.0
      %646 = vst.msk [vmem:[#allocation4 + $0x210] sm:$0xff] %vm579, 0.0
      %647 = vst.msk [vmem:[#allocation4 + $0x218] sm:$0xff] %vm579, 0.0
      %648 = vst.msk [vmem:[#allocation4 + $0x220] sm:$0xff] %vm579, 0.0
      %649 = vst.msk [vmem:[#allocation4 + $0x228] sm:$0xff] %vm579, 0.0
      %650 = vst.msk [vmem:[#allocation4 + $0x230] sm:$0xff] %vm579, 0.0
      %651 = vst.msk [vmem:[#allocation4 + $0x238] sm:$0xff] %vm579, 0.0
      %s652 = scalar_lea.vmem [#allocation2], 32
      %653 = vst.msk [vmem:[%s652 + $0x8] sm:$0xff] %vm433, %v401
      %654 = vst.msk [vmem:[%s652 + $0x10] sm:$0xff] %vm433, %v402
      %655 = vst.msk [vmem:[%s652 + $0x28] sm:$0xff] %vm433, %v403
      %656 = vst.msk [vmem:[%s652 + $0x30] sm:$0xff] %vm433, %v404
      %657 = vst.msk [vmem:[%s652 + $0x48] sm:$0xff] %vm433, %v405
      %658 = vst.msk [vmem:[%s652 + $0x50] sm:$0xff] %vm433, %v406
      %659 = vst.msk [vmem:[%s652 + $0x68] sm:$0xff] %vm433, %v407
      %660 = vst.msk [vmem:[%s652 + $0x70] sm:$0xff] %vm433, %v408
      %661 = vst.msk [vmem:[%s652 + $0x88] sm:$0xff] %vm433, %v409
      %662 = vst.msk [vmem:[%s652 + $0x90] sm:$0xff] %vm433, %v410
      %663 = vst.msk [vmem:[%s652 + $0xa8] sm:$0xff] %vm433, %v411
      %664 = vst.msk [vmem:[%s652 + $0xb0] sm:$0xff] %vm433, %v412
      %665 = vst.msk [vmem:[%s652 + $0xc8] sm:$0xff] %vm433, %v413
      %666 = vst.msk [vmem:[%s652 + $0xd0] sm:$0xff] %vm433, %v414
      %667 = vst.msk [vmem:[%s652 + $0xe8] sm:$0xff] %vm433, %v415
      %668 = vst.msk [vmem:[%s652 + $0xf0] sm:$0xff] %vm433, %v416
      %669 = vst.msk [vmem:[%s652 + $0x108] sm:$0xff] %vm433, %v417
      %670 = vst.msk [vmem:[%s652 + $0x110] sm:$0xff] %vm433, %v418
      %671 = vst.msk [vmem:[%s652 + $0x128] sm:$0xff] %vm433, %v419
      %672 = vst.msk [vmem:[%s652 + $0x130] sm:$0xff] %vm433, %v420
      %673 = vst.msk [vmem:[%s652 + $0x148] sm:$0xff] %vm433, %v421
      %674 = vst.msk [vmem:[%s652 + $0x150] sm:$0xff] %vm433, %v422
      %675 = vst.msk [vmem:[%s652 + $0x168] sm:$0xff] %vm433, %v423
      %676 = vst.msk [vmem:[%s652 + $0x170] sm:$0xff] %vm433, %v424
      %677 = vst.msk [vmem:[%s652 + $0x188] sm:$0xff] %vm433, %v425
      %678 = vst.msk [vmem:[%s652 + $0x190] sm:$0xff] %vm433, %v426
      %679 = vst.msk [vmem:[%s652 + $0x1a8] sm:$0xff] %vm433, %v427
      %680 = vst.msk [vmem:[%s652 + $0x1b0] sm:$0xff] %vm433, %v428
      %681 = vst.msk [vmem:[%s652 + $0x1c8] sm:$0xff] %vm433, %v429
      %682 = vst.msk [vmem:[%s652 + $0x1d0] sm:$0xff] %vm433, %v430
      %683 = vst.msk [vmem:[%s652 + $0x1e8] sm:$0xff] %vm433, %v431
      %684 = vst.msk [vmem:[%s652 + $0x1f0] sm:$0xff] %vm433, %v432
      %v685 = vld [vmem:[#allocation2 + $0x7] sm:$0xff]
      %v686 = vld [vmem:[#allocation2 + $0xf] sm:$0xff]
      %v687 = vld [vmem:[#allocation2 + $0x27] sm:$0xff]
      %v688 = vld [vmem:[#allocation2 + $0x2f] sm:$0xff]
      %v689 = vld [vmem:[#allocation2 + $0x47] sm:$0xff]
      %v690 = vld [vmem:[#allocation2 + $0x4f] sm:$0xff]
      %v691 = vld [vmem:[#allocation2 + $0x67] sm:$0xff]
      %v692 = vld [vmem:[#allocation2 + $0x6f] sm:$0xff]
      %v693 = vld [vmem:[#allocation2 + $0x87] sm:$0xff]
      %v694 = vld [vmem:[#allocation2 + $0x8f] sm:$0xff]
      %v695 = vld [vmem:[#allocation2 + $0xa7] sm:$0xff]
      %v696 = vld [vmem:[#allocation2 + $0xaf] sm:$0xff]
      %v697 = vld [vmem:[#allocation2 + $0xc7] sm:$0xff]
      %v698 = vld [vmem:[#allocation2 + $0xcf] sm:$0xff]
      %v699 = vld [vmem:[#allocation2 + $0xe7] sm:$0xff]
      %v700 = vld [vmem:[#allocation2 + $0xef] sm:$0xff]
      %v701 = vld [vmem:[#allocation2 + $0x107] sm:$0xff]
      %v702 = vld [vmem:[#allocation2 + $0x10f] sm:$0xff]
      %v703 = vld [vmem:[#allocation2 + $0x127] sm:$0xff]
      %v704 = vld [vmem:[#allocation2 + $0x12f] sm:$0xff]
      %v705 = vld [vmem:[#allocation2 + $0x147] sm:$0xff]
      %v706 = vld [vmem:[#allocation2 + $0x14f] sm:$0xff]
      %v707 = vld [vmem:[#allocation2 + $0x167] sm:$0xff]
      %v708 = vld [vmem:[#allocation2 + $0x16f] sm:$0xff]
      %v709 = vld [vmem:[#allocation2 + $0x187] sm:$0xff]
      %v710 = vld [vmem:[#allocation2 + $0x18f] sm:$0xff]
      %v711 = vld [vmem:[#allocation2 + $0x1a7] sm:$0xff]
      %v712 = vld [vmem:[#allocation2 + $0x1af] sm:$0xff]
      %v713 = vld [vmem:[#allocation2 + $0x1c7] sm:$0xff]
      %v714 = vld [vmem:[#allocation2 + $0x1cf] sm:$0xff]
      %v715 = vld [vmem:[#allocation2 + $0x1e7] sm:$0xff]
      %v716 = vld [vmem:[#allocation2 + $0x1ef] sm:$0xff]
      %v717 = vld [vmem:[#allocation2 + $0x8] sm:$0xff]
      %v718 = vld [vmem:[#allocation2 + $0x10] sm:$0xff]
      %v719 = vld [vmem:[#allocation2 + $0x28] sm:$0xff]
      %v720 = vld [vmem:[#allocation2 + $0x30] sm:$0xff]
      %v721 = vld [vmem:[#allocation2 + $0x48] sm:$0xff]
      %v722 = vld [vmem:[#allocation2 + $0x50] sm:$0xff]
      %v723 = vld [vmem:[#allocation2 + $0x68] sm:$0xff]
      %v724 = vld [vmem:[#allocation2 + $0x70] sm:$0xff]
      %v725 = vld [vmem:[#allocation2 + $0x88] sm:$0xff]
      %v726 = vld [vmem:[#allocation2 + $0x90] sm:$0xff]
      %v727 = vld [vmem:[#allocation2 + $0xa8] sm:$0xff]
      %v728 = vld [vmem:[#allocation2 + $0xb0] sm:$0xff]
      %v729 = vld [vmem:[#allocation2 + $0xc8] sm:$0xff]
      %v730 = vld [vmem:[#allocation2 + $0xd0] sm:$0xff]
      %v731 = vld [vmem:[#allocation2 + $0xe8] sm:$0xff]
      %v732 = vld [vmem:[#allocation2 + $0xf0] sm:$0xff]
      %v733 = vld [vmem:[#allocation2 + $0x108] sm:$0xff]
      %v734 = vld [vmem:[#allocation2 + $0x110] sm:$0xff]
      %v735 = vld [vmem:[#allocation2 + $0x128] sm:$0xff]
      %v736 = vld [vmem:[#allocation2 + $0x130] sm:$0xff]
      %v737 = vld [vmem:[#allocation2 + $0x148] sm:$0xff]
      %v738 = vld [vmem:[#allocation2 + $0x150] sm:$0xff]
      %v739 = vld [vmem:[#allocation2 + $0x168] sm:$0xff]
      %v740 = vld [vmem:[#allocation2 + $0x170] sm:$0xff]
      %v741 = vld [vmem:[#allocation2 + $0x188] sm:$0xff]
      %v742 = vld [vmem:[#allocation2 + $0x190] sm:$0xff]
      %v743 = vld [vmem:[#allocation2 + $0x1a8] sm:$0xff]
      %v744 = vld [vmem:[#allocation2 + $0x1b0] sm:$0xff]
      %v745 = vld [vmem:[#allocation2 + $0x1c8] sm:$0xff]
      %v746 = vld [vmem:[#allocation2 + $0x1d0] sm:$0xff]
      %v747 = vld [vmem:[#allocation2 + $0x1e8] sm:$0xff]
      %v748 = vld [vmem:[#allocation2 + $0x1f0] sm:$0xff]
      %v749 = vld [vmem:[#allocation2 + $0x9] sm:$0xff]
      %v750 = vld [vmem:[#allocation2 + $0x11] sm:$0xff]
      %v751 = vld [vmem:[#allocation2 + $0x29] sm:$0xff]
      %v752 = vld [vmem:[#allocation2 + $0x31] sm:$0xff]
      %v753 = vld [vmem:[#allocation2 + $0x49] sm:$0xff]
      %v754 = vld [vmem:[#allocation2 + $0x51] sm:$0xff]
      %v755 = vld [vmem:[#allocation2 + $0x69] sm:$0xff]
      %v756 = vld [vmem:[#allocation2 + $0x71] sm:$0xff]
      %v757 = vld [vmem:[#allocation2 + $0x89] sm:$0xff]
      %v758 = vld [vmem:[#allocation2 + $0x91] sm:$0xff]
      %v759 = vld [vmem:[#allocation2 + $0xa9] sm:$0xff]
      %v760 = vld [vmem:[#allocation2 + $0xb1] sm:$0xff]
      %v761 = vld [vmem:[#allocation2 + $0xc9] sm:$0xff]
      %v762 = vld [vmem:[#allocation2 + $0xd1] sm:$0xff]
      %v763 = vld [vmem:[#allocation2 + $0xe9] sm:$0xff]
      %v764 = vld [vmem:[#allocation2 + $0xf1] sm:$0xff]
      %v765 = vld [vmem:[#allocation2 + $0x109] sm:$0xff]
      %v766 = vld [vmem:[#allocation2 + $0x111] sm:$0xff]
      %v767 = vld [vmem:[#allocation2 + $0x129] sm:$0xff]
      %v768 = vld [vmem:[#allocation2 + $0x131] sm:$0xff]
      %v769 = vld [vmem:[#allocation2 + $0x149] sm:$0xff]
      %v770 = vld [vmem:[#allocation2 + $0x151] sm:$0xff]
      %v771 = vld [vmem:[#allocation2 + $0x169] sm:$0xff]
      %v772 = vld [vmem:[#allocation2 + $0x171] sm:$0xff]
      %v773 = vld [vmem:[#allocation2 + $0x189] sm:$0xff]
      %v774 = vld [vmem:[#allocation2 + $0x191] sm:$0xff]
      %v775 = vld [vmem:[#allocation2 + $0x1a9] sm:$0xff]
      %v776 = vld [vmem:[#allocation2 + $0x1b1] sm:$0xff]
      %v777 = vld [vmem:[#allocation2 + $0x1c9] sm:$0xff]
      %v778 = vld [vmem:[#allocation2 + $0x1d1] sm:$0xff]
      %v779 = vld [vmem:[#allocation2 + $0x1e9] sm:$0xff]
      %v780 = vld [vmem:[#allocation2 + $0x1f1] sm:$0xff]
      %v781 = vld [vmem:[%s652 + $0x7] sm:$0xff]
      %v782 = vld [vmem:[%s652 + $0xf] sm:$0xff]
      %v783 = vld [vmem:[%s652 + $0x27] sm:$0xff]
      %v784 = vld [vmem:[%s652 + $0x2f] sm:$0xff]
      %v785 = vld [vmem:[%s652 + $0x47] sm:$0xff]
      %v786 = vld [vmem:[%s652 + $0x4f] sm:$0xff]
      %v787 = vld [vmem:[%s652 + $0x67] sm:$0xff]
      %v788 = vld [vmem:[%s652 + $0x6f] sm:$0xff]
      %v789 = vld [vmem:[%s652 + $0x87] sm:$0xff]
      %v790 = vld [vmem:[%s652 + $0x8f] sm:$0xff]
      %v791 = vld [vmem:[%s652 + $0xa7] sm:$0xff]
      %v792 = vld [vmem:[%s652 + $0xaf] sm:$0xff]
      %v793 = vld [vmem:[%s652 + $0xc7] sm:$0xff]
      %v794 = vld [vmem:[%s652 + $0xcf] sm:$0xff]
      %v795 = vld [vmem:[%s652 + $0xe7] sm:$0xff]
      %v796 = vld [vmem:[%s652 + $0xef] sm:$0xff]
      %v797 = vld [vmem:[%s652 + $0x107] sm:$0xff]
      %v798 = vld [vmem:[%s652 + $0x10f] sm:$0xff]
      %v799 = vld [vmem:[%s652 + $0x127] sm:$0xff]
      %v800 = vld [vmem:[%s652 + $0x12f] sm:$0xff]
      %v801 = vld [vmem:[%s652 + $0x147] sm:$0xff]
      %v802 = vld [vmem:[%s652 + $0x14f] sm:$0xff]
      %v803 = vld [vmem:[%s652 + $0x167] sm:$0xff]
      %v804 = vld [vmem:[%s652 + $0x16f] sm:$0xff]
      %v805 = vld [vmem:[%s652 + $0x187] sm:$0xff]
      %v806 = vld [vmem:[%s652 + $0x18f] sm:$0xff]
      %v807 = vld [vmem:[%s652 + $0x1a7] sm:$0xff]
      %v808 = vld [vmem:[%s652 + $0x1af] sm:$0xff]
      %v809 = vld [vmem:[%s652 + $0x1c7] sm:$0xff]
      %v810 = vld [vmem:[%s652 + $0x1cf] sm:$0xff]
      %v811 = vld [vmem:[%s652 + $0x1e7] sm:$0xff]
      %v812 = vld [vmem:[%s652 + $0x1ef] sm:$0xff]
      %v813 = vld [vmem:[%s652 + $0x8] sm:$0xff]
      %v814 = vld [vmem:[%s652 + $0x10] sm:$0xff]
      %v815 = vld [vmem:[%s652 + $0x28] sm:$0xff]
      %v816 = vld [vmem:[%s652 + $0x30] sm:$0xff]
      %v817 = vld [vmem:[%s652 + $0x48] sm:$0xff]
      %v818 = vld [vmem:[%s652 + $0x50] sm:$0xff]
      %v819 = vld [vmem:[%s652 + $0x68] sm:$0xff]
      %v820 = vld [vmem:[%s652 + $0x70] sm:$0xff]
      %v821 = vld [vmem:[%s652 + $0x88] sm:$0xff]
      %v822 = vld [vmem:[%s652 + $0x90] sm:$0xff]
      %v823 = vld [vmem:[%s652 + $0xa8] sm:$0xff]
      %v824 = vld [vmem:[%s652 + $0xb0] sm:$0xff]
      %v825 = vld [vmem:[%s652 + $0xc8] sm:$0xff]
      %v826 = vld [vmem:[%s652 + $0xd0] sm:$0xff]
      %v827 = vld [vmem:[%s652 + $0xe8] sm:$0xff]
      %v828 = vld [vmem:[%s652 + $0xf0] sm:$0xff]
      %v829 = vld [vmem:[%s652 + $0x108] sm:$0xff]
      %v830 = vld [vmem:[%s652 + $0x110] sm:$0xff]
      %v831 = vld [vmem:[%s652 + $0x128] sm:$0xff]
      %v832 = vld [vmem:[%s652 + $0x130] sm:$0xff]
      %v833 = vld [vmem:[%s652 + $0x148] sm:$0xff]
      %v834 = vld [vmem:[%s652 + $0x150] sm:$0xff]
      %v835 = vld [vmem:[%s652 + $0x168] sm:$0xff]
      %v836 = vld [vmem:[%s652 + $0x170] sm:$0xff]
      %v837 = vld [vmem:[%s652 + $0x188] sm:$0xff]
      %v838 = vld [vmem:[%s652 + $0x190] sm:$0xff]
      %v839 = vld [vmem:[%s652 + $0x1a8] sm:$0xff]
      %v840 = vld [vmem:[%s652 + $0x1b0] sm:$0xff]
      %v841 = vld [vmem:[%s652 + $0x1c8] sm:$0xff]
      %v842 = vld [vmem:[%s652 + $0x1d0] sm:$0xff]
      %v843 = vld [vmem:[%s652 + $0x1e8] sm:$0xff]
      %v844 = vld [vmem:[%s652 + $0x1f0] sm:$0xff]
      %v845 = vld [vmem:[%s652 + $0x9] sm:$0xff]
      %v846 = vld [vmem:[%s652 + $0x11] sm:$0xff]
      %v847 = vld [vmem:[%s652 + $0x29] sm:$0xff]
      %v848 = vld [vmem:[%s652 + $0x31] sm:$0xff]
      %v849 = vld [vmem:[%s652 + $0x49] sm:$0xff]
      %v850 = vld [vmem:[%s652 + $0x51] sm:$0xff]
      %v851 = vld [vmem:[%s652 + $0x69] sm:$0xff]
      %v852 = vld [vmem:[%s652 + $0x71] sm:$0xff]
      %v853 = vld [vmem:[%s652 + $0x89] sm:$0xff]
      %v854 = vld [vmem:[%s652 + $0x91] sm:$0xff]
      %v855 = vld [vmem:[%s652 + $0xa9] sm:$0xff]
      %v856 = vld [vmem:[%s652 + $0xb1] sm:$0xff]
      %v857 = vld [vmem:[%s652 + $0xc9] sm:$0xff]
      %v858 = vld [vmem:[%s652 + $0xd1] sm:$0xff]
      %v859 = vld [vmem:[%s652 + $0xe9] sm:$0xff]
      %v860 = vld [vmem:[%s652 + $0xf1] sm:$0xff]
      %v861 = vld [vmem:[%s652 + $0x109] sm:$0xff]
      %v862 = vld [vmem:[%s652 + $0x111] sm:$0xff]
      %v863 = vld [vmem:[%s652 + $0x129] sm:$0xff]
      %v864 = vld [vmem:[%s652 + $0x131] sm:$0xff]
      %v865 = vld [vmem:[%s652 + $0x149] sm:$0xff]
      %v866 = vld [vmem:[%s652 + $0x151] sm:$0xff]
      %v867 = vld [vmem:[%s652 + $0x169] sm:$0xff]
      %v868 = vld [vmem:[%s652 + $0x171] sm:$0xff]
      %v869 = vld [vmem:[%s652 + $0x189] sm:$0xff]
      %v870 = vld [vmem:[%s652 + $0x191] sm:$0xff]
      %v871 = vld [vmem:[%s652 + $0x1a9] sm:$0xff]
      %v872 = vld [vmem:[%s652 + $0x1b1] sm:$0xff]
      %v873 = vld [vmem:[%s652 + $0x1c9] sm:$0xff]
      %v874 = vld [vmem:[%s652 + $0x1d1] sm:$0xff]
      %v875 = vld [vmem:[%s652 + $0x1e9] sm:$0xff]
      %v876 = vld [vmem:[%s652 + $0x1f1] sm:$0xff]
      %s877 = scalar_lea.vmem [#allocation2], 64
      %v878 = vld [vmem:[%s877 + $0x7] sm:$0xff]
      %v879 = vld [vmem:[%s877 + $0xf] sm:$0xff]
      %v880 = vld [vmem:[%s877 + $0x27] sm:$0xff]
      %v881 = vld [vmem:[%s877 + $0x2f] sm:$0xff]
      %v882 = vld [vmem:[%s877 + $0x47] sm:$0xff]
      %v883 = vld [vmem:[%s877 + $0x4f] sm:$0xff]
      %v884 = vld [vmem:[%s877 + $0x67] sm:$0xff]
      %v885 = vld [vmem:[%s877 + $0x6f] sm:$0xff]
      %v886 = vld [vmem:[%s877 + $0x87] sm:$0xff]
      %v887 = vld [vmem:[%s877 + $0x8f] sm:$0xff]
      %v888 = vld [vmem:[%s877 + $0xa7] sm:$0xff]
      %v889 = vld [vmem:[%s877 + $0xaf] sm:$0xff]
      %v890 = vld [vmem:[%s877 + $0xc7] sm:$0xff]
      %v891 = vld [vmem:[%s877 + $0xcf] sm:$0xff]
      %v892 = vld [vmem:[%s877 + $0xe7] sm:$0xff]
      %v893 = vld [vmem:[%s877 + $0xef] sm:$0xff]
      %v894 = vld [vmem:[%s877 + $0x107] sm:$0xff]
      %v895 = vld [vmem:[%s877 + $0x10f] sm:$0xff]
      %v896 = vld [vmem:[%s877 + $0x127] sm:$0xff]
      %v897 = vld [vmem:[%s877 + $0x12f] sm:$0xff]
      %v898 = vld [vmem:[%s877 + $0x147] sm:$0xff]
      %v899 = vld [vmem:[%s877 + $0x14f] sm:$0xff]
      %v900 = vld [vmem:[%s877 + $0x167] sm:$0xff]
      %v901 = vld [vmem:[%s877 + $0x16f] sm:$0xff]
      %v902 = vld [vmem:[%s877 + $0x187] sm:$0xff]
      %v903 = vld [vmem:[%s877 + $0x18f] sm:$0xff]
      %v904 = vld [vmem:[%s877 + $0x1a7] sm:$0xff]
      %v905 = vld [vmem:[%s877 + $0x1af] sm:$0xff]
      %v906 = vld [vmem:[%s877 + $0x1c7] sm:$0xff]
      %v907 = vld [vmem:[%s877 + $0x1cf] sm:$0xff]
      %v908 = vld [vmem:[%s877 + $0x1e7] sm:$0xff]
      %v909 = vld [vmem:[%s877 + $0x1ef] sm:$0xff]
      %v910 = vld [vmem:[%s877 + $0x8] sm:$0xff]
      %v911 = vld [vmem:[%s877 + $0x10] sm:$0xff]
      %v912 = vld [vmem:[%s877 + $0x28] sm:$0xff]
      %v913 = vld [vmem:[%s877 + $0x30] sm:$0xff]
      %v914 = vld [vmem:[%s877 + $0x48] sm:$0xff]
      %v915 = vld [vmem:[%s877 + $0x50] sm:$0xff]
      %v916 = vld [vmem:[%s877 + $0x68] sm:$0xff]
      %v917 = vld [vmem:[%s877 + $0x70] sm:$0xff]
      %v918 = vld [vmem:[%s877 + $0x88] sm:$0xff]
      %v919 = vld [vmem:[%s877 + $0x90] sm:$0xff]
      %v920 = vld [vmem:[%s877 + $0xa8] sm:$0xff]
      %v921 = vld [vmem:[%s877 + $0xb0] sm:$0xff]
      %v922 = vld [vmem:[%s877 + $0xc8] sm:$0xff]
      %v923 = vld [vmem:[%s877 + $0xd0] sm:$0xff]
      %v924 = vld [vmem:[%s877 + $0xe8] sm:$0xff]
      %v925 = vld [vmem:[%s877 + $0xf0] sm:$0xff]
      %v926 = vld [vmem:[%s877 + $0x108] sm:$0xff]
      %v927 = vld [vmem:[%s877 + $0x110] sm:$0xff]
      %v928 = vld [vmem:[%s877 + $0x128] sm:$0xff]
      %v929 = vld [vmem:[%s877 + $0x130] sm:$0xff]
      %v930 = vld [vmem:[%s877 + $0x148] sm:$0xff]
      %v931 = vld [vmem:[%s877 + $0x150] sm:$0xff]
      %v932 = vld [vmem:[%s877 + $0x168] sm:$0xff]
      %v933 = vld [vmem:[%s877 + $0x170] sm:$0xff]
      %v934 = vld [vmem:[%s877 + $0x188] sm:$0xff]
      %v935 = vld [vmem:[%s877 + $0x190] sm:$0xff]
      %v936 = vld [vmem:[%s877 + $0x1a8] sm:$0xff]
      %v937 = vld [vmem:[%s877 + $0x1b0] sm:$0xff]
      %v938 = vld [vmem:[%s877 + $0x1c8] sm:$0xff]
      %v939 = vld [vmem:[%s877 + $0x1d0] sm:$0xff]
      %v940 = vld [vmem:[%s877 + $0x1e8] sm:$0xff]
      %v941 = vld [vmem:[%s877 + $0x1f0] sm:$0xff]
      %v942 = vld [vmem:[%s877 + $0x9] sm:$0xff]
      %v943 = vld [vmem:[%s877 + $0x11] sm:$0xff]
      %v944 = vld [vmem:[%s877 + $0x29] sm:$0xff]
      %v945 = vld [vmem:[%s877 + $0x31] sm:$0xff]
      %v946 = vld [vmem:[%s877 + $0x49] sm:$0xff]
      %v947 = vld [vmem:[%s877 + $0x51] sm:$0xff]
      %v948 = vld [vmem:[%s877 + $0x69] sm:$0xff]
      %v949 = vld [vmem:[%s877 + $0x71] sm:$0xff]
      %v950 = vld [vmem:[%s877 + $0x89] sm:$0xff]
      %v951 = vld [vmem:[%s877 + $0x91] sm:$0xff]
      %v952 = vld [vmem:[%s877 + $0xa9] sm:$0xff]
      %v953 = vld [vmem:[%s877 + $0xb1] sm:$0xff]
      %v954 = vld [vmem:[%s877 + $0xc9] sm:$0xff]
      %v955 = vld [vmem:[%s877 + $0xd1] sm:$0xff]
      %v956 = vld [vmem:[%s877 + $0xe9] sm:$0xff]
      %v957 = vld [vmem:[%s877 + $0xf1] sm:$0xff]
      %v958 = vld [vmem:[%s877 + $0x109] sm:$0xff]
      %v959 = vld [vmem:[%s877 + $0x111] sm:$0xff]
      %v960 = vld [vmem:[%s877 + $0x129] sm:$0xff]
      %v961 = vld [vmem:[%s877 + $0x131] sm:$0xff]
      %v962 = vld [vmem:[%s877 + $0x149] sm:$0xff]
      %v963 = vld [vmem:[%s877 + $0x151] sm:$0xff]
      %v964 = vld [vmem:[%s877 + $0x169] sm:$0xff]
      %v965 = vld [vmem:[%s877 + $0x171] sm:$0xff]
      %v966 = vld [vmem:[%s877 + $0x189] sm:$0xff]
      %v967 = vld [vmem:[%s877 + $0x191] sm:$0xff]
      %v968 = vld [vmem:[%s877 + $0x1a9] sm:$0xff]
      %v969 = vld [vmem:[%s877 + $0x1b1] sm:$0xff]
      %v970 = vld [vmem:[%s877 + $0x1c9] sm:$0xff]
      %v971 = vld [vmem:[%s877 + $0x1d1] sm:$0xff]
      %v972 = vld [vmem:[%s877 + $0x1e9] sm:$0xff]
      %v973 = vld [vmem:[%s877 + $0x1f1] sm:$0xff]
      %1006 = vrot.lane.b32.xlu0 %v717, 4
      %v1007 = vpop.permute.xlu0 %1006
      %1008 = vrot.lane.b32.xlu0 %v718, 4
      %v1009 = vpop.permute.xlu0 %1008
      %1010 = vrot.lane.b32.xlu0 %v719, 4
      %v1011 = vpop.permute.xlu0 %1010
      %1012 = vrot.lane.b32.xlu0 %v720, 4
      %v1013 = vpop.permute.xlu0 %1012
      %1014 = vrot.lane.b32.xlu0 %v721, 4
      %v1015 = vpop.permute.xlu0 %1014
      %1016 = vrot.lane.b32.xlu0 %v722, 4
      %v1017 = vpop.permute.xlu0 %1016
      %1018 = vrot.lane.b32.xlu0 %v723, 4
      %v1019 = vpop.permute.xlu0 %1018
      %1020 = vrot.lane.b32.xlu0 %v724, 4
      %v1021 = vpop.permute.xlu0 %1020
      %1022 = vrot.lane.b32.xlu0 %v725, 4
      %v1023 = vpop.permute.xlu0 %1022
      %1024 = vrot.lane.b32.xlu0 %v726, 4
      %v1025 = vpop.permute.xlu0 %1024
      %1026 = vrot.lane.b32.xlu0 %v727, 4
      %v1027 = vpop.permute.xlu0 %1026
      %1028 = vrot.lane.b32.xlu0 %v728, 4
      %v1029 = vpop.permute.xlu0 %1028
      %1030 = vrot.lane.b32.xlu0 %v729, 4
      %v1031 = vpop.permute.xlu0 %1030
      %1032 = vrot.lane.b32.xlu0 %v730, 4
      %v1033 = vpop.permute.xlu0 %1032
      %1034 = vrot.lane.b32.xlu0 %v731, 4
      %v1035 = vpop.permute.xlu0 %1034
      %1036 = vrot.lane.b32.xlu0 %v732, 4
      %v1037 = vpop.permute.xlu0 %1036
      %1038 = vrot.lane.b32.xlu0 %v733, 4
      %v1039 = vpop.permute.xlu0 %1038
      %1040 = vrot.lane.b32.xlu0 %v734, 4
      %v1041 = vpop.permute.xlu0 %1040
      %1042 = vrot.lane.b32.xlu0 %v735, 4
      %v1043 = vpop.permute.xlu0 %1042
      %1044 = vrot.lane.b32.xlu0 %v736, 4
      %v1045 = vpop.permute.xlu0 %1044
      %1046 = vrot.lane.b32.xlu0 %v737, 4
      %v1047 = vpop.permute.xlu0 %1046
      %1048 = vrot.lane.b32.xlu0 %v738, 4
      %v1049 = vpop.permute.xlu0 %1048
      %1050 = vrot.lane.b32.xlu0 %v739, 4
      %v1051 = vpop.permute.xlu0 %1050
      %1052 = vrot.lane.b32.xlu0 %v740, 4
      %v1053 = vpop.permute.xlu0 %1052
      %1054 = vrot.lane.b32.xlu0 %v741, 4
      %v1055 = vpop.permute.xlu0 %1054
      %1056 = vrot.lane.b32.xlu0 %v742, 4
      %v1057 = vpop.permute.xlu0 %1056
      %1058 = vrot.lane.b32.xlu0 %v743, 4
      %v1059 = vpop.permute.xlu0 %1058
      %1060 = vrot.lane.b32.xlu0 %v744, 4
      %v1061 = vpop.permute.xlu0 %1060
      %1062 = vrot.lane.b32.xlu0 %v745, 4
      %v1063 = vpop.permute.xlu0 %1062
      %1064 = vrot.lane.b32.xlu0 %v746, 4
      %v1065 = vpop.permute.xlu0 %1064
      %1066 = vrot.lane.b32.xlu0 %v747, 4
      %v1067 = vpop.permute.xlu0 %1066
      %1068 = vrot.lane.b32.xlu0 %v748, 4
      %v1069 = vpop.permute.xlu0 %1068
      %1134 = vrot.lane.b32.xlu0 %v749, 8
      %v1135 = vpop.permute.xlu0 %1134
      %1136 = vrot.lane.b32.xlu0 %v750, 8
      %v1137 = vpop.permute.xlu0 %1136
      %1138 = vrot.lane.b32.xlu0 %v751, 8
      %v1139 = vpop.permute.xlu0 %1138
      %1140 = vrot.lane.b32.xlu0 %v752, 8
      %v1141 = vpop.permute.xlu0 %1140
      %1142 = vrot.lane.b32.xlu0 %v753, 8
      %v1143 = vpop.permute.xlu0 %1142
      %1144 = vrot.lane.b32.xlu0 %v754, 8
      %v1145 = vpop.permute.xlu0 %1144
      %1146 = vrot.lane.b32.xlu0 %v755, 8
      %v1147 = vpop.permute.xlu0 %1146
      %1148 = vrot.lane.b32.xlu0 %v756, 8
      %v1149 = vpop.permute.xlu0 %1148
      %1150 = vrot.lane.b32.xlu0 %v757, 8
      %v1151 = vpop.permute.xlu0 %1150
      %1152 = vrot.lane.b32.xlu0 %v758, 8
      %v1153 = vpop.permute.xlu0 %1152
      %1154 = vrot.lane.b32.xlu0 %v759, 8
      %v1155 = vpop.permute.xlu0 %1154
      %1156 = vrot.lane.b32.xlu0 %v760, 8
      %v1157 = vpop.permute.xlu0 %1156
      %1158 = vrot.lane.b32.xlu0 %v761, 8
      %v1159 = vpop.permute.xlu0 %1158
      %1160 = vrot.lane.b32.xlu0 %v762, 8
      %v1161 = vpop.permute.xlu0 %1160
      %1162 = vrot.lane.b32.xlu0 %v763, 8
      %v1163 = vpop.permute.xlu0 %1162
      %1164 = vrot.lane.b32.xlu0 %v764, 8
      %v1165 = vpop.permute.xlu0 %1164
      %1166 = vrot.lane.b32.xlu0 %v765, 8
      %v1167 = vpop.permute.xlu0 %1166
      %1168 = vrot.lane.b32.xlu0 %v766, 8
      %v1169 = vpop.permute.xlu0 %1168
      %1170 = vrot.lane.b32.xlu0 %v767, 8
      %v1171 = vpop.permute.xlu0 %1170
      %1172 = vrot.lane.b32.xlu0 %v768, 8
      %v1173 = vpop.permute.xlu0 %1172
      %1174 = vrot.lane.b32.xlu0 %v769, 8
      %v1175 = vpop.permute.xlu0 %1174
      %1176 = vrot.lane.b32.xlu0 %v770, 8
      %v1177 = vpop.permute.xlu0 %1176
      %1178 = vrot.lane.b32.xlu0 %v771, 8
      %v1179 = vpop.permute.xlu0 %1178
      %1180 = vrot.lane.b32.xlu0 %v772, 8
      %v1181 = vpop.permute.xlu0 %1180
      %1182 = vrot.lane.b32.xlu0 %v773, 8
      %v1183 = vpop.permute.xlu0 %1182
      %1184 = vrot.lane.b32.xlu0 %v774, 8
      %v1185 = vpop.permute.xlu0 %1184
      %1186 = vrot.lane.b32.xlu0 %v775, 8
      %v1187 = vpop.permute.xlu0 %1186
      %1188 = vrot.lane.b32.xlu0 %v776, 8
      %v1189 = vpop.permute.xlu0 %1188
      %1190 = vrot.lane.b32.xlu0 %v777, 8
      %v1191 = vpop.permute.xlu0 %1190
      %1192 = vrot.lane.b32.xlu0 %v778, 8
      %v1193 = vpop.permute.xlu0 %1192
      %1194 = vrot.lane.b32.xlu0 %v779, 8
      %v1195 = vpop.permute.xlu0 %1194
      %1196 = vrot.lane.b32.xlu0 %v780, 8
      %v1197 = vpop.permute.xlu0 %1196
      %1262 = vrot.lane.b32.xlu0 %v781, 12
      %v1263 = vpop.permute.xlu0 %1262
      %1264 = vrot.lane.b32.xlu0 %v782, 12
      %v1265 = vpop.permute.xlu0 %1264
      %1266 = vrot.lane.b32.xlu0 %v783, 12
      %v1267 = vpop.permute.xlu0 %1266
      %1268 = vrot.lane.b32.xlu0 %v784, 12
      %v1269 = vpop.permute.xlu0 %1268
      %1270 = vrot.lane.b32.xlu0 %v785, 12
      %v1271 = vpop.permute.xlu0 %1270
      %1272 = vrot.lane.b32.xlu0 %v786, 12
      %v1273 = vpop.permute.xlu0 %1272
      %1274 = vrot.lane.b32.xlu0 %v787, 12
      %v1275 = vpop.permute.xlu0 %1274
      %1276 = vrot.lane.b32.xlu0 %v788, 12
      %v1277 = vpop.permute.xlu0 %1276
      %1278 = vrot.lane.b32.xlu0 %v789, 12
      %v1279 = vpop.permute.xlu0 %1278
      %1280 = vrot.lane.b32.xlu0 %v790, 12
      %v1281 = vpop.permute.xlu0 %1280
      %1282 = vrot.lane.b32.xlu0 %v791, 12
      %v1283 = vpop.permute.xlu0 %1282
      %1284 = vrot.lane.b32.xlu0 %v792, 12
      %v1285 = vpop.permute.xlu0 %1284
      %1286 = vrot.lane.b32.xlu0 %v793, 12
      %v1287 = vpop.permute.xlu0 %1286
      %1288 = vrot.lane.b32.xlu0 %v794, 12
      %v1289 = vpop.permute.xlu0 %1288
      %1290 = vrot.lane.b32.xlu0 %v795, 12
      %v1291 = vpop.permute.xlu0 %1290
      %1292 = vrot.lane.b32.xlu0 %v796, 12
      %v1293 = vpop.permute.xlu0 %1292
      %1294 = vrot.lane.b32.xlu0 %v797, 12
      %v1295 = vpop.permute.xlu0 %1294
      %1296 = vrot.lane.b32.xlu0 %v798, 12
      %v1297 = vpop.permute.xlu0 %1296
      %1298 = vrot.lane.b32.xlu0 %v799, 12
      %v1299 = vpop.permute.xlu0 %1298
      %1300 = vrot.lane.b32.xlu0 %v800, 12
      %v1301 = vpop.permute.xlu0 %1300
      %1302 = vrot.lane.b32.xlu0 %v801, 12
      %v1303 = vpop.permute.xlu0 %1302
      %1304 = vrot.lane.b32.xlu0 %v802, 12
      %v1305 = vpop.permute.xlu0 %1304
      %1306 = vrot.lane.b32.xlu0 %v803, 12
      %v1307 = vpop.permute.xlu0 %1306
      %1308 = vrot.lane.b32.xlu0 %v804, 12
      %v1309 = vpop.permute.xlu0 %1308
      %1310 = vrot.lane.b32.xlu0 %v805, 12
      %v1311 = vpop.permute.xlu0 %1310
      %1312 = vrot.lane.b32.xlu0 %v806, 12
      %v1313 = vpop.permute.xlu0 %1312
      %1314 = vrot.lane.b32.xlu0 %v807, 12
      %v1315 = vpop.permute.xlu0 %1314
      %1316 = vrot.lane.b32.xlu0 %v808, 12
      %v1317 = vpop.permute.xlu0 %1316
      %1318 = vrot.lane.b32.xlu0 %v809, 12
      %v1319 = vpop.permute.xlu0 %1318
      %1320 = vrot.lane.b32.xlu0 %v810, 12
      %v1321 = vpop.permute.xlu0 %1320
      %1322 = vrot.lane.b32.xlu0 %v811, 12
      %v1323 = vpop.permute.xlu0 %1322
      %1324 = vrot.lane.b32.xlu0 %v812, 12
      %v1325 = vpop.permute.xlu0 %1324
      %1390 = vrot.lane.b32.xlu0 %v813, 16
      %v1391 = vpop.permute.xlu0 %1390
      %1392 = vrot.lane.b32.xlu0 %v814, 16
      %v1393 = vpop.permute.xlu0 %1392
      %1394 = vrot.lane.b32.xlu0 %v815, 16
      %v1395 = vpop.permute.xlu0 %1394
      %1396 = vrot.lane.b32.xlu0 %v816, 16
      %v1397 = vpop.permute.xlu0 %1396
      %1398 = vrot.lane.b32.xlu0 %v817, 16
      %v1399 = vpop.permute.xlu0 %1398
      %1400 = vrot.lane.b32.xlu0 %v818, 16
      %v1401 = vpop.permute.xlu0 %1400
      %1402 = vrot.lane.b32.xlu0 %v819, 16
      %v1403 = vpop.permute.xlu0 %1402
      %1404 = vrot.lane.b32.xlu0 %v820, 16
      %v1405 = vpop.permute.xlu0 %1404
      %1406 = vrot.lane.b32.xlu0 %v821, 16
      %v1407 = vpop.permute.xlu0 %1406
      %1408 = vrot.lane.b32.xlu0 %v822, 16
      %v1409 = vpop.permute.xlu0 %1408
      %1410 = vrot.lane.b32.xlu0 %v823, 16
      %v1411 = vpop.permute.xlu0 %1410
      %1412 = vrot.lane.b32.xlu0 %v824, 16
      %v1413 = vpop.permute.xlu0 %1412
      %1414 = vrot.lane.b32.xlu0 %v825, 16
      %v1415 = vpop.permute.xlu0 %1414
      %1416 = vrot.lane.b32.xlu0 %v826, 16
      %v1417 = vpop.permute.xlu0 %1416
      %1418 = vrot.lane.b32.xlu0 %v827, 16
      %v1419 = vpop.permute.xlu0 %1418
      %1420 = vrot.lane.b32.xlu0 %v828, 16
      %v1421 = vpop.permute.xlu0 %1420
      %1422 = vrot.lane.b32.xlu0 %v829, 16
      %v1423 = vpop.permute.xlu0 %1422
      %1424 = vrot.lane.b32.xlu0 %v830, 16
      %v1425 = vpop.permute.xlu0 %1424
      %1426 = vrot.lane.b32.xlu0 %v831, 16
      %v1427 = vpop.permute.xlu0 %1426
      %1428 = vrot.lane.b32.xlu0 %v832, 16
      %v1429 = vpop.permute.xlu0 %1428
      %1430 = vrot.lane.b32.xlu0 %v833, 16
      %v1431 = vpop.permute.xlu0 %1430
      %1432 = vrot.lane.b32.xlu0 %v834, 16
      %v1433 = vpop.permute.xlu0 %1432
      %1434 = vrot.lane.b32.xlu0 %v835, 16
      %v1435 = vpop.permute.xlu0 %1434
      %1436 = vrot.lane.b32.xlu0 %v836, 16
      %v1437 = vpop.permute.xlu0 %1436
      %1438 = vrot.lane.b32.xlu0 %v837, 16
      %v1439 = vpop.permute.xlu0 %1438
      %1440 = vrot.lane.b32.xlu0 %v838, 16
      %v1441 = vpop.permute.xlu0 %1440
      %1442 = vrot.lane.b32.xlu0 %v839, 16
      %v1443 = vpop.permute.xlu0 %1442
      %1444 = vrot.lane.b32.xlu0 %v840, 16
      %v1445 = vpop.permute.xlu0 %1444
      %1446 = vrot.lane.b32.xlu0 %v841, 16
      %v1447 = vpop.permute.xlu0 %1446
      %1448 = vrot.lane.b32.xlu0 %v842, 16
      %v1449 = vpop.permute.xlu0 %1448
      %1450 = vrot.lane.b32.xlu0 %v843, 16
      %v1451 = vpop.permute.xlu0 %1450
      %1452 = vrot.lane.b32.xlu0 %v844, 16
      %v1453 = vpop.permute.xlu0 %1452
      %1518 = vrot.lane.b32.xlu0 %v845, 20
      %v1519 = vpop.permute.xlu0 %1518
      %1520 = vrot.lane.b32.xlu0 %v846, 20
      %v1521 = vpop.permute.xlu0 %1520
      %1522 = vrot.lane.b32.xlu0 %v847, 20
      %v1523 = vpop.permute.xlu0 %1522
      %1524 = vrot.lane.b32.xlu0 %v848, 20
      %v1525 = vpop.permute.xlu0 %1524
      %1526 = vrot.lane.b32.xlu0 %v849, 20
      %v1527 = vpop.permute.xlu0 %1526
      %1528 = vrot.lane.b32.xlu0 %v850, 20
      %v1529 = vpop.permute.xlu0 %1528
      %1530 = vrot.lane.b32.xlu0 %v851, 20
      %v1531 = vpop.permute.xlu0 %1530
      %1532 = vrot.lane.b32.xlu0 %v852, 20
      %v1533 = vpop.permute.xlu0 %1532
      %1534 = vrot.lane.b32.xlu0 %v853, 20
      %v1535 = vpop.permute.xlu0 %1534
      %1536 = vrot.lane.b32.xlu0 %v854, 20
      %v1537 = vpop.permute.xlu0 %1536
      %1538 = vrot.lane.b32.xlu0 %v855, 20
      %v1539 = vpop.permute.xlu0 %1538
      %1540 = vrot.lane.b32.xlu0 %v856, 20
      %v1541 = vpop.permute.xlu0 %1540
      %1542 = vrot.lane.b32.xlu0 %v857, 20
      %v1543 = vpop.permute.xlu0 %1542
      %1544 = vrot.lane.b32.xlu0 %v858, 20
      %v1545 = vpop.permute.xlu0 %1544
      %1546 = vrot.lane.b32.xlu0 %v859, 20
      %v1547 = vpop.permute.xlu0 %1546
      %1548 = vrot.lane.b32.xlu0 %v860, 20
      %v1549 = vpop.permute.xlu0 %1548
      %1550 = vrot.lane.b32.xlu0 %v861, 20
      %v1551 = vpop.permute.xlu0 %1550
      %1552 = vrot.lane.b32.xlu0 %v862, 20
      %v1553 = vpop.permute.xlu0 %1552
      %1554 = vrot.lane.b32.xlu0 %v863, 20
      %v1555 = vpop.permute.xlu0 %1554
      %1556 = vrot.lane.b32.xlu0 %v864, 20
      %v1557 = vpop.permute.xlu0 %1556
      %1558 = vrot.lane.b32.xlu0 %v865, 20
      %v1559 = vpop.permute.xlu0 %1558
      %1560 = vrot.lane.b32.xlu0 %v866, 20
      %v1561 = vpop.permute.xlu0 %1560
      %1562 = vrot.lane.b32.xlu0 %v867, 20
      %v1563 = vpop.permute.xlu0 %1562
      %1564 = vrot.lane.b32.xlu0 %v868, 20
      %v1565 = vpop.permute.xlu0 %1564
      %1566 = vrot.lane.b32.xlu0 %v869, 20
      %v1567 = vpop.permute.xlu0 %1566
      %1568 = vrot.lane.b32.xlu0 %v870, 20
      %v1569 = vpop.permute.xlu0 %1568
      %1570 = vrot.lane.b32.xlu0 %v871, 20
      %v1571 = vpop.permute.xlu0 %1570
      %1572 = vrot.lane.b32.xlu0 %v872, 20
      %v1573 = vpop.permute.xlu0 %1572
      %1574 = vrot.lane.b32.xlu0 %v873, 20
      %v1575 = vpop.permute.xlu0 %1574
      %1576 = vrot.lane.b32.xlu0 %v874, 20
      %v1577 = vpop.permute.xlu0 %1576
      %1578 = vrot.lane.b32.xlu0 %v875, 20
      %v1579 = vpop.permute.xlu0 %1578
      %1580 = vrot.lane.b32.xlu0 %v876, 20
      %v1581 = vpop.permute.xlu0 %1580
      %1646 = vrot.lane.b32.xlu0 %v878, 24
      %v1647 = vpop.permute.xlu0 %1646
      %1648 = vrot.lane.b32.xlu0 %v879, 24
      %v1649 = vpop.permute.xlu0 %1648
      %1650 = vrot.lane.b32.xlu0 %v880, 24
      %v1651 = vpop.permute.xlu0 %1650
      %1652 = vrot.lane.b32.xlu0 %v881, 24
      %v1653 = vpop.permute.xlu0 %1652
      %1654 = vrot.lane.b32.xlu0 %v882, 24
      %v1655 = vpop.permute.xlu0 %1654
      %1656 = vrot.lane.b32.xlu0 %v883, 24
      %v1657 = vpop.permute.xlu0 %1656
      %1658 = vrot.lane.b32.xlu0 %v884, 24
      %v1659 = vpop.permute.xlu0 %1658
      %1660 = vrot.lane.b32.xlu0 %v885, 24
      %v1661 = vpop.permute.xlu0 %1660
      %1662 = vrot.lane.b32.xlu0 %v886, 24
      %v1663 = vpop.permute.xlu0 %1662
      %1664 = vrot.lane.b32.xlu0 %v887, 24
      %v1665 = vpop.permute.xlu0 %1664
      %1666 = vrot.lane.b32.xlu0 %v888, 24
      %v1667 = vpop.permute.xlu0 %1666
      %1668 = vrot.lane.b32.xlu0 %v889, 24
      %v1669 = vpop.permute.xlu0 %1668
      %1670 = vrot.lane.b32.xlu0 %v890, 24
      %v1671 = vpop.permute.xlu0 %1670
      %1672 = vrot.lane.b32.xlu0 %v891, 24
      %v1673 = vpop.permute.xlu0 %1672
      %1674 = vrot.lane.b32.xlu0 %v892, 24
      %v1675 = vpop.permute.xlu0 %1674
      %1676 = vrot.lane.b32.xlu0 %v893, 24
      %v1677 = vpop.permute.xlu0 %1676
      %1678 = vrot.lane.b32.xlu0 %v894, 24
      %v1679 = vpop.permute.xlu0 %1678
      %1680 = vrot.lane.b32.xlu0 %v895, 24
      %v1681 = vpop.permute.xlu0 %1680
      %1682 = vrot.lane.b32.xlu0 %v896, 24
      %v1683 = vpop.permute.xlu0 %1682
      %1684 = vrot.lane.b32.xlu0 %v897, 24
      %v1685 = vpop.permute.xlu0 %1684
      %1686 = vrot.lane.b32.xlu0 %v898, 24
      %v1687 = vpop.permute.xlu0 %1686
      %1688 = vrot.lane.b32.xlu0 %v899, 24
      %v1689 = vpop.permute.xlu0 %1688
      %1690 = vrot.lane.b32.xlu0 %v900, 24
      %v1691 = vpop.permute.xlu0 %1690
      %1692 = vrot.lane.b32.xlu0 %v901, 24
      %v1693 = vpop.permute.xlu0 %1692
      %1694 = vrot.lane.b32.xlu0 %v902, 24
      %v1695 = vpop.permute.xlu0 %1694
      %1696 = vrot.lane.b32.xlu0 %v903, 24
      %v1697 = vpop.permute.xlu0 %1696
      %1698 = vrot.lane.b32.xlu0 %v904, 24
      %v1699 = vpop.permute.xlu0 %1698
      %1700 = vrot.lane.b32.xlu0 %v905, 24
      %v1701 = vpop.permute.xlu0 %1700
      %1702 = vrot.lane.b32.xlu0 %v906, 24
      %v1703 = vpop.permute.xlu0 %1702
      %1704 = vrot.lane.b32.xlu0 %v907, 24
      %v1705 = vpop.permute.xlu0 %1704
      %1706 = vrot.lane.b32.xlu0 %v908, 24
      %v1707 = vpop.permute.xlu0 %1706
      %1708 = vrot.lane.b32.xlu0 %v909, 24
      %v1709 = vpop.permute.xlu0 %1708
      %1774 = vrot.lane.b32.xlu0 %v910, 28
      %v1775 = vpop.permute.xlu0 %1774
      %1776 = vrot.lane.b32.xlu0 %v911, 28
      %v1777 = vpop.permute.xlu0 %1776
      %1778 = vrot.lane.b32.xlu0 %v912, 28
      %v1779 = vpop.permute.xlu0 %1778
      %1780 = vrot.lane.b32.xlu0 %v913, 28
      %v1781 = vpop.permute.xlu0 %1780
      %1782 = vrot.lane.b32.xlu0 %v914, 28
      %v1783 = vpop.permute.xlu0 %1782
      %1784 = vrot.lane.b32.xlu0 %v915, 28
      %v1785 = vpop.permute.xlu0 %1784
      %1786 = vrot.lane.b32.xlu0 %v916, 28
      %v1787 = vpop.permute.xlu0 %1786
      %1788 = vrot.lane.b32.xlu0 %v917, 28
      %v1789 = vpop.permute.xlu0 %1788
      %1790 = vrot.lane.b32.xlu0 %v918, 28
      %v1791 = vpop.permute.xlu0 %1790
      %1792 = vrot.lane.b32.xlu0 %v919, 28
      %v1793 = vpop.permute.xlu0 %1792
      %1794 = vrot.lane.b32.xlu0 %v920, 28
      %v1795 = vpop.permute.xlu0 %1794
      %1796 = vrot.lane.b32.xlu0 %v921, 28
      %v1797 = vpop.permute.xlu0 %1796
      %1798 = vrot.lane.b32.xlu0 %v922, 28
      %v1799 = vpop.permute.xlu0 %1798
      %1800 = vrot.lane.b32.xlu0 %v923, 28
      %v1801 = vpop.permute.xlu0 %1800
      %1802 = vrot.lane.b32.xlu0 %v924, 28
      %v1803 = vpop.permute.xlu0 %1802
      %1804 = vrot.lane.b32.xlu0 %v925, 28
      %v1805 = vpop.permute.xlu0 %1804
      %1806 = vrot.lane.b32.xlu0 %v926, 28
      %v1807 = vpop.permute.xlu0 %1806
      %1808 = vrot.lane.b32.xlu0 %v927, 28
      %v1809 = vpop.permute.xlu0 %1808
      %1810 = vrot.lane.b32.xlu0 %v928, 28
      %v1811 = vpop.permute.xlu0 %1810
      %1812 = vrot.lane.b32.xlu0 %v929, 28
      %v1813 = vpop.permute.xlu0 %1812
      %1814 = vrot.lane.b32.xlu0 %v930, 28
      %v1815 = vpop.permute.xlu0 %1814
      %1816 = vrot.lane.b32.xlu0 %v931, 28
      %v1817 = vpop.permute.xlu0 %1816
      %1818 = vrot.lane.b32.xlu0 %v932, 28
      %v1819 = vpop.permute.xlu0 %1818
      %1820 = vrot.lane.b32.xlu0 %v933, 28
      %v1821 = vpop.permute.xlu0 %1820
      %1822 = vrot.lane.b32.xlu0 %v934, 28
      %v1823 = vpop.permute.xlu0 %1822
      %1824 = vrot.lane.b32.xlu0 %v935, 28
      %v1825 = vpop.permute.xlu0 %1824
      %1826 = vrot.lane.b32.xlu0 %v936, 28
      %v1827 = vpop.permute.xlu0 %1826
      %1828 = vrot.lane.b32.xlu0 %v937, 28
      %v1829 = vpop.permute.xlu0 %1828
      %1830 = vrot.lane.b32.xlu0 %v938, 28
      %v1831 = vpop.permute.xlu0 %1830
      %1832 = vrot.lane.b32.xlu0 %v939, 28
      %v1833 = vpop.permute.xlu0 %1832
      %1834 = vrot.lane.b32.xlu0 %v940, 28
      %v1835 = vpop.permute.xlu0 %1834
      %1836 = vrot.lane.b32.xlu0 %v941, 28
      %v1837 = vpop.permute.xlu0 %1836
      %1902 = vrot.lane.b32.xlu0 %v942, 32
      %v1903 = vpop.permute.xlu0 %1902
      %1904 = vrot.lane.b32.xlu0 %v943, 32
      %v1905 = vpop.permute.xlu0 %1904
      %1906 = vrot.lane.b32.xlu0 %v944, 32
      %v1907 = vpop.permute.xlu0 %1906
      %1908 = vrot.lane.b32.xlu0 %v945, 32
      %v1909 = vpop.permute.xlu0 %1908
      %1910 = vrot.lane.b32.xlu0 %v946, 32
      %v1911 = vpop.permute.xlu0 %1910
      %1912 = vrot.lane.b32.xlu0 %v947, 32
      %v1913 = vpop.permute.xlu0 %1912
      %1914 = vrot.lane.b32.xlu0 %v948, 32
      %v1915 = vpop.permute.xlu0 %1914
      %1916 = vrot.lane.b32.xlu0 %v949, 32
      %v1917 = vpop.permute.xlu0 %1916
      %1918 = vrot.lane.b32.xlu0 %v950, 32
      %v1919 = vpop.permute.xlu0 %1918
      %1920 = vrot.lane.b32.xlu0 %v951, 32
      %v1921 = vpop.permute.xlu0 %1920
      %1922 = vrot.lane.b32.xlu0 %v952, 32
      %v1923 = vpop.permute.xlu0 %1922
      %1924 = vrot.lane.b32.xlu0 %v953, 32
      %v1925 = vpop.permute.xlu0 %1924
      %1926 = vrot.lane.b32.xlu0 %v954, 32
      %v1927 = vpop.permute.xlu0 %1926
      %1928 = vrot.lane.b32.xlu0 %v955, 32
      %v1929 = vpop.permute.xlu0 %1928
      %1930 = vrot.lane.b32.xlu0 %v956, 32
      %v1931 = vpop.permute.xlu0 %1930
      %1932 = vrot.lane.b32.xlu0 %v957, 32
      %v1933 = vpop.permute.xlu0 %1932
      %1934 = vrot.lane.b32.xlu0 %v958, 32
      %v1935 = vpop.permute.xlu0 %1934
      %1936 = vrot.lane.b32.xlu0 %v959, 32
      %v1937 = vpop.permute.xlu0 %1936
      %1938 = vrot.lane.b32.xlu0 %v960, 32
      %v1939 = vpop.permute.xlu0 %1938
      %1940 = vrot.lane.b32.xlu0 %v961, 32
      %v1941 = vpop.permute.xlu0 %1940
      %1942 = vrot.lane.b32.xlu0 %v962, 32
      %v1943 = vpop.permute.xlu0 %1942
      %1944 = vrot.lane.b32.xlu0 %v963, 32
      %v1945 = vpop.permute.xlu0 %1944
      %1946 = vrot.lane.b32.xlu0 %v964, 32
      %v1947 = vpop.permute.xlu0 %1946
      %1948 = vrot.lane.b32.xlu0 %v965, 32
      %v1949 = vpop.permute.xlu0 %1948
      %1950 = vrot.lane.b32.xlu0 %v966, 32
      %v1951 = vpop.permute.xlu0 %1950
      %1952 = vrot.lane.b32.xlu0 %v967, 32
      %v1953 = vpop.permute.xlu0 %1952
      %1954 = vrot.lane.b32.xlu0 %v968, 32
      %v1955 = vpop.permute.xlu0 %1954
      %1956 = vrot.lane.b32.xlu0 %v969, 32
      %v1957 = vpop.permute.xlu0 %1956
      %1958 = vrot.lane.b32.xlu0 %v970, 32
      %v1959 = vpop.permute.xlu0 %1958
      %1960 = vrot.lane.b32.xlu0 %v971, 32
      %v1961 = vpop.permute.xlu0 %1960
      %1962 = vrot.lane.b32.xlu0 %v972, 32
      %v1963 = vpop.permute.xlu0 %1962
      %1964 = vrot.lane.b32.xlu0 %v973, 32
      %v1965 = vpop.permute.xlu0 %1964
      %v1998 = vsel %vm433, %v685, %v1007
      %v1999 = vsel %vm433, %v686, %v1009
      %v2000 = vsel %vm433, %v687, %v1011
      %v2001 = vsel %vm433, %v688, %v1013
      %v2002 = vsel %vm433, %v689, %v1015
      %v2003 = vsel %vm433, %v690, %v1017
      %v2004 = vsel %vm433, %v691, %v1019
      %v2005 = vsel %vm433, %v692, %v1021
      %v2006 = vsel %vm433, %v693, %v1023
      %v2007 = vsel %vm433, %v694, %v1025
      %v2008 = vsel %vm433, %v695, %v1027
      %v2009 = vsel %vm433, %v696, %v1029
      %v2010 = vsel %vm433, %v697, %v1031
      %v2011 = vsel %vm433, %v698, %v1033
      %v2012 = vsel %vm433, %v699, %v1035
      %v2013 = vsel %vm433, %v700, %v1037
      %v2014 = vsel %vm433, %v701, %v1039
      %v2015 = vsel %vm433, %v702, %v1041
      %v2016 = vsel %vm433, %v703, %v1043
      %v2017 = vsel %vm433, %v704, %v1045
      %v2018 = vsel %vm433, %v705, %v1047
      %v2019 = vsel %vm433, %v706, %v1049
      %v2020 = vsel %vm433, %v707, %v1051
      %v2021 = vsel %vm433, %v708, %v1053
      %v2022 = vsel %vm433, %v709, %v1055
      %v2023 = vsel %vm433, %v710, %v1057
      %v2024 = vsel %vm433, %v711, %v1059
      %v2025 = vsel %vm433, %v712, %v1061
      %v2026 = vsel %vm433, %v713, %v1063
      %v2027 = vsel %vm433, %v714, %v1065
      %v2028 = vsel %vm433, %v715, %v1067
      %v2029 = vsel %vm433, %v716, %v1069
      %v2030 = vsel %vm506, %v1998, %v1135
      %v2031 = vsel %vm506, %v1999, %v1137
      %v2032 = vsel %vm506, %v2000, %v1139
      %v2033 = vsel %vm506, %v2001, %v1141
      %v2034 = vsel %vm506, %v2002, %v1143
      %v2035 = vsel %vm506, %v2003, %v1145
      %v2036 = vsel %vm506, %v2004, %v1147
      %v2037 = vsel %vm506, %v2005, %v1149
      %v2038 = vsel %vm506, %v2006, %v1151
      %v2039 = vsel %vm506, %v2007, %v1153
      %v2040 = vsel %vm506, %v2008, %v1155
      %v2041 = vsel %vm506, %v2009, %v1157
      %v2042 = vsel %vm506, %v2010, %v1159
      %v2043 = vsel %vm506, %v2011, %v1161
      %v2044 = vsel %vm506, %v2012, %v1163
      %v2045 = vsel %vm506, %v2013, %v1165
      %v2046 = vsel %vm506, %v2014, %v1167
      %v2047 = vsel %vm506, %v2015, %v1169
      %v2048 = vsel %vm506, %v2016, %v1171
      %v2049 = vsel %vm506, %v2017, %v1173
      %v2050 = vsel %vm506, %v2018, %v1175
      %v2051 = vsel %vm506, %v2019, %v1177
      %v2052 = vsel %vm506, %v2020, %v1179
      %v2053 = vsel %vm506, %v2021, %v1181
      %v2054 = vsel %vm506, %v2022, %v1183
      %v2055 = vsel %vm506, %v2023, %v1185
      %v2056 = vsel %vm506, %v2024, %v1187
      %v2057 = vsel %vm506, %v2025, %v1189
      %v2058 = vsel %vm506, %v2026, %v1191
      %v2059 = vsel %vm506, %v2027, %v1193
      %v2060 = vsel %vm506, %v2028, %v1195
      %v2061 = vsel %vm506, %v2029, %v1197
      %vm2062 = vcmask 97280
      %v2063 = vsel %vm2062, %v2030, %v1263
      %v2064 = vsel %vm2062, %v2031, %v1265
      %v2065 = vsel %vm2062, %v2032, %v1267
      %v2066 = vsel %vm2062, %v2033, %v1269
      %v2067 = vsel %vm2062, %v2034, %v1271
      %v2068 = vsel %vm2062, %v2035, %v1273
      %v2069 = vsel %vm2062, %v2036, %v1275
      %v2070 = vsel %vm2062, %v2037, %v1277
      %v2071 = vsel %vm2062, %v2038, %v1279
      %v2072 = vsel %vm2062, %v2039, %v1281
      %v2073 = vsel %vm2062, %v2040, %v1283
      %v2074 = vsel %vm2062, %v2041, %v1285
      %v2075 = vsel %vm2062, %v2042, %v1287
      %v2076 = vsel %vm2062, %v2043, %v1289
      %v2077 = vsel %vm2062, %v2044, %v1291
      %v2078 = vsel %vm2062, %v2045, %v1293
      %v2079 = vsel %vm2062, %v2046, %v1295
      %v2080 = vsel %vm2062, %v2047, %v1297
      %v2081 = vsel %vm2062, %v2048, %v1299
      %v2082 = vsel %vm2062, %v2049, %v1301
      %v2083 = vsel %vm2062, %v2050, %v1303
      %v2084 = vsel %vm2062, %v2051, %v1305
      %v2085 = vsel %vm2062, %v2052, %v1307
      %v2086 = vsel %vm2062, %v2053, %v1309
      %v2087 = vsel %vm2062, %v2054, %v1311
      %v2088 = vsel %vm2062, %v2055, %v1313
      %v2089 = vsel %vm2062, %v2056, %v1315
      %v2090 = vsel %vm2062, %v2057, %v1317
      %v2091 = vsel %vm2062, %v2058, %v1319
      %v2092 = vsel %vm2062, %v2059, %v1321
      %v2093 = vsel %vm2062, %v2060, %v1323
      %v2094 = vsel %vm2062, %v2061, %v1325
      %vm2095 = vcmask 130048
      %v2096 = vsel %vm2095, %v2063, %v1391
      %v2097 = vsel %vm2095, %v2064, %v1393
      %v2098 = vsel %vm2095, %v2065, %v1395
      %v2099 = vsel %vm2095, %v2066, %v1397
      %v2100 = vsel %vm2095, %v2067, %v1399
      %v2101 = vsel %vm2095, %v2068, %v1401
      %v2102 = vsel %vm2095, %v2069, %v1403
      %v2103 = vsel %vm2095, %v2070, %v1405
      %v2104 = vsel %vm2095, %v2071, %v1407
      %v2105 = vsel %vm2095, %v2072, %v1409
      %v2106 = vsel %vm2095, %v2073, %v1411
      %v2107 = vsel %vm2095, %v2074, %v1413
      %v2108 = vsel %vm2095, %v2075, %v1415
      %v2109 = vsel %vm2095, %v2076, %v1417
      %v2110 = vsel %vm2095, %v2077, %v1419
      %v2111 = vsel %vm2095, %v2078, %v1421
      %v2112 = vsel %vm2095, %v2079, %v1423
      %v2113 = vsel %vm2095, %v2080, %v1425
      %v2114 = vsel %vm2095, %v2081, %v1427
      %v2115 = vsel %vm2095, %v2082, %v1429
      %v2116 = vsel %vm2095, %v2083, %v1431
      %v2117 = vsel %vm2095, %v2084, %v1433
      %v2118 = vsel %vm2095, %v2085, %v1435
      %v2119 = vsel %vm2095, %v2086, %v1437
      %v2120 = vsel %vm2095, %v2087, %v1439
      %v2121 = vsel %vm2095, %v2088, %v1441
      %v2122 = vsel %vm2095, %v2089, %v1443
      %v2123 = vsel %vm2095, %v2090, %v1445
      %v2124 = vsel %vm2095, %v2091, %v1447
      %v2125 = vsel %vm2095, %v2092, %v1449
      %v2126 = vsel %vm2095, %v2093, %v1451
      %v2127 = vsel %vm2095, %v2094, %v1453
      %vm2128 = vcmask 162816
      %v2129 = vsel %vm2128, %v2096, %v1519
      %v2130 = vsel %vm2128, %v2097, %v1521
      %v2131 = vsel %vm2128, %v2098, %v1523
      %v2132 = vsel %vm2128, %v2099, %v1525
      %v2133 = vsel %vm2128, %v2100, %v1527
      %v2134 = vsel %vm2128, %v2101, %v1529
      %v2135 = vsel %vm2128, %v2102, %v1531
      %v2136 = vsel %vm2128, %v2103, %v1533
      %v2137 = vsel %vm2128, %v2104, %v1535
      %v2138 = vsel %vm2128, %v2105, %v1537
      %v2139 = vsel %vm2128, %v2106, %v1539
      %v2140 = vsel %vm2128, %v2107, %v1541
      %v2141 = vsel %vm2128, %v2108, %v1543
      %v2142 = vsel %vm2128, %v2109, %v1545
      %v2143 = vsel %vm2128, %v2110, %v1547
      %v2144 = vsel %vm2128, %v2111, %v1549
      %v2145 = vsel %vm2128, %v2112, %v1551
      %v2146 = vsel %vm2128, %v2113, %v1553
      %v2147 = vsel %vm2128, %v2114, %v1555
      %v2148 = vsel %vm2128, %v2115, %v1557
      %v2149 = vsel %vm2128, %v2116, %v1559
      %v2150 = vsel %vm2128, %v2117, %v1561
      %v2151 = vsel %vm2128, %v2118, %v1563
      %v2152 = vsel %vm2128, %v2119, %v1565
      %v2153 = vsel %vm2128, %v2120, %v1567
      %v2154 = vsel %vm2128, %v2121, %v1569
      %v2155 = vsel %vm2128, %v2122, %v1571
      %v2156 = vsel %vm2128, %v2123, %v1573
      %v2157 = vsel %vm2128, %v2124, %v1575
      %v2158 = vsel %vm2128, %v2125, %v1577
      %v2159 = vsel %vm2128, %v2126, %v1579
      %v2160 = vsel %vm2128, %v2127, %v1581
      %vm2161 = vcmask 195584
      %v2162 = vsel %vm2161, %v2129, %v1647
      %v2163 = vsel %vm2161, %v2130, %v1649
      %v2164 = vsel %vm2161, %v2131, %v1651
      %v2165 = vsel %vm2161, %v2132, %v1653
      %v2166 = vsel %vm2161, %v2133, %v1655
      %v2167 = vsel %vm2161, %v2134, %v1657
      %v2168 = vsel %vm2161, %v2135, %v1659
      %v2169 = vsel %vm2161, %v2136, %v1661
      %v2170 = vsel %vm2161, %v2137, %v1663
      %v2171 = vsel %vm2161, %v2138, %v1665
      %v2172 = vsel %vm2161, %v2139, %v1667
      %v2173 = vsel %vm2161, %v2140, %v1669
      %v2174 = vsel %vm2161, %v2141, %v1671
      %v2175 = vsel %vm2161, %v2142, %v1673
      %v2176 = vsel %vm2161, %v2143, %v1675
      %v2177 = vsel %vm2161, %v2144, %v1677
      %v2178 = vsel %vm2161, %v2145, %v1679
      %v2179 = vsel %vm2161, %v2146, %v1681
      %v2180 = vsel %vm2161, %v2147, %v1683
      %v2181 = vsel %vm2161, %v2148, %v1685
      %v2182 = vsel %vm2161, %v2149, %v1687
      %v2183 = vsel %vm2161, %v2150, %v1689
      %v2184 = vsel %vm2161, %v2151, %v1691
      %v2185 = vsel %vm2161, %v2152, %v1693
      %v2186 = vsel %vm2161, %v2153, %v1695
      %v2187 = vsel %vm2161, %v2154, %v1697
      %v2188 = vsel %vm2161, %v2155, %v1699
      %v2189 = vsel %vm2161, %v2156, %v1701
      %v2190 = vsel %vm2161, %v2157, %v1703
      %v2191 = vsel %vm2161, %v2158, %v1705
      %v2192 = vsel %vm2161, %v2159, %v1707
      %v2193 = vsel %vm2161, %v2160, %v1709
      %vm2194 = vcmask 228352
      %v2195 = vsel %vm2194, %v2162, %v1775
      %v2196 = vsel %vm2194, %v2163, %v1777
      %v2197 = vsel %vm2194, %v2164, %v1779
      %v2198 = vsel %vm2194, %v2165, %v1781
      %v2199 = vsel %vm2194, %v2166, %v1783
      %v2200 = vsel %vm2194, %v2167, %v1785
      %v2201 = vsel %vm2194, %v2168, %v1787
      %v2202 = vsel %vm2194, %v2169, %v1789
      %v2203 = vsel %vm2194, %v2170, %v1791
      %v2204 = vsel %vm2194, %v2171, %v1793
      %v2205 = vsel %vm2194, %v2172, %v1795
      %v2206 = vsel %vm2194, %v2173, %v1797
      %v2207 = vsel %vm2194, %v2174, %v1799
      %v2208 = vsel %vm2194, %v2175, %v1801
      %v2209 = vsel %vm2194, %v2176, %v1803
      %v2210 = vsel %vm2194, %v2177, %v1805
      %v2211 = vsel %vm2194, %v2178, %v1807
      %v2212 = vsel %vm2194, %v2179, %v1809
      %v2213 = vsel %vm2194, %v2180, %v1811
      %v2214 = vsel %vm2194, %v2181, %v1813
      %v2215 = vsel %vm2194, %v2182, %v1815
      %v2216 = vsel %vm2194, %v2183, %v1817
      %v2217 = vsel %vm2194, %v2184, %v1819
      %v2218 = vsel %vm2194, %v2185, %v1821
      %v2219 = vsel %vm2194, %v2186, %v1823
      %v2220 = vsel %vm2194, %v2187, %v1825
      %v2221 = vsel %vm2194, %v2188, %v1827
      %v2222 = vsel %vm2194, %v2189, %v1829
      %v2223 = vsel %vm2194, %v2190, %v1831
      %v2224 = vsel %vm2194, %v2191, %v1833
      %v2225 = vsel %vm2194, %v2192, %v1835
      %v2226 = vsel %vm2194, %v2193, %v1837
      %v2227 = vsel %vm579, %v2195, %v1903
      %v2228 = vsel %vm579, %v2196, %v1905
      %v2229 = vsel %vm579, %v2197, %v1907
      %v2230 = vsel %vm579, %v2198, %v1909
      %v2231 = vsel %vm579, %v2199, %v1911
      %v2232 = vsel %vm579, %v2200, %v1913
      %v2233 = vsel %vm579, %v2201, %v1915
      %v2234 = vsel %vm579, %v2202, %v1917
      %v2235 = vsel %vm579, %v2203, %v1919
      %v2236 = vsel %vm579, %v2204, %v1921
      %v2237 = vsel %vm579, %v2205, %v1923
      %v2238 = vsel %vm579, %v2206, %v1925
      %v2239 = vsel %vm579, %v2207, %v1927
      %v2240 = vsel %vm579, %v2208, %v1929
      %v2241 = vsel %vm579, %v2209, %v1931
      %v2242 = vsel %vm579, %v2210, %v1933
      %v2243 = vsel %vm579, %v2211, %v1935
      %v2244 = vsel %vm579, %v2212, %v1937
      %v2245 = vsel %vm579, %v2213, %v1939
      %v2246 = vsel %vm579, %v2214, %v1941
      %v2247 = vsel %vm579, %v2215, %v1943
      %v2248 = vsel %vm579, %v2216, %v1945
      %v2249 = vsel %vm579, %v2217, %v1947
      %v2250 = vsel %vm579, %v2218, %v1949
      %v2251 = vsel %vm579, %v2219, %v1951
      %v2252 = vsel %vm579, %v2220, %v1953
      %v2253 = vsel %vm579, %v2221, %v1955
      %v2254 = vsel %vm579, %v2222, %v1957
      %v2255 = vsel %vm579, %v2223, %v1959
      %v2256 = vsel %vm579, %v2224, %v1961
      %v2257 = vsel %vm579, %v2225, %v1963
      %v2258 = vsel %vm579, %v2226, %v1965
      %v2259 = vpack.c.bf16 %v2228, %v2227
      %v2260 = vpack.c.bf16 %v2230, %v2229
      %v2261 = vpack.c.bf16 %v2232, %v2231
      %v2262 = vpack.c.bf16 %v2234, %v2233
      %v2263 = vpack.c.bf16 %v2236, %v2235
      %v2264 = vpack.c.bf16 %v2238, %v2237
      %v2265 = vpack.c.bf16 %v2240, %v2239
      %v2266 = vpack.c.bf16 %v2242, %v2241
      %v2267 = vpack.c.bf16 %v2244, %v2243
      %v2268 = vpack.c.bf16 %v2246, %v2245
      %v2269 = vpack.c.bf16 %v2248, %v2247
      %v2270 = vpack.c.bf16 %v2250, %v2249
      %v2271 = vpack.c.bf16 %v2252, %v2251
      %v2272 = vpack.c.bf16 %v2254, %v2253
      %v2273 = vpack.c.bf16 %v2256, %v2255
      %v2274 = vpack.c.bf16 %v2258, %v2257
      %v2275 = vld [vmem:[%s1] sm:$0xf]
      %v2276 = vld [vmem:[%s1 + $0x4] sm:$0xf]
      %v2277 = vld [vmem:[%s1 + $0x8] sm:$0xf]
      %v2278 = vld [vmem:[%s1 + $0xc] sm:$0xf]
      %v2279 = vld [vmem:[%s1 + $0x10] sm:$0x3]
      %v2280 = vld [vmem:[%s2] sm:$0x1]
      %v2282 = vperm.slane %v2280, 0
      %v2289 = vunpack.c.l.b16 %v2275
      %v2290 = vunpack.c.l.b16 %v2276
      %v2291 = vunpack.c.l.b16 %v2277
      %v2292 = vunpack.c.l.b16 %v2278
      %v2293 = vunpack.c.l.b16 %v2279
      %v2294 = vpack.c.b16 %v2290, %v2289
      %v2295 = vpack.c.b16 %v2292, %v2291
      %v2296 = vpack.c.b16 %v2293, %v2293
      %vm2299 = vcmask 293888
      %v2301 = vsel %vm2299, %v2259, 0
      %v2304 = vsel %vm2299, %v2260, 0
      %v2307 = vsel %vm2299, %v2261, 0
      %v2310 = vsel %vm2299, %v2262, 0
      %v2313 = vsel %vm2299, %v2263, 0
      %v2316 = vsel %vm2299, %v2264, 0
      %v2319 = vsel %vm2299, %v2265, 0
      %v2322 = vsel %vm2299, %v2266, 0
      %v2325 = vsel %vm2299, %v2267, 0
      %v2328 = vsel %vm2299, %v2268, 0
      %v2331 = vsel %vm2299, %v2269, 0
      %v2334 = vsel %vm2299, %v2270, 0
      %v2337 = vsel %vm2299, %v2271, 0
      %v2340 = vsel %vm2299, %v2272, 0
      %v2343 = vsel %vm2299, %v2273, 0
      %v2346 = vsel %vm2299, %v2274, 0
      %vm2348 = vcmask 1041408
      %v2350 = vsel %vm2348, %v2296, 0
      %2352 = vmatpush.bf16.msra.mxu0 0
      %2353 = vmatpush.bf16.msra.mxu0 0
      %2354 = vmatpush.bf16.msra.mxu0 0
      %2355 = vmatpush.bf16.msra.mxu0 0
      %2356 = vmatpush.bf16.msra.mxu0 0
      %2357 = vmatpush.bf16.msra.mxu0 %v2350
      %2358 = vmatpush.bf16.msra.mxu0 %v2295
      %2359 = vmatpush.bf16.msra.mxu0 %v2294
      %2360 = vmatmul.bf16.gmra.mxu0 %v2301
      %v2361 = vpop.f32.mrf.mxu0
      %v2362 = vadd.f32 %v2282, %v2361
      %v2363 = vpop.f32.mrf.mxu0
      %v2364 = vadd.f32 %v2282, %v2363
      %2365 = vmatmul.bf16.gmra.mxu0 %v2304
      %v2366 = vpop.f32.mrf.mxu0
      %v2367 = vadd.f32 %v2282, %v2366
      %v2368 = vpop.f32.mrf.mxu0
      %v2369 = vadd.f32 %v2282, %v2368
      %2370 = vmatmul.bf16.gmra.mxu0 %v2307
      %v2371 = vpop.f32.mrf.mxu0
      %v2372 = vadd.f32 %v2282, %v2371
      %v2373 = vpop.f32.mrf.mxu0
      %v2374 = vadd.f32 %v2282, %v2373
      %2375 = vmatmul.bf16.gmra.mxu0 %v2310
      %v2376 = vpop.f32.mrf.mxu0
      %v2377 = vadd.f32 %v2282, %v2376
      %v2378 = vpop.f32.mrf.mxu0
      %v2379 = vadd.f32 %v2282, %v2378
      %2380 = vmatmul.bf16.gmra.mxu0 %v2313
      %v2381 = vpop.f32.mrf.mxu0
      %v2382 = vadd.f32 %v2282, %v2381
      %v2383 = vpop.f32.mrf.mxu0
      %v2384 = vadd.f32 %v2282, %v2383
      %2385 = vmatmul.bf16.gmra.mxu0 %v2316
      %v2386 = vpop.f32.mrf.mxu0
      %v2387 = vadd.f32 %v2282, %v2386
      %v2388 = vpop.f32.mrf.mxu0
      %v2389 = vadd.f32 %v2282, %v2388
      %2390 = vmatmul.bf16.gmra.mxu0 %v2319
      %v2391 = vpop.f32.mrf.mxu0
      %v2392 = vadd.f32 %v2282, %v2391
      %v2393 = vpop.f32.mrf.mxu0
      %v2394 = vadd.f32 %v2282, %v2393
      %2395 = vmatmul.bf16.gmra.mxu0 %v2322
      %v2396 = vpop.f32.mrf.mxu0
      %v2397 = vadd.f32 %v2282, %v2396
      %v2398 = vpop.f32.mrf.mxu0
      %v2399 = vadd.f32 %v2282, %v2398
      %2400 = vmatmul.bf16.gmra.mxu0 %v2325
      %v2401 = vpop.f32.mrf.mxu0
      %v2402 = vadd.f32 %v2282, %v2401
      %v2403 = vpop.f32.mrf.mxu0
      %v2404 = vadd.f32 %v2282, %v2403
      %2405 = vmatmul.bf16.gmra.mxu0 %v2328
      %v2406 = vpop.f32.mrf.mxu0
      %v2407 = vadd.f32 %v2282, %v2406
      %v2408 = vpop.f32.mrf.mxu0
      %v2409 = vadd.f32 %v2282, %v2408
      %2410 = vmatmul.bf16.gmra.mxu0 %v2331
      %v2411 = vpop.f32.mrf.mxu0
      %v2412 = vadd.f32 %v2282, %v2411
      %v2413 = vpop.f32.mrf.mxu0
      %v2414 = vadd.f32 %v2282, %v2413
      %2415 = vmatmul.bf16.gmra.mxu0 %v2334
      %v2416 = vpop.f32.mrf.mxu0
      %v2417 = vadd.f32 %v2282, %v2416
      %v2418 = vpop.f32.mrf.mxu0
      %v2419 = vadd.f32 %v2282, %v2418
      %2420 = vmatmul.bf16.gmra.mxu0 %v2337
      %v2421 = vpop.f32.mrf.mxu0
      %v2422 = vadd.f32 %v2282, %v2421
      %v2423 = vpop.f32.mrf.mxu0
      %v2424 = vadd.f32 %v2282, %v2423
      %2425 = vmatmul.bf16.gmra.mxu0 %v2340
      %v2426 = vpop.f32.mrf.mxu0
      %v2427 = vadd.f32 %v2282, %v2426
      %v2428 = vpop.f32.mrf.mxu0
      %v2429 = vadd.f32 %v2282, %v2428
      %2430 = vmatmul.bf16.gmra.mxu0 %v2343
      %v2431 = vpop.f32.mrf.mxu0
      %v2432 = vadd.f32 %v2282, %v2431
      %v2433 = vpop.f32.mrf.mxu0
      %v2434 = vadd.f32 %v2282, %v2433
      %2435 = vmatmul.bf16.gmra.mxu0 %v2346
      %v2436 = vpop.f32.mrf.mxu0
      %v2437 = vadd.f32 %v2282, %v2436
      %v2438 = vpop.f32.mrf.mxu0
      %v2439 = vadd.f32 %v2282, %v2438
      %2440 = vdwg.mxu0
      %v2441 = vmax.f32 %v2362, 0.0
      %v2442 = vmax.f32 %v2364, 0.0
      %v2443 = vmax.f32 %v2367, 0.0
      %v2444 = vmax.f32 %v2369, 0.0
      %v2445 = vmax.f32 %v2372, 0.0
      %v2446 = vmax.f32 %v2374, 0.0
      %v2447 = vmax.f32 %v2377, 0.0
      %v2448 = vmax.f32 %v2379, 0.0
      %v2449 = vmax.f32 %v2382, 0.0
      %v2450 = vmax.f32 %v2384, 0.0
      %v2451 = vmax.f32 %v2387, 0.0
      %v2452 = vmax.f32 %v2389, 0.0
      %v2453 = vmax.f32 %v2392, 0.0
      %v2454 = vmax.f32 %v2394, 0.0
      %v2455 = vmax.f32 %v2397, 0.0
      %v2456 = vmax.f32 %v2399, 0.0
      %v2457 = vmax.f32 %v2402, 0.0
      %v2458 = vmax.f32 %v2404, 0.0
      %v2459 = vmax.f32 %v2407, 0.0
      %v2460 = vmax.f32 %v2409, 0.0
      %v2461 = vmax.f32 %v2412, 0.0
      %v2462 = vmax.f32 %v2414, 0.0
      %v2463 = vmax.f32 %v2417, 0.0
      %v2464 = vmax.f32 %v2419, 0.0
      %v2465 = vmax.f32 %v2422, 0.0
      %v2466 = vmax.f32 %v2424, 0.0
      %v2467 = vmax.f32 %v2427, 0.0
      %v2468 = vmax.f32 %v2429, 0.0
      %v2469 = vmax.f32 %v2432, 0.0
      %v2470 = vmax.f32 %v2434, 0.0
      %v2471 = vmax.f32 %v2437, 0.0
      %v2472 = vmax.f32 %v2439, 0.0
      %s2473 = scalar_lea.vmem [#allocation4], 32
      %2474 = vst.msk [vmem:[%s2473 + $0x8] sm:$0xff] %vm579, %v2441
      %2475 = vst.msk [vmem:[%s2473 + $0x10] sm:$0xff] %vm579, %v2442
      %2476 = vst.msk [vmem:[%s2473 + $0x28] sm:$0xff] %vm579, %v2443
      %2477 = vst.msk [vmem:[%s2473 + $0x30] sm:$0xff] %vm579, %v2444
      %2478 = vst.msk [vmem:[%s2473 + $0x48] sm:$0xff] %vm579, %v2445
      %2479 = vst.msk [vmem:[%s2473 + $0x50] sm:$0xff] %vm579, %v2446
      %2480 = vst.msk [vmem:[%s2473 + $0x68] sm:$0xff] %vm579, %v2447
      %2481 = vst.msk [vmem:[%s2473 + $0x70] sm:$0xff] %vm579, %v2448
      %2482 = vst.msk [vmem:[%s2473 + $0x88] sm:$0xff] %vm579, %v2449
      %2483 = vst.msk [vmem:[%s2473 + $0x90] sm:$0xff] %vm579, %v2450
      %2484 = vst.msk [vmem:[%s2473 + $0xa8] sm:$0xff] %vm579, %v2451
      %2485 = vst.msk [vmem:[%s2473 + $0xb0] sm:$0xff] %vm579, %v2452
      %2486 = vst.msk [vmem:[%s2473 + $0xc8] sm:$0xff] %vm579, %v2453
      %2487 = vst.msk [vmem:[%s2473 + $0xd0] sm:$0xff] %vm579, %v2454
      %2488 = vst.msk [vmem:[%s2473 + $0xe8] sm:$0xff] %vm579, %v2455
      %2489 = vst.msk [vmem:[%s2473 + $0xf0] sm:$0xff] %vm579, %v2456
      %2490 = vst.msk [vmem:[%s2473 + $0x108] sm:$0xff] %vm579, %v2457
      %2491 = vst.msk [vmem:[%s2473 + $0x110] sm:$0xff] %vm579, %v2458
      %2492 = vst.msk [vmem:[%s2473 + $0x128] sm:$0xff] %vm579, %v2459
      %2493 = vst.msk [vmem:[%s2473 + $0x130] sm:$0xff] %vm579, %v2460
      %2494 = vst.msk [vmem:[%s2473 + $0x148] sm:$0xff] %vm579, %v2461
      %2495 = vst.msk [vmem:[%s2473 + $0x150] sm:$0xff] %vm579, %v2462
      %2496 = vst.msk [vmem:[%s2473 + $0x168] sm:$0xff] %vm579, %v2463
      %2497 = vst.msk [vmem:[%s2473 + $0x170] sm:$0xff] %vm579, %v2464
      %2498 = vst.msk [vmem:[%s2473 + $0x188] sm:$0xff] %vm579, %v2465
      %2499 = vst.msk [vmem:[%s2473 + $0x190] sm:$0xff] %vm579, %v2466
      %2500 = vst.msk [vmem:[%s2473 + $0x1a8] sm:$0xff] %vm579, %v2467
      %2501 = vst.msk [vmem:[%s2473 + $0x1b0] sm:$0xff] %vm579, %v2468
      %2502 = vst.msk [vmem:[%s2473 + $0x1c8] sm:$0xff] %vm579, %v2469
      %2503 = vst.msk [vmem:[%s2473 + $0x1d0] sm:$0xff] %vm579, %v2470
      %2504 = vst.msk [vmem:[%s2473 + $0x1e8] sm:$0xff] %vm579, %v2471
      %2505 = vst.msk [vmem:[%s2473 + $0x1f0] sm:$0xff] %vm579, %v2472
      %v2506 = vld [vmem:[#allocation4 + $0x7] sm:$0xff]
      %v2507 = vld [vmem:[#allocation4 + $0xf] sm:$0xff]
      %v2508 = vld [vmem:[#allocation4 + $0x27] sm:$0xff]
      %v2509 = vld [vmem:[#allocation4 + $0x2f] sm:$0xff]
      %v2510 = vld [vmem:[#allocation4 + $0x47] sm:$0xff]
      %v2511 = vld [vmem:[#allocation4 + $0x4f] sm:$0xff]
      %v2512 = vld [vmem:[#allocation4 + $0x67] sm:$0xff]
      %v2513 = vld [vmem:[#allocation4 + $0x6f] sm:$0xff]
      %v2514 = vld [vmem:[#allocation4 + $0x87] sm:$0xff]
      %v2515 = vld [vmem:[#allocation4 + $0x8f] sm:$0xff]
      %v2516 = vld [vmem:[#allocation4 + $0xa7] sm:$0xff]
      %v2517 = vld [vmem:[#allocation4 + $0xaf] sm:$0xff]
      %v2518 = vld [vmem:[#allocation4 + $0xc7] sm:$0xff]
      %v2519 = vld [vmem:[#allocation4 + $0xcf] sm:$0xff]
      %v2520 = vld [vmem:[#allocation4 + $0xe7] sm:$0xff]
      %v2521 = vld [vmem:[#allocation4 + $0xef] sm:$0xff]
      %v2522 = vld [vmem:[#allocation4 + $0x107] sm:$0xff]
      %v2523 = vld [vmem:[#allocation4 + $0x10f] sm:$0xff]
      %v2524 = vld [vmem:[#allocation4 + $0x127] sm:$0xff]
      %v2525 = vld [vmem:[#allocation4 + $0x12f] sm:$0xff]
      %v2526 = vld [vmem:[#allocation4 + $0x147] sm:$0xff]
      %v2527 = vld [vmem:[#allocation4 + $0x14f] sm:$0xff]
      %v2528 = vld [vmem:[#allocation4 + $0x167] sm:$0xff]
      %v2529 = vld [vmem:[#allocation4 + $0x16f] sm:$0xff]
      %v2530 = vld [vmem:[#allocation4 + $0x187] sm:$0xff]
      %v2531 = vld [vmem:[#allocation4 + $0x18f] sm:$0xff]
      %v2532 = vld [vmem:[#allocation4 + $0x1a7] sm:$0xff]
      %v2533 = vld [vmem:[#allocation4 + $0x1af] sm:$0xff]
      %v2534 = vld [vmem:[#allocation4 + $0x1c7] sm:$0xff]
      %v2535 = vld [vmem:[#allocation4 + $0x1cf] sm:$0xff]
      %v2536 = vld [vmem:[#allocation4 + $0x1e7] sm:$0xff]
      %v2537 = vld [vmem:[#allocation4 + $0x1ef] sm:$0xff]
      %v2538 = vld [vmem:[#allocation4 + $0x8] sm:$0xff]
      %v2539 = vld [vmem:[#allocation4 + $0x10] sm:$0xff]
      %v2540 = vld [vmem:[#allocation4 + $0x28] sm:$0xff]
      %v2541 = vld [vmem:[#allocation4 + $0x30] sm:$0xff]
      %v2542 = vld [vmem:[#allocation4 + $0x48] sm:$0xff]
      %v2543 = vld [vmem:[#allocation4 + $0x50] sm:$0xff]
      %v2544 = vld [vmem:[#allocation4 + $0x68] sm:$0xff]
      %v2545 = vld [vmem:[#allocation4 + $0x70] sm:$0xff]
      %v2546 = vld [vmem:[#allocation4 + $0x88] sm:$0xff]
      %v2547 = vld [vmem:[#allocation4 + $0x90] sm:$0xff]
      %v2548 = vld [vmem:[#allocation4 + $0xa8] sm:$0xff]
      %v2549 = vld [vmem:[#allocation4 + $0xb0] sm:$0xff]
      %v2550 = vld [vmem:[#allocation4 + $0xc8] sm:$0xff]
      %v2551 = vld [vmem:[#allocation4 + $0xd0] sm:$0xff]
      %v2552 = vld [vmem:[#allocation4 + $0xe8] sm:$0xff]
      %v2553 = vld [vmem:[#allocation4 + $0xf0] sm:$0xff]
      %v2554 = vld [vmem:[#allocation4 + $0x108] sm:$0xff]
      %v2555 = vld [vmem:[#allocation4 + $0x110] sm:$0xff]
      %v2556 = vld [vmem:[#allocation4 + $0x128] sm:$0xff]
      %v2557 = vld [vmem:[#allocation4 + $0x130] sm:$0xff]
      %v2558 = vld [vmem:[#allocation4 + $0x148] sm:$0xff]
      %v2559 = vld [vmem:[#allocation4 + $0x150] sm:$0xff]
      %v2560 = vld [vmem:[#allocation4 + $0x168] sm:$0xff]
      %v2561 = vld [vmem:[#allocation4 + $0x170] sm:$0xff]
      %v2562 = vld [vmem:[#allocation4 + $0x188] sm:$0xff]
      %v2563 = vld [vmem:[#allocation4 + $0x190] sm:$0xff]
      %v2564 = vld [vmem:[#allocation4 + $0x1a8] sm:$0xff]
      %v2565 = vld [vmem:[#allocation4 + $0x1b0] sm:$0xff]
      %v2566 = vld [vmem:[#allocation4 + $0x1c8] sm:$0xff]
      %v2567 = vld [vmem:[#allocation4 + $0x1d0] sm:$0xff]
      %v2568 = vld [vmem:[#allocation4 + $0x1e8] sm:$0xff]
      %v2569 = vld [vmem:[#allocation4 + $0x1f0] sm:$0xff]
      %v2570 = vld [vmem:[#allocation4 + $0x9] sm:$0xff]
      %v2571 = vld [vmem:[#allocation4 + $0x11] sm:$0xff]
      %v2572 = vld [vmem:[#allocation4 + $0x29] sm:$0xff]
      %v2573 = vld [vmem:[#allocation4 + $0x31] sm:$0xff]
      %v2574 = vld [vmem:[#allocation4 + $0x49] sm:$0xff]
      %v2575 = vld [vmem:[#allocation4 + $0x51] sm:$0xff]
      %v2576 = vld [vmem:[#allocation4 + $0x69] sm:$0xff]
      %v2577 = vld [vmem:[#allocation4 + $0x71] sm:$0xff]
      %v2578 = vld [vmem:[#allocation4 + $0x89] sm:$0xff]
      %v2579 = vld [vmem:[#allocation4 + $0x91] sm:$0xff]
      %v2580 = vld [vmem:[#allocation4 + $0xa9] sm:$0xff]
      %v2581 = vld [vmem:[#allocation4 + $0xb1] sm:$0xff]
      %v2582 = vld [vmem:[#allocation4 + $0xc9] sm:$0xff]
      %v2583 = vld [vmem:[#allocation4 + $0xd1] sm:$0xff]
      %v2584 = vld [vmem:[#allocation4 + $0xe9] sm:$0xff]
      %v2585 = vld [vmem:[#allocation4 + $0xf1] sm:$0xff]
      %v2586 = vld [vmem:[#allocation4 + $0x109] sm:$0xff]
      %v2587 = vld [vmem:[#allocation4 + $0x111] sm:$0xff]
      %v2588 = vld [vmem:[#allocation4 + $0x129] sm:$0xff]
      %v2589 = vld [vmem:[#allocation4 + $0x131] sm:$0xff]
      %v2590 = vld [vmem:[#allocation4 + $0x149] sm:$0xff]
      %v2591 = vld [vmem:[#allocation4 + $0x151] sm:$0xff]
      %v2592 = vld [vmem:[#allocation4 + $0x169] sm:$0xff]
      %v2593 = vld [vmem:[#allocation4 + $0x171] sm:$0xff]
      %v2594 = vld [vmem:[#allocation4 + $0x189] sm:$0xff]
      %v2595 = vld [vmem:[#allocation4 + $0x191] sm:$0xff]
      %v2596 = vld [vmem:[#allocation4 + $0x1a9] sm:$0xff]
      %v2597 = vld [vmem:[#allocation4 + $0x1b1] sm:$0xff]
      %v2598 = vld [vmem:[#allocation4 + $0x1c9] sm:$0xff]
      %v2599 = vld [vmem:[#allocation4 + $0x1d1] sm:$0xff]
      %v2600 = vld [vmem:[#allocation4 + $0x1e9] sm:$0xff]
      %v2601 = vld [vmem:[#allocation4 + $0x1f1] sm:$0xff]
      %v2602 = vld [vmem:[%s2473 + $0x7] sm:$0xff]
      %v2603 = vld [vmem:[%s2473 + $0xf] sm:$0xff]
      %v2604 = vld [vmem:[%s2473 + $0x27] sm:$0xff]
      %v2605 = vld [vmem:[%s2473 + $0x2f] sm:$0xff]
      %v2606 = vld [vmem:[%s2473 + $0x47] sm:$0xff]
      %v2607 = vld [vmem:[%s2473 + $0x4f] sm:$0xff]
      %v2608 = vld [vmem:[%s2473 + $0x67] sm:$0xff]
      %v2609 = vld [vmem:[%s2473 + $0x6f] sm:$0xff]
      %v2610 = vld [vmem:[%s2473 + $0x87] sm:$0xff]
      %v2611 = vld [vmem:[%s2473 + $0x8f] sm:$0xff]
      %v2612 = vld [vmem:[%s2473 + $0xa7] sm:$0xff]
      %v2613 = vld [vmem:[%s2473 + $0xaf] sm:$0xff]
      %v2614 = vld [vmem:[%s2473 + $0xc7] sm:$0xff]
      %v2615 = vld [vmem:[%s2473 + $0xcf] sm:$0xff]
      %v2616 = vld [vmem:[%s2473 + $0xe7] sm:$0xff]
      %v2617 = vld [vmem:[%s2473 + $0xef] sm:$0xff]
      %v2618 = vld [vmem:[%s2473 + $0x107] sm:$0xff]
      %v2619 = vld [vmem:[%s2473 + $0x10f] sm:$0xff]
      %v2620 = vld [vmem:[%s2473 + $0x127] sm:$0xff]
      %v2621 = vld [vmem:[%s2473 + $0x12f] sm:$0xff]
      %v2622 = vld [vmem:[%s2473 + $0x147] sm:$0xff]
      %v2623 = vld [vmem:[%s2473 + $0x14f] sm:$0xff]
      %v2624 = vld [vmem:[%s2473 + $0x167] sm:$0xff]
      %v2625 = vld [vmem:[%s2473 + $0x16f] sm:$0xff]
      %v2626 = vld [vmem:[%s2473 + $0x187] sm:$0xff]
      %v2627 = vld [vmem:[%s2473 + $0x18f] sm:$0xff]
      %v2628 = vld [vmem:[%s2473 + $0x1a7] sm:$0xff]
      %v2629 = vld [vmem:[%s2473 + $0x1af] sm:$0xff]
      %v2630 = vld [vmem:[%s2473 + $0x1c7] sm:$0xff]
      %v2631 = vld [vmem:[%s2473 + $0x1cf] sm:$0xff]
      %v2632 = vld [vmem:[%s2473 + $0x1e7] sm:$0xff]
      %v2633 = vld [vmem:[%s2473 + $0x1ef] sm:$0xff]
      %v2634 = vld [vmem:[%s2473 + $0x8] sm:$0xff]
      %v2635 = vld [vmem:[%s2473 + $0x10] sm:$0xff]
      %v2636 = vld [vmem:[%s2473 + $0x28] sm:$0xff]
      %v2637 = vld [vmem:[%s2473 + $0x30] sm:$0xff]
      %v2638 = vld [vmem:[%s2473 + $0x48] sm:$0xff]
      %v2639 = vld [vmem:[%s2473 + $0x50] sm:$0xff]
      %v2640 = vld [vmem:[%s2473 + $0x68] sm:$0xff]
      %v2641 = vld [vmem:[%s2473 + $0x70] sm:$0xff]
      %v2642 = vld [vmem:[%s2473 + $0x88] sm:$0xff]
      %v2643 = vld [vmem:[%s2473 + $0x90] sm:$0xff]
      %v2644 = vld [vmem:[%s2473 + $0xa8] sm:$0xff]
      %v2645 = vld [vmem:[%s2473 + $0xb0] sm:$0xff]
      %v2646 = vld [vmem:[%s2473 + $0xc8] sm:$0xff]
      %v2647 = vld [vmem:[%s2473 + $0xd0] sm:$0xff]
      %v2648 = vld [vmem:[%s2473 + $0xe8] sm:$0xff]
      %v2649 = vld [vmem:[%s2473 + $0xf0] sm:$0xff]
      %v2650 = vld [vmem:[%s2473 + $0x108] sm:$0xff]
      %v2651 = vld [vmem:[%s2473 + $0x110] sm:$0xff]
      %v2652 = vld [vmem:[%s2473 + $0x128] sm:$0xff]
      %v2653 = vld [vmem:[%s2473 + $0x130] sm:$0xff]
      %v2654 = vld [vmem:[%s2473 + $0x148] sm:$0xff]
      %v2655 = vld [vmem:[%s2473 + $0x150] sm:$0xff]
      %v2656 = vld [vmem:[%s2473 + $0x168] sm:$0xff]
      %v2657 = vld [vmem:[%s2473 + $0x170] sm:$0xff]
      %v2658 = vld [vmem:[%s2473 + $0x188] sm:$0xff]
      %v2659 = vld [vmem:[%s2473 + $0x190] sm:$0xff]
      %v2660 = vld [vmem:[%s2473 + $0x1a8] sm:$0xff]
      %v2661 = vld [vmem:[%s2473 + $0x1b0] sm:$0xff]
      %v2662 = vld [vmem:[%s2473 + $0x1c8] sm:$0xff]
      %v2663 = vld [vmem:[%s2473 + $0x1d0] sm:$0xff]
      %v2664 = vld [vmem:[%s2473 + $0x1e8] sm:$0xff]
      %v2665 = vld [vmem:[%s2473 + $0x1f0] sm:$0xff]
      %v2666 = vld [vmem:[%s2473 + $0x9] sm:$0xff]
      %v2667 = vld [vmem:[%s2473 + $0x11] sm:$0xff]
      %v2668 = vld [vmem:[%s2473 + $0x29] sm:$0xff]
      %v2669 = vld [vmem:[%s2473 + $0x31] sm:$0xff]
      %v2670 = vld [vmem:[%s2473 + $0x49] sm:$0xff]
      %v2671 = vld [vmem:[%s2473 + $0x51] sm:$0xff]
      %v2672 = vld [vmem:[%s2473 + $0x69] sm:$0xff]
      %v2673 = vld [vmem:[%s2473 + $0x71] sm:$0xff]
      %v2674 = vld [vmem:[%s2473 + $0x89] sm:$0xff]
      %v2675 = vld [vmem:[%s2473 + $0x91] sm:$0xff]
      %v2676 = vld [vmem:[%s2473 + $0xa9] sm:$0xff]
      %v2677 = vld [vmem:[%s2473 + $0xb1] sm:$0xff]
      %v2678 = vld [vmem:[%s2473 + $0xc9] sm:$0xff]
      %v2679 = vld [vmem:[%s2473 + $0xd1] sm:$0xff]
      %v2680 = vld [vmem:[%s2473 + $0xe9] sm:$0xff]
      %v2681 = vld [vmem:[%s2473 + $0xf1] sm:$0xff]
      %v2682 = vld [vmem:[%s2473 + $0x109] sm:$0xff]
      %v2683 = vld [vmem:[%s2473 + $0x111] sm:$0xff]
      %v2684 = vld [vmem:[%s2473 + $0x129] sm:$0xff]
      %v2685 = vld [vmem:[%s2473 + $0x131] sm:$0xff]
      %v2686 = vld [vmem:[%s2473 + $0x149] sm:$0xff]
      %v2687 = vld [vmem:[%s2473 + $0x151] sm:$0xff]
      %v2688 = vld [vmem:[%s2473 + $0x169] sm:$0xff]
      %v2689 = vld [vmem:[%s2473 + $0x171] sm:$0xff]
      %v2690 = vld [vmem:[%s2473 + $0x189] sm:$0xff]
      %v2691 = vld [vmem:[%s2473 + $0x191] sm:$0xff]
      %v2692 = vld [vmem:[%s2473 + $0x1a9] sm:$0xff]
      %v2693 = vld [vmem:[%s2473 + $0x1b1] sm:$0xff]
      %v2694 = vld [vmem:[%s2473 + $0x1c9] sm:$0xff]
      %v2695 = vld [vmem:[%s2473 + $0x1d1] sm:$0xff]
      %v2696 = vld [vmem:[%s2473 + $0x1e9] sm:$0xff]
      %v2697 = vld [vmem:[%s2473 + $0x1f1] sm:$0xff]
      %s2698 = scalar_lea.vmem [#allocation4], 64
      %v2699 = vld [vmem:[%s2698 + $0x7] sm:$0xff]
      %v2700 = vld [vmem:[%s2698 + $0xf] sm:$0xff]
      %v2701 = vld [vmem:[%s2698 + $0x27] sm:$0xff]
      %v2702 = vld [vmem:[%s2698 + $0x2f] sm:$0xff]
      %v2703 = vld [vmem:[%s2698 + $0x47] sm:$0xff]
      %v2704 = vld [vmem:[%s2698 + $0x4f] sm:$0xff]
      %v2705 = vld [vmem:[%s2698 + $0x67] sm:$0xff]
      %v2706 = vld [vmem:[%s2698 + $0x6f] sm:$0xff]
      %v2707 = vld [vmem:[%s2698 + $0x87] sm:$0xff]
      %v2708 = vld [vmem:[%s2698 + $0x8f] sm:$0xff]
      %v2709 = vld [vmem:[%s2698 + $0xa7] sm:$0xff]
      %v2710 = vld [vmem:[%s2698 + $0xaf] sm:$0xff]
      %v2711 = vld [vmem:[%s2698 + $0xc7] sm:$0xff]
      %v2712 = vld [vmem:[%s2698 + $0xcf] sm:$0xff]
      %v2713 = vld [vmem:[%s2698 + $0xe7] sm:$0xff]
      %v2714 = vld [vmem:[%s2698 + $0xef] sm:$0xff]
      %v2715 = vld [vmem:[%s2698 + $0x107] sm:$0xff]
      %v2716 = vld [vmem:[%s2698 + $0x10f] sm:$0xff]
      %v2717 = vld [vmem:[%s2698 + $0x127] sm:$0xff]
      %v2718 = vld [vmem:[%s2698 + $0x12f] sm:$0xff]
      %v2719 = vld [vmem:[%s2698 + $0x147] sm:$0xff]
      %v2720 = vld [vmem:[%s2698 + $0x14f] sm:$0xff]
      %v2721 = vld [vmem:[%s2698 + $0x167] sm:$0xff]
      %v2722 = vld [vmem:[%s2698 + $0x16f] sm:$0xff]
      %v2723 = vld [vmem:[%s2698 + $0x187] sm:$0xff]
      %v2724 = vld [vmem:[%s2698 + $0x18f] sm:$0xff]
      %v2725 = vld [vmem:[%s2698 + $0x1a7] sm:$0xff]
      %v2726 = vld [vmem:[%s2698 + $0x1af] sm:$0xff]
      %v2727 = vld [vmem:[%s2698 + $0x1c7] sm:$0xff]
      %v2728 = vld [vmem:[%s2698 + $0x1cf] sm:$0xff]
      %v2729 = vld [vmem:[%s2698 + $0x1e7] sm:$0xff]
      %v2730 = vld [vmem:[%s2698 + $0x1ef] sm:$0xff]
      %v2731 = vld [vmem:[%s2698 + $0x8] sm:$0xff]
      %v2732 = vld [vmem:[%s2698 + $0x10] sm:$0xff]
      %v2733 = vld [vmem:[%s2698 + $0x28] sm:$0xff]
      %v2734 = vld [vmem:[%s2698 + $0x30] sm:$0xff]
      %v2735 = vld [vmem:[%s2698 + $0x48] sm:$0xff]
      %v2736 = vld [vmem:[%s2698 + $0x50] sm:$0xff]
      %v2737 = vld [vmem:[%s2698 + $0x68] sm:$0xff]
      %v2738 = vld [vmem:[%s2698 + $0x70] sm:$0xff]
      %v2739 = vld [vmem:[%s2698 + $0x88] sm:$0xff]
      %v2740 = vld [vmem:[%s2698 + $0x90] sm:$0xff]
      %v2741 = vld [vmem:[%s2698 + $0xa8] sm:$0xff]
      %v2742 = vld [vmem:[%s2698 + $0xb0] sm:$0xff]
      %v2743 = vld [vmem:[%s2698 + $0xc8] sm:$0xff]
      %v2744 = vld [vmem:[%s2698 + $0xd0] sm:$0xff]
      %v2745 = vld [vmem:[%s2698 + $0xe8] sm:$0xff]
      %v2746 = vld [vmem:[%s2698 + $0xf0] sm:$0xff]
      %v2747 = vld [vmem:[%s2698 + $0x108] sm:$0xff]
      %v2748 = vld [vmem:[%s2698 + $0x110] sm:$0xff]
      %v2749 = vld [vmem:[%s2698 + $0x128] sm:$0xff]
      %v2750 = vld [vmem:[%s2698 + $0x130] sm:$0xff]
      %v2751 = vld [vmem:[%s2698 + $0x148] sm:$0xff]
      %v2752 = vld [vmem:[%s2698 + $0x150] sm:$0xff]
      %v2753 = vld [vmem:[%s2698 + $0x168] sm:$0xff]
      %v2754 = vld [vmem:[%s2698 + $0x170] sm:$0xff]
      %v2755 = vld [vmem:[%s2698 + $0x188] sm:$0xff]
      %v2756 = vld [vmem:[%s2698 + $0x190] sm:$0xff]
      %v2757 = vld [vmem:[%s2698 + $0x1a8] sm:$0xff]
      %v2758 = vld [vmem:[%s2698 + $0x1b0] sm:$0xff]
      %v2759 = vld [vmem:[%s2698 + $0x1c8] sm:$0xff]
      %v2760 = vld [vmem:[%s2698 + $0x1d0] sm:$0xff]
      %v2761 = vld [vmem:[%s2698 + $0x1e8] sm:$0xff]
      %v2762 = vld [vmem:[%s2698 + $0x1f0] sm:$0xff]
      %v2763 = vld [vmem:[%s2698 + $0x9] sm:$0xff]
      %v2764 = vld [vmem:[%s2698 + $0x11] sm:$0xff]
      %v2765 = vld [vmem:[%s2698 + $0x29] sm:$0xff]
      %v2766 = vld [vmem:[%s2698 + $0x31] sm:$0xff]
      %v2767 = vld [vmem:[%s2698 + $0x49] sm:$0xff]
      %v2768 = vld [vmem:[%s2698 + $0x51] sm:$0xff]
      %v2769 = vld [vmem:[%s2698 + $0x69] sm:$0xff]
      %v2770 = vld [vmem:[%s2698 + $0x71] sm:$0xff]
      %v2771 = vld [vmem:[%s2698 + $0x89] sm:$0xff]
      %v2772 = vld [vmem:[%s2698 + $0x91] sm:$0xff]
      %v2773 = vld [vmem:[%s2698 + $0xa9] sm:$0xff]
      %v2774 = vld [vmem:[%s2698 + $0xb1] sm:$0xff]
      %v2775 = vld [vmem:[%s2698 + $0xc9] sm:$0xff]
      %v2776 = vld [vmem:[%s2698 + $0xd1] sm:$0xff]
      %v2777 = vld [vmem:[%s2698 + $0xe9] sm:$0xff]
      %v2778 = vld [vmem:[%s2698 + $0xf1] sm:$0xff]
      %v2779 = vld [vmem:[%s2698 + $0x109] sm:$0xff]
      %v2780 = vld [vmem:[%s2698 + $0x111] sm:$0xff]
      %v2781 = vld [vmem:[%s2698 + $0x129] sm:$0xff]
      %v2782 = vld [vmem:[%s2698 + $0x131] sm:$0xff]
      %v2783 = vld [vmem:[%s2698 + $0x149] sm:$0xff]
      %v2784 = vld [vmem:[%s2698 + $0x151] sm:$0xff]
      %v2785 = vld [vmem:[%s2698 + $0x169] sm:$0xff]
      %v2786 = vld [vmem:[%s2698 + $0x171] sm:$0xff]
      %v2787 = vld [vmem:[%s2698 + $0x189] sm:$0xff]
      %v2788 = vld [vmem:[%s2698 + $0x191] sm:$0xff]
      %v2789 = vld [vmem:[%s2698 + $0x1a9] sm:$0xff]
      %v2790 = vld [vmem:[%s2698 + $0x1b1] sm:$0xff]
      %v2791 = vld [vmem:[%s2698 + $0x1c9] sm:$0xff]
      %v2792 = vld [vmem:[%s2698 + $0x1d1] sm:$0xff]
      %v2793 = vld [vmem:[%s2698 + $0x1e9] sm:$0xff]
      %v2794 = vld [vmem:[%s2698 + $0x1f1] sm:$0xff]
      %2827 = vrot.lane.b32.xlu0 %v2538, 32
      %v2828 = vpop.permute.xlu0 %2827
      %2829 = vrot.lane.b32.xlu0 %v2539, 32
      %v2830 = vpop.permute.xlu0 %2829
      %2831 = vrot.lane.b32.xlu0 %v2540, 32
      %v2832 = vpop.permute.xlu0 %2831
      %2833 = vrot.lane.b32.xlu0 %v2541, 32
      %v2834 = vpop.permute.xlu0 %2833
      %2835 = vrot.lane.b32.xlu0 %v2542, 32
      %v2836 = vpop.permute.xlu0 %2835
      %2837 = vrot.lane.b32.xlu0 %v2543, 32
      %v2838 = vpop.permute.xlu0 %2837
      %2839 = vrot.lane.b32.xlu0 %v2544, 32
      %v2840 = vpop.permute.xlu0 %2839
      %2841 = vrot.lane.b32.xlu0 %v2545, 32
      %v2842 = vpop.permute.xlu0 %2841
      %2843 = vrot.lane.b32.xlu0 %v2546, 32
      %v2844 = vpop.permute.xlu0 %2843
      %2845 = vrot.lane.b32.xlu0 %v2547, 32
      %v2846 = vpop.permute.xlu0 %2845
      %2847 = vrot.lane.b32.xlu0 %v2548, 32
      %v2848 = vpop.permute.xlu0 %2847
      %2849 = vrot.lane.b32.xlu0 %v2549, 32
      %v2850 = vpop.permute.xlu0 %2849
      %2851 = vrot.lane.b32.xlu0 %v2550, 32
      %v2852 = vpop.permute.xlu0 %2851
      %2853 = vrot.lane.b32.xlu0 %v2551, 32
      %v2854 = vpop.permute.xlu0 %2853
      %2855 = vrot.lane.b32.xlu0 %v2552, 32
      %v2856 = vpop.permute.xlu0 %2855
      %2857 = vrot.lane.b32.xlu0 %v2553, 32
      %v2858 = vpop.permute.xlu0 %2857
      %2859 = vrot.lane.b32.xlu0 %v2554, 32
      %v2860 = vpop.permute.xlu0 %2859
      %2861 = vrot.lane.b32.xlu0 %v2555, 32
      %v2862 = vpop.permute.xlu0 %2861
      %2863 = vrot.lane.b32.xlu0 %v2556, 32
      %v2864 = vpop.permute.xlu0 %2863
      %2865 = vrot.lane.b32.xlu0 %v2557, 32
      %v2866 = vpop.permute.xlu0 %2865
      %2867 = vrot.lane.b32.xlu0 %v2558, 32
      %v2868 = vpop.permute.xlu0 %2867
      %2869 = vrot.lane.b32.xlu0 %v2559, 32
      %v2870 = vpop.permute.xlu0 %2869
      %2871 = vrot.lane.b32.xlu0 %v2560, 32
      %v2872 = vpop.permute.xlu0 %2871
      %2873 = vrot.lane.b32.xlu0 %v2561, 32
      %v2874 = vpop.permute.xlu0 %2873
      %2875 = vrot.lane.b32.xlu0 %v2562, 32
      %v2876 = vpop.permute.xlu0 %2875
      %2877 = vrot.lane.b32.xlu0 %v2563, 32
      %v2878 = vpop.permute.xlu0 %2877
      %2879 = vrot.lane.b32.xlu0 %v2564, 32
      %v2880 = vpop.permute.xlu0 %2879
      %2881 = vrot.lane.b32.xlu0 %v2565, 32
      %v2882 = vpop.permute.xlu0 %2881
      %2883 = vrot.lane.b32.xlu0 %v2566, 32
      %v2884 = vpop.permute.xlu0 %2883
      %2885 = vrot.lane.b32.xlu0 %v2567, 32
      %v2886 = vpop.permute.xlu0 %2885
      %2887 = vrot.lane.b32.xlu0 %v2568, 32
      %v2888 = vpop.permute.xlu0 %2887
      %2889 = vrot.lane.b32.xlu0 %v2569, 32
      %v2890 = vpop.permute.xlu0 %2889
      %2955 = vrot.lane.b32.xlu0 %v2570, 64
      %v2956 = vpop.permute.xlu0 %2955
      %2957 = vrot.lane.b32.xlu0 %v2571, 64
      %v2958 = vpop.permute.xlu0 %2957
      %2959 = vrot.lane.b32.xlu0 %v2572, 64
      %v2960 = vpop.permute.xlu0 %2959
      %2961 = vrot.lane.b32.xlu0 %v2573, 64
      %v2962 = vpop.permute.xlu0 %2961
      %2963 = vrot.lane.b32.xlu0 %v2574, 64
      %v2964 = vpop.permute.xlu0 %2963
      %2965 = vrot.lane.b32.xlu0 %v2575, 64
      %v2966 = vpop.permute.xlu0 %2965
      %2967 = vrot.lane.b32.xlu0 %v2576, 64
      %v2968 = vpop.permute.xlu0 %2967
      %2969 = vrot.lane.b32.xlu0 %v2577, 64
      %v2970 = vpop.permute.xlu0 %2969
      %2971 = vrot.lane.b32.xlu0 %v2578, 64
      %v2972 = vpop.permute.xlu0 %2971
      %2973 = vrot.lane.b32.xlu0 %v2579, 64
      %v2974 = vpop.permute.xlu0 %2973
      %2975 = vrot.lane.b32.xlu0 %v2580, 64
      %v2976 = vpop.permute.xlu0 %2975
      %2977 = vrot.lane.b32.xlu0 %v2581, 64
      %v2978 = vpop.permute.xlu0 %2977
      %2979 = vrot.lane.b32.xlu0 %v2582, 64
      %v2980 = vpop.permute.xlu0 %2979
      %2981 = vrot.lane.b32.xlu0 %v2583, 64
      %v2982 = vpop.permute.xlu0 %2981
      %2983 = vrot.lane.b32.xlu0 %v2584, 64
      %v2984 = vpop.permute.xlu0 %2983
      %2985 = vrot.lane.b32.xlu0 %v2585, 64
      %v2986 = vpop.permute.xlu0 %2985
      %2987 = vrot.lane.b32.xlu0 %v2586, 64
      %v2988 = vpop.permute.xlu0 %2987
      %2989 = vrot.lane.b32.xlu0 %v2587, 64
      %v2990 = vpop.permute.xlu0 %2989
      %2991 = vrot.lane.b32.xlu0 %v2588, 64
      %v2992 = vpop.permute.xlu0 %2991
      %2993 = vrot.lane.b32.xlu0 %v2589, 64
      %v2994 = vpop.permute.xlu0 %2993
      %2995 = vrot.lane.b32.xlu0 %v2590, 64
      %v2996 = vpop.permute.xlu0 %2995
      %2997 = vrot.lane.b32.xlu0 %v2591, 64
      %v2998 = vpop.permute.xlu0 %2997
      %2999 = vrot.lane.b32.xlu0 %v2592, 64
      %v3000 = vpop.permute.xlu0 %2999
      %3001 = vrot.lane.b32.xlu0 %v2593, 64
      %v3002 = vpop.permute.xlu0 %3001
      %3003 = vrot.lane.b32.xlu0 %v2594, 64
      %v3004 = vpop.permute.xlu0 %3003
      %3005 = vrot.lane.b32.xlu0 %v2595, 64
      %v3006 = vpop.permute.xlu0 %3005
      %3007 = vrot.lane.b32.xlu0 %v2596, 64
      %v3008 = vpop.permute.xlu0 %3007
      %3009 = vrot.lane.b32.xlu0 %v2597, 64
      %v3010 = vpop.permute.xlu0 %3009
      %3011 = vrot.lane.b32.xlu0 %v2598, 64
      %v3012 = vpop.permute.xlu0 %3011
      %3013 = vrot.lane.b32.xlu0 %v2599, 64
      %v3014 = vpop.permute.xlu0 %3013
      %3015 = vrot.lane.b32.xlu0 %v2600, 64
      %v3016 = vpop.permute.xlu0 %3015
      %3017 = vrot.lane.b32.xlu0 %v2601, 64
      %v3018 = vpop.permute.xlu0 %3017
      %3083 = vrot.lane.b32.xlu0 %v2602, 96
      %v3084 = vpop.permute.xlu0 %3083
      %3085 = vrot.lane.b32.xlu0 %v2603, 96
      %v3086 = vpop.permute.xlu0 %3085
      %3087 = vrot.lane.b32.xlu0 %v2604, 96
      %v3088 = vpop.permute.xlu0 %3087
      %3089 = vrot.lane.b32.xlu0 %v2605, 96
      %v3090 = vpop.permute.xlu0 %3089
      %3091 = vrot.lane.b32.xlu0 %v2606, 96
      %v3092 = vpop.permute.xlu0 %3091
      %3093 = vrot.lane.b32.xlu0 %v2607, 96
      %v3094 = vpop.permute.xlu0 %3093
      %3095 = vrot.lane.b32.xlu0 %v2608, 96
      %v3096 = vpop.permute.xlu0 %3095
      %3097 = vrot.lane.b32.xlu0 %v2609, 96
      %v3098 = vpop.permute.xlu0 %3097
      %3099 = vrot.lane.b32.xlu0 %v2610, 96
      %v3100 = vpop.permute.xlu0 %3099
      %3101 = vrot.lane.b32.xlu0 %v2611, 96
      %v3102 = vpop.permute.xlu0 %3101
      %3103 = vrot.lane.b32.xlu0 %v2612, 96
      %v3104 = vpop.permute.xlu0 %3103
      %3105 = vrot.lane.b32.xlu0 %v2613, 96
      %v3106 = vpop.permute.xlu0 %3105
      %3107 = vrot.lane.b32.xlu0 %v2614, 96
      %v3108 = vpop.permute.xlu0 %3107
      %3109 = vrot.lane.b32.xlu0 %v2615, 96
      %v3110 = vpop.permute.xlu0 %3109
      %3111 = vrot.lane.b32.xlu0 %v2616, 96
      %v3112 = vpop.permute.xlu0 %3111
      %3113 = vrot.lane.b32.xlu0 %v2617, 96
      %v3114 = vpop.permute.xlu0 %3113
      %3115 = vrot.lane.b32.xlu0 %v2618, 96
      %v3116 = vpop.permute.xlu0 %3115
      %3117 = vrot.lane.b32.xlu0 %v2619, 96
      %v3118 = vpop.permute.xlu0 %3117
      %3119 = vrot.lane.b32.xlu0 %v2620, 96
      %v3120 = vpop.permute.xlu0 %3119
      %3121 = vrot.lane.b32.xlu0 %v2621, 96
      %v3122 = vpop.permute.xlu0 %3121
      %3123 = vrot.lane.b32.xlu0 %v2622, 96
      %v3124 = vpop.permute.xlu0 %3123
      %3125 = vrot.lane.b32.xlu0 %v2623, 96
      %v3126 = vpop.permute.xlu0 %3125
      %3127 = vrot.lane.b32.xlu0 %v2624, 96
      %v3128 = vpop.permute.xlu0 %3127
      %3129 = vrot.lane.b32.xlu0 %v2625, 96
      %v3130 = vpop.permute.xlu0 %3129
      %3131 = vrot.lane.b32.xlu0 %v2626, 96
      %v3132 = vpop.permute.xlu0 %3131
      %3133 = vrot.lane.b32.xlu0 %v2627, 96
      %v3134 = vpop.permute.xlu0 %3133
      %3135 = vrot.lane.b32.xlu0 %v2628, 96
      %v3136 = vpop.permute.xlu0 %3135
      %3137 = vrot.lane.b32.xlu0 %v2629, 96
      %v3138 = vpop.permute.xlu0 %3137
      %3139 = vrot.lane.b32.xlu0 %v2630, 96
      %v3140 = vpop.permute.xlu0 %3139
      %3141 = vrot.lane.b32.xlu0 %v2631, 96
      %v3142 = vpop.permute.xlu0 %3141
      %3143 = vrot.lane.b32.xlu0 %v2632, 96
      %v3144 = vpop.permute.xlu0 %3143
      %3145 = vrot.lane.b32.xlu0 %v2633, 96
      %v3146 = vpop.permute.xlu0 %3145
      %3211 = vrot.lane.b32.xlu0 %v2666, 32
      %v3212 = vpop.permute.xlu0 %3211
      %3213 = vrot.lane.b32.xlu0 %v2667, 32
      %v3214 = vpop.permute.xlu0 %3213
      %3215 = vrot.lane.b32.xlu0 %v2668, 32
      %v3216 = vpop.permute.xlu0 %3215
      %3217 = vrot.lane.b32.xlu0 %v2669, 32
      %v3218 = vpop.permute.xlu0 %3217
      %3219 = vrot.lane.b32.xlu0 %v2670, 32
      %v3220 = vpop.permute.xlu0 %3219
      %3221 = vrot.lane.b32.xlu0 %v2671, 32
      %v3222 = vpop.permute.xlu0 %3221
      %3223 = vrot.lane.b32.xlu0 %v2672, 32
      %v3224 = vpop.permute.xlu0 %3223
      %3225 = vrot.lane.b32.xlu0 %v2673, 32
      %v3226 = vpop.permute.xlu0 %3225
      %3227 = vrot.lane.b32.xlu0 %v2674, 32
      %v3228 = vpop.permute.xlu0 %3227
      %3229 = vrot.lane.b32.xlu0 %v2675, 32
      %v3230 = vpop.permute.xlu0 %3229
      %3231 = vrot.lane.b32.xlu0 %v2676, 32
      %v3232 = vpop.permute.xlu0 %3231
      %3233 = vrot.lane.b32.xlu0 %v2677, 32
      %v3234 = vpop.permute.xlu0 %3233
      %3235 = vrot.lane.b32.xlu0 %v2678, 32
      %v3236 = vpop.permute.xlu0 %3235
      %3237 = vrot.lane.b32.xlu0 %v2679, 32
      %v3238 = vpop.permute.xlu0 %3237
      %3239 = vrot.lane.b32.xlu0 %v2680, 32
      %v3240 = vpop.permute.xlu0 %3239
      %3241 = vrot.lane.b32.xlu0 %v2681, 32
      %v3242 = vpop.permute.xlu0 %3241
      %3243 = vrot.lane.b32.xlu0 %v2682, 32
      %v3244 = vpop.permute.xlu0 %3243
      %3245 = vrot.lane.b32.xlu0 %v2683, 32
      %v3246 = vpop.permute.xlu0 %3245
      %3247 = vrot.lane.b32.xlu0 %v2684, 32
      %v3248 = vpop.permute.xlu0 %3247
      %3249 = vrot.lane.b32.xlu0 %v2685, 32
      %v3250 = vpop.permute.xlu0 %3249
      %3251 = vrot.lane.b32.xlu0 %v2686, 32
      %v3252 = vpop.permute.xlu0 %3251
      %3253 = vrot.lane.b32.xlu0 %v2687, 32
      %v3254 = vpop.permute.xlu0 %3253
      %3255 = vrot.lane.b32.xlu0 %v2688, 32
      %v3256 = vpop.permute.xlu0 %3255
      %3257 = vrot.lane.b32.xlu0 %v2689, 32
      %v3258 = vpop.permute.xlu0 %3257
      %3259 = vrot.lane.b32.xlu0 %v2690, 32
      %v3260 = vpop.permute.xlu0 %3259
      %3261 = vrot.lane.b32.xlu0 %v2691, 32
      %v3262 = vpop.permute.xlu0 %3261
      %3263 = vrot.lane.b32.xlu0 %v2692, 32
      %v3264 = vpop.permute.xlu0 %3263
      %3265 = vrot.lane.b32.xlu0 %v2693, 32
      %v3266 = vpop.permute.xlu0 %3265
      %3267 = vrot.lane.b32.xlu0 %v2694, 32
      %v3268 = vpop.permute.xlu0 %3267
      %3269 = vrot.lane.b32.xlu0 %v2695, 32
      %v3270 = vpop.permute.xlu0 %3269
      %3271 = vrot.lane.b32.xlu0 %v2696, 32
      %v3272 = vpop.permute.xlu0 %3271
      %3273 = vrot.lane.b32.xlu0 %v2697, 32
      %v3274 = vpop.permute.xlu0 %3273
      %3339 = vrot.lane.b32.xlu0 %v2699, 64
      %v3340 = vpop.permute.xlu0 %3339
      %3341 = vrot.lane.b32.xlu0 %v2700, 64
      %v3342 = vpop.permute.xlu0 %3341
      %3343 = vrot.lane.b32.xlu0 %v2701, 64
      %v3344 = vpop.permute.xlu0 %3343
      %3345 = vrot.lane.b32.xlu0 %v2702, 64
      %v3346 = vpop.permute.xlu0 %3345
      %3347 = vrot.lane.b32.xlu0 %v2703, 64
      %v3348 = vpop.permute.xlu0 %3347
      %3349 = vrot.lane.b32.xlu0 %v2704, 64
      %v3350 = vpop.permute.xlu0 %3349
      %3351 = vrot.lane.b32.xlu0 %v2705, 64
      %v3352 = vpop.permute.xlu0 %3351
      %3353 = vrot.lane.b32.xlu0 %v2706, 64
      %v3354 = vpop.permute.xlu0 %3353
      %3355 = vrot.lane.b32.xlu0 %v2707, 64
      %v3356 = vpop.permute.xlu0 %3355
      %3357 = vrot.lane.b32.xlu0 %v2708, 64
      %v3358 = vpop.permute.xlu0 %3357
      %3359 = vrot.lane.b32.xlu0 %v2709, 64
      %v3360 = vpop.permute.xlu0 %3359
      %3361 = vrot.lane.b32.xlu0 %v2710, 64
      %v3362 = vpop.permute.xlu0 %3361
      %3363 = vrot.lane.b32.xlu0 %v2711, 64
      %v3364 = vpop.permute.xlu0 %3363
      %3365 = vrot.lane.b32.xlu0 %v2712, 64
      %v3366 = vpop.permute.xlu0 %3365
      %3367 = vrot.lane.b32.xlu0 %v2713, 64
      %v3368 = vpop.permute.xlu0 %3367
      %3369 = vrot.lane.b32.xlu0 %v2714, 64
      %v3370 = vpop.permute.xlu0 %3369
      %3371 = vrot.lane.b32.xlu0 %v2715, 64
      %v3372 = vpop.permute.xlu0 %3371
      %3373 = vrot.lane.b32.xlu0 %v2716, 64
      %v3374 = vpop.permute.xlu0 %3373
      %3375 = vrot.lane.b32.xlu0 %v2717, 64
      %v3376 = vpop.permute.xlu0 %3375
      %3377 = vrot.lane.b32.xlu0 %v2718, 64
      %v3378 = vpop.permute.xlu0 %3377
      %3379 = vrot.lane.b32.xlu0 %v2719, 64
      %v3380 = vpop.permute.xlu0 %3379
      %3381 = vrot.lane.b32.xlu0 %v2720, 64
      %v3382 = vpop.permute.xlu0 %3381
      %3383 = vrot.lane.b32.xlu0 %v2721, 64
      %v3384 = vpop.permute.xlu0 %3383
      %3385 = vrot.lane.b32.xlu0 %v2722, 64
      %v3386 = vpop.permute.xlu0 %3385
      %3387 = vrot.lane.b32.xlu0 %v2723, 64
      %v3388 = vpop.permute.xlu0 %3387
      %3389 = vrot.lane.b32.xlu0 %v2724, 64
      %v3390 = vpop.permute.xlu0 %3389
      %3391 = vrot.lane.b32.xlu0 %v2725, 64
      %v3392 = vpop.permute.xlu0 %3391
      %3393 = vrot.lane.b32.xlu0 %v2726, 64
      %v3394 = vpop.permute.xlu0 %3393
      %3395 = vrot.lane.b32.xlu0 %v2727, 64
      %v3396 = vpop.permute.xlu0 %3395
      %3397 = vrot.lane.b32.xlu0 %v2728, 64
      %v3398 = vpop.permute.xlu0 %3397
      %3399 = vrot.lane.b32.xlu0 %v2729, 64
      %v3400 = vpop.permute.xlu0 %3399
      %3401 = vrot.lane.b32.xlu0 %v2730, 64
      %v3402 = vpop.permute.xlu0 %3401
      %3467 = vrot.lane.b32.xlu0 %v2731, 96
      %v3468 = vpop.permute.xlu0 %3467
      %3469 = vrot.lane.b32.xlu0 %v2732, 96
      %v3470 = vpop.permute.xlu0 %3469
      %3471 = vrot.lane.b32.xlu0 %v2733, 96
      %v3472 = vpop.permute.xlu0 %3471
      %3473 = vrot.lane.b32.xlu0 %v2734, 96
      %v3474 = vpop.permute.xlu0 %3473
      %3475 = vrot.lane.b32.xlu0 %v2735, 96
      %v3476 = vpop.permute.xlu0 %3475
      %3477 = vrot.lane.b32.xlu0 %v2736, 96
      %v3478 = vpop.permute.xlu0 %3477
      %3479 = vrot.lane.b32.xlu0 %v2737, 96
      %v3480 = vpop.permute.xlu0 %3479
      %3481 = vrot.lane.b32.xlu0 %v2738, 96
      %v3482 = vpop.permute.xlu0 %3481
      %3483 = vrot.lane.b32.xlu0 %v2739, 96
      %v3484 = vpop.permute.xlu0 %3483
      %3485 = vrot.lane.b32.xlu0 %v2740, 96
      %v3486 = vpop.permute.xlu0 %3485
      %3487 = vrot.lane.b32.xlu0 %v2741, 96
      %v3488 = vpop.permute.xlu0 %3487
      %3489 = vrot.lane.b32.xlu0 %v2742, 96
      %v3490 = vpop.permute.xlu0 %3489
      %3491 = vrot.lane.b32.xlu0 %v2743, 96
      %v3492 = vpop.permute.xlu0 %3491
      %3493 = vrot.lane.b32.xlu0 %v2744, 96
      %v3494 = vpop.permute.xlu0 %3493
      %3495 = vrot.lane.b32.xlu0 %v2745, 96
      %v3496 = vpop.permute.xlu0 %3495
      %3497 = vrot.lane.b32.xlu0 %v2746, 96
      %v3498 = vpop.permute.xlu0 %3497
      %3499 = vrot.lane.b32.xlu0 %v2747, 96
      %v3500 = vpop.permute.xlu0 %3499
      %3501 = vrot.lane.b32.xlu0 %v2748, 96
      %v3502 = vpop.permute.xlu0 %3501
      %3503 = vrot.lane.b32.xlu0 %v2749, 96
      %v3504 = vpop.permute.xlu0 %3503
      %3505 = vrot.lane.b32.xlu0 %v2750, 96
      %v3506 = vpop.permute.xlu0 %3505
      %3507 = vrot.lane.b32.xlu0 %v2751, 96
      %v3508 = vpop.permute.xlu0 %3507
      %3509 = vrot.lane.b32.xlu0 %v2752, 96
      %v3510 = vpop.permute.xlu0 %3509
      %3511 = vrot.lane.b32.xlu0 %v2753, 96
      %v3512 = vpop.permute.xlu0 %3511
      %3513 = vrot.lane.b32.xlu0 %v2754, 96
      %v3514 = vpop.permute.xlu0 %3513
      %3515 = vrot.lane.b32.xlu0 %v2755, 96
      %v3516 = vpop.permute.xlu0 %3515
      %3517 = vrot.lane.b32.xlu0 %v2756, 96
      %v3518 = vpop.permute.xlu0 %3517
      %3519 = vrot.lane.b32.xlu0 %v2757, 96
      %v3520 = vpop.permute.xlu0 %3519
      %3521 = vrot.lane.b32.xlu0 %v2758, 96
      %v3522 = vpop.permute.xlu0 %3521
      %3523 = vrot.lane.b32.xlu0 %v2759, 96
      %v3524 = vpop.permute.xlu0 %3523
      %3525 = vrot.lane.b32.xlu0 %v2760, 96
      %v3526 = vpop.permute.xlu0 %3525
      %3527 = vrot.lane.b32.xlu0 %v2761, 96
      %v3528 = vpop.permute.xlu0 %3527
      %3529 = vrot.lane.b32.xlu0 %v2762, 96
      %v3530 = vpop.permute.xlu0 %3529
      %v3563 = vsel %vm579, %v2506, %v2828
      %v3564 = vsel %vm579, %v2507, %v2830
      %v3565 = vsel %vm579, %v2508, %v2832
      %v3566 = vsel %vm579, %v2509, %v2834
      %v3567 = vsel %vm579, %v2510, %v2836
      %v3568 = vsel %vm579, %v2511, %v2838
      %v3569 = vsel %vm579, %v2512, %v2840
      %v3570 = vsel %vm579, %v2513, %v2842
      %v3571 = vsel %vm579, %v2514, %v2844
      %v3572 = vsel %vm579, %v2515, %v2846
      %v3573 = vsel %vm579, %v2516, %v2848
      %v3574 = vsel %vm579, %v2517, %v2850
      %v3575 = vsel %vm579, %v2518, %v2852
      %v3576 = vsel %vm579, %v2519, %v2854
      %v3577 = vsel %vm579, %v2520, %v2856
      %v3578 = vsel %vm579, %v2521, %v2858
      %v3579 = vsel %vm579, %v2522, %v2860
      %v3580 = vsel %vm579, %v2523, %v2862
      %v3581 = vsel %vm579, %v2524, %v2864
      %v3582 = vsel %vm579, %v2525, %v2866
      %v3583 = vsel %vm579, %v2526, %v2868
      %v3584 = vsel %vm579, %v2527, %v2870
      %v3585 = vsel %vm579, %v2528, %v2872
      %v3586 = vsel %vm579, %v2529, %v2874
      %v3587 = vsel %vm579, %v2530, %v2876
      %v3588 = vsel %vm579, %v2531, %v2878
      %v3589 = vsel %vm579, %v2532, %v2880
      %v3590 = vsel %vm579, %v2533, %v2882
      %v3591 = vsel %vm579, %v2534, %v2884
      %v3592 = vsel %vm579, %v2535, %v2886
      %v3593 = vsel %vm579, %v2536, %v2888
      %v3594 = vsel %vm579, %v2537, %v2890
      %vm3595 = vcmask 523264
      %v3596 = vsel %vm3595, %v3563, %v2956
      %v3597 = vsel %vm3595, %v3564, %v2958
      %v3598 = vsel %vm3595, %v3565, %v2960
      %v3599 = vsel %vm3595, %v3566, %v2962
      %v3600 = vsel %vm3595, %v3567, %v2964
      %v3601 = vsel %vm3595, %v3568, %v2966
      %v3602 = vsel %vm3595, %v3569, %v2968
      %v3603 = vsel %vm3595, %v3570, %v2970
      %v3604 = vsel %vm3595, %v3571, %v2972
      %v3605 = vsel %vm3595, %v3572, %v2974
      %v3606 = vsel %vm3595, %v3573, %v2976
      %v3607 = vsel %vm3595, %v3574, %v2978
      %v3608 = vsel %vm3595, %v3575, %v2980
      %v3609 = vsel %vm3595, %v3576, %v2982
      %v3610 = vsel %vm3595, %v3577, %v2984
      %v3611 = vsel %vm3595, %v3578, %v2986
      %v3612 = vsel %vm3595, %v3579, %v2988
      %v3613 = vsel %vm3595, %v3580, %v2990
      %v3614 = vsel %vm3595, %v3581, %v2992
      %v3615 = vsel %vm3595, %v3582, %v2994
      %v3616 = vsel %vm3595, %v3583, %v2996
      %v3617 = vsel %vm3595, %v3584, %v2998
      %v3618 = vsel %vm3595, %v3585, %v3000
      %v3619 = vsel %vm3595, %v3586, %v3002
      %v3620 = vsel %vm3595, %v3587, %v3004
      %v3621 = vsel %vm3595, %v3588, %v3006
      %v3622 = vsel %vm3595, %v3589, %v3008
      %v3623 = vsel %vm3595, %v3590, %v3010
      %v3624 = vsel %vm3595, %v3591, %v3012
      %v3625 = vsel %vm3595, %v3592, %v3014
      %v3626 = vsel %vm3595, %v3593, %v3016
      %v3627 = vsel %vm3595, %v3594, %v3018
      %vm3628 = vcmask 785408
      %v3629 = vsel %vm3628, %v3596, %v3084
      %v3630 = vsel %vm3628, %v3597, %v3086
      %v3631 = vsel %vm3628, %v3598, %v3088
      %v3632 = vsel %vm3628, %v3599, %v3090
      %v3633 = vsel %vm3628, %v3600, %v3092
      %v3634 = vsel %vm3628, %v3601, %v3094
      %v3635 = vsel %vm3628, %v3602, %v3096
      %v3636 = vsel %vm3628, %v3603, %v3098
      %v3637 = vsel %vm3628, %v3604, %v3100
      %v3638 = vsel %vm3628, %v3605, %v3102
      %v3639 = vsel %vm3628, %v3606, %v3104
      %v3640 = vsel %vm3628, %v3607, %v3106
      %v3641 = vsel %vm3628, %v3608, %v3108
      %v3642 = vsel %vm3628, %v3609, %v3110
      %v3643 = vsel %vm3628, %v3610, %v3112
      %v3644 = vsel %vm3628, %v3611, %v3114
      %v3645 = vsel %vm3628, %v3612, %v3116
      %v3646 = vsel %vm3628, %v3613, %v3118
      %v3647 = vsel %vm3628, %v3614, %v3120
      %v3648 = vsel %vm3628, %v3615, %v3122
      %v3649 = vsel %vm3628, %v3616, %v3124
      %v3650 = vsel %vm3628, %v3617, %v3126
      %v3651 = vsel %vm3628, %v3618, %v3128
      %v3652 = vsel %vm3628, %v3619, %v3130
      %v3653 = vsel %vm3628, %v3620, %v3132
      %v3654 = vsel %vm3628, %v3621, %v3134
      %v3655 = vsel %vm3628, %v3622, %v3136
      %v3656 = vsel %vm3628, %v3623, %v3138
      %v3657 = vsel %vm3628, %v3624, %v3140
      %v3658 = vsel %vm3628, %v3625, %v3142
      %v3659 = vsel %vm3628, %v3626, %v3144
      %v3660 = vsel %vm3628, %v3627, %v3146
      %v3661 = vsel %vm579, %v2634, %v3212
      %v3662 = vsel %vm579, %v2635, %v3214
      %v3663 = vsel %vm579, %v2636, %v3216
      %v3664 = vsel %vm579, %v2637, %v3218
      %v3665 = vsel %vm579, %v2638, %v3220
      %v3666 = vsel %vm579, %v2639, %v3222
      %v3667 = vsel %vm579, %v2640, %v3224
      %v3668 = vsel %vm579, %v2641, %v3226
      %v3669 = vsel %vm579, %v2642, %v3228
      %v3670 = vsel %vm579, %v2643, %v3230
      %v3671 = vsel %vm579, %v2644, %v3232
      %v3672 = vsel %vm579, %v2645, %v3234
      %v3673 = vsel %vm579, %v2646, %v3236
      %v3674 = vsel %vm579, %v2647, %v3238
      %v3675 = vsel %vm579, %v2648, %v3240
      %v3676 = vsel %vm579, %v2649, %v3242
      %v3677 = vsel %vm579, %v2650, %v3244
      %v3678 = vsel %vm579, %v2651, %v3246
      %v3679 = vsel %vm579, %v2652, %v3248
      %v3680 = vsel %vm579, %v2653, %v3250
      %v3681 = vsel %vm579, %v2654, %v3252
      %v3682 = vsel %vm579, %v2655, %v3254
      %v3683 = vsel %vm579, %v2656, %v3256
      %v3684 = vsel %vm579, %v2657, %v3258
      %v3685 = vsel %vm579, %v2658, %v3260
      %v3686 = vsel %vm579, %v2659, %v3262
      %v3687 = vsel %vm579, %v2660, %v3264
      %v3688 = vsel %vm579, %v2661, %v3266
      %v3689 = vsel %vm579, %v2662, %v3268
      %v3690 = vsel %vm579, %v2663, %v3270
      %v3691 = vsel %vm579, %v2664, %v3272
      %v3692 = vsel %vm579, %v2665, %v3274
      %v3693 = vsel %vm3595, %v3661, %v3340
      %v3694 = vsel %vm3595, %v3662, %v3342
      %v3695 = vsel %vm3595, %v3663, %v3344
      %v3696 = vsel %vm3595, %v3664, %v3346
      %v3697 = vsel %vm3595, %v3665, %v3348
      %v3698 = vsel %vm3595, %v3666, %v3350
      %v3699 = vsel %vm3595, %v3667, %v3352
      %v3700 = vsel %vm3595, %v3668, %v3354
      %v3701 = vsel %vm3595, %v3669, %v3356
      %v3702 = vsel %vm3595, %v3670, %v3358
      %v3703 = vsel %vm3595, %v3671, %v3360
      %v3704 = vsel %vm3595, %v3672, %v3362
      %v3705 = vsel %vm3595, %v3673, %v3364
      %v3706 = vsel %vm3595, %v3674, %v3366
      %v3707 = vsel %vm3595, %v3675, %v3368
      %v3708 = vsel %vm3595, %v3676, %v3370
      %v3709 = vsel %vm3595, %v3677, %v3372
      %v3710 = vsel %vm3595, %v3678, %v3374
      %v3711 = vsel %vm3595, %v3679, %v3376
      %v3712 = vsel %vm3595, %v3680, %v3378
      %v3713 = vsel %vm3595, %v3681, %v3380
      %v3714 = vsel %vm3595, %v3682, %v3382
      %v3715 = vsel %vm3595, %v3683, %v3384
      %v3716 = vsel %vm3595, %v3684, %v3386
      %v3717 = vsel %vm3595, %v3685, %v3388
      %v3718 = vsel %vm3595, %v3686, %v3390
      %v3719 = vsel %vm3595, %v3687, %v3392
      %v3720 = vsel %vm3595, %v3688, %v3394
      %v3721 = vsel %vm3595, %v3689, %v3396
      %v3722 = vsel %vm3595, %v3690, %v3398
      %v3723 = vsel %vm3595, %v3691, %v3400
      %v3724 = vsel %vm3595, %v3692, %v3402
      %v3725 = vsel %vm3628, %v3693, %v3468
      %v3726 = vsel %vm3628, %v3694, %v3470
      %v3727 = vsel %vm3628, %v3695, %v3472
      %v3728 = vsel %vm3628, %v3696, %v3474
      %v3729 = vsel %vm3628, %v3697, %v3476
      %v3730 = vsel %vm3628, %v3698, %v3478
      %v3731 = vsel %vm3628, %v3699, %v3480
      %v3732 = vsel %vm3628, %v3700, %v3482
      %v3733 = vsel %vm3628, %v3701, %v3484
      %v3734 = vsel %vm3628, %v3702, %v3486
      %v3735 = vsel %vm3628, %v3703, %v3488
      %v3736 = vsel %vm3628, %v3704, %v3490
      %v3737 = vsel %vm3628, %v3705, %v3492
      %v3738 = vsel %vm3628, %v3706, %v3494
      %v3739 = vsel %vm3628, %v3707, %v3496
      %v3740 = vsel %vm3628, %v3708, %v3498
      %v3741 = vsel %vm3628, %v3709, %v3500
      %v3742 = vsel %vm3628, %v3710, %v3502
      %v3743 = vsel %vm3628, %v3711, %v3504
      %v3744 = vsel %vm3628, %v3712, %v3506
      %v3745 = vsel %vm3628, %v3713, %v3508
      %v3746 = vsel %vm3628, %v3714, %v3510
      %v3747 = vsel %vm3628, %v3715, %v3512
      %v3748 = vsel %vm3628, %v3716, %v3514
      %v3749 = vsel %vm3628, %v3717, %v3516
      %v3750 = vsel %vm3628, %v3718, %v3518
      %v3751 = vsel %vm3628, %v3719, %v3520
      %v3752 = vsel %vm3628, %v3720, %v3522
      %v3753 = vsel %vm3628, %v3721, %v3524
      %v3754 = vsel %vm3628, %v3722, %v3526
      %v3755 = vsel %vm3628, %v3723, %v3528
      %v3756 = vsel %vm3628, %v3724, %v3530
      %v3757 = vpack.c.bf16 %v3630, %v3629
      %v3758 = vpack.c.bf16 %v3726, %v3725
      %v3759 = vpack.c.bf16 %v2764, %v2763
      %v3760 = vpack.c.bf16 %v3632, %v3631
      %v3761 = vpack.c.bf16 %v3728, %v3727
      %v3762 = vpack.c.bf16 %v2766, %v2765
      %v3763 = vpack.c.bf16 %v3634, %v3633
      %v3764 = vpack.c.bf16 %v3730, %v3729
      %v3765 = vpack.c.bf16 %v2768, %v2767
      %v3766 = vpack.c.bf16 %v3636, %v3635
      %v3767 = vpack.c.bf16 %v3732, %v3731
      %v3768 = vpack.c.bf16 %v2770, %v2769
      %v3769 = vpack.c.bf16 %v3638, %v3637
      %v3770 = vpack.c.bf16 %v3734, %v3733
      %v3771 = vpack.c.bf16 %v2772, %v2771
      %v3772 = vpack.c.bf16 %v3640, %v3639
      %v3773 = vpack.c.bf16 %v3736, %v3735
      %v3774 = vpack.c.bf16 %v2774, %v2773
      %v3775 = vpack.c.bf16 %v3642, %v3641
      %v3776 = vpack.c.bf16 %v3738, %v3737
      %v3777 = vpack.c.bf16 %v2776, %v2775
      %v3778 = vpack.c.bf16 %v3644, %v3643
      %v3779 = vpack.c.bf16 %v3740, %v3739
      %v3780 = vpack.c.bf16 %v2778, %v2777
      %v3781 = vpack.c.bf16 %v3646, %v3645
      %v3782 = vpack.c.bf16 %v3742, %v3741
      %v3783 = vpack.c.bf16 %v2780, %v2779
      %v3784 = vpack.c.bf16 %v3648, %v3647
      %v3785 = vpack.c.bf16 %v3744, %v3743
      %v3786 = vpack.c.bf16 %v2782, %v2781
      %v3787 = vpack.c.bf16 %v3650, %v3649
      %v3788 = vpack.c.bf16 %v3746, %v3745
      %v3789 = vpack.c.bf16 %v2784, %v2783
      %v3790 = vpack.c.bf16 %v3652, %v3651
      %v3791 = vpack.c.bf16 %v3748, %v3747
      %v3792 = vpack.c.bf16 %v2786, %v2785
      %v3793 = vpack.c.bf16 %v3654, %v3653
      %v3794 = vpack.c.bf16 %v3750, %v3749
      %v3795 = vpack.c.bf16 %v2788, %v2787
      %v3796 = vpack.c.bf16 %v3656, %v3655
      %v3797 = vpack.c.bf16 %v3752, %v3751
      %v3798 = vpack.c.bf16 %v2790, %v2789
      %v3799 = vpack.c.bf16 %v3658, %v3657
      %v3800 = vpack.c.bf16 %v3754, %v3753
      %v3801 = vpack.c.bf16 %v2792, %v2791
      %v3802 = vpack.c.bf16 %v3660, %v3659
      %v3803 = vpack.c.bf16 %v3756, %v3755
      %v3804 = vpack.c.bf16 %v2794, %v2793
      %v3805 = vld [vmem:[%s3] sm:$0xf]
      %v3806 = vld [vmem:[%s3 + $0x4] sm:$0xf]
      %v3807 = vld [vmem:[%s3 + $0x8] sm:$0xf]
      %v3808 = vld [vmem:[%s3 + $0xc] sm:$0xf]
      %v3809 = vld [vmem:[%s3 + $0x10] sm:$0xf]
      %v3810 = vld [vmem:[%s3 + $0x14] sm:$0xf]
      %v3811 = vld [vmem:[%s3 + $0x18] sm:$0xf]
      %v3812 = vld [vmem:[%s3 + $0x1c] sm:$0xf]
      %v3813 = vld [vmem:[%s3 + $0x20] sm:$0xf]
      %v3814 = vld [vmem:[%s3 + $0x24] sm:$0xf]
      %v3815 = vld [vmem:[%s3 + $0x28] sm:$0xf]
      %v3816 = vld [vmem:[%s3 + $0x2c] sm:$0xf]
      %v3817 = vld [vmem:[%s3 + $0x30] sm:$0xf]
      %v3818 = vld [vmem:[%s3 + $0x34] sm:$0xf]
      %v3819 = vld [vmem:[%s3 + $0x38] sm:$0xf]
      %v3820 = vld [vmem:[%s3 + $0x3c] sm:$0xf]
      %v3821 = vld [vmem:[%s3 + $0x40] sm:$0xf]
      %v3822 = vld [vmem:[%s3 + $0x44] sm:$0xf]
      %v3823 = vld [vmem:[%s3 + $0x48] sm:$0xf]
      %v3824 = vld [vmem:[%s3 + $0x4c] sm:$0xf]
      %v3825 = vld [vmem:[%s3 + $0x50] sm:$0xf]
      %v3826 = vld [vmem:[%s3 + $0x54] sm:$0xf]
      %v3827 = vld [vmem:[%s3 + $0x58] sm:$0xf]
      %v3828 = vld [vmem:[%s3 + $0x5c] sm:$0xf]
      %v3829 = vld [vmem:[%s3 + $0x60] sm:$0xf]
      %v3830 = vld [vmem:[%s3 + $0x64] sm:$0xf]
      %v3831 = vld [vmem:[%s3 + $0x68] sm:$0xf]
      %v3832 = vld [vmem:[%s3 + $0x6c] sm:$0xf]
      %v3833 = vld [vmem:[%s3 + $0x70] sm:$0xf]
      %v3834 = vld [vmem:[%s3 + $0x74] sm:$0xf]
      %v3835 = vld [vmem:[%s3 + $0x78] sm:$0xf]
      %v3836 = vld [vmem:[%s3 + $0x7c] sm:$0xf]
      %v3837 = vld [vmem:[%s3 + $0x80] sm:$0xf]
      %v3838 = vld [vmem:[%s3 + $0x84] sm:$0xf]
      %v3839 = vld [vmem:[%s3 + $0x88] sm:$0xf]
      %v3840 = vld [vmem:[%s3 + $0x8c] sm:$0xf]
      %v3841 = vld [vmem:[%s4] sm:$0x1]
      %v3843 = vperm.slane %v3841, 0
      %v3881 = vunpack.c.l.b16 %v3805
      %v3882 = vunpack.c.l.b16 %v3806
      %v3883 = vunpack.c.l.b16 %v3807
      %v3884 = vunpack.c.l.b16 %v3808
      %v3885 = vunpack.c.l.b16 %v3809
      %v3886 = vunpack.c.l.b16 %v3810
      %v3887 = vunpack.c.l.b16 %v3811
      %v3888 = vunpack.c.l.b16 %v3812
      %v3889 = vunpack.c.l.b16 %v3813
      %v3890 = vunpack.c.l.b16 %v3814
      %v3891 = vunpack.c.l.b16 %v3815
      %v3892 = vunpack.c.l.b16 %v3816
      %v3893 = vunpack.c.l.b16 %v3817
      %v3894 = vunpack.c.l.b16 %v3818
      %v3895 = vunpack.c.l.b16 %v3819
      %v3896 = vunpack.c.l.b16 %v3820
      %v3897 = vunpack.c.l.b16 %v3821
      %v3898 = vunpack.c.l.b16 %v3822
      %v3899 = vunpack.c.l.b16 %v3823
      %v3900 = vunpack.c.l.b16 %v3824
      %v3901 = vunpack.c.l.b16 %v3825
      %v3902 = vunpack.c.l.b16 %v3826
      %v3903 = vunpack.c.l.b16 %v3827
      %v3904 = vunpack.c.l.b16 %v3828
      %v3905 = vunpack.c.l.b16 %v3829
      %v3906 = vunpack.c.l.b16 %v3830
      %v3907 = vunpack.c.l.b16 %v3831
      %v3908 = vunpack.c.l.b16 %v3832
      %v3909 = vunpack.c.l.b16 %v3833
      %v3910 = vunpack.c.l.b16 %v3834
      %v3911 = vunpack.c.l.b16 %v3835
      %v3912 = vunpack.c.l.b16 %v3836
      %v3913 = vunpack.c.l.b16 %v3837
      %v3914 = vunpack.c.l.b16 %v3838
      %v3915 = vunpack.c.l.b16 %v3839
      %v3916 = vunpack.c.l.b16 %v3840
      %v3917 = vpack.c.b16 %v3882, %v3881
      %v3918 = vpack.c.b16 %v3884, %v3883
      %v3919 = vpack.c.b16 %v3886, %v3885
      %v3920 = vpack.c.b16 %v3888, %v3887
      %v3921 = vpack.c.b16 %v3890, %v3889
      %v3922 = vpack.c.b16 %v3892, %v3891
      %v3923 = vpack.c.b16 %v3894, %v3893
      %v3924 = vpack.c.b16 %v3896, %v3895
      %v3925 = vpack.c.b16 %v3898, %v3897
      %v3926 = vpack.c.b16 %v3900, %v3899
      %v3927 = vpack.c.b16 %v3902, %v3901
      %v3928 = vpack.c.b16 %v3904, %v3903
      %v3929 = vpack.c.b16 %v3906, %v3905
      %v3930 = vpack.c.b16 %v3908, %v3907
      %v3931 = vpack.c.b16 %v3910, %v3909
      %v3932 = vpack.c.b16 %v3912, %v3911
      %v3933 = vpack.c.b16 %v3914, %v3913
      %v3934 = vpack.c.b16 %v3916, %v3915
      %v3954 = vsel %vm579, %v3759, 0
      %v3957 = vsel %vm579, %v3762, 0
      %v3960 = vsel %vm579, %v3765, 0
      %v3963 = vsel %vm579, %v3768, 0
      %v3966 = vsel %vm579, %v3771, 0
      %v3969 = vsel %vm579, %v3774, 0
      %v3972 = vsel %vm579, %v3777, 0
      %v3975 = vsel %vm579, %v3780, 0
      %v3978 = vsel %vm579, %v3783, 0
      %v3981 = vsel %vm579, %v3786, 0
      %v3984 = vsel %vm579, %v3789, 0
      %v3987 = vsel %vm579, %v3792, 0
      %v3990 = vsel %vm579, %v3795, 0
      %v3993 = vsel %vm579, %v3798, 0
      %v3996 = vsel %vm579, %v3801, 0
      %v3999 = vsel %vm579, %v3804, 0
      %4001 = vmatpush.bf16.msra.mxu0 %v3924
      %4002 = vmatpush.bf16.msra.mxu0 %v3923
      %4003 = vmatpush.bf16.msra.mxu0 %v3922
      %4004 = vmatpush.bf16.msra.mxu0 %v3921
      %4005 = vmatpush.bf16.msra.mxu0 %v3920
      %4006 = vmatpush.bf16.msra.mxu0 %v3919
      %4007 = vmatpush.bf16.msra.mxu0 %v3918
      %4008 = vmatpush.bf16.msra.mxu0 %v3917
      %4009 = vmatmul.bf16.gmra.mxu0 %v3757
      %v4010 = vpop.f32.mrf.mxu0
      %v4011 = vadd.f32 %v3843, %v4010
      %v4012 = vpop.f32.mrf.mxu0
      %v4013 = vadd.f32 %v3843, %v4012
      %4014 = vmatmul.bf16.gmra.mxu0 %v3760
      %v4015 = vpop.f32.mrf.mxu0
      %v4016 = vadd.f32 %v3843, %v4015
      %v4017 = vpop.f32.mrf.mxu0
      %v4018 = vadd.f32 %v3843, %v4017
      %4019 = vmatmul.bf16.gmra.mxu0 %v3763
      %v4020 = vpop.f32.mrf.mxu0
      %v4021 = vadd.f32 %v3843, %v4020
      %v4022 = vpop.f32.mrf.mxu0
      %v4023 = vadd.f32 %v3843, %v4022
      %4024 = vmatmul.bf16.gmra.mxu0 %v3766
      %v4025 = vpop.f32.mrf.mxu0
      %v4026 = vadd.f32 %v3843, %v4025
      %v4027 = vpop.f32.mrf.mxu0
      %v4028 = vadd.f32 %v3843, %v4027
      %4029 = vmatmul.bf16.gmra.mxu0 %v3769
      %v4030 = vpop.f32.mrf.mxu0
      %v4031 = vadd.f32 %v3843, %v4030
      %v4032 = vpop.f32.mrf.mxu0
      %v4033 = vadd.f32 %v3843, %v4032
      %4034 = vmatmul.bf16.gmra.mxu0 %v3772
      %v4035 = vpop.f32.mrf.mxu0
      %v4036 = vadd.f32 %v3843, %v4035
      %v4037 = vpop.f32.mrf.mxu0
      %v4038 = vadd.f32 %v3843, %v4037
      %4039 = vmatmul.bf16.gmra.mxu0 %v3775
      %v4040 = vpop.f32.mrf.mxu0
      %v4041 = vadd.f32 %v3843, %v4040
      %v4042 = vpop.f32.mrf.mxu0
      %v4043 = vadd.f32 %v3843, %v4042
      %4044 = vmatmul.bf16.gmra.mxu0 %v3778
      %v4045 = vpop.f32.mrf.mxu0
      %v4046 = vadd.f32 %v3843, %v4045
      %v4047 = vpop.f32.mrf.mxu0
      %v4048 = vadd.f32 %v3843, %v4047
      %4049 = vmatmul.bf16.gmra.mxu0 %v3781
      %v4050 = vpop.f32.mrf.mxu0
      %v4051 = vadd.f32 %v3843, %v4050
      %v4052 = vpop.f32.mrf.mxu0
      %v4053 = vadd.f32 %v3843, %v4052
      %4054 = vmatmul.bf16.gmra.mxu0 %v3784
      %v4055 = vpop.f32.mrf.mxu0
      %v4056 = vadd.f32 %v3843, %v4055
      %v4057 = vpop.f32.mrf.mxu0
      %v4058 = vadd.f32 %v3843, %v4057
      %4059 = vmatmul.bf16.gmra.mxu0 %v3787
      %v4060 = vpop.f32.mrf.mxu0
      %v4061 = vadd.f32 %v3843, %v4060
      %v4062 = vpop.f32.mrf.mxu0
      %v4063 = vadd.f32 %v3843, %v4062
      %4064 = vmatmul.bf16.gmra.mxu0 %v3790
      %v4065 = vpop.f32.mrf.mxu0
      %v4066 = vadd.f32 %v3843, %v4065
      %v4067 = vpop.f32.mrf.mxu0
      %v4068 = vadd.f32 %v3843, %v4067
      %4069 = vmatmul.bf16.gmra.mxu0 %v3793
      %v4070 = vpop.f32.mrf.mxu0
      %v4071 = vadd.f32 %v3843, %v4070
      %v4072 = vpop.f32.mrf.mxu0
      %v4073 = vadd.f32 %v3843, %v4072
      %4074 = vmatmul.bf16.gmra.mxu0 %v3796
      %v4075 = vpop.f32.mrf.mxu0
      %v4076 = vadd.f32 %v3843, %v4075
      %v4077 = vpop.f32.mrf.mxu0
      %v4078 = vadd.f32 %v3843, %v4077
      %4079 = vmatmul.bf16.gmra.mxu0 %v3799
      %v4080 = vpop.f32.mrf.mxu0
      %v4081 = vadd.f32 %v3843, %v4080
      %v4082 = vpop.f32.mrf.mxu0
      %v4083 = vadd.f32 %v3843, %v4082
      %4084 = vmatmul.bf16.gmra.mxu0 %v3802
      %v4085 = vpop.f32.mrf.mxu0
      %v4086 = vadd.f32 %v3843, %v4085
      %v4087 = vpop.f32.mrf.mxu0
      %v4088 = vadd.f32 %v3843, %v4087
      %4089 = vdwg.mxu0
      %4090 = vmatpush.bf16.msra.mxu0 %v3932
      %4091 = vmatpush.bf16.msra.mxu0 %v3931
      %4092 = vmatpush.bf16.msra.mxu0 %v3930
      %4093 = vmatpush.bf16.msra.mxu0 %v3929
      %4094 = vmatpush.bf16.msra.mxu0 %v3928
      %4095 = vmatpush.bf16.msra.mxu0 %v3927
      %4096 = vmatpush.bf16.msra.mxu0 %v3926
      %4097 = vmatpush.bf16.msra.mxu0 %v3925
      %4098 = vmatmul.bf16.gmra.mxu0 %v3758
      %v4099 = vpop.f32.mrf.mxu0
      %v4100 = vadd.f32 %v4011, %v4099
      %v4101 = vpop.f32.mrf.mxu0
      %v4102 = vadd.f32 %v4013, %v4101
      %4103 = vmatmul.bf16.gmra.mxu0 %v3761
      %v4104 = vpop.f32.mrf.mxu0
      %v4105 = vadd.f32 %v4016, %v4104
      %v4106 = vpop.f32.mrf.mxu0
      %v4107 = vadd.f32 %v4018, %v4106
      %4108 = vmatmul.bf16.gmra.mxu0 %v3764
      %v4109 = vpop.f32.mrf.mxu0
      %v4110 = vadd.f32 %v4021, %v4109
      %v4111 = vpop.f32.mrf.mxu0
      %v4112 = vadd.f32 %v4023, %v4111
      %4113 = vmatmul.bf16.gmra.mxu0 %v3767
      %v4114 = vpop.f32.mrf.mxu0
      %v4115 = vadd.f32 %v4026, %v4114
      %v4116 = vpop.f32.mrf.mxu0
      %v4117 = vadd.f32 %v4028, %v4116
      %4118 = vmatmul.bf16.gmra.mxu0 %v3770
      %v4119 = vpop.f32.mrf.mxu0
      %v4120 = vadd.f32 %v4031, %v4119
      %v4121 = vpop.f32.mrf.mxu0
      %v4122 = vadd.f32 %v4033, %v4121
      %4123 = vmatmul.bf16.gmra.mxu0 %v3773
      %v4124 = vpop.f32.mrf.mxu0
      %v4125 = vadd.f32 %v4036, %v4124
      %v4126 = vpop.f32.mrf.mxu0
      %v4127 = vadd.f32 %v4038, %v4126
      %4128 = vmatmul.bf16.gmra.mxu0 %v3776
      %v4129 = vpop.f32.mrf.mxu0
      %v4130 = vadd.f32 %v4041, %v4129
      %v4131 = vpop.f32.mrf.mxu0
      %v4132 = vadd.f32 %v4043, %v4131
      %4133 = vmatmul.bf16.gmra.mxu0 %v3779
      %v4134 = vpop.f32.mrf.mxu0
      %v4135 = vadd.f32 %v4046, %v4134
      %v4136 = vpop.f32.mrf.mxu0
      %v4137 = vadd.f32 %v4048, %v4136
      %4138 = vmatmul.bf16.gmra.mxu0 %v3782
      %v4139 = vpop.f32.mrf.mxu0
      %v4140 = vadd.f32 %v4051, %v4139
      %v4141 = vpop.f32.mrf.mxu0
      %v4142 = vadd.f32 %v4053, %v4141
      %4143 = vmatmul.bf16.gmra.mxu0 %v3785
      %v4144 = vpop.f32.mrf.mxu0
      %v4145 = vadd.f32 %v4056, %v4144
      %v4146 = vpop.f32.mrf.mxu0
      %v4147 = vadd.f32 %v4058, %v4146
      %4148 = vmatmul.bf16.gmra.mxu0 %v3788
      %v4149 = vpop.f32.mrf.mxu0
      %v4150 = vadd.f32 %v4061, %v4149
      %v4151 = vpop.f32.mrf.mxu0
      %v4152 = vadd.f32 %v4063, %v4151
      %4153 = vmatmul.bf16.gmra.mxu0 %v3791
      %v4154 = vpop.f32.mrf.mxu0
      %v4155 = vadd.f32 %v4066, %v4154
      %v4156 = vpop.f32.mrf.mxu0
      %v4157 = vadd.f32 %v4068, %v4156
      %4158 = vmatmul.bf16.gmra.mxu0 %v3794
      %v4159 = vpop.f32.mrf.mxu0
      %v4160 = vadd.f32 %v4071, %v4159
      %v4161 = vpop.f32.mrf.mxu0
      %v4162 = vadd.f32 %v4073, %v4161
      %4163 = vmatmul.bf16.gmra.mxu0 %v3797
      %v4164 = vpop.f32.mrf.mxu0
      %v4165 = vadd.f32 %v4076, %v4164
      %v4166 = vpop.f32.mrf.mxu0
      %v4167 = vadd.f32 %v4078, %v4166
      %4168 = vmatmul.bf16.gmra.mxu0 %v3800
      %v4169 = vpop.f32.mrf.mxu0
      %v4170 = vadd.f32 %v4081, %v4169
      %v4171 = vpop.f32.mrf.mxu0
      %v4172 = vadd.f32 %v4083, %v4171
      %4173 = vmatmul.bf16.gmra.mxu0 %v3803
      %v4174 = vpop.f32.mrf.mxu0
      %v4175 = vadd.f32 %v4086, %v4174
      %v4176 = vpop.f32.mrf.mxu0
      %v4177 = vadd.f32 %v4088, %v4176
      %4178 = vdwg.mxu0
      %4179 = vmatpush.bf16.msra.mxu0 0
      %4180 = vmatpush.bf16.msra.mxu0 0
      %4181 = vmatpush.bf16.msra.mxu0 0
      %4182 = vmatpush.bf16.msra.mxu0 0
      %4183 = vmatpush.bf16.msra.mxu0 0
      %4184 = vmatpush.bf16.msra.mxu0 0
      %4185 = vmatpush.bf16.msra.mxu0 %v3934
      %4186 = vmatpush.bf16.msra.mxu0 %v3933
      %4187 = vmatmul.bf16.gmra.mxu0 %v3954
      %v4188 = vpop.f32.mrf.mxu0
      %v4189 = vadd.f32 %v4100, %v4188
      %v4190 = vpop.f32.mrf.mxu0
      %v4191 = vadd.f32 %v4102, %v4190
      %4192 = vmatmul.bf16.gmra.mxu0 %v3957
      %v4193 = vpop.f32.mrf.mxu0
      %v4194 = vadd.f32 %v4105, %v4193
      %v4195 = vpop.f32.mrf.mxu0
      %v4196 = vadd.f32 %v4107, %v4195
      %4197 = vmatmul.bf16.gmra.mxu0 %v3960
      %v4198 = vpop.f32.mrf.mxu0
      %v4199 = vadd.f32 %v4110, %v4198
      %v4200 = vpop.f32.mrf.mxu0
      %v4201 = vadd.f32 %v4112, %v4200
      %4202 = vmatmul.bf16.gmra.mxu0 %v3963
      %v4203 = vpop.f32.mrf.mxu0
      %v4204 = vadd.f32 %v4115, %v4203
      %v4205 = vpop.f32.mrf.mxu0
      %v4206 = vadd.f32 %v4117, %v4205
      %4207 = vmatmul.bf16.gmra.mxu0 %v3966
      %v4208 = vpop.f32.mrf.mxu0
      %v4209 = vadd.f32 %v4120, %v4208
      %v4210 = vpop.f32.mrf.mxu0
      %v4211 = vadd.f32 %v4122, %v4210
      %4212 = vmatmul.bf16.gmra.mxu0 %v3969
      %v4213 = vpop.f32.mrf.mxu0
      %v4214 = vadd.f32 %v4125, %v4213
      %v4215 = vpop.f32.mrf.mxu0
      %v4216 = vadd.f32 %v4127, %v4215
      %4217 = vmatmul.bf16.gmra.mxu0 %v3972
      %v4218 = vpop.f32.mrf.mxu0
      %v4219 = vadd.f32 %v4130, %v4218
      %v4220 = vpop.f32.mrf.mxu0
      %v4221 = vadd.f32 %v4132, %v4220
      %4222 = vmatmul.bf16.gmra.mxu0 %v3975
      %v4223 = vpop.f32.mrf.mxu0
      %v4224 = vadd.f32 %v4135, %v4223
      %v4225 = vpop.f32.mrf.mxu0
      %v4226 = vadd.f32 %v4137, %v4225
      %4227 = vmatmul.bf16.gmra.mxu0 %v3978
      %v4228 = vpop.f32.mrf.mxu0
      %v4229 = vadd.f32 %v4140, %v4228
      %v4230 = vpop.f32.mrf.mxu0
      %v4231 = vadd.f32 %v4142, %v4230
      %4232 = vmatmul.bf16.gmra.mxu0 %v3981
      %v4233 = vpop.f32.mrf.mxu0
      %v4234 = vadd.f32 %v4145, %v4233
      %v4235 = vpop.f32.mrf.mxu0
      %v4236 = vadd.f32 %v4147, %v4235
      %4237 = vmatmul.bf16.gmra.mxu0 %v3984
      %v4238 = vpop.f32.mrf.mxu0
      %v4239 = vadd.f32 %v4150, %v4238
      %v4240 = vpop.f32.mrf.mxu0
      %v4241 = vadd.f32 %v4152, %v4240
      %4242 = vmatmul.bf16.gmra.mxu0 %v3987
      %v4243 = vpop.f32.mrf.mxu0
      %v4244 = vadd.f32 %v4155, %v4243
      %v4245 = vpop.f32.mrf.mxu0
      %v4246 = vadd.f32 %v4157, %v4245
      %4247 = vmatmul.bf16.gmra.mxu0 %v3990
      %v4248 = vpop.f32.mrf.mxu0
      %v4249 = vadd.f32 %v4160, %v4248
      %v4250 = vpop.f32.mrf.mxu0
      %v4251 = vadd.f32 %v4162, %v4250
      %4252 = vmatmul.bf16.gmra.mxu0 %v3993
      %v4253 = vpop.f32.mrf.mxu0
      %v4254 = vadd.f32 %v4165, %v4253
      %v4255 = vpop.f32.mrf.mxu0
      %v4256 = vadd.f32 %v4167, %v4255
      %4257 = vmatmul.bf16.gmra.mxu0 %v3996
      %v4258 = vpop.f32.mrf.mxu0
      %v4259 = vadd.f32 %v4170, %v4258
      %v4260 = vpop.f32.mrf.mxu0
      %v4261 = vadd.f32 %v4172, %v4260
      %4262 = vmatmul.bf16.gmra.mxu0 %v3999
      %v4263 = vpop.f32.mrf.mxu0
      %v4264 = vadd.f32 %v4175, %v4263
      %v4265 = vpop.f32.mrf.mxu0
      %v4266 = vadd.f32 %v4177, %v4265
      %4267 = vdwg.mxu0
      %4268 = vst.msk [vmem:[%s399] sm:$0xff] %vm506, %v4189
      %4269 = vst.msk [vmem:[%s399 + $0x8] sm:$0xff] %vm506, %v4191
      %4270 = vst.msk [vmem:[%s399 + $0x10] sm:$0xff] %vm506, %v4194
      %4271 = vst.msk [vmem:[%s399 + $0x18] sm:$0xff] %vm506, %v4196
      %4272 = vst.msk [vmem:[%s399 + $0x20] sm:$0xff] %vm506, %v4199
      %4273 = vst.msk [vmem:[%s399 + $0x28] sm:$0xff] %vm506, %v4201
      %4274 = vst.msk [vmem:[%s399 + $0x30] sm:$0xff] %vm506, %v4204
      %4275 = vst.msk [vmem:[%s399 + $0x38] sm:$0xff] %vm506, %v4206
      %4276 = vst.msk [vmem:[%s399 + $0x40] sm:$0xff] %vm506, %v4209
      %4277 = vst.msk [vmem:[%s399 + $0x48] sm:$0xff] %vm506, %v4211
      %4278 = vst.msk [vmem:[%s399 + $0x50] sm:$0xff] %vm506, %v4214
      %4279 = vst.msk [vmem:[%s399 + $0x58] sm:$0xff] %vm506, %v4216
      %4280 = vst.msk [vmem:[%s399 + $0x60] sm:$0xff] %vm506, %v4219
      %4281 = vst.msk [vmem:[%s399 + $0x68] sm:$0xff] %vm506, %v4221
      %4282 = vst.msk [vmem:[%s399 + $0x70] sm:$0xff] %vm506, %v4224
      %4283 = vst.msk [vmem:[%s399 + $0x78] sm:$0xff] %vm506, %v4226
      %4284 = vst.msk [vmem:[%s399 + $0x80] sm:$0xff] %vm506, %v4229
      %4285 = vst.msk [vmem:[%s399 + $0x88] sm:$0xff] %vm506, %v4231
      %4286 = vst.msk [vmem:[%s399 + $0x90] sm:$0xff] %vm506, %v4234
      %4287 = vst.msk [vmem:[%s399 + $0x98] sm:$0xff] %vm506, %v4236
      %4288 = vst.msk [vmem:[%s399 + $0xa0] sm:$0xff] %vm506, %v4239
      %4289 = vst.msk [vmem:[%s399 + $0xa8] sm:$0xff] %vm506, %v4241
      %4290 = vst.msk [vmem:[%s399 + $0xb0] sm:$0xff] %vm506, %v4244
      %4291 = vst.msk [vmem:[%s399 + $0xb8] sm:$0xff] %vm506, %v4246
      %4292 = vst.msk [vmem:[%s399 + $0xc0] sm:$0xff] %vm506, %v4249
      %4293 = vst.msk [vmem:[%s399 + $0xc8] sm:$0xff] %vm506, %v4251
      %4294 = vst.msk [vmem:[%s399 + $0xd0] sm:$0xff] %vm506, %v4254
      %4295 = vst.msk [vmem:[%s399 + $0xd8] sm:$0xff] %vm506, %v4256
      %4296 = vst.msk [vmem:[%s399 + $0xe0] sm:$0xff] %vm506, %v4259
      %4297 = vst.msk [vmem:[%s399 + $0xe8] sm:$0xff] %vm506, %v4261
      %4298 = vst.msk [vmem:[%s399 + $0xf0] sm:$0xff] %vm506, %v4264
      %4299 = vst.msk [vmem:[%s399 + $0xf8] sm:$0xff] %vm506, %v4266
      %s4300 = scalar_lea.vmem [#allocation3], 32
      %4301 = vst.msk [vmem:[%s4300 + $0x8] sm:$0xff] %vm506, %v4189
      %4302 = vst.msk [vmem:[%s4300 + $0x10] sm:$0xff] %vm506, %v4191
      %4303 = vst.msk [vmem:[%s4300 + $0x28] sm:$0xff] %vm506, %v4194
      %4304 = vst.msk [vmem:[%s4300 + $0x30] sm:$0xff] %vm506, %v4196
      %4305 = vst.msk [vmem:[%s4300 + $0x48] sm:$0xff] %vm506, %v4199
      %4306 = vst.msk [vmem:[%s4300 + $0x50] sm:$0xff] %vm506, %v4201
      %4307 = vst.msk [vmem:[%s4300 + $0x68] sm:$0xff] %vm506, %v4204
      %4308 = vst.msk [vmem:[%s4300 + $0x70] sm:$0xff] %vm506, %v4206
      %4309 = vst.msk [vmem:[%s4300 + $0x88] sm:$0xff] %vm506, %v4209
      %4310 = vst.msk [vmem:[%s4300 + $0x90] sm:$0xff] %vm506, %v4211
      %4311 = vst.msk [vmem:[%s4300 + $0xa8] sm:$0xff] %vm506, %v4214
      %4312 = vst.msk [vmem:[%s4300 + $0xb0] sm:$0xff] %vm506, %v4216
      %4313 = vst.msk [vmem:[%s4300 + $0xc8] sm:$0xff] %vm506, %v4219
      %4314 = vst.msk [vmem:[%s4300 + $0xd0] sm:$0xff] %vm506, %v4221
      %4315 = vst.msk [vmem:[%s4300 + $0xe8] sm:$0xff] %vm506, %v4224
      %4316 = vst.msk [vmem:[%s4300 + $0xf0] sm:$0xff] %vm506, %v4226
      %4317 = vst.msk [vmem:[%s4300 + $0x108] sm:$0xff] %vm506, %v4229
      %4318 = vst.msk [vmem:[%s4300 + $0x110] sm:$0xff] %vm506, %v4231
      %4319 = vst.msk [vmem:[%s4300 + $0x128] sm:$0xff] %vm506, %v4234
      %4320 = vst.msk [vmem:[%s4300 + $0x130] sm:$0xff] %vm506, %v4236
      %4321 = vst.msk [vmem:[%s4300 + $0x148] sm:$0xff] %vm506, %v4239
      %4322 = vst.msk [vmem:[%s4300 + $0x150] sm:$0xff] %vm506, %v4241
      %4323 = vst.msk [vmem:[%s4300 + $0x168] sm:$0xff] %vm506, %v4244
      %4324 = vst.msk [vmem:[%s4300 + $0x170] sm:$0xff] %vm506, %v4246
      %4325 = vst.msk [vmem:[%s4300 + $0x188] sm:$0xff] %vm506, %v4249
      %4326 = vst.msk [vmem:[%s4300 + $0x190] sm:$0xff] %vm506, %v4251
      %4327 = vst.msk [vmem:[%s4300 + $0x1a8] sm:$0xff] %vm506, %v4254
      %4328 = vst.msk [vmem:[%s4300 + $0x1b0] sm:$0xff] %vm506, %v4256
      %4329 = vst.msk [vmem:[%s4300 + $0x1c8] sm:$0xff] %vm506, %v4259
      %4330 = vst.msk [vmem:[%s4300 + $0x1d0] sm:$0xff] %vm506, %v4261
      %4331 = vst.msk [vmem:[%s4300 + $0x1e8] sm:$0xff] %vm506, %v4264
      %4332 = vst.msk [vmem:[%s4300 + $0x1f0] sm:$0xff] %vm506, %v4266
      %v4333 = vld [vmem:[#allocation2 + $0x7] sm:$0xff]
      %v4334 = vld [vmem:[#allocation2 + $0xf] sm:$0xff]
      %v4335 = vld [vmem:[#allocation2 + $0x27] sm:$0xff]
      %v4336 = vld [vmem:[#allocation2 + $0x2f] sm:$0xff]
      %v4337 = vld [vmem:[#allocation2 + $0x47] sm:$0xff]
      %v4338 = vld [vmem:[#allocation2 + $0x4f] sm:$0xff]
      %v4339 = vld [vmem:[#allocation2 + $0x67] sm:$0xff]
      %v4340 = vld [vmem:[#allocation2 + $0x6f] sm:$0xff]
      %v4341 = vld [vmem:[#allocation2 + $0x87] sm:$0xff]
      %v4342 = vld [vmem:[#allocation2 + $0x8f] sm:$0xff]
      %v4343 = vld [vmem:[#allocation2 + $0xa7] sm:$0xff]
      %v4344 = vld [vmem:[#allocation2 + $0xaf] sm:$0xff]
      %v4345 = vld [vmem:[#allocation2 + $0xc7] sm:$0xff]
      %v4346 = vld [vmem:[#allocation2 + $0xcf] sm:$0xff]
      %v4347 = vld [vmem:[#allocation2 + $0xe7] sm:$0xff]
      %v4348 = vld [vmem:[#allocation2 + $0xef] sm:$0xff]
      %v4349 = vld [vmem:[#allocation2 + $0x107] sm:$0xff]
      %v4350 = vld [vmem:[#allocation2 + $0x10f] sm:$0xff]
      %v4351 = vld [vmem:[#allocation2 + $0x127] sm:$0xff]
      %v4352 = vld [vmem:[#allocation2 + $0x12f] sm:$0xff]
      %v4353 = vld [vmem:[#allocation2 + $0x147] sm:$0xff]
      %v4354 = vld [vmem:[#allocation2 + $0x14f] sm:$0xff]
      %v4355 = vld [vmem:[#allocation2 + $0x167] sm:$0xff]
      %v4356 = vld [vmem:[#allocation2 + $0x16f] sm:$0xff]
      %v4357 = vld [vmem:[#allocation2 + $0x187] sm:$0xff]
      %v4358 = vld [vmem:[#allocation2 + $0x18f] sm:$0xff]
      %v4359 = vld [vmem:[#allocation2 + $0x1a7] sm:$0xff]
      %v4360 = vld [vmem:[#allocation2 + $0x1af] sm:$0xff]
      %v4361 = vld [vmem:[#allocation2 + $0x1c7] sm:$0xff]
      %v4362 = vld [vmem:[#allocation2 + $0x1cf] sm:$0xff]
      %v4363 = vld [vmem:[#allocation2 + $0x1e7] sm:$0xff]
      %v4364 = vld [vmem:[#allocation2 + $0x1ef] sm:$0xff]
      %v4365 = vld [vmem:[#allocation2 + $0x8] sm:$0xff]
      %v4366 = vld [vmem:[#allocation2 + $0x10] sm:$0xff]
      %v4367 = vld [vmem:[#allocation2 + $0x28] sm:$0xff]
      %v4368 = vld [vmem:[#allocation2 + $0x30] sm:$0xff]
      %v4369 = vld [vmem:[#allocation2 + $0x48] sm:$0xff]
      %v4370 = vld [vmem:[#allocation2 + $0x50] sm:$0xff]
      %v4371 = vld [vmem:[#allocation2 + $0x68] sm:$0xff]
      %v4372 = vld [vmem:[#allocation2 + $0x70] sm:$0xff]
      %v4373 = vld [vmem:[#allocation2 + $0x88] sm:$0xff]
      %v4374 = vld [vmem:[#allocation2 + $0x90] sm:$0xff]
      %v4375 = vld [vmem:[#allocation2 + $0xa8] sm:$0xff]
      %v4376 = vld [vmem:[#allocation2 + $0xb0] sm:$0xff]
      %v4377 = vld [vmem:[#allocation2 + $0xc8] sm:$0xff]
      %v4378 = vld [vmem:[#allocation2 + $0xd0] sm:$0xff]
      %v4379 = vld [vmem:[#allocation2 + $0xe8] sm:$0xff]
      %v4380 = vld [vmem:[#allocation2 + $0xf0] sm:$0xff]
      %v4381 = vld [vmem:[#allocation2 + $0x108] sm:$0xff]
      %v4382 = vld [vmem:[#allocation2 + $0x110] sm:$0xff]
      %v4383 = vld [vmem:[#allocation2 + $0x128] sm:$0xff]
      %v4384 = vld [vmem:[#allocation2 + $0x130] sm:$0xff]
      %v4385 = vld [vmem:[#allocation2 + $0x148] sm:$0xff]
      %v4386 = vld [vmem:[#allocation2 + $0x150] sm:$0xff]
      %v4387 = vld [vmem:[#allocation2 + $0x168] sm:$0xff]
      %v4388 = vld [vmem:[#allocation2 + $0x170] sm:$0xff]
      %v4389 = vld [vmem:[#allocation2 + $0x188] sm:$0xff]
      %v4390 = vld [vmem:[#allocation2 + $0x190] sm:$0xff]
      %v4391 = vld [vmem:[#allocation2 + $0x1a8] sm:$0xff]
      %v4392 = vld [vmem:[#allocation2 + $0x1b0] sm:$0xff]
      %v4393 = vld [vmem:[#allocation2 + $0x1c8] sm:$0xff]
      %v4394 = vld [vmem:[#allocation2 + $0x1d0] sm:$0xff]
      %v4395 = vld [vmem:[#allocation2 + $0x1e8] sm:$0xff]
      %v4396 = vld [vmem:[#allocation2 + $0x1f0] sm:$0xff]
      %v4397 = vld [vmem:[#allocation2 + $0x9] sm:$0xff]
      %v4398 = vld [vmem:[#allocation2 + $0x11] sm:$0xff]
      %v4399 = vld [vmem:[#allocation2 + $0x29] sm:$0xff]
      %v4400 = vld [vmem:[#allocation2 + $0x31] sm:$0xff]
      %v4401 = vld [vmem:[#allocation2 + $0x49] sm:$0xff]
      %v4402 = vld [vmem:[#allocation2 + $0x51] sm:$0xff]
      %v4403 = vld [vmem:[#allocation2 + $0x69] sm:$0xff]
      %v4404 = vld [vmem:[#allocation2 + $0x71] sm:$0xff]
      %v4405 = vld [vmem:[#allocation2 + $0x89] sm:$0xff]
      %v4406 = vld [vmem:[#allocation2 + $0x91] sm:$0xff]
      %v4407 = vld [vmem:[#allocation2 + $0xa9] sm:$0xff]
      %v4408 = vld [vmem:[#allocation2 + $0xb1] sm:$0xff]
      %v4409 = vld [vmem:[#allocation2 + $0xc9] sm:$0xff]
      %v4410 = vld [vmem:[#allocation2 + $0xd1] sm:$0xff]
      %v4411 = vld [vmem:[#allocation2 + $0xe9] sm:$0xff]
      %v4412 = vld [vmem:[#allocation2 + $0xf1] sm:$0xff]
      %v4413 = vld [vmem:[#allocation2 + $0x109] sm:$0xff]
      %v4414 = vld [vmem:[#allocation2 + $0x111] sm:$0xff]
      %v4415 = vld [vmem:[#allocation2 + $0x129] sm:$0xff]
      %v4416 = vld [vmem:[#allocation2 + $0x131] sm:$0xff]
      %v4417 = vld [vmem:[#allocation2 + $0x149] sm:$0xff]
      %v4418 = vld [vmem:[#allocation2 + $0x151] sm:$0xff]
      %v4419 = vld [vmem:[#allocation2 + $0x169] sm:$0xff]
      %v4420 = vld [vmem:[#allocation2 + $0x171] sm:$0xff]
      %v4421 = vld [vmem:[#allocation2 + $0x189] sm:$0xff]
      %v4422 = vld [vmem:[#allocation2 + $0x191] sm:$0xff]
      %v4423 = vld [vmem:[#allocation2 + $0x1a9] sm:$0xff]
      %v4424 = vld [vmem:[#allocation2 + $0x1b1] sm:$0xff]
      %v4425 = vld [vmem:[#allocation2 + $0x1c9] sm:$0xff]
      %v4426 = vld [vmem:[#allocation2 + $0x1d1] sm:$0xff]
      %v4427 = vld [vmem:[#allocation2 + $0x1e9] sm:$0xff]
      %v4428 = vld [vmem:[#allocation2 + $0x1f1] sm:$0xff]
      %v4429 = vld [vmem:[%s652 + $0x7] sm:$0xff]
      %v4430 = vld [vmem:[%s652 + $0xf] sm:$0xff]
      %v4431 = vld [vmem:[%s652 + $0x27] sm:$0xff]
      %v4432 = vld [vmem:[%s652 + $0x2f] sm:$0xff]
      %v4433 = vld [vmem:[%s652 + $0x47] sm:$0xff]
      %v4434 = vld [vmem:[%s652 + $0x4f] sm:$0xff]
      %v4435 = vld [vmem:[%s652 + $0x67] sm:$0xff]
      %v4436 = vld [vmem:[%s652 + $0x6f] sm:$0xff]
      %v4437 = vld [vmem:[%s652 + $0x87] sm:$0xff]
      %v4438 = vld [vmem:[%s652 + $0x8f] sm:$0xff]
      %v4439 = vld [vmem:[%s652 + $0xa7] sm:$0xff]
      %v4440 = vld [vmem:[%s652 + $0xaf] sm:$0xff]
      %v4441 = vld [vmem:[%s652 + $0xc7] sm:$0xff]
      %v4442 = vld [vmem:[%s652 + $0xcf] sm:$0xff]
      %v4443 = vld [vmem:[%s652 + $0xe7] sm:$0xff]
      %v4444 = vld [vmem:[%s652 + $0xef] sm:$0xff]
      %v4445 = vld [vmem:[%s652 + $0x107] sm:$0xff]
      %v4446 = vld [vmem:[%s652 + $0x10f] sm:$0xff]
      %v4447 = vld [vmem:[%s652 + $0x127] sm:$0xff]
      %v4448 = vld [vmem:[%s652 + $0x12f] sm:$0xff]
      %v4449 = vld [vmem:[%s652 + $0x147] sm:$0xff]
      %v4450 = vld [vmem:[%s652 + $0x14f] sm:$0xff]
      %v4451 = vld [vmem:[%s652 + $0x167] sm:$0xff]
      %v4452 = vld [vmem:[%s652 + $0x16f] sm:$0xff]
      %v4453 = vld [vmem:[%s652 + $0x187] sm:$0xff]
      %v4454 = vld [vmem:[%s652 + $0x18f] sm:$0xff]
      %v4455 = vld [vmem:[%s652 + $0x1a7] sm:$0xff]
      %v4456 = vld [vmem:[%s652 + $0x1af] sm:$0xff]
      %v4457 = vld [vmem:[%s652 + $0x1c7] sm:$0xff]
      %v4458 = vld [vmem:[%s652 + $0x1cf] sm:$0xff]
      %v4459 = vld [vmem:[%s652 + $0x1e7] sm:$0xff]
      %v4460 = vld [vmem:[%s652 + $0x1ef] sm:$0xff]
      %v4461 = vld [vmem:[%s652 + $0x8] sm:$0xff]
      %v4462 = vld [vmem:[%s652 + $0x10] sm:$0xff]
      %v4463 = vld [vmem:[%s652 + $0x28] sm:$0xff]
      %v4464 = vld [vmem:[%s652 + $0x30] sm:$0xff]
      %v4465 = vld [vmem:[%s652 + $0x48] sm:$0xff]
      %v4466 = vld [vmem:[%s652 + $0x50] sm:$0xff]
      %v4467 = vld [vmem:[%s652 + $0x68] sm:$0xff]
      %v4468 = vld [vmem:[%s652 + $0x70] sm:$0xff]
      %v4469 = vld [vmem:[%s652 + $0x88] sm:$0xff]
      %v4470 = vld [vmem:[%s652 + $0x90] sm:$0xff]
      %v4471 = vld [vmem:[%s652 + $0xa8] sm:$0xff]
      %v4472 = vld [vmem:[%s652 + $0xb0] sm:$0xff]
      %v4473 = vld [vmem:[%s652 + $0xc8] sm:$0xff]
      %v4474 = vld [vmem:[%s652 + $0xd0] sm:$0xff]
      %v4475 = vld [vmem:[%s652 + $0xe8] sm:$0xff]
      %v4476 = vld [vmem:[%s652 + $0xf0] sm:$0xff]
      %v4477 = vld [vmem:[%s652 + $0x108] sm:$0xff]
      %v4478 = vld [vmem:[%s652 + $0x110] sm:$0xff]
      %v4479 = vld [vmem:[%s652 + $0x128] sm:$0xff]
      %v4480 = vld [vmem:[%s652 + $0x130] sm:$0xff]
      %v4481 = vld [vmem:[%s652 + $0x148] sm:$0xff]
      %v4482 = vld [vmem:[%s652 + $0x150] sm:$0xff]
      %v4483 = vld [vmem:[%s652 + $0x168] sm:$0xff]
      %v4484 = vld [vmem:[%s652 + $0x170] sm:$0xff]
      %v4485 = vld [vmem:[%s652 + $0x188] sm:$0xff]
      %v4486 = vld [vmem:[%s652 + $0x190] sm:$0xff]
      %v4487 = vld [vmem:[%s652 + $0x1a8] sm:$0xff]
      %v4488 = vld [vmem:[%s652 + $0x1b0] sm:$0xff]
      %v4489 = vld [vmem:[%s652 + $0x1c8] sm:$0xff]
      %v4490 = vld [vmem:[%s652 + $0x1d0] sm:$0xff]
      %v4491 = vld [vmem:[%s652 + $0x1e8] sm:$0xff]
      %v4492 = vld [vmem:[%s652 + $0x1f0] sm:$0xff]
      %v4493 = vld [vmem:[%s652 + $0x9] sm:$0xff]
      %v4494 = vld [vmem:[%s652 + $0x11] sm:$0xff]
      %v4495 = vld [vmem:[%s652 + $0x29] sm:$0xff]
      %v4496 = vld [vmem:[%s652 + $0x31] sm:$0xff]
      %v4497 = vld [vmem:[%s652 + $0x49] sm:$0xff]
      %v4498 = vld [vmem:[%s652 + $0x51] sm:$0xff]
      %v4499 = vld [vmem:[%s652 + $0x69] sm:$0xff]
      %v4500 = vld [vmem:[%s652 + $0x71] sm:$0xff]
      %v4501 = vld [vmem:[%s652 + $0x89] sm:$0xff]
      %v4502 = vld [vmem:[%s652 + $0x91] sm:$0xff]
      %v4503 = vld [vmem:[%s652 + $0xa9] sm:$0xff]
      %v4504 = vld [vmem:[%s652 + $0xb1] sm:$0xff]
      %v4505 = vld [vmem:[%s652 + $0xc9] sm:$0xff]
      %v4506 = vld [vmem:[%s652 + $0xd1] sm:$0xff]
      %v4507 = vld [vmem:[%s652 + $0xe9] sm:$0xff]
      %v4508 = vld [vmem:[%s652 + $0xf1] sm:$0xff]
      %v4509 = vld [vmem:[%s652 + $0x109] sm:$0xff]
      %v4510 = vld [vmem:[%s652 + $0x111] sm:$0xff]
      %v4511 = vld [vmem:[%s652 + $0x129] sm:$0xff]
      %v4512 = vld [vmem:[%s652 + $0x131] sm:$0xff]
      %v4513 = vld [vmem:[%s652 + $0x149] sm:$0xff]
      %v4514 = vld [vmem:[%s652 + $0x151] sm:$0xff]
      %v4515 = vld [vmem:[%s652 + $0x169] sm:$0xff]
      %v4516 = vld [vmem:[%s652 + $0x171] sm:$0xff]
      %v4517 = vld [vmem:[%s652 + $0x189] sm:$0xff]
      %v4518 = vld [vmem:[%s652 + $0x191] sm:$0xff]
      %v4519 = vld [vmem:[%s652 + $0x1a9] sm:$0xff]
      %v4520 = vld [vmem:[%s652 + $0x1b1] sm:$0xff]
      %v4521 = vld [vmem:[%s652 + $0x1c9] sm:$0xff]
      %v4522 = vld [vmem:[%s652 + $0x1d1] sm:$0xff]
      %v4523 = vld [vmem:[%s652 + $0x1e9] sm:$0xff]
      %v4524 = vld [vmem:[%s652 + $0x1f1] sm:$0xff]
      %v4525 = vld [vmem:[%s877 + $0x7] sm:$0xff]
      %v4526 = vld [vmem:[%s877 + $0xf] sm:$0xff]
      %v4527 = vld [vmem:[%s877 + $0x27] sm:$0xff]
      %v4528 = vld [vmem:[%s877 + $0x2f] sm:$0xff]
      %v4529 = vld [vmem:[%s877 + $0x47] sm:$0xff]
      %v4530 = vld [vmem:[%s877 + $0x4f] sm:$0xff]
      %v4531 = vld [vmem:[%s877 + $0x67] sm:$0xff]
      %v4532 = vld [vmem:[%s877 + $0x6f] sm:$0xff]
      %v4533 = vld [vmem:[%s877 + $0x87] sm:$0xff]
      %v4534 = vld [vmem:[%s877 + $0x8f] sm:$0xff]
      %v4535 = vld [vmem:[%s877 + $0xa7] sm:$0xff]
      %v4536 = vld [vmem:[%s877 + $0xaf] sm:$0xff]
      %v4537 = vld [vmem:[%s877 + $0xc7] sm:$0xff]
      %v4538 = vld [vmem:[%s877 + $0xcf] sm:$0xff]
      %v4539 = vld [vmem:[%s877 + $0xe7] sm:$0xff]
      %v4540 = vld [vmem:[%s877 + $0xef] sm:$0xff]
      %v4541 = vld [vmem:[%s877 + $0x107] sm:$0xff]
      %v4542 = vld [vmem:[%s877 + $0x10f] sm:$0xff]
      %v4543 = vld [vmem:[%s877 + $0x127] sm:$0xff]
      %v4544 = vld [vmem:[%s877 + $0x12f] sm:$0xff]
      %v4545 = vld [vmem:[%s877 + $0x147] sm:$0xff]
      %v4546 = vld [vmem:[%s877 + $0x14f] sm:$0xff]
      %v4547 = vld [vmem:[%s877 + $0x167] sm:$0xff]
      %v4548 = vld [vmem:[%s877 + $0x16f] sm:$0xff]
      %v4549 = vld [vmem:[%s877 + $0x187] sm:$0xff]
      %v4550 = vld [vmem:[%s877 + $0x18f] sm:$0xff]
      %v4551 = vld [vmem:[%s877 + $0x1a7] sm:$0xff]
      %v4552 = vld [vmem:[%s877 + $0x1af] sm:$0xff]
      %v4553 = vld [vmem:[%s877 + $0x1c7] sm:$0xff]
      %v4554 = vld [vmem:[%s877 + $0x1cf] sm:$0xff]
      %v4555 = vld [vmem:[%s877 + $0x1e7] sm:$0xff]
      %v4556 = vld [vmem:[%s877 + $0x1ef] sm:$0xff]
      %v4557 = vld [vmem:[%s877 + $0x8] sm:$0xff]
      %v4558 = vld [vmem:[%s877 + $0x10] sm:$0xff]
      %v4559 = vld [vmem:[%s877 + $0x28] sm:$0xff]
      %v4560 = vld [vmem:[%s877 + $0x30] sm:$0xff]
      %v4561 = vld [vmem:[%s877 + $0x48] sm:$0xff]
      %v4562 = vld [vmem:[%s877 + $0x50] sm:$0xff]
      %v4563 = vld [vmem:[%s877 + $0x68] sm:$0xff]
      %v4564 = vld [vmem:[%s877 + $0x70] sm:$0xff]
      %v4565 = vld [vmem:[%s877 + $0x88] sm:$0xff]
      %v4566 = vld [vmem:[%s877 + $0x90] sm:$0xff]
      %v4567 = vld [vmem:[%s877 + $0xa8] sm:$0xff]
      %v4568 = vld [vmem:[%s877 + $0xb0] sm:$0xff]
      %v4569 = vld [vmem:[%s877 + $0xc8] sm:$0xff]
      %v4570 = vld [vmem:[%s877 + $0xd0] sm:$0xff]
      %v4571 = vld [vmem:[%s877 + $0xe8] sm:$0xff]
      %v4572 = vld [vmem:[%s877 + $0xf0] sm:$0xff]
      %v4573 = vld [vmem:[%s877 + $0x108] sm:$0xff]
      %v4574 = vld [vmem:[%s877 + $0x110] sm:$0xff]
      %v4575 = vld [vmem:[%s877 + $0x128] sm:$0xff]
      %v4576 = vld [vmem:[%s877 + $0x130] sm:$0xff]
      %v4577 = vld [vmem:[%s877 + $0x148] sm:$0xff]
      %v4578 = vld [vmem:[%s877 + $0x150] sm:$0xff]
      %v4579 = vld [vmem:[%s877 + $0x168] sm:$0xff]
      %v4580 = vld [vmem:[%s877 + $0x170] sm:$0xff]
      %v4581 = vld [vmem:[%s877 + $0x188] sm:$0xff]
      %v4582 = vld [vmem:[%s877 + $0x190] sm:$0xff]
      %v4583 = vld [vmem:[%s877 + $0x1a8] sm:$0xff]
      %v4584 = vld [vmem:[%s877 + $0x1b0] sm:$0xff]
      %v4585 = vld [vmem:[%s877 + $0x1c8] sm:$0xff]
      %v4586 = vld [vmem:[%s877 + $0x1d0] sm:$0xff]
      %v4587 = vld [vmem:[%s877 + $0x1e8] sm:$0xff]
      %v4588 = vld [vmem:[%s877 + $0x1f0] sm:$0xff]
      %v4589 = vld [vmem:[%s877 + $0x9] sm:$0xff]
      %v4590 = vld [vmem:[%s877 + $0x11] sm:$0xff]
      %v4591 = vld [vmem:[%s877 + $0x29] sm:$0xff]
      %v4592 = vld [vmem:[%s877 + $0x31] sm:$0xff]
      %v4593 = vld [vmem:[%s877 + $0x49] sm:$0xff]
      %v4594 = vld [vmem:[%s877 + $0x51] sm:$0xff]
      %v4595 = vld [vmem:[%s877 + $0x69] sm:$0xff]
      %v4596 = vld [vmem:[%s877 + $0x71] sm:$0xff]
      %v4597 = vld [vmem:[%s877 + $0x89] sm:$0xff]
      %v4598 = vld [vmem:[%s877 + $0x91] sm:$0xff]
      %v4599 = vld [vmem:[%s877 + $0xa9] sm:$0xff]
      %v4600 = vld [vmem:[%s877 + $0xb1] sm:$0xff]
      %v4601 = vld [vmem:[%s877 + $0xc9] sm:$0xff]
      %v4602 = vld [vmem:[%s877 + $0xd1] sm:$0xff]
      %v4603 = vld [vmem:[%s877 + $0xe9] sm:$0xff]
      %v4604 = vld [vmem:[%s877 + $0xf1] sm:$0xff]
      %v4605 = vld [vmem:[%s877 + $0x109] sm:$0xff]
      %v4606 = vld [vmem:[%s877 + $0x111] sm:$0xff]
      %v4607 = vld [vmem:[%s877 + $0x129] sm:$0xff]
      %v4608 = vld [vmem:[%s877 + $0x131] sm:$0xff]
      %v4609 = vld [vmem:[%s877 + $0x149] sm:$0xff]
      %v4610 = vld [vmem:[%s877 + $0x151] sm:$0xff]
      %v4611 = vld [vmem:[%s877 + $0x169] sm:$0xff]
      %v4612 = vld [vmem:[%s877 + $0x171] sm:$0xff]
      %v4613 = vld [vmem:[%s877 + $0x189] sm:$0xff]
      %v4614 = vld [vmem:[%s877 + $0x191] sm:$0xff]
      %v4615 = vld [vmem:[%s877 + $0x1a9] sm:$0xff]
      %v4616 = vld [vmem:[%s877 + $0x1b1] sm:$0xff]
      %v4617 = vld [vmem:[%s877 + $0x1c9] sm:$0xff]
      %v4618 = vld [vmem:[%s877 + $0x1d1] sm:$0xff]
      %v4619 = vld [vmem:[%s877 + $0x1e9] sm:$0xff]
      %v4620 = vld [vmem:[%s877 + $0x1f1] sm:$0xff]
      %4653 = vrot.lane.b32.xlu0 %v4365, 4
      %v4654 = vpop.permute.xlu0 %4653
      %4655 = vrot.lane.b32.xlu0 %v4366, 4
      %v4656 = vpop.permute.xlu0 %4655
      %4657 = vrot.lane.b32.xlu0 %v4367, 4
      %v4658 = vpop.permute.xlu0 %4657
      %4659 = vrot.lane.b32.xlu0 %v4368, 4
      %v4660 = vpop.permute.xlu0 %4659
      %4661 = vrot.lane.b32.xlu0 %v4369, 4
      %v4662 = vpop.permute.xlu0 %4661
      %4663 = vrot.lane.b32.xlu0 %v4370, 4
      %v4664 = vpop.permute.xlu0 %4663
      %4665 = vrot.lane.b32.xlu0 %v4371, 4
      %v4666 = vpop.permute.xlu0 %4665
      %4667 = vrot.lane.b32.xlu0 %v4372, 4
      %v4668 = vpop.permute.xlu0 %4667
      %4669 = vrot.lane.b32.xlu0 %v4373, 4
      %v4670 = vpop.permute.xlu0 %4669
      %4671 = vrot.lane.b32.xlu0 %v4374, 4
      %v4672 = vpop.permute.xlu0 %4671
      %4673 = vrot.lane.b32.xlu0 %v4375, 4
      %v4674 = vpop.permute.xlu0 %4673
      %4675 = vrot.lane.b32.xlu0 %v4376, 4
      %v4676 = vpop.permute.xlu0 %4675
      %4677 = vrot.lane.b32.xlu0 %v4377, 4
      %v4678 = vpop.permute.xlu0 %4677
      %4679 = vrot.lane.b32.xlu0 %v4378, 4
      %v4680 = vpop.permute.xlu0 %4679
      %4681 = vrot.lane.b32.xlu0 %v4379, 4
      %v4682 = vpop.permute.xlu0 %4681
      %4683 = vrot.lane.b32.xlu0 %v4380, 4
      %v4684 = vpop.permute.xlu0 %4683
      %4685 = vrot.lane.b32.xlu0 %v4381, 4
      %v4686 = vpop.permute.xlu0 %4685
      %4687 = vrot.lane.b32.xlu0 %v4382, 4
      %v4688 = vpop.permute.xlu0 %4687
      %4689 = vrot.lane.b32.xlu0 %v4383, 4
      %v4690 = vpop.permute.xlu0 %4689
      %4691 = vrot.lane.b32.xlu0 %v4384, 4
      %v4692 = vpop.permute.xlu0 %4691
      %4693 = vrot.lane.b32.xlu0 %v4385, 4
      %v4694 = vpop.permute.xlu0 %4693
      %4695 = vrot.lane.b32.xlu0 %v4386, 4
      %v4696 = vpop.permute.xlu0 %4695
      %4697 = vrot.lane.b32.xlu0 %v4387, 4
      %v4698 = vpop.permute.xlu0 %4697
      %4699 = vrot.lane.b32.xlu0 %v4388, 4
      %v4700 = vpop.permute.xlu0 %4699
      %4701 = vrot.lane.b32.xlu0 %v4389, 4
      %v4702 = vpop.permute.xlu0 %4701
      %4703 = vrot.lane.b32.xlu0 %v4390, 4
      %v4704 = vpop.permute.xlu0 %4703
      %4705 = vrot.lane.b32.xlu0 %v4391, 4
      %v4706 = vpop.permute.xlu0 %4705
      %4707 = vrot.lane.b32.xlu0 %v4392, 4
      %v4708 = vpop.permute.xlu0 %4707
      %4709 = vrot.lane.b32.xlu0 %v4393, 4
      %v4710 = vpop.permute.xlu0 %4709
      %4711 = vrot.lane.b32.xlu0 %v4394, 4
      %v4712 = vpop.permute.xlu0 %4711
      %4713 = vrot.lane.b32.xlu0 %v4395, 4
      %v4714 = vpop.permute.xlu0 %4713
      %4715 = vrot.lane.b32.xlu0 %v4396, 4
      %v4716 = vpop.permute.xlu0 %4715
      %4781 = vrot.lane.b32.xlu0 %v4397, 8
      %v4782 = vpop.permute.xlu0 %4781
      %4783 = vrot.lane.b32.xlu0 %v4398, 8
      %v4784 = vpop.permute.xlu0 %4783
      %4785 = vrot.lane.b32.xlu0 %v4399, 8
      %v4786 = vpop.permute.xlu0 %4785
      %4787 = vrot.lane.b32.xlu0 %v4400, 8
      %v4788 = vpop.permute.xlu0 %4787
      %4789 = vrot.lane.b32.xlu0 %v4401, 8
      %v4790 = vpop.permute.xlu0 %4789
      %4791 = vrot.lane.b32.xlu0 %v4402, 8
      %v4792 = vpop.permute.xlu0 %4791
      %4793 = vrot.lane.b32.xlu0 %v4403, 8
      %v4794 = vpop.permute.xlu0 %4793
      %4795 = vrot.lane.b32.xlu0 %v4404, 8
      %v4796 = vpop.permute.xlu0 %4795
      %4797 = vrot.lane.b32.xlu0 %v4405, 8
      %v4798 = vpop.permute.xlu0 %4797
      %4799 = vrot.lane.b32.xlu0 %v4406, 8
      %v4800 = vpop.permute.xlu0 %4799
      %4801 = vrot.lane.b32.xlu0 %v4407, 8
      %v4802 = vpop.permute.xlu0 %4801
      %4803 = vrot.lane.b32.xlu0 %v4408, 8
      %v4804 = vpop.permute.xlu0 %4803
      %4805 = vrot.lane.b32.xlu0 %v4409, 8
      %v4806 = vpop.permute.xlu0 %4805
      %4807 = vrot.lane.b32.xlu0 %v4410, 8
      %v4808 = vpop.permute.xlu0 %4807
      %4809 = vrot.lane.b32.xlu0 %v4411, 8
      %v4810 = vpop.permute.xlu0 %4809
      %4811 = vrot.lane.b32.xlu0 %v4412, 8
      %v4812 = vpop.permute.xlu0 %4811
      %4813 = vrot.lane.b32.xlu0 %v4413, 8
      %v4814 = vpop.permute.xlu0 %4813
      %4815 = vrot.lane.b32.xlu0 %v4414, 8
      %v4816 = vpop.permute.xlu0 %4815
      %4817 = vrot.lane.b32.xlu0 %v4415, 8
      %v4818 = vpop.permute.xlu0 %4817
      %4819 = vrot.lane.b32.xlu0 %v4416, 8
      %v4820 = vpop.permute.xlu0 %4819
      %4821 = vrot.lane.b32.xlu0 %v4417, 8
      %v4822 = vpop.permute.xlu0 %4821
      %4823 = vrot.lane.b32.xlu0 %v4418, 8
      %v4824 = vpop.permute.xlu0 %4823
      %4825 = vrot.lane.b32.xlu0 %v4419, 8
      %v4826 = vpop.permute.xlu0 %4825
      %4827 = vrot.lane.b32.xlu0 %v4420, 8
      %v4828 = vpop.permute.xlu0 %4827
      %4829 = vrot.lane.b32.xlu0 %v4421, 8
      %v4830 = vpop.permute.xlu0 %4829
      %4831 = vrot.lane.b32.xlu0 %v4422, 8
      %v4832 = vpop.permute.xlu0 %4831
      %4833 = vrot.lane.b32.xlu0 %v4423, 8
      %v4834 = vpop.permute.xlu0 %4833
      %4835 = vrot.lane.b32.xlu0 %v4424, 8
      %v4836 = vpop.permute.xlu0 %4835
      %4837 = vrot.lane.b32.xlu0 %v4425, 8
      %v4838 = vpop.permute.xlu0 %4837
      %4839 = vrot.lane.b32.xlu0 %v4426, 8
      %v4840 = vpop.permute.xlu0 %4839
      %4841 = vrot.lane.b32.xlu0 %v4427, 8
      %v4842 = vpop.permute.xlu0 %4841
      %4843 = vrot.lane.b32.xlu0 %v4428, 8
      %v4844 = vpop.permute.xlu0 %4843
      %4909 = vrot.lane.b32.xlu0 %v4429, 12
      %v4910 = vpop.permute.xlu0 %4909
      %4911 = vrot.lane.b32.xlu0 %v4430, 12
      %v4912 = vpop.permute.xlu0 %4911
      %4913 = vrot.lane.b32.xlu0 %v4431, 12
      %v4914 = vpop.permute.xlu0 %4913
      %4915 = vrot.lane.b32.xlu0 %v4432, 12
      %v4916 = vpop.permute.xlu0 %4915
      %4917 = vrot.lane.b32.xlu0 %v4433, 12
      %v4918 = vpop.permute.xlu0 %4917
      %4919 = vrot.lane.b32.xlu0 %v4434, 12
      %v4920 = vpop.permute.xlu0 %4919
      %4921 = vrot.lane.b32.xlu0 %v4435, 12
      %v4922 = vpop.permute.xlu0 %4921
      %4923 = vrot.lane.b32.xlu0 %v4436, 12
      %v4924 = vpop.permute.xlu0 %4923
      %4925 = vrot.lane.b32.xlu0 %v4437, 12
      %v4926 = vpop.permute.xlu0 %4925
      %4927 = vrot.lane.b32.xlu0 %v4438, 12
      %v4928 = vpop.permute.xlu0 %4927
      %4929 = vrot.lane.b32.xlu0 %v4439, 12
      %v4930 = vpop.permute.xlu0 %4929
      %4931 = vrot.lane.b32.xlu0 %v4440, 12
      %v4932 = vpop.permute.xlu0 %4931
      %4933 = vrot.lane.b32.xlu0 %v4441, 12
      %v4934 = vpop.permute.xlu0 %4933
      %4935 = vrot.lane.b32.xlu0 %v4442, 12
      %v4936 = vpop.permute.xlu0 %4935
      %4937 = vrot.lane.b32.xlu0 %v4443, 12
      %v4938 = vpop.permute.xlu0 %4937
      %4939 = vrot.lane.b32.xlu0 %v4444, 12
      %v4940 = vpop.permute.xlu0 %4939
      %4941 = vrot.lane.b32.xlu0 %v4445, 12
      %v4942 = vpop.permute.xlu0 %4941
      %4943 = vrot.lane.b32.xlu0 %v4446, 12
      %v4944 = vpop.permute.xlu0 %4943
      %4945 = vrot.lane.b32.xlu0 %v4447, 12
      %v4946 = vpop.permute.xlu0 %4945
      %4947 = vrot.lane.b32.xlu0 %v4448, 12
      %v4948 = vpop.permute.xlu0 %4947
      %4949 = vrot.lane.b32.xlu0 %v4449, 12
      %v4950 = vpop.permute.xlu0 %4949
      %4951 = vrot.lane.b32.xlu0 %v4450, 12
      %v4952 = vpop.permute.xlu0 %4951
      %4953 = vrot.lane.b32.xlu0 %v4451, 12
      %v4954 = vpop.permute.xlu0 %4953
      %4955 = vrot.lane.b32.xlu0 %v4452, 12
      %v4956 = vpop.permute.xlu0 %4955
      %4957 = vrot.lane.b32.xlu0 %v4453, 12
      %v4958 = vpop.permute.xlu0 %4957
      %4959 = vrot.lane.b32.xlu0 %v4454, 12
      %v4960 = vpop.permute.xlu0 %4959
      %4961 = vrot.lane.b32.xlu0 %v4455, 12
      %v4962 = vpop.permute.xlu0 %4961
      %4963 = vrot.lane.b32.xlu0 %v4456, 12
      %v4964 = vpop.permute.xlu0 %4963
      %4965 = vrot.lane.b32.xlu0 %v4457, 12
      %v4966 = vpop.permute.xlu0 %4965
      %4967 = vrot.lane.b32.xlu0 %v4458, 12
      %v4968 = vpop.permute.xlu0 %4967
      %4969 = vrot.lane.b32.xlu0 %v4459, 12
      %v4970 = vpop.permute.xlu0 %4969
      %4971 = vrot.lane.b32.xlu0 %v4460, 12
      %v4972 = vpop.permute.xlu0 %4971
      %5037 = vrot.lane.b32.xlu0 %v4461, 16
      %v5038 = vpop.permute.xlu0 %5037
      %5039 = vrot.lane.b32.xlu0 %v4462, 16
      %v5040 = vpop.permute.xlu0 %5039
      %5041 = vrot.lane.b32.xlu0 %v4463, 16
      %v5042 = vpop.permute.xlu0 %5041
      %5043 = vrot.lane.b32.xlu0 %v4464, 16
      %v5044 = vpop.permute.xlu0 %5043
      %5045 = vrot.lane.b32.xlu0 %v4465, 16
      %v5046 = vpop.permute.xlu0 %5045
      %5047 = vrot.lane.b32.xlu0 %v4466, 16
      %v5048 = vpop.permute.xlu0 %5047
      %5049 = vrot.lane.b32.xlu0 %v4467, 16
      %v5050 = vpop.permute.xlu0 %5049
      %5051 = vrot.lane.b32.xlu0 %v4468, 16
      %v5052 = vpop.permute.xlu0 %5051
      %5053 = vrot.lane.b32.xlu0 %v4469, 16
      %v5054 = vpop.permute.xlu0 %5053
      %5055 = vrot.lane.b32.xlu0 %v4470, 16
      %v5056 = vpop.permute.xlu0 %5055
      %5057 = vrot.lane.b32.xlu0 %v4471, 16
      %v5058 = vpop.permute.xlu0 %5057
      %5059 = vrot.lane.b32.xlu0 %v4472, 16
      %v5060 = vpop.permute.xlu0 %5059
      %5061 = vrot.lane.b32.xlu0 %v4473, 16
      %v5062 = vpop.permute.xlu0 %5061
      %5063 = vrot.lane.b32.xlu0 %v4474, 16
      %v5064 = vpop.permute.xlu0 %5063
      %5065 = vrot.lane.b32.xlu0 %v4475, 16
      %v5066 = vpop.permute.xlu0 %5065
      %5067 = vrot.lane.b32.xlu0 %v4476, 16
      %v5068 = vpop.permute.xlu0 %5067
      %5069 = vrot.lane.b32.xlu0 %v4477, 16
      %v5070 = vpop.permute.xlu0 %5069
      %5071 = vrot.lane.b32.xlu0 %v4478, 16
      %v5072 = vpop.permute.xlu0 %5071
      %5073 = vrot.lane.b32.xlu0 %v4479, 16
      %v5074 = vpop.permute.xlu0 %5073
      %5075 = vrot.lane.b32.xlu0 %v4480, 16
      %v5076 = vpop.permute.xlu0 %5075
      %5077 = vrot.lane.b32.xlu0 %v4481, 16
      %v5078 = vpop.permute.xlu0 %5077
      %5079 = vrot.lane.b32.xlu0 %v4482, 16
      %v5080 = vpop.permute.xlu0 %5079
      %5081 = vrot.lane.b32.xlu0 %v4483, 16
      %v5082 = vpop.permute.xlu0 %5081
      %5083 = vrot.lane.b32.xlu0 %v4484, 16
      %v5084 = vpop.permute.xlu0 %5083
      %5085 = vrot.lane.b32.xlu0 %v4485, 16
      %v5086 = vpop.permute.xlu0 %5085
      %5087 = vrot.lane.b32.xlu0 %v4486, 16
      %v5088 = vpop.permute.xlu0 %5087
      %5089 = vrot.lane.b32.xlu0 %v4487, 16
      %v5090 = vpop.permute.xlu0 %5089
      %5091 = vrot.lane.b32.xlu0 %v4488, 16
      %v5092 = vpop.permute.xlu0 %5091
      %5093 = vrot.lane.b32.xlu0 %v4489, 16
      %v5094 = vpop.permute.xlu0 %5093
      %5095 = vrot.lane.b32.xlu0 %v4490, 16
      %v5096 = vpop.permute.xlu0 %5095
      %5097 = vrot.lane.b32.xlu0 %v4491, 16
      %v5098 = vpop.permute.xlu0 %5097
      %5099 = vrot.lane.b32.xlu0 %v4492, 16
      %v5100 = vpop.permute.xlu0 %5099
      %5165 = vrot.lane.b32.xlu0 %v4493, 20
      %v5166 = vpop.permute.xlu0 %5165
      %5167 = vrot.lane.b32.xlu0 %v4494, 20
      %v5168 = vpop.permute.xlu0 %5167
      %5169 = vrot.lane.b32.xlu0 %v4495, 20
      %v5170 = vpop.permute.xlu0 %5169
      %5171 = vrot.lane.b32.xlu0 %v4496, 20
      %v5172 = vpop.permute.xlu0 %5171
      %5173 = vrot.lane.b32.xlu0 %v4497, 20
      %v5174 = vpop.permute.xlu0 %5173
      %5175 = vrot.lane.b32.xlu0 %v4498, 20
      %v5176 = vpop.permute.xlu0 %5175
      %5177 = vrot.lane.b32.xlu0 %v4499, 20
      %v5178 = vpop.permute.xlu0 %5177
      %5179 = vrot.lane.b32.xlu0 %v4500, 20
      %v5180 = vpop.permute.xlu0 %5179
      %5181 = vrot.lane.b32.xlu0 %v4501, 20
      %v5182 = vpop.permute.xlu0 %5181
      %5183 = vrot.lane.b32.xlu0 %v4502, 20
      %v5184 = vpop.permute.xlu0 %5183
      %5185 = vrot.lane.b32.xlu0 %v4503, 20
      %v5186 = vpop.permute.xlu0 %5185
      %5187 = vrot.lane.b32.xlu0 %v4504, 20
      %v5188 = vpop.permute.xlu0 %5187
      %5189 = vrot.lane.b32.xlu0 %v4505, 20
      %v5190 = vpop.permute.xlu0 %5189
      %5191 = vrot.lane.b32.xlu0 %v4506, 20
      %v5192 = vpop.permute.xlu0 %5191
      %5193 = vrot.lane.b32.xlu0 %v4507, 20
      %v5194 = vpop.permute.xlu0 %5193
      %5195 = vrot.lane.b32.xlu0 %v4508, 20
      %v5196 = vpop.permute.xlu0 %5195
      %5197 = vrot.lane.b32.xlu0 %v4509, 20
      %v5198 = vpop.permute.xlu0 %5197
      %5199 = vrot.lane.b32.xlu0 %v4510, 20
      %v5200 = vpop.permute.xlu0 %5199
      %5201 = vrot.lane.b32.xlu0 %v4511, 20
      %v5202 = vpop.permute.xlu0 %5201
      %5203 = vrot.lane.b32.xlu0 %v4512, 20
      %v5204 = vpop.permute.xlu0 %5203
      %5205 = vrot.lane.b32.xlu0 %v4513, 20
      %v5206 = vpop.permute.xlu0 %5205
      %5207 = vrot.lane.b32.xlu0 %v4514, 20
      %v5208 = vpop.permute.xlu0 %5207
      %5209 = vrot.lane.b32.xlu0 %v4515, 20
      %v5210 = vpop.permute.xlu0 %5209
      %5211 = vrot.lane.b32.xlu0 %v4516, 20
      %v5212 = vpop.permute.xlu0 %5211
      %5213 = vrot.lane.b32.xlu0 %v4517, 20
      %v5214 = vpop.permute.xlu0 %5213
      %5215 = vrot.lane.b32.xlu0 %v4518, 20
      %v5216 = vpop.permute.xlu0 %5215
      %5217 = vrot.lane.b32.xlu0 %v4519, 20
      %v5218 = vpop.permute.xlu0 %5217
      %5219 = vrot.lane.b32.xlu0 %v4520, 20
      %v5220 = vpop.permute.xlu0 %5219
      %5221 = vrot.lane.b32.xlu0 %v4521, 20
      %v5222 = vpop.permute.xlu0 %5221
      %5223 = vrot.lane.b32.xlu0 %v4522, 20
      %v5224 = vpop.permute.xlu0 %5223
      %5225 = vrot.lane.b32.xlu0 %v4523, 20
      %v5226 = vpop.permute.xlu0 %5225
      %5227 = vrot.lane.b32.xlu0 %v4524, 20
      %v5228 = vpop.permute.xlu0 %5227
      %5293 = vrot.lane.b32.xlu0 %v4525, 24
      %v5294 = vpop.permute.xlu0 %5293
      %5295 = vrot.lane.b32.xlu0 %v4526, 24
      %v5296 = vpop.permute.xlu0 %5295
      %5297 = vrot.lane.b32.xlu0 %v4527, 24
      %v5298 = vpop.permute.xlu0 %5297
      %5299 = vrot.lane.b32.xlu0 %v4528, 24
      %v5300 = vpop.permute.xlu0 %5299
      %5301 = vrot.lane.b32.xlu0 %v4529, 24
      %v5302 = vpop.permute.xlu0 %5301
      %5303 = vrot.lane.b32.xlu0 %v4530, 24
      %v5304 = vpop.permute.xlu0 %5303
      %5305 = vrot.lane.b32.xlu0 %v4531, 24
      %v5306 = vpop.permute.xlu0 %5305
      %5307 = vrot.lane.b32.xlu0 %v4532, 24
      %v5308 = vpop.permute.xlu0 %5307
      %5309 = vrot.lane.b32.xlu0 %v4533, 24
      %v5310 = vpop.permute.xlu0 %5309
      %5311 = vrot.lane.b32.xlu0 %v4534, 24
      %v5312 = vpop.permute.xlu0 %5311
      %5313 = vrot.lane.b32.xlu0 %v4535, 24
      %v5314 = vpop.permute.xlu0 %5313
      %5315 = vrot.lane.b32.xlu0 %v4536, 24
      %v5316 = vpop.permute.xlu0 %5315
      %5317 = vrot.lane.b32.xlu0 %v4537, 24
      %v5318 = vpop.permute.xlu0 %5317
      %5319 = vrot.lane.b32.xlu0 %v4538, 24
      %v5320 = vpop.permute.xlu0 %5319
      %5321 = vrot.lane.b32.xlu0 %v4539, 24
      %v5322 = vpop.permute.xlu0 %5321
      %5323 = vrot.lane.b32.xlu0 %v4540, 24
      %v5324 = vpop.permute.xlu0 %5323
      %5325 = vrot.lane.b32.xlu0 %v4541, 24
      %v5326 = vpop.permute.xlu0 %5325
      %5327 = vrot.lane.b32.xlu0 %v4542, 24
      %v5328 = vpop.permute.xlu0 %5327
      %5329 = vrot.lane.b32.xlu0 %v4543, 24
      %v5330 = vpop.permute.xlu0 %5329
      %5331 = vrot.lane.b32.xlu0 %v4544, 24
      %v5332 = vpop.permute.xlu0 %5331
      %5333 = vrot.lane.b32.xlu0 %v4545, 24
      %v5334 = vpop.permute.xlu0 %5333
      %5335 = vrot.lane.b32.xlu0 %v4546, 24
      %v5336 = vpop.permute.xlu0 %5335
      %5337 = vrot.lane.b32.xlu0 %v4547, 24
      %v5338 = vpop.permute.xlu0 %5337
      %5339 = vrot.lane.b32.xlu0 %v4548, 24
      %v5340 = vpop.permute.xlu0 %5339
      %5341 = vrot.lane.b32.xlu0 %v4549, 24
      %v5342 = vpop.permute.xlu0 %5341
      %5343 = vrot.lane.b32.xlu0 %v4550, 24
      %v5344 = vpop.permute.xlu0 %5343
      %5345 = vrot.lane.b32.xlu0 %v4551, 24
      %v5346 = vpop.permute.xlu0 %5345
      %5347 = vrot.lane.b32.xlu0 %v4552, 24
      %v5348 = vpop.permute.xlu0 %5347
      %5349 = vrot.lane.b32.xlu0 %v4553, 24
      %v5350 = vpop.permute.xlu0 %5349
      %5351 = vrot.lane.b32.xlu0 %v4554, 24
      %v5352 = vpop.permute.xlu0 %5351
      %5353 = vrot.lane.b32.xlu0 %v4555, 24
      %v5354 = vpop.permute.xlu0 %5353
      %5355 = vrot.lane.b32.xlu0 %v4556, 24
      %v5356 = vpop.permute.xlu0 %5355
      %5421 = vrot.lane.b32.xlu0 %v4557, 28
      %v5422 = vpop.permute.xlu0 %5421
      %5423 = vrot.lane.b32.xlu0 %v4558, 28
      %v5424 = vpop.permute.xlu0 %5423
      %5425 = vrot.lane.b32.xlu0 %v4559, 28
      %v5426 = vpop.permute.xlu0 %5425
      %5427 = vrot.lane.b32.xlu0 %v4560, 28
      %v5428 = vpop.permute.xlu0 %5427
      %5429 = vrot.lane.b32.xlu0 %v4561, 28
      %v5430 = vpop.permute.xlu0 %5429
      %5431 = vrot.lane.b32.xlu0 %v4562, 28
      %v5432 = vpop.permute.xlu0 %5431
      %5433 = vrot.lane.b32.xlu0 %v4563, 28
      %v5434 = vpop.permute.xlu0 %5433
      %5435 = vrot.lane.b32.xlu0 %v4564, 28
      %v5436 = vpop.permute.xlu0 %5435
      %5437 = vrot.lane.b32.xlu0 %v4565, 28
      %v5438 = vpop.permute.xlu0 %5437
      %5439 = vrot.lane.b32.xlu0 %v4566, 28
      %v5440 = vpop.permute.xlu0 %5439
      %5441 = vrot.lane.b32.xlu0 %v4567, 28
      %v5442 = vpop.permute.xlu0 %5441
      %5443 = vrot.lane.b32.xlu0 %v4568, 28
      %v5444 = vpop.permute.xlu0 %5443
      %5445 = vrot.lane.b32.xlu0 %v4569, 28
      %v5446 = vpop.permute.xlu0 %5445
      %5447 = vrot.lane.b32.xlu0 %v4570, 28
      %v5448 = vpop.permute.xlu0 %5447
      %5449 = vrot.lane.b32.xlu0 %v4571, 28
      %v5450 = vpop.permute.xlu0 %5449
      %5451 = vrot.lane.b32.xlu0 %v4572, 28
      %v5452 = vpop.permute.xlu0 %5451
      %5453 = vrot.lane.b32.xlu0 %v4573, 28
      %v5454 = vpop.permute.xlu0 %5453
      %5455 = vrot.lane.b32.xlu0 %v4574, 28
      %v5456 = vpop.permute.xlu0 %5455
      %5457 = vrot.lane.b32.xlu0 %v4575, 28
      %v5458 = vpop.permute.xlu0 %5457
      %5459 = vrot.lane.b32.xlu0 %v4576, 28
      %v5460 = vpop.permute.xlu0 %5459
      %5461 = vrot.lane.b32.xlu0 %v4577, 28
      %v5462 = vpop.permute.xlu0 %5461
      %5463 = vrot.lane.b32.xlu0 %v4578, 28
      %v5464 = vpop.permute.xlu0 %5463
      %5465 = vrot.lane.b32.xlu0 %v4579, 28
      %v5466 = vpop.permute.xlu0 %5465
      %5467 = vrot.lane.b32.xlu0 %v4580, 28
      %v5468 = vpop.permute.xlu0 %5467
      %5469 = vrot.lane.b32.xlu0 %v4581, 28
      %v5470 = vpop.permute.xlu0 %5469
      %5471 = vrot.lane.b32.xlu0 %v4582, 28
      %v5472 = vpop.permute.xlu0 %5471
      %5473 = vrot.lane.b32.xlu0 %v4583, 28
      %v5474 = vpop.permute.xlu0 %5473
      %5475 = vrot.lane.b32.xlu0 %v4584, 28
      %v5476 = vpop.permute.xlu0 %5475
      %5477 = vrot.lane.b32.xlu0 %v4585, 28
      %v5478 = vpop.permute.xlu0 %5477
      %5479 = vrot.lane.b32.xlu0 %v4586, 28
      %v5480 = vpop.permute.xlu0 %5479
      %5481 = vrot.lane.b32.xlu0 %v4587, 28
      %v5482 = vpop.permute.xlu0 %5481
      %5483 = vrot.lane.b32.xlu0 %v4588, 28
      %v5484 = vpop.permute.xlu0 %5483
      %5549 = vrot.lane.b32.xlu0 %v4589, 32
      %v5550 = vpop.permute.xlu0 %5549
      %5551 = vrot.lane.b32.xlu0 %v4590, 32
      %v5552 = vpop.permute.xlu0 %5551
      %5553 = vrot.lane.b32.xlu0 %v4591, 32
      %v5554 = vpop.permute.xlu0 %5553
      %5555 = vrot.lane.b32.xlu0 %v4592, 32
      %v5556 = vpop.permute.xlu0 %5555
      %5557 = vrot.lane.b32.xlu0 %v4593, 32
      %v5558 = vpop.permute.xlu0 %5557
      %5559 = vrot.lane.b32.xlu0 %v4594, 32
      %v5560 = vpop.permute.xlu0 %5559
      %5561 = vrot.lane.b32.xlu0 %v4595, 32
      %v5562 = vpop.permute.xlu0 %5561
      %5563 = vrot.lane.b32.xlu0 %v4596, 32
      %v5564 = vpop.permute.xlu0 %5563
      %5565 = vrot.lane.b32.xlu0 %v4597, 32
      %v5566 = vpop.permute.xlu0 %5565
      %5567 = vrot.lane.b32.xlu0 %v4598, 32
      %v5568 = vpop.permute.xlu0 %5567
      %5569 = vrot.lane.b32.xlu0 %v4599, 32
      %v5570 = vpop.permute.xlu0 %5569
      %5571 = vrot.lane.b32.xlu0 %v4600, 32
      %v5572 = vpop.permute.xlu0 %5571
      %5573 = vrot.lane.b32.xlu0 %v4601, 32
      %v5574 = vpop.permute.xlu0 %5573
      %5575 = vrot.lane.b32.xlu0 %v4602, 32
      %v5576 = vpop.permute.xlu0 %5575
      %5577 = vrot.lane.b32.xlu0 %v4603, 32
      %v5578 = vpop.permute.xlu0 %5577
      %5579 = vrot.lane.b32.xlu0 %v4604, 32
      %v5580 = vpop.permute.xlu0 %5579
      %5581 = vrot.lane.b32.xlu0 %v4605, 32
      %v5582 = vpop.permute.xlu0 %5581
      %5583 = vrot.lane.b32.xlu0 %v4606, 32
      %v5584 = vpop.permute.xlu0 %5583
      %5585 = vrot.lane.b32.xlu0 %v4607, 32
      %v5586 = vpop.permute.xlu0 %5585
      %5587 = vrot.lane.b32.xlu0 %v4608, 32
      %v5588 = vpop.permute.xlu0 %5587
      %5589 = vrot.lane.b32.xlu0 %v4609, 32
      %v5590 = vpop.permute.xlu0 %5589
      %5591 = vrot.lane.b32.xlu0 %v4610, 32
      %v5592 = vpop.permute.xlu0 %5591
      %5593 = vrot.lane.b32.xlu0 %v4611, 32
      %v5594 = vpop.permute.xlu0 %5593
      %5595 = vrot.lane.b32.xlu0 %v4612, 32
      %v5596 = vpop.permute.xlu0 %5595
      %5597 = vrot.lane.b32.xlu0 %v4613, 32
      %v5598 = vpop.permute.xlu0 %5597
      %5599 = vrot.lane.b32.xlu0 %v4614, 32
      %v5600 = vpop.permute.xlu0 %5599
      %5601 = vrot.lane.b32.xlu0 %v4615, 32
      %v5602 = vpop.permute.xlu0 %5601
      %5603 = vrot.lane.b32.xlu0 %v4616, 32
      %v5604 = vpop.permute.xlu0 %5603
      %5605 = vrot.lane.b32.xlu0 %v4617, 32
      %v5606 = vpop.permute.xlu0 %5605
      %5607 = vrot.lane.b32.xlu0 %v4618, 32
      %v5608 = vpop.permute.xlu0 %5607
      %5609 = vrot.lane.b32.xlu0 %v4619, 32
      %v5610 = vpop.permute.xlu0 %5609
      %5611 = vrot.lane.b32.xlu0 %v4620, 32
      %v5612 = vpop.permute.xlu0 %5611
      %v5645 = vsel %vm433, %v4333, %v4654
      %v5646 = vsel %vm433, %v4334, %v4656
      %v5647 = vsel %vm433, %v4335, %v4658
      %v5648 = vsel %vm433, %v4336, %v4660
      %v5649 = vsel %vm433, %v4337, %v4662
      %v5650 = vsel %vm433, %v4338, %v4664
      %v5651 = vsel %vm433, %v4339, %v4666
      %v5652 = vsel %vm433, %v4340, %v4668
      %v5653 = vsel %vm433, %v4341, %v4670
      %v5654 = vsel %vm433, %v4342, %v4672
      %v5655 = vsel %vm433, %v4343, %v4674
      %v5656 = vsel %vm433, %v4344, %v4676
      %v5657 = vsel %vm433, %v4345, %v4678
      %v5658 = vsel %vm433, %v4346, %v4680
      %v5659 = vsel %vm433, %v4347, %v4682
      %v5660 = vsel %vm433, %v4348, %v4684
      %v5661 = vsel %vm433, %v4349, %v4686
      %v5662 = vsel %vm433, %v4350, %v4688
      %v5663 = vsel %vm433, %v4351, %v4690
      %v5664 = vsel %vm433, %v4352, %v4692
      %v5665 = vsel %vm433, %v4353, %v4694
      %v5666 = vsel %vm433, %v4354, %v4696
      %v5667 = vsel %vm433, %v4355, %v4698
      %v5668 = vsel %vm433, %v4356, %v4700
      %v5669 = vsel %vm433, %v4357, %v4702
      %v5670 = vsel %vm433, %v4358, %v4704
      %v5671 = vsel %vm433, %v4359, %v4706
      %v5672 = vsel %vm433, %v4360, %v4708
      %v5673 = vsel %vm433, %v4361, %v4710
      %v5674 = vsel %vm433, %v4362, %v4712
      %v5675 = vsel %vm433, %v4363, %v4714
      %v5676 = vsel %vm433, %v4364, %v4716
      %v5677 = vsel %vm506, %v5645, %v4782
      %v5678 = vsel %vm506, %v5646, %v4784
      %v5679 = vsel %vm506, %v5647, %v4786
      %v5680 = vsel %vm506, %v5648, %v4788
      %v5681 = vsel %vm506, %v5649, %v4790
      %v5682 = vsel %vm506, %v5650, %v4792
      %v5683 = vsel %vm506, %v5651, %v4794
      %v5684 = vsel %vm506, %v5652, %v4796
      %v5685 = vsel %vm506, %v5653, %v4798
      %v5686 = vsel %vm506, %v5654, %v4800
      %v5687 = vsel %vm506, %v5655, %v4802
      %v5688 = vsel %vm506, %v5656, %v4804
      %v5689 = vsel %vm506, %v5657, %v4806
      %v5690 = vsel %vm506, %v5658, %v4808
      %v5691 = vsel %vm506, %v5659, %v4810
      %v5692 = vsel %vm506, %v5660, %v4812
      %v5693 = vsel %vm506, %v5661, %v4814
      %v5694 = vsel %vm506, %v5662, %v4816
      %v5695 = vsel %vm506, %v5663, %v4818
      %v5696 = vsel %vm506, %v5664, %v4820
      %v5697 = vsel %vm506, %v5665, %v4822
      %v5698 = vsel %vm506, %v5666, %v4824
      %v5699 = vsel %vm506, %v5667, %v4826
      %v5700 = vsel %vm506, %v5668, %v4828
      %v5701 = vsel %vm506, %v5669, %v4830
      %v5702 = vsel %vm506, %v5670, %v4832
      %v5703 = vsel %vm506, %v5671, %v4834
      %v5704 = vsel %vm506, %v5672, %v4836
      %v5705 = vsel %vm506, %v5673, %v4838
      %v5706 = vsel %vm506, %v5674, %v4840
      %v5707 = vsel %vm506, %v5675, %v4842
      %v5708 = vsel %vm506, %v5676, %v4844
      %v5709 = vsel %vm2062, %v5677, %v4910
      %v5710 = vsel %vm2062, %v5678, %v4912
      %v5711 = vsel %vm2062, %v5679, %v4914
      %v5712 = vsel %vm2062, %v5680, %v4916
      %v5713 = vsel %vm2062, %v5681, %v4918
      %v5714 = vsel %vm2062, %v5682, %v4920
      %v5715 = vsel %vm2062, %v5683, %v4922
      %v5716 = vsel %vm2062, %v5684, %v4924
      %v5717 = vsel %vm2062, %v5685, %v4926
      %v5718 = vsel %vm2062, %v5686, %v4928
      %v5719 = vsel %vm2062, %v5687, %v4930
      %v5720 = vsel %vm2062, %v5688, %v4932
      %v5721 = vsel %vm2062, %v5689, %v4934
      %v5722 = vsel %vm2062, %v5690, %v4936
      %v5723 = vsel %vm2062, %v5691, %v4938
      %v5724 = vsel %vm2062, %v5692, %v4940
      %v5725 = vsel %vm2062, %v5693, %v4942
      %v5726 = vsel %vm2062, %v5694, %v4944
      %v5727 = vsel %vm2062, %v5695, %v4946
      %v5728 = vsel %vm2062, %v5696, %v4948
      %v5729 = vsel %vm2062, %v5697, %v4950
      %v5730 = vsel %vm2062, %v5698, %v4952
      %v5731 = vsel %vm2062, %v5699, %v4954
      %v5732 = vsel %vm2062, %v5700, %v4956
      %v5733 = vsel %vm2062, %v5701, %v4958
      %v5734 = vsel %vm2062, %v5702, %v4960
      %v5735 = vsel %vm2062, %v5703, %v4962
      %v5736 = vsel %vm2062, %v5704, %v4964
      %v5737 = vsel %vm2062, %v5705, %v4966
      %v5738 = vsel %vm2062, %v5706, %v4968
      %v5739 = vsel %vm2062, %v5707, %v4970
      %v5740 = vsel %vm2062, %v5708, %v4972
      %v5741 = vsel %vm2095, %v5709, %v5038
      %v5742 = vsel %vm2095, %v5710, %v5040
      %v5743 = vsel %vm2095, %v5711, %v5042
      %v5744 = vsel %vm2095, %v5712, %v5044
      %v5745 = vsel %vm2095, %v5713, %v5046
      %v5746 = vsel %vm2095, %v5714, %v5048
      %v5747 = vsel %vm2095, %v5715, %v5050
      %v5748 = vsel %vm2095, %v5716, %v5052
      %v5749 = vsel %vm2095, %v5717, %v5054
      %v5750 = vsel %vm2095, %v5718, %v5056
      %v5751 = vsel %vm2095, %v5719, %v5058
      %v5752 = vsel %vm2095, %v5720, %v5060
      %v5753 = vsel %vm2095, %v5721, %v5062
      %v5754 = vsel %vm2095, %v5722, %v5064
      %v5755 = vsel %vm2095, %v5723, %v5066
      %v5756 = vsel %vm2095, %v5724, %v5068
      %v5757 = vsel %vm2095, %v5725, %v5070
      %v5758 = vsel %vm2095, %v5726, %v5072
      %v5759 = vsel %vm2095, %v5727, %v5074
      %v5760 = vsel %vm2095, %v5728, %v5076
      %v5761 = vsel %vm2095, %v5729, %v5078
      %v5762 = vsel %vm2095, %v5730, %v5080
      %v5763 = vsel %vm2095, %v5731, %v5082
      %v5764 = vsel %vm2095, %v5732, %v5084
      %v5765 = vsel %vm2095, %v5733, %v5086
      %v5766 = vsel %vm2095, %v5734, %v5088
      %v5767 = vsel %vm2095, %v5735, %v5090
      %v5768 = vsel %vm2095, %v5736, %v5092
      %v5769 = vsel %vm2095, %v5737, %v5094
      %v5770 = vsel %vm2095, %v5738, %v5096
      %v5771 = vsel %vm2095, %v5739, %v5098
      %v5772 = vsel %vm2095, %v5740, %v5100
      %v5773 = vsel %vm2128, %v5741, %v5166
      %v5774 = vsel %vm2128, %v5742, %v5168
      %v5775 = vsel %vm2128, %v5743, %v5170
      %v5776 = vsel %vm2128, %v5744, %v5172
      %v5777 = vsel %vm2128, %v5745, %v5174
      %v5778 = vsel %vm2128, %v5746, %v5176
      %v5779 = vsel %vm2128, %v5747, %v5178
      %v5780 = vsel %vm2128, %v5748, %v5180
      %v5781 = vsel %vm2128, %v5749, %v5182
      %v5782 = vsel %vm2128, %v5750, %v5184
      %v5783 = vsel %vm2128, %v5751, %v5186
      %v5784 = vsel %vm2128, %v5752, %v5188
      %v5785 = vsel %vm2128, %v5753, %v5190
      %v5786 = vsel %vm2128, %v5754, %v5192
      %v5787 = vsel %vm2128, %v5755, %v5194
      %v5788 = vsel %vm2128, %v5756, %v5196
      %v5789 = vsel %vm2128, %v5757, %v5198
      %v5790 = vsel %vm2128, %v5758, %v5200
      %v5791 = vsel %vm2128, %v5759, %v5202
      %v5792 = vsel %vm2128, %v5760, %v5204
      %v5793 = vsel %vm2128, %v5761, %v5206
      %v5794 = vsel %vm2128, %v5762, %v5208
      %v5795 = vsel %vm2128, %v5763, %v5210
      %v5796 = vsel %vm2128, %v5764, %v5212
      %v5797 = vsel %vm2128, %v5765, %v5214
      %v5798 = vsel %vm2128, %v5766, %v5216
      %v5799 = vsel %vm2128, %v5767, %v5218
      %v5800 = vsel %vm2128, %v5768, %v5220
      %v5801 = vsel %vm2128, %v5769, %v5222
      %v5802 = vsel %vm2128, %v5770, %v5224
      %v5803 = vsel %vm2128, %v5771, %v5226
      %v5804 = vsel %vm2128, %v5772, %v5228
      %v5805 = vsel %vm2161, %v5773, %v5294
      %v5806 = vsel %vm2161, %v5774, %v5296
      %v5807 = vsel %vm2161, %v5775, %v5298
      %v5808 = vsel %vm2161, %v5776, %v5300
      %v5809 = vsel %vm2161, %v5777, %v5302
      %v5810 = vsel %vm2161, %v5778, %v5304
      %v5811 = vsel %vm2161, %v5779, %v5306
      %v5812 = vsel %vm2161, %v5780, %v5308
      %v5813 = vsel %vm2161, %v5781, %v5310
      %v5814 = vsel %vm2161, %v5782, %v5312
      %v5815 = vsel %vm2161, %v5783, %v5314
      %v5816 = vsel %vm2161, %v5784, %v5316
      %v5817 = vsel %vm2161, %v5785, %v5318
      %v5818 = vsel %vm2161, %v5786, %v5320
      %v5819 = vsel %vm2161, %v5787, %v5322
      %v5820 = vsel %vm2161, %v5788, %v5324
      %v5821 = vsel %vm2161, %v5789, %v5326
      %v5822 = vsel %vm2161, %v5790, %v5328
      %v5823 = vsel %vm2161, %v5791, %v5330
      %v5824 = vsel %vm2161, %v5792, %v5332
      %v5825 = vsel %vm2161, %v5793, %v5334
      %v5826 = vsel %vm2161, %v5794, %v5336
      %v5827 = vsel %vm2161, %v5795, %v5338
      %v5828 = vsel %vm2161, %v5796, %v5340
      %v5829 = vsel %vm2161, %v5797, %v5342
      %v5830 = vsel %vm2161, %v5798, %v5344
      %v5831 = vsel %vm2161, %v5799, %v5346
      %v5832 = vsel %vm2161, %v5800, %v5348
      %v5833 = vsel %vm2161, %v5801, %v5350
      %v5834 = vsel %vm2161, %v5802, %v5352
      %v5835 = vsel %vm2161, %v5803, %v5354
      %v5836 = vsel %vm2161, %v5804, %v5356
      %v5837 = vsel %vm2194, %v5805, %v5422
      %v5838 = vsel %vm2194, %v5806, %v5424
      %v5839 = vsel %vm2194, %v5807, %v5426
      %v5840 = vsel %vm2194, %v5808, %v5428
      %v5841 = vsel %vm2194, %v5809, %v5430
      %v5842 = vsel %vm2194, %v5810, %v5432
      %v5843 = vsel %vm2194, %v5811, %v5434
      %v5844 = vsel %vm2194, %v5812, %v5436
      %v5845 = vsel %vm2194, %v5813, %v5438
      %v5846 = vsel %vm2194, %v5814, %v5440
      %v5847 = vsel %vm2194, %v5815, %v5442
      %v5848 = vsel %vm2194, %v5816, %v5444
      %v5849 = vsel %vm2194, %v5817, %v5446
      %v5850 = vsel %vm2194, %v5818, %v5448
      %v5851 = vsel %vm2194, %v5819, %v5450
      %v5852 = vsel %vm2194, %v5820, %v5452
      %v5853 = vsel %vm2194, %v5821, %v5454
      %v5854 = vsel %vm2194, %v5822, %v5456
      %v5855 = vsel %vm2194, %v5823, %v5458
      %v5856 = vsel %vm2194, %v5824, %v5460
      %v5857 = vsel %vm2194, %v5825, %v5462
      %v5858 = vsel %vm2194, %v5826, %v5464
      %v5859 = vsel %vm2194, %v5827, %v5466
      %v5860 = vsel %vm2194, %v5828, %v5468
      %v5861 = vsel %vm2194, %v5829, %v5470
      %v5862 = vsel %vm2194, %v5830, %v5472
      %v5863 = vsel %vm2194, %v5831, %v5474
      %v5864 = vsel %vm2194, %v5832, %v5476
      %v5865 = vsel %vm2194, %v5833, %v5478
      %v5866 = vsel %vm2194, %v5834, %v5480
      %v5867 = vsel %vm2194, %v5835, %v5482
      %v5868 = vsel %vm2194, %v5836, %v5484
      %v5869 = vsel %vm579, %v5837, %v5550
      %v5870 = vsel %vm579, %v5838, %v5552
      %v5871 = vsel %vm579, %v5839, %v5554
      %v5872 = vsel %vm579, %v5840, %v5556
      %v5873 = vsel %vm579, %v5841, %v5558
      %v5874 = vsel %vm579, %v5842, %v5560
      %v5875 = vsel %vm579, %v5843, %v5562
      %v5876 = vsel %vm579, %v5844, %v5564
      %v5877 = vsel %vm579, %v5845, %v5566
      %v5878 = vsel %vm579, %v5846, %v5568
      %v5879 = vsel %vm579, %v5847, %v5570
      %v5880 = vsel %vm579, %v5848, %v5572
      %v5881 = vsel %vm579, %v5849, %v5574
      %v5882 = vsel %vm579, %v5850, %v5576
      %v5883 = vsel %vm579, %v5851, %v5578
      %v5884 = vsel %vm579, %v5852, %v5580
      %v5885 = vsel %vm579, %v5853, %v5582
      %v5886 = vsel %vm579, %v5854, %v5584
      %v5887 = vsel %vm579, %v5855, %v5586
      %v5888 = vsel %vm579, %v5856, %v5588
      %v5889 = vsel %vm579, %v5857, %v5590
      %v5890 = vsel %vm579, %v5858, %v5592
      %v5891 = vsel %vm579, %v5859, %v5594
      %v5892 = vsel %vm579, %v5860, %v5596
      %v5893 = vsel %vm579, %v5861, %v5598
      %v5894 = vsel %vm579, %v5862, %v5600
      %v5895 = vsel %vm579, %v5863, %v5602
      %v5896 = vsel %vm579, %v5864, %v5604
      %v5897 = vsel %vm579, %v5865, %v5606
      %v5898 = vsel %vm579, %v5866, %v5608
      %v5899 = vsel %vm579, %v5867, %v5610
      %v5900 = vsel %vm579, %v5868, %v5612
      %v5901 = vpack.c.bf16 %v5870, %v5869
      %v5902 = vpack.c.bf16 %v5872, %v5871
      %v5903 = vpack.c.bf16 %v5874, %v5873
      %v5904 = vpack.c.bf16 %v5876, %v5875
      %v5905 = vpack.c.bf16 %v5878, %v5877
      %v5906 = vpack.c.bf16 %v5880, %v5879
      %v5907 = vpack.c.bf16 %v5882, %v5881
      %v5908 = vpack.c.bf16 %v5884, %v5883
      %v5909 = vpack.c.bf16 %v5886, %v5885
      %v5910 = vpack.c.bf16 %v5888, %v5887
      %v5911 = vpack.c.bf16 %v5890, %v5889
      %v5912 = vpack.c.bf16 %v5892, %v5891
      %v5913 = vpack.c.bf16 %v5894, %v5893
      %v5914 = vpack.c.bf16 %v5896, %v5895
      %v5915 = vpack.c.bf16 %v5898, %v5897
      %v5916 = vpack.c.bf16 %v5900, %v5899
      %v5917 = vld [vmem:[%s5] sm:$0xf]
      %v5918 = vld [vmem:[%s5 + $0x4] sm:$0xf]
      %v5919 = vld [vmem:[%s5 + $0x8] sm:$0xf]
      %v5920 = vld [vmem:[%s5 + $0xc] sm:$0xf]
      %v5921 = vld [vmem:[%s5 + $0x10] sm:$0x3]
      %v5922 = vld [vmem:[#allocation3 + $0x7] sm:$0xff]
      %v5923 = vld [vmem:[#allocation3 + $0xf] sm:$0xff]
      %v5924 = vld [vmem:[#allocation3 + $0x27] sm:$0xff]
      %v5925 = vld [vmem:[#allocation3 + $0x2f] sm:$0xff]
      %v5926 = vld [vmem:[#allocation3 + $0x47] sm:$0xff]
      %v5927 = vld [vmem:[#allocation3 + $0x4f] sm:$0xff]
      %v5928 = vld [vmem:[#allocation3 + $0x67] sm:$0xff]
      %v5929 = vld [vmem:[#allocation3 + $0x6f] sm:$0xff]
      %v5930 = vld [vmem:[#allocation3 + $0x87] sm:$0xff]
      %v5931 = vld [vmem:[#allocation3 + $0x8f] sm:$0xff]
      %v5932 = vld [vmem:[#allocation3 + $0xa7] sm:$0xff]
      %v5933 = vld [vmem:[#allocation3 + $0xaf] sm:$0xff]
      %v5934 = vld [vmem:[#allocation3 + $0xc7] sm:$0xff]
      %v5935 = vld [vmem:[#allocation3 + $0xcf] sm:$0xff]
      %v5936 = vld [vmem:[#allocation3 + $0xe7] sm:$0xff]
      %v5937 = vld [vmem:[#allocation3 + $0xef] sm:$0xff]
      %v5938 = vld [vmem:[#allocation3 + $0x107] sm:$0xff]
      %v5939 = vld [vmem:[#allocation3 + $0x10f] sm:$0xff]
      %v5940 = vld [vmem:[#allocation3 + $0x127] sm:$0xff]
      %v5941 = vld [vmem:[#allocation3 + $0x12f] sm:$0xff]
      %v5942 = vld [vmem:[#allocation3 + $0x147] sm:$0xff]
      %v5943 = vld [vmem:[#allocation3 + $0x14f] sm:$0xff]
      %v5944 = vld [vmem:[#allocation3 + $0x167] sm:$0xff]
      %v5945 = vld [vmem:[#allocation3 + $0x16f] sm:$0xff]
      %v5946 = vld [vmem:[#allocation3 + $0x187] sm:$0xff]
      %v5947 = vld [vmem:[#allocation3 + $0x18f] sm:$0xff]
      %v5948 = vld [vmem:[#allocation3 + $0x1a7] sm:$0xff]
      %v5949 = vld [vmem:[#allocation3 + $0x1af] sm:$0xff]
      %v5950 = vld [vmem:[#allocation3 + $0x1c7] sm:$0xff]
      %v5951 = vld [vmem:[#allocation3 + $0x1cf] sm:$0xff]
      %v5952 = vld [vmem:[#allocation3 + $0x1e7] sm:$0xff]
      %v5953 = vld [vmem:[#allocation3 + $0x1ef] sm:$0xff]
      %v5954 = vld [vmem:[#allocation3 + $0x8] sm:$0xff]
      %v5955 = vld [vmem:[#allocation3 + $0x10] sm:$0xff]
      %v5956 = vld [vmem:[#allocation3 + $0x28] sm:$0xff]
      %v5957 = vld [vmem:[#allocation3 + $0x30] sm:$0xff]
      %v5958 = vld [vmem:[#allocation3 + $0x48] sm:$0xff]
      %v5959 = vld [vmem:[#allocation3 + $0x50] sm:$0xff]
      %v5960 = vld [vmem:[#allocation3 + $0x68] sm:$0xff]
      %v5961 = vld [vmem:[#allocation3 + $0x70] sm:$0xff]
      %v5962 = vld [vmem:[#allocation3 + $0x88] sm:$0xff]
      %v5963 = vld [vmem:[#allocation3 + $0x90] sm:$0xff]
      %v5964 = vld [vmem:[#allocation3 + $0xa8] sm:$0xff]
      %v5965 = vld [vmem:[#allocation3 + $0xb0] sm:$0xff]
      %v5966 = vld [vmem:[#allocation3 + $0xc8] sm:$0xff]
      %v5967 = vld [vmem:[#allocation3 + $0xd0] sm:$0xff]
      %v5968 = vld [vmem:[#allocation3 + $0xe8] sm:$0xff]
      %v5969 = vld [vmem:[#allocation3 + $0xf0] sm:$0xff]
      %v5970 = vld [vmem:[#allocation3 + $0x108] sm:$0xff]
      %v5971 = vld [vmem:[#allocation3 + $0x110] sm:$0xff]
      %v5972 = vld [vmem:[#allocation3 + $0x128] sm:$0xff]
      %v5973 = vld [vmem:[#allocation3 + $0x130] sm:$0xff]
      %v5974 = vld [vmem:[#allocation3 + $0x148] sm:$0xff]
      %v5975 = vld [vmem:[#allocation3 + $0x150] sm:$0xff]
      %v5976 = vld [vmem:[#allocation3 + $0x168] sm:$0xff]
      %v5977 = vld [vmem:[#allocation3 + $0x170] sm:$0xff]
      %v5978 = vld [vmem:[#allocation3 + $0x188] sm:$0xff]
      %v5979 = vld [vmem:[#allocation3 + $0x190] sm:$0xff]
      %v5980 = vld [vmem:[#allocation3 + $0x1a8] sm:$0xff]
      %v5981 = vld [vmem:[#allocation3 + $0x1b0] sm:$0xff]
      %v5982 = vld [vmem:[#allocation3 + $0x1c8] sm:$0xff]
      %v5983 = vld [vmem:[#allocation3 + $0x1d0] sm:$0xff]
      %v5984 = vld [vmem:[#allocation3 + $0x1e8] sm:$0xff]
      %v5985 = vld [vmem:[#allocation3 + $0x1f0] sm:$0xff]
      %v5986 = vld [vmem:[#allocation3 + $0x9] sm:$0xff]
      %v5987 = vld [vmem:[#allocation3 + $0x11] sm:$0xff]
      %v5988 = vld [vmem:[#allocation3 + $0x29] sm:$0xff]
      %v5989 = vld [vmem:[#allocation3 + $0x31] sm:$0xff]
      %v5990 = vld [vmem:[#allocation3 + $0x49] sm:$0xff]
      %v5991 = vld [vmem:[#allocation3 + $0x51] sm:$0xff]
      %v5992 = vld [vmem:[#allocation3 + $0x69] sm:$0xff]
      %v5993 = vld [vmem:[#allocation3 + $0x71] sm:$0xff]
      %v5994 = vld [vmem:[#allocation3 + $0x89] sm:$0xff]
      %v5995 = vld [vmem:[#allocation3 + $0x91] sm:$0xff]
      %v5996 = vld [vmem:[#allocation3 + $0xa9] sm:$0xff]
      %v5997 = vld [vmem:[#allocation3 + $0xb1] sm:$0xff]
      %v5998 = vld [vmem:[#allocation3 + $0xc9] sm:$0xff]
      %v5999 = vld [vmem:[#allocation3 + $0xd1] sm:$0xff]
      %v6000 = vld [vmem:[#allocation3 + $0xe9] sm:$0xff]
      %v6001 = vld [vmem:[#allocation3 + $0xf1] sm:$0xff]
      %v6002 = vld [vmem:[#allocation3 + $0x109] sm:$0xff]
      %v6003 = vld [vmem:[#allocation3 + $0x111] sm:$0xff]
      %v6004 = vld [vmem:[#allocation3 + $0x129] sm:$0xff]
      %v6005 = vld [vmem:[#allocation3 + $0x131] sm:$0xff]
      %v6006 = vld [vmem:[#allocation3 + $0x149] sm:$0xff]
      %v6007 = vld [vmem:[#allocation3 + $0x151] sm:$0xff]
      %v6008 = vld [vmem:[#allocation3 + $0x169] sm:$0xff]
      %v6009 = vld [vmem:[#allocation3 + $0x171] sm:$0xff]
      %v6010 = vld [vmem:[#allocation3 + $0x189] sm:$0xff]
      %v6011 = vld [vmem:[#allocation3 + $0x191] sm:$0xff]
      %v6012 = vld [vmem:[#allocation3 + $0x1a9] sm:$0xff]
      %v6013 = vld [vmem:[#allocation3 + $0x1b1] sm:$0xff]
      %v6014 = vld [vmem:[#allocation3 + $0x1c9] sm:$0xff]
      %v6015 = vld [vmem:[#allocation3 + $0x1d1] sm:$0xff]
      %v6016 = vld [vmem:[#allocation3 + $0x1e9] sm:$0xff]
      %v6017 = vld [vmem:[#allocation3 + $0x1f1] sm:$0xff]
      %v6018 = vld [vmem:[%s4300 + $0x7] sm:$0xff]
      %v6019 = vld [vmem:[%s4300 + $0xf] sm:$0xff]
      %v6020 = vld [vmem:[%s4300 + $0x27] sm:$0xff]
      %v6021 = vld [vmem:[%s4300 + $0x2f] sm:$0xff]
      %v6022 = vld [vmem:[%s4300 + $0x47] sm:$0xff]
      %v6023 = vld [vmem:[%s4300 + $0x4f] sm:$0xff]
      %v6024 = vld [vmem:[%s4300 + $0x67] sm:$0xff]
      %v6025 = vld [vmem:[%s4300 + $0x6f] sm:$0xff]
      %v6026 = vld [vmem:[%s4300 + $0x87] sm:$0xff]
      %v6027 = vld [vmem:[%s4300 + $0x8f] sm:$0xff]
      %v6028 = vld [vmem:[%s4300 + $0xa7] sm:$0xff]
      %v6029 = vld [vmem:[%s4300 + $0xaf] sm:$0xff]
      %v6030 = vld [vmem:[%s4300 + $0xc7] sm:$0xff]
      %v6031 = vld [vmem:[%s4300 + $0xcf] sm:$0xff]
      %v6032 = vld [vmem:[%s4300 + $0xe7] sm:$0xff]
      %v6033 = vld [vmem:[%s4300 + $0xef] sm:$0xff]
      %v6034 = vld [vmem:[%s4300 + $0x107] sm:$0xff]
      %v6035 = vld [vmem:[%s4300 + $0x10f] sm:$0xff]
      %v6036 = vld [vmem:[%s4300 + $0x127] sm:$0xff]
      %v6037 = vld [vmem:[%s4300 + $0x12f] sm:$0xff]
      %v6038 = vld [vmem:[%s4300 + $0x147] sm:$0xff]
      %v6039 = vld [vmem:[%s4300 + $0x14f] sm:$0xff]
      %v6040 = vld [vmem:[%s4300 + $0x167] sm:$0xff]
      %v6041 = vld [vmem:[%s4300 + $0x16f] sm:$0xff]
      %v6042 = vld [vmem:[%s4300 + $0x187] sm:$0xff]
      %v6043 = vld [vmem:[%s4300 + $0x18f] sm:$0xff]
      %v6044 = vld [vmem:[%s4300 + $0x1a7] sm:$0xff]
      %v6045 = vld [vmem:[%s4300 + $0x1af] sm:$0xff]
      %v6046 = vld [vmem:[%s4300 + $0x1c7] sm:$0xff]
      %v6047 = vld [vmem:[%s4300 + $0x1cf] sm:$0xff]
      %v6048 = vld [vmem:[%s4300 + $0x1e7] sm:$0xff]
      %v6049 = vld [vmem:[%s4300 + $0x1ef] sm:$0xff]
      %v6050 = vld [vmem:[%s4300 + $0x8] sm:$0xff]
      %v6051 = vld [vmem:[%s4300 + $0x10] sm:$0xff]
      %v6052 = vld [vmem:[%s4300 + $0x28] sm:$0xff]
      %v6053 = vld [vmem:[%s4300 + $0x30] sm:$0xff]
      %v6054 = vld [vmem:[%s4300 + $0x48] sm:$0xff]
      %v6055 = vld [vmem:[%s4300 + $0x50] sm:$0xff]
      %v6056 = vld [vmem:[%s4300 + $0x68] sm:$0xff]
      %v6057 = vld [vmem:[%s4300 + $0x70] sm:$0xff]
      %v6058 = vld [vmem:[%s4300 + $0x88] sm:$0xff]
      %v6059 = vld [vmem:[%s4300 + $0x90] sm:$0xff]
      %v6060 = vld [vmem:[%s4300 + $0xa8] sm:$0xff]
      %v6061 = vld [vmem:[%s4300 + $0xb0] sm:$0xff]
      %v6062 = vld [vmem:[%s4300 + $0xc8] sm:$0xff]
      %v6063 = vld [vmem:[%s4300 + $0xd0] sm:$0xff]
      %v6064 = vld [vmem:[%s4300 + $0xe8] sm:$0xff]
      %v6065 = vld [vmem:[%s4300 + $0xf0] sm:$0xff]
      %v6066 = vld [vmem:[%s4300 + $0x108] sm:$0xff]
      %v6067 = vld [vmem:[%s4300 + $0x110] sm:$0xff]
      %v6068 = vld [vmem:[%s4300 + $0x128] sm:$0xff]
      %v6069 = vld [vmem:[%s4300 + $0x130] sm:$0xff]
      %v6070 = vld [vmem:[%s4300 + $0x148] sm:$0xff]
      %v6071 = vld [vmem:[%s4300 + $0x150] sm:$0xff]
      %v6072 = vld [vmem:[%s4300 + $0x168] sm:$0xff]
      %v6073 = vld [vmem:[%s4300 + $0x170] sm:$0xff]
      %v6074 = vld [vmem:[%s4300 + $0x188] sm:$0xff]
      %v6075 = vld [vmem:[%s4300 + $0x190] sm:$0xff]
      %v6076 = vld [vmem:[%s4300 + $0x1a8] sm:$0xff]
      %v6077 = vld [vmem:[%s4300 + $0x1b0] sm:$0xff]
      %v6078 = vld [vmem:[%s4300 + $0x1c8] sm:$0xff]
      %v6079 = vld [vmem:[%s4300 + $0x1d0] sm:$0xff]
      %v6080 = vld [vmem:[%s4300 + $0x1e8] sm:$0xff]
      %v6081 = vld [vmem:[%s4300 + $0x1f0] sm:$0xff]
      %v6082 = vld [vmem:[%s4300 + $0x9] sm:$0xff]
      %v6083 = vld [vmem:[%s4300 + $0x11] sm:$0xff]
      %v6084 = vld [vmem:[%s4300 + $0x29] sm:$0xff]
      %v6085 = vld [vmem:[%s4300 + $0x31] sm:$0xff]
      %v6086 = vld [vmem:[%s4300 + $0x49] sm:$0xff]
      %v6087 = vld [vmem:[%s4300 + $0x51] sm:$0xff]
      %v6088 = vld [vmem:[%s4300 + $0x69] sm:$0xff]
      %v6089 = vld [vmem:[%s4300 + $0x71] sm:$0xff]
      %v6090 = vld [vmem:[%s4300 + $0x89] sm:$0xff]
      %v6091 = vld [vmem:[%s4300 + $0x91] sm:$0xff]
      %v6092 = vld [vmem:[%s4300 + $0xa9] sm:$0xff]
      %v6093 = vld [vmem:[%s4300 + $0xb1] sm:$0xff]
      %v6094 = vld [vmem:[%s4300 + $0xc9] sm:$0xff]
      %v6095 = vld [vmem:[%s4300 + $0xd1] sm:$0xff]
      %v6096 = vld [vmem:[%s4300 + $0xe9] sm:$0xff]
      %v6097 = vld [vmem:[%s4300 + $0xf1] sm:$0xff]
      %v6098 = vld [vmem:[%s4300 + $0x109] sm:$0xff]
      %v6099 = vld [vmem:[%s4300 + $0x111] sm:$0xff]
      %v6100 = vld [vmem:[%s4300 + $0x129] sm:$0xff]
      %v6101 = vld [vmem:[%s4300 + $0x131] sm:$0xff]
      %v6102 = vld [vmem:[%s4300 + $0x149] sm:$0xff]
      %v6103 = vld [vmem:[%s4300 + $0x151] sm:$0xff]
      %v6104 = vld [vmem:[%s4300 + $0x169] sm:$0xff]
      %v6105 = vld [vmem:[%s4300 + $0x171] sm:$0xff]
      %v6106 = vld [vmem:[%s4300 + $0x189] sm:$0xff]
      %v6107 = vld [vmem:[%s4300 + $0x191] sm:$0xff]
      %v6108 = vld [vmem:[%s4300 + $0x1a9] sm:$0xff]
      %v6109 = vld [vmem:[%s4300 + $0x1b1] sm:$0xff]
      %v6110 = vld [vmem:[%s4300 + $0x1c9] sm:$0xff]
      %v6111 = vld [vmem:[%s4300 + $0x1d1] sm:$0xff]
      %v6112 = vld [vmem:[%s4300 + $0x1e9] sm:$0xff]
      %v6113 = vld [vmem:[%s4300 + $0x1f1] sm:$0xff]
      %s6114 = scalar_lea.vmem [#allocation3], 64
      %v6115 = vld [vmem:[%s6114 + $0x7] sm:$0xff]
      %v6116 = vld [vmem:[%s6114 + $0xf] sm:$0xff]
      %v6117 = vld [vmem:[%s6114 + $0x27] sm:$0xff]
      %v6118 = vld [vmem:[%s6114 + $0x2f] sm:$0xff]
      %v6119 = vld [vmem:[%s6114 + $0x47] sm:$0xff]
      %v6120 = vld [vmem:[%s6114 + $0x4f] sm:$0xff]
      %v6121 = vld [vmem:[%s6114 + $0x67] sm:$0xff]
      %v6122 = vld [vmem:[%s6114 + $0x6f] sm:$0xff]
      %v6123 = vld [vmem:[%s6114 + $0x87] sm:$0xff]
      %v6124 = vld [vmem:[%s6114 + $0x8f] sm:$0xff]
      %v6125 = vld [vmem:[%s6114 + $0xa7] sm:$0xff]
      %v6126 = vld [vmem:[%s6114 + $0xaf] sm:$0xff]
      %v6127 = vld [vmem:[%s6114 + $0xc7] sm:$0xff]
      %v6128 = vld [vmem:[%s6114 + $0xcf] sm:$0xff]
      %v6129 = vld [vmem:[%s6114 + $0xe7] sm:$0xff]
      %v6130 = vld [vmem:[%s6114 + $0xef] sm:$0xff]
      %v6131 = vld [vmem:[%s6114 + $0x107] sm:$0xff]
      %v6132 = vld [vmem:[%s6114 + $0x10f] sm:$0xff]
      %v6133 = vld [vmem:[%s6114 + $0x127] sm:$0xff]
      %v6134 = vld [vmem:[%s6114 + $0x12f] sm:$0xff]
      %v6135 = vld [vmem:[%s6114 + $0x147] sm:$0xff]
      %v6136 = vld [vmem:[%s6114 + $0x14f] sm:$0xff]
      %v6137 = vld [vmem:[%s6114 + $0x167] sm:$0xff]
      %v6138 = vld [vmem:[%s6114 + $0x16f] sm:$0xff]
      %v6139 = vld [vmem:[%s6114 + $0x187] sm:$0xff]
      %v6140 = vld [vmem:[%s6114 + $0x18f] sm:$0xff]
      %v6141 = vld [vmem:[%s6114 + $0x1a7] sm:$0xff]
      %v6142 = vld [vmem:[%s6114 + $0x1af] sm:$0xff]
      %v6143 = vld [vmem:[%s6114 + $0x1c7] sm:$0xff]
      %v6144 = vld [vmem:[%s6114 + $0x1cf] sm:$0xff]
      %v6145 = vld [vmem:[%s6114 + $0x1e7] sm:$0xff]
      %v6146 = vld [vmem:[%s6114 + $0x1ef] sm:$0xff]
      %v6147 = vld [vmem:[%s6114 + $0x8] sm:$0xff]
      %v6148 = vld [vmem:[%s6114 + $0x10] sm:$0xff]
      %v6149 = vld [vmem:[%s6114 + $0x28] sm:$0xff]
      %v6150 = vld [vmem:[%s6114 + $0x30] sm:$0xff]
      %v6151 = vld [vmem:[%s6114 + $0x48] sm:$0xff]
      %v6152 = vld [vmem:[%s6114 + $0x50] sm:$0xff]
      %v6153 = vld [vmem:[%s6114 + $0x68] sm:$0xff]
      %v6154 = vld [vmem:[%s6114 + $0x70] sm:$0xff]
      %v6155 = vld [vmem:[%s6114 + $0x88] sm:$0xff]
      %v6156 = vld [vmem:[%s6114 + $0x90] sm:$0xff]
      %v6157 = vld [vmem:[%s6114 + $0xa8] sm:$0xff]
      %v6158 = vld [vmem:[%s6114 + $0xb0] sm:$0xff]
      %v6159 = vld [vmem:[%s6114 + $0xc8] sm:$0xff]
      %v6160 = vld [vmem:[%s6114 + $0xd0] sm:$0xff]
      %v6161 = vld [vmem:[%s6114 + $0xe8] sm:$0xff]
      %v6162 = vld [vmem:[%s6114 + $0xf0] sm:$0xff]
      %v6163 = vld [vmem:[%s6114 + $0x108] sm:$0xff]
      %v6164 = vld [vmem:[%s6114 + $0x110] sm:$0xff]
      %v6165 = vld [vmem:[%s6114 + $0x128] sm:$0xff]
      %v6166 = vld [vmem:[%s6114 + $0x130] sm:$0xff]
      %v6167 = vld [vmem:[%s6114 + $0x148] sm:$0xff]
      %v6168 = vld [vmem:[%s6114 + $0x150] sm:$0xff]
      %v6169 = vld [vmem:[%s6114 + $0x168] sm:$0xff]
      %v6170 = vld [vmem:[%s6114 + $0x170] sm:$0xff]
      %v6171 = vld [vmem:[%s6114 + $0x188] sm:$0xff]
      %v6172 = vld [vmem:[%s6114 + $0x190] sm:$0xff]
      %v6173 = vld [vmem:[%s6114 + $0x1a8] sm:$0xff]
      %v6174 = vld [vmem:[%s6114 + $0x1b0] sm:$0xff]
      %v6175 = vld [vmem:[%s6114 + $0x1c8] sm:$0xff]
      %v6176 = vld [vmem:[%s6114 + $0x1d0] sm:$0xff]
      %v6177 = vld [vmem:[%s6114 + $0x1e8] sm:$0xff]
      %v6178 = vld [vmem:[%s6114 + $0x1f0] sm:$0xff]
      %v6179 = vld [vmem:[%s6114 + $0x9] sm:$0xff]
      %v6180 = vld [vmem:[%s6114 + $0x11] sm:$0xff]
      %v6181 = vld [vmem:[%s6114 + $0x29] sm:$0xff]
      %v6182 = vld [vmem:[%s6114 + $0x31] sm:$0xff]
      %v6183 = vld [vmem:[%s6114 + $0x49] sm:$0xff]
      %v6184 = vld [vmem:[%s6114 + $0x51] sm:$0xff]
      %v6185 = vld [vmem:[%s6114 + $0x69] sm:$0xff]
      %v6186 = vld [vmem:[%s6114 + $0x71] sm:$0xff]
      %v6187 = vld [vmem:[%s6114 + $0x89] sm:$0xff]
      %v6188 = vld [vmem:[%s6114 + $0x91] sm:$0xff]
      %v6189 = vld [vmem:[%s6114 + $0xa9] sm:$0xff]
      %v6190 = vld [vmem:[%s6114 + $0xb1] sm:$0xff]
      %v6191 = vld [vmem:[%s6114 + $0xc9] sm:$0xff]
      %v6192 = vld [vmem:[%s6114 + $0xd1] sm:$0xff]
      %v6193 = vld [vmem:[%s6114 + $0xe9] sm:$0xff]
      %v6194 = vld [vmem:[%s6114 + $0xf1] sm:$0xff]
      %v6195 = vld [vmem:[%s6114 + $0x109] sm:$0xff]
      %v6196 = vld [vmem:[%s6114 + $0x111] sm:$0xff]
      %v6197 = vld [vmem:[%s6114 + $0x129] sm:$0xff]
      %v6198 = vld [vmem:[%s6114 + $0x131] sm:$0xff]
      %v6199 = vld [vmem:[%s6114 + $0x149] sm:$0xff]
      %v6200 = vld [vmem:[%s6114 + $0x151] sm:$0xff]
      %v6201 = vld [vmem:[%s6114 + $0x169] sm:$0xff]
      %v6202 = vld [vmem:[%s6114 + $0x171] sm:$0xff]
      %v6203 = vld [vmem:[%s6114 + $0x189] sm:$0xff]
      %v6204 = vld [vmem:[%s6114 + $0x191] sm:$0xff]
      %v6205 = vld [vmem:[%s6114 + $0x1a9] sm:$0xff]
      %v6206 = vld [vmem:[%s6114 + $0x1b1] sm:$0xff]
      %v6207 = vld [vmem:[%s6114 + $0x1c9] sm:$0xff]
      %v6208 = vld [vmem:[%s6114 + $0x1d1] sm:$0xff]
      %v6209 = vld [vmem:[%s6114 + $0x1e9] sm:$0xff]
      %v6210 = vld [vmem:[%s6114 + $0x1f1] sm:$0xff]
      %6243 = vrot.lane.b32.xlu0 %v5954, 8
      %v6244 = vpop.permute.xlu0 %6243
      %6245 = vrot.lane.b32.xlu0 %v5955, 8
      %v6246 = vpop.permute.xlu0 %6245
      %6247 = vrot.lane.b32.xlu0 %v5956, 8
      %v6248 = vpop.permute.xlu0 %6247
      %6249 = vrot.lane.b32.xlu0 %v5957, 8
      %v6250 = vpop.permute.xlu0 %6249
      %6251 = vrot.lane.b32.xlu0 %v5958, 8
      %v6252 = vpop.permute.xlu0 %6251
      %6253 = vrot.lane.b32.xlu0 %v5959, 8
      %v6254 = vpop.permute.xlu0 %6253
      %6255 = vrot.lane.b32.xlu0 %v5960, 8
      %v6256 = vpop.permute.xlu0 %6255
      %6257 = vrot.lane.b32.xlu0 %v5961, 8
      %v6258 = vpop.permute.xlu0 %6257
      %6259 = vrot.lane.b32.xlu0 %v5962, 8
      %v6260 = vpop.permute.xlu0 %6259
      %6261 = vrot.lane.b32.xlu0 %v5963, 8
      %v6262 = vpop.permute.xlu0 %6261
      %6263 = vrot.lane.b32.xlu0 %v5964, 8
      %v6264 = vpop.permute.xlu0 %6263
      %6265 = vrot.lane.b32.xlu0 %v5965, 8
      %v6266 = vpop.permute.xlu0 %6265
      %6267 = vrot.lane.b32.xlu0 %v5966, 8
      %v6268 = vpop.permute.xlu0 %6267
      %6269 = vrot.lane.b32.xlu0 %v5967, 8
      %v6270 = vpop.permute.xlu0 %6269
      %6271 = vrot.lane.b32.xlu0 %v5968, 8
      %v6272 = vpop.permute.xlu0 %6271
      %6273 = vrot.lane.b32.xlu0 %v5969, 8
      %v6274 = vpop.permute.xlu0 %6273
      %6275 = vrot.lane.b32.xlu0 %v5970, 8
      %v6276 = vpop.permute.xlu0 %6275
      %6277 = vrot.lane.b32.xlu0 %v5971, 8
      %v6278 = vpop.permute.xlu0 %6277
      %6279 = vrot.lane.b32.xlu0 %v5972, 8
      %v6280 = vpop.permute.xlu0 %6279
      %6281 = vrot.lane.b32.xlu0 %v5973, 8
      %v6282 = vpop.permute.xlu0 %6281
      %6283 = vrot.lane.b32.xlu0 %v5974, 8
      %v6284 = vpop.permute.xlu0 %6283
      %6285 = vrot.lane.b32.xlu0 %v5975, 8
      %v6286 = vpop.permute.xlu0 %6285
      %6287 = vrot.lane.b32.xlu0 %v5976, 8
      %v6288 = vpop.permute.xlu0 %6287
      %6289 = vrot.lane.b32.xlu0 %v5977, 8
      %v6290 = vpop.permute.xlu0 %6289
      %6291 = vrot.lane.b32.xlu0 %v5978, 8
      %v6292 = vpop.permute.xlu0 %6291
      %6293 = vrot.lane.b32.xlu0 %v5979, 8
      %v6294 = vpop.permute.xlu0 %6293
      %6295 = vrot.lane.b32.xlu0 %v5980, 8
      %v6296 = vpop.permute.xlu0 %6295
      %6297 = vrot.lane.b32.xlu0 %v5981, 8
      %v6298 = vpop.permute.xlu0 %6297
      %6299 = vrot.lane.b32.xlu0 %v5982, 8
      %v6300 = vpop.permute.xlu0 %6299
      %6301 = vrot.lane.b32.xlu0 %v5983, 8
      %v6302 = vpop.permute.xlu0 %6301
      %6303 = vrot.lane.b32.xlu0 %v5984, 8
      %v6304 = vpop.permute.xlu0 %6303
      %6305 = vrot.lane.b32.xlu0 %v5985, 8
      %v6306 = vpop.permute.xlu0 %6305
      %6371 = vrot.lane.b32.xlu0 %v5986, 16
      %v6372 = vpop.permute.xlu0 %6371
      %6373 = vrot.lane.b32.xlu0 %v5987, 16
      %v6374 = vpop.permute.xlu0 %6373
      %6375 = vrot.lane.b32.xlu0 %v5988, 16
      %v6376 = vpop.permute.xlu0 %6375
      %6377 = vrot.lane.b32.xlu0 %v5989, 16
      %v6378 = vpop.permute.xlu0 %6377
      %6379 = vrot.lane.b32.xlu0 %v5990, 16
      %v6380 = vpop.permute.xlu0 %6379
      %6381 = vrot.lane.b32.xlu0 %v5991, 16
      %v6382 = vpop.permute.xlu0 %6381
      %6383 = vrot.lane.b32.xlu0 %v5992, 16
      %v6384 = vpop.permute.xlu0 %6383
      %6385 = vrot.lane.b32.xlu0 %v5993, 16
      %v6386 = vpop.permute.xlu0 %6385
      %6387 = vrot.lane.b32.xlu0 %v5994, 16
      %v6388 = vpop.permute.xlu0 %6387
      %6389 = vrot.lane.b32.xlu0 %v5995, 16
      %v6390 = vpop.permute.xlu0 %6389
      %6391 = vrot.lane.b32.xlu0 %v5996, 16
      %v6392 = vpop.permute.xlu0 %6391
      %6393 = vrot.lane.b32.xlu0 %v5997, 16
      %v6394 = vpop.permute.xlu0 %6393
      %6395 = vrot.lane.b32.xlu0 %v5998, 16
      %v6396 = vpop.permute.xlu0 %6395
      %6397 = vrot.lane.b32.xlu0 %v5999, 16
      %v6398 = vpop.permute.xlu0 %6397
      %6399 = vrot.lane.b32.xlu0 %v6000, 16
      %v6400 = vpop.permute.xlu0 %6399
      %6401 = vrot.lane.b32.xlu0 %v6001, 16
      %v6402 = vpop.permute.xlu0 %6401
      %6403 = vrot.lane.b32.xlu0 %v6002, 16
      %v6404 = vpop.permute.xlu0 %6403
      %6405 = vrot.lane.b32.xlu0 %v6003, 16
      %v6406 = vpop.permute.xlu0 %6405
      %6407 = vrot.lane.b32.xlu0 %v6004, 16
      %v6408 = vpop.permute.xlu0 %6407
      %6409 = vrot.lane.b32.xlu0 %v6005, 16
      %v6410 = vpop.permute.xlu0 %6409
      %6411 = vrot.lane.b32.xlu0 %v6006, 16
      %v6412 = vpop.permute.xlu0 %6411
      %6413 = vrot.lane.b32.xlu0 %v6007, 16
      %v6414 = vpop.permute.xlu0 %6413
      %6415 = vrot.lane.b32.xlu0 %v6008, 16
      %v6416 = vpop.permute.xlu0 %6415
      %6417 = vrot.lane.b32.xlu0 %v6009, 16
      %v6418 = vpop.permute.xlu0 %6417
      %6419 = vrot.lane.b32.xlu0 %v6010, 16
      %v6420 = vpop.permute.xlu0 %6419
      %6421 = vrot.lane.b32.xlu0 %v6011, 16
      %v6422 = vpop.permute.xlu0 %6421
      %6423 = vrot.lane.b32.xlu0 %v6012, 16
      %v6424 = vpop.permute.xlu0 %6423
      %6425 = vrot.lane.b32.xlu0 %v6013, 16
      %v6426 = vpop.permute.xlu0 %6425
      %6427 = vrot.lane.b32.xlu0 %v6014, 16
      %v6428 = vpop.permute.xlu0 %6427
      %6429 = vrot.lane.b32.xlu0 %v6015, 16
      %v6430 = vpop.permute.xlu0 %6429
      %6431 = vrot.lane.b32.xlu0 %v6016, 16
      %v6432 = vpop.permute.xlu0 %6431
      %6433 = vrot.lane.b32.xlu0 %v6017, 16
      %v6434 = vpop.permute.xlu0 %6433
      %6499 = vrot.lane.b32.xlu0 %v6018, 24
      %v6500 = vpop.permute.xlu0 %6499
      %6501 = vrot.lane.b32.xlu0 %v6019, 24
      %v6502 = vpop.permute.xlu0 %6501
      %6503 = vrot.lane.b32.xlu0 %v6020, 24
      %v6504 = vpop.permute.xlu0 %6503
      %6505 = vrot.lane.b32.xlu0 %v6021, 24
      %v6506 = vpop.permute.xlu0 %6505
      %6507 = vrot.lane.b32.xlu0 %v6022, 24
      %v6508 = vpop.permute.xlu0 %6507
      %6509 = vrot.lane.b32.xlu0 %v6023, 24
      %v6510 = vpop.permute.xlu0 %6509
      %6511 = vrot.lane.b32.xlu0 %v6024, 24
      %v6512 = vpop.permute.xlu0 %6511
      %6513 = vrot.lane.b32.xlu0 %v6025, 24
      %v6514 = vpop.permute.xlu0 %6513
      %6515 = vrot.lane.b32.xlu0 %v6026, 24
      %v6516 = vpop.permute.xlu0 %6515
      %6517 = vrot.lane.b32.xlu0 %v6027, 24
      %v6518 = vpop.permute.xlu0 %6517
      %6519 = vrot.lane.b32.xlu0 %v6028, 24
      %v6520 = vpop.permute.xlu0 %6519
      %6521 = vrot.lane.b32.xlu0 %v6029, 24
      %v6522 = vpop.permute.xlu0 %6521
      %6523 = vrot.lane.b32.xlu0 %v6030, 24
      %v6524 = vpop.permute.xlu0 %6523
      %6525 = vrot.lane.b32.xlu0 %v6031, 24
      %v6526 = vpop.permute.xlu0 %6525
      %6527 = vrot.lane.b32.xlu0 %v6032, 24
      %v6528 = vpop.permute.xlu0 %6527
      %6529 = vrot.lane.b32.xlu0 %v6033, 24
      %v6530 = vpop.permute.xlu0 %6529
      %6531 = vrot.lane.b32.xlu0 %v6034, 24
      %v6532 = vpop.permute.xlu0 %6531
      %6533 = vrot.lane.b32.xlu0 %v6035, 24
      %v6534 = vpop.permute.xlu0 %6533
      %6535 = vrot.lane.b32.xlu0 %v6036, 24
      %v6536 = vpop.permute.xlu0 %6535
      %6537 = vrot.lane.b32.xlu0 %v6037, 24
      %v6538 = vpop.permute.xlu0 %6537
      %6539 = vrot.lane.b32.xlu0 %v6038, 24
      %v6540 = vpop.permute.xlu0 %6539
      %6541 = vrot.lane.b32.xlu0 %v6039, 24
      %v6542 = vpop.permute.xlu0 %6541
      %6543 = vrot.lane.b32.xlu0 %v6040, 24
      %v6544 = vpop.permute.xlu0 %6543
      %6545 = vrot.lane.b32.xlu0 %v6041, 24
      %v6546 = vpop.permute.xlu0 %6545
      %6547 = vrot.lane.b32.xlu0 %v6042, 24
      %v6548 = vpop.permute.xlu0 %6547
      %6549 = vrot.lane.b32.xlu0 %v6043, 24
      %v6550 = vpop.permute.xlu0 %6549
      %6551 = vrot.lane.b32.xlu0 %v6044, 24
      %v6552 = vpop.permute.xlu0 %6551
      %6553 = vrot.lane.b32.xlu0 %v6045, 24
      %v6554 = vpop.permute.xlu0 %6553
      %6555 = vrot.lane.b32.xlu0 %v6046, 24
      %v6556 = vpop.permute.xlu0 %6555
      %6557 = vrot.lane.b32.xlu0 %v6047, 24
      %v6558 = vpop.permute.xlu0 %6557
      %6559 = vrot.lane.b32.xlu0 %v6048, 24
      %v6560 = vpop.permute.xlu0 %6559
      %6561 = vrot.lane.b32.xlu0 %v6049, 24
      %v6562 = vpop.permute.xlu0 %6561
      %6627 = vrot.lane.b32.xlu0 %v6050, 32
      %v6628 = vpop.permute.xlu0 %6627
      %6629 = vrot.lane.b32.xlu0 %v6051, 32
      %v6630 = vpop.permute.xlu0 %6629
      %6631 = vrot.lane.b32.xlu0 %v6052, 32
      %v6632 = vpop.permute.xlu0 %6631
      %6633 = vrot.lane.b32.xlu0 %v6053, 32
      %v6634 = vpop.permute.xlu0 %6633
      %6635 = vrot.lane.b32.xlu0 %v6054, 32
      %v6636 = vpop.permute.xlu0 %6635
      %6637 = vrot.lane.b32.xlu0 %v6055, 32
      %v6638 = vpop.permute.xlu0 %6637
      %6639 = vrot.lane.b32.xlu0 %v6056, 32
      %v6640 = vpop.permute.xlu0 %6639
      %6641 = vrot.lane.b32.xlu0 %v6057, 32
      %v6642 = vpop.permute.xlu0 %6641
      %6643 = vrot.lane.b32.xlu0 %v6058, 32
      %v6644 = vpop.permute.xlu0 %6643
      %6645 = vrot.lane.b32.xlu0 %v6059, 32
      %v6646 = vpop.permute.xlu0 %6645
      %6647 = vrot.lane.b32.xlu0 %v6060, 32
      %v6648 = vpop.permute.xlu0 %6647
      %6649 = vrot.lane.b32.xlu0 %v6061, 32
      %v6650 = vpop.permute.xlu0 %6649
      %6651 = vrot.lane.b32.xlu0 %v6062, 32
      %v6652 = vpop.permute.xlu0 %6651
      %6653 = vrot.lane.b32.xlu0 %v6063, 32
      %v6654 = vpop.permute.xlu0 %6653
      %6655 = vrot.lane.b32.xlu0 %v6064, 32
      %v6656 = vpop.permute.xlu0 %6655
      %6657 = vrot.lane.b32.xlu0 %v6065, 32
      %v6658 = vpop.permute.xlu0 %6657
      %6659 = vrot.lane.b32.xlu0 %v6066, 32
      %v6660 = vpop.permute.xlu0 %6659
      %6661 = vrot.lane.b32.xlu0 %v6067, 32
      %v6662 = vpop.permute.xlu0 %6661
      %6663 = vrot.lane.b32.xlu0 %v6068, 32
      %v6664 = vpop.permute.xlu0 %6663
      %6665 = vrot.lane.b32.xlu0 %v6069, 32
      %v6666 = vpop.permute.xlu0 %6665
      %6667 = vrot.lane.b32.xlu0 %v6070, 32
      %v6668 = vpop.permute.xlu0 %6667
      %6669 = vrot.lane.b32.xlu0 %v6071, 32
      %v6670 = vpop.permute.xlu0 %6669
      %6671 = vrot.lane.b32.xlu0 %v6072, 32
      %v6672 = vpop.permute.xlu0 %6671
      %6673 = vrot.lane.b32.xlu0 %v6073, 32
      %v6674 = vpop.permute.xlu0 %6673
      %6675 = vrot.lane.b32.xlu0 %v6074, 32
      %v6676 = vpop.permute.xlu0 %6675
      %6677 = vrot.lane.b32.xlu0 %v6075, 32
      %v6678 = vpop.permute.xlu0 %6677
      %6679 = vrot.lane.b32.xlu0 %v6076, 32
      %v6680 = vpop.permute.xlu0 %6679
      %6681 = vrot.lane.b32.xlu0 %v6077, 32
      %v6682 = vpop.permute.xlu0 %6681
      %6683 = vrot.lane.b32.xlu0 %v6078, 32
      %v6684 = vpop.permute.xlu0 %6683
      %6685 = vrot.lane.b32.xlu0 %v6079, 32
      %v6686 = vpop.permute.xlu0 %6685
      %6687 = vrot.lane.b32.xlu0 %v6080, 32
      %v6688 = vpop.permute.xlu0 %6687
      %6689 = vrot.lane.b32.xlu0 %v6081, 32
      %v6690 = vpop.permute.xlu0 %6689
      %6755 = vrot.lane.b32.xlu0 %v6082, 40
      %v6756 = vpop.permute.xlu0 %6755
      %6757 = vrot.lane.b32.xlu0 %v6083, 40
      %v6758 = vpop.permute.xlu0 %6757
      %6759 = vrot.lane.b32.xlu0 %v6084, 40
      %v6760 = vpop.permute.xlu0 %6759
      %6761 = vrot.lane.b32.xlu0 %v6085, 40
      %v6762 = vpop.permute.xlu0 %6761
      %6763 = vrot.lane.b32.xlu0 %v6086, 40
      %v6764 = vpop.permute.xlu0 %6763
      %6765 = vrot.lane.b32.xlu0 %v6087, 40
      %v6766 = vpop.permute.xlu0 %6765
      %6767 = vrot.lane.b32.xlu0 %v6088, 40
      %v6768 = vpop.permute.xlu0 %6767
      %6769 = vrot.lane.b32.xlu0 %v6089, 40
      %v6770 = vpop.permute.xlu0 %6769
      %6771 = vrot.lane.b32.xlu0 %v6090, 40
      %v6772 = vpop.permute.xlu0 %6771
      %6773 = vrot.lane.b32.xlu0 %v6091, 40
      %v6774 = vpop.permute.xlu0 %6773
      %6775 = vrot.lane.b32.xlu0 %v6092, 40
      %v6776 = vpop.permute.xlu0 %6775
      %6777 = vrot.lane.b32.xlu0 %v6093, 40
      %v6778 = vpop.permute.xlu0 %6777
      %6779 = vrot.lane.b32.xlu0 %v6094, 40
      %v6780 = vpop.permute.xlu0 %6779
      %6781 = vrot.lane.b32.xlu0 %v6095, 40
      %v6782 = vpop.permute.xlu0 %6781
      %6783 = vrot.lane.b32.xlu0 %v6096, 40
      %v6784 = vpop.permute.xlu0 %6783
      %6785 = vrot.lane.b32.xlu0 %v6097, 40
      %v6786 = vpop.permute.xlu0 %6785
      %6787 = vrot.lane.b32.xlu0 %v6098, 40
      %v6788 = vpop.permute.xlu0 %6787
      %6789 = vrot.lane.b32.xlu0 %v6099, 40
      %v6790 = vpop.permute.xlu0 %6789
      %6791 = vrot.lane.b32.xlu0 %v6100, 40
      %v6792 = vpop.permute.xlu0 %6791
      %6793 = vrot.lane.b32.xlu0 %v6101, 40
      %v6794 = vpop.permute.xlu0 %6793
      %6795 = vrot.lane.b32.xlu0 %v6102, 40
      %v6796 = vpop.permute.xlu0 %6795
      %6797 = vrot.lane.b32.xlu0 %v6103, 40
      %v6798 = vpop.permute.xlu0 %6797
      %6799 = vrot.lane.b32.xlu0 %v6104, 40
      %v6800 = vpop.permute.xlu0 %6799
      %6801 = vrot.lane.b32.xlu0 %v6105, 40
      %v6802 = vpop.permute.xlu0 %6801
      %6803 = vrot.lane.b32.xlu0 %v6106, 40
      %v6804 = vpop.permute.xlu0 %6803
      %6805 = vrot.lane.b32.xlu0 %v6107, 40
      %v6806 = vpop.permute.xlu0 %6805
      %6807 = vrot.lane.b32.xlu0 %v6108, 40
      %v6808 = vpop.permute.xlu0 %6807
      %6809 = vrot.lane.b32.xlu0 %v6109, 40
      %v6810 = vpop.permute.xlu0 %6809
      %6811 = vrot.lane.b32.xlu0 %v6110, 40
      %v6812 = vpop.permute.xlu0 %6811
      %6813 = vrot.lane.b32.xlu0 %v6111, 40
      %v6814 = vpop.permute.xlu0 %6813
      %6815 = vrot.lane.b32.xlu0 %v6112, 40
      %v6816 = vpop.permute.xlu0 %6815
      %6817 = vrot.lane.b32.xlu0 %v6113, 40
      %v6818 = vpop.permute.xlu0 %6817
      %6883 = vrot.lane.b32.xlu0 %v6115, 48
      %v6884 = vpop.permute.xlu0 %6883
      %6885 = vrot.lane.b32.xlu0 %v6116, 48
      %v6886 = vpop.permute.xlu0 %6885
      %6887 = vrot.lane.b32.xlu0 %v6117, 48
      %v6888 = vpop.permute.xlu0 %6887
      %6889 = vrot.lane.b32.xlu0 %v6118, 48
      %v6890 = vpop.permute.xlu0 %6889
      %6891 = vrot.lane.b32.xlu0 %v6119, 48
      %v6892 = vpop.permute.xlu0 %6891
      %6893 = vrot.lane.b32.xlu0 %v6120, 48
      %v6894 = vpop.permute.xlu0 %6893
      %6895 = vrot.lane.b32.xlu0 %v6121, 48
      %v6896 = vpop.permute.xlu0 %6895
      %6897 = vrot.lane.b32.xlu0 %v6122, 48
      %v6898 = vpop.permute.xlu0 %6897
      %6899 = vrot.lane.b32.xlu0 %v6123, 48
      %v6900 = vpop.permute.xlu0 %6899
      %6901 = vrot.lane.b32.xlu0 %v6124, 48
      %v6902 = vpop.permute.xlu0 %6901
      %6903 = vrot.lane.b32.xlu0 %v6125, 48
      %v6904 = vpop.permute.xlu0 %6903
      %6905 = vrot.lane.b32.xlu0 %v6126, 48
      %v6906 = vpop.permute.xlu0 %6905
      %6907 = vrot.lane.b32.xlu0 %v6127, 48
      %v6908 = vpop.permute.xlu0 %6907
      %6909 = vrot.lane.b32.xlu0 %v6128, 48
      %v6910 = vpop.permute.xlu0 %6909
      %6911 = vrot.lane.b32.xlu0 %v6129, 48
      %v6912 = vpop.permute.xlu0 %6911
      %6913 = vrot.lane.b32.xlu0 %v6130, 48
      %v6914 = vpop.permute.xlu0 %6913
      %6915 = vrot.lane.b32.xlu0 %v6131, 48
      %v6916 = vpop.permute.xlu0 %6915
      %6917 = vrot.lane.b32.xlu0 %v6132, 48
      %v6918 = vpop.permute.xlu0 %6917
      %6919 = vrot.lane.b32.xlu0 %v6133, 48
      %v6920 = vpop.permute.xlu0 %6919
      %6921 = vrot.lane.b32.xlu0 %v6134, 48
      %v6922 = vpop.permute.xlu0 %6921
      %6923 = vrot.lane.b32.xlu0 %v6135, 48
      %v6924 = vpop.permute.xlu0 %6923
      %6925 = vrot.lane.b32.xlu0 %v6136, 48
      %v6926 = vpop.permute.xlu0 %6925
      %6927 = vrot.lane.b32.xlu0 %v6137, 48
      %v6928 = vpop.permute.xlu0 %6927
      %6929 = vrot.lane.b32.xlu0 %v6138, 48
      %v6930 = vpop.permute.xlu0 %6929
      %6931 = vrot.lane.b32.xlu0 %v6139, 48
      %v6932 = vpop.permute.xlu0 %6931
      %6933 = vrot.lane.b32.xlu0 %v6140, 48
      %v6934 = vpop.permute.xlu0 %6933
      %6935 = vrot.lane.b32.xlu0 %v6141, 48
      %v6936 = vpop.permute.xlu0 %6935
      %6937 = vrot.lane.b32.xlu0 %v6142, 48
      %v6938 = vpop.permute.xlu0 %6937
      %6939 = vrot.lane.b32.xlu0 %v6143, 48
      %v6940 = vpop.permute.xlu0 %6939
      %6941 = vrot.lane.b32.xlu0 %v6144, 48
      %v6942 = vpop.permute.xlu0 %6941
      %6943 = vrot.lane.b32.xlu0 %v6145, 48
      %v6944 = vpop.permute.xlu0 %6943
      %6945 = vrot.lane.b32.xlu0 %v6146, 48
      %v6946 = vpop.permute.xlu0 %6945
      %7011 = vrot.lane.b32.xlu0 %v6147, 56
      %v7012 = vpop.permute.xlu0 %7011
      %7013 = vrot.lane.b32.xlu0 %v6148, 56
      %v7014 = vpop.permute.xlu0 %7013
      %7015 = vrot.lane.b32.xlu0 %v6149, 56
      %v7016 = vpop.permute.xlu0 %7015
      %7017 = vrot.lane.b32.xlu0 %v6150, 56
      %v7018 = vpop.permute.xlu0 %7017
      %7019 = vrot.lane.b32.xlu0 %v6151, 56
      %v7020 = vpop.permute.xlu0 %7019
      %7021 = vrot.lane.b32.xlu0 %v6152, 56
      %v7022 = vpop.permute.xlu0 %7021
      %7023 = vrot.lane.b32.xlu0 %v6153, 56
      %v7024 = vpop.permute.xlu0 %7023
      %7025 = vrot.lane.b32.xlu0 %v6154, 56
      %v7026 = vpop.permute.xlu0 %7025
      %7027 = vrot.lane.b32.xlu0 %v6155, 56
      %v7028 = vpop.permute.xlu0 %7027
      %7029 = vrot.lane.b32.xlu0 %v6156, 56
      %v7030 = vpop.permute.xlu0 %7029
      %7031 = vrot.lane.b32.xlu0 %v6157, 56
      %v7032 = vpop.permute.xlu0 %7031
      %7033 = vrot.lane.b32.xlu0 %v6158, 56
      %v7034 = vpop.permute.xlu0 %7033
      %7035 = vrot.lane.b32.xlu0 %v6159, 56
      %v7036 = vpop.permute.xlu0 %7035
      %7037 = vrot.lane.b32.xlu0 %v6160, 56
      %v7038 = vpop.permute.xlu0 %7037
      %7039 = vrot.lane.b32.xlu0 %v6161, 56
      %v7040 = vpop.permute.xlu0 %7039
      %7041 = vrot.lane.b32.xlu0 %v6162, 56
      %v7042 = vpop.permute.xlu0 %7041
      %7043 = vrot.lane.b32.xlu0 %v6163, 56
      %v7044 = vpop.permute.xlu0 %7043
      %7045 = vrot.lane.b32.xlu0 %v6164, 56
      %v7046 = vpop.permute.xlu0 %7045
      %7047 = vrot.lane.b32.xlu0 %v6165, 56
      %v7048 = vpop.permute.xlu0 %7047
      %7049 = vrot.lane.b32.xlu0 %v6166, 56
      %v7050 = vpop.permute.xlu0 %7049
      %7051 = vrot.lane.b32.xlu0 %v6167, 56
      %v7052 = vpop.permute.xlu0 %7051
      %7053 = vrot.lane.b32.xlu0 %v6168, 56
      %v7054 = vpop.permute.xlu0 %7053
      %7055 = vrot.lane.b32.xlu0 %v6169, 56
      %v7056 = vpop.permute.xlu0 %7055
      %7057 = vrot.lane.b32.xlu0 %v6170, 56
      %v7058 = vpop.permute.xlu0 %7057
      %7059 = vrot.lane.b32.xlu0 %v6171, 56
      %v7060 = vpop.permute.xlu0 %7059
      %7061 = vrot.lane.b32.xlu0 %v6172, 56
      %v7062 = vpop.permute.xlu0 %7061
      %7063 = vrot.lane.b32.xlu0 %v6173, 56
      %v7064 = vpop.permute.xlu0 %7063
      %7065 = vrot.lane.b32.xlu0 %v6174, 56
      %v7066 = vpop.permute.xlu0 %7065
      %7067 = vrot.lane.b32.xlu0 %v6175, 56
      %v7068 = vpop.permute.xlu0 %7067
      %7069 = vrot.lane.b32.xlu0 %v6176, 56
      %v7070 = vpop.permute.xlu0 %7069
      %7071 = vrot.lane.b32.xlu0 %v6177, 56
      %v7072 = vpop.permute.xlu0 %7071
      %7073 = vrot.lane.b32.xlu0 %v6178, 56
      %v7074 = vpop.permute.xlu0 %7073
      %7139 = vrot.lane.b32.xlu0 %v6179, 64
      %v7140 = vpop.permute.xlu0 %7139
      %7141 = vrot.lane.b32.xlu0 %v6180, 64
      %v7142 = vpop.permute.xlu0 %7141
      %7143 = vrot.lane.b32.xlu0 %v6181, 64
      %v7144 = vpop.permute.xlu0 %7143
      %7145 = vrot.lane.b32.xlu0 %v6182, 64
      %v7146 = vpop.permute.xlu0 %7145
      %7147 = vrot.lane.b32.xlu0 %v6183, 64
      %v7148 = vpop.permute.xlu0 %7147
      %7149 = vrot.lane.b32.xlu0 %v6184, 64
      %v7150 = vpop.permute.xlu0 %7149
      %7151 = vrot.lane.b32.xlu0 %v6185, 64
      %v7152 = vpop.permute.xlu0 %7151
      %7153 = vrot.lane.b32.xlu0 %v6186, 64
      %v7154 = vpop.permute.xlu0 %7153
      %7155 = vrot.lane.b32.xlu0 %v6187, 64
      %v7156 = vpop.permute.xlu0 %7155
      %7157 = vrot.lane.b32.xlu0 %v6188, 64
      %v7158 = vpop.permute.xlu0 %7157
      %7159 = vrot.lane.b32.xlu0 %v6189, 64
      %v7160 = vpop.permute.xlu0 %7159
      %7161 = vrot.lane.b32.xlu0 %v6190, 64
      %v7162 = vpop.permute.xlu0 %7161
      %7163 = vrot.lane.b32.xlu0 %v6191, 64
      %v7164 = vpop.permute.xlu0 %7163
      %7165 = vrot.lane.b32.xlu0 %v6192, 64
      %v7166 = vpop.permute.xlu0 %7165
      %7167 = vrot.lane.b32.xlu0 %v6193, 64
      %v7168 = vpop.permute.xlu0 %7167
      %7169 = vrot.lane.b32.xlu0 %v6194, 64
      %v7170 = vpop.permute.xlu0 %7169
      %7171 = vrot.lane.b32.xlu0 %v6195, 64
      %v7172 = vpop.permute.xlu0 %7171
      %7173 = vrot.lane.b32.xlu0 %v6196, 64
      %v7174 = vpop.permute.xlu0 %7173
      %7175 = vrot.lane.b32.xlu0 %v6197, 64
      %v7176 = vpop.permute.xlu0 %7175
      %7177 = vrot.lane.b32.xlu0 %v6198, 64
      %v7178 = vpop.permute.xlu0 %7177
      %7179 = vrot.lane.b32.xlu0 %v6199, 64
      %v7180 = vpop.permute.xlu0 %7179
      %7181 = vrot.lane.b32.xlu0 %v6200, 64
      %v7182 = vpop.permute.xlu0 %7181
      %7183 = vrot.lane.b32.xlu0 %v6201, 64
      %v7184 = vpop.permute.xlu0 %7183
      %7185 = vrot.lane.b32.xlu0 %v6202, 64
      %v7186 = vpop.permute.xlu0 %7185
      %7187 = vrot.lane.b32.xlu0 %v6203, 64
      %v7188 = vpop.permute.xlu0 %7187
      %7189 = vrot.lane.b32.xlu0 %v6204, 64
      %v7190 = vpop.permute.xlu0 %7189
      %7191 = vrot.lane.b32.xlu0 %v6205, 64
      %v7192 = vpop.permute.xlu0 %7191
      %7193 = vrot.lane.b32.xlu0 %v6206, 64
      %v7194 = vpop.permute.xlu0 %7193
      %7195 = vrot.lane.b32.xlu0 %v6207, 64
      %v7196 = vpop.permute.xlu0 %7195
      %7197 = vrot.lane.b32.xlu0 %v6208, 64
      %v7198 = vpop.permute.xlu0 %7197
      %7199 = vrot.lane.b32.xlu0 %v6209, 64
      %v7200 = vpop.permute.xlu0 %7199
      %7201 = vrot.lane.b32.xlu0 %v6210, 64
      %v7202 = vpop.permute.xlu0 %7201
      %v7235 = vsel %vm506, %v5922, %v6244
      %v7236 = vsel %vm506, %v5923, %v6246
      %v7237 = vsel %vm506, %v5924, %v6248
      %v7238 = vsel %vm506, %v5925, %v6250
      %v7239 = vsel %vm506, %v5926, %v6252
      %v7240 = vsel %vm506, %v5927, %v6254
      %v7241 = vsel %vm506, %v5928, %v6256
      %v7242 = vsel %vm506, %v5929, %v6258
      %v7243 = vsel %vm506, %v5930, %v6260
      %v7244 = vsel %vm506, %v5931, %v6262
      %v7245 = vsel %vm506, %v5932, %v6264
      %v7246 = vsel %vm506, %v5933, %v6266
      %v7247 = vsel %vm506, %v5934, %v6268
      %v7248 = vsel %vm506, %v5935, %v6270
      %v7249 = vsel %vm506, %v5936, %v6272
      %v7250 = vsel %vm506, %v5937, %v6274
      %v7251 = vsel %vm506, %v5938, %v6276
      %v7252 = vsel %vm506, %v5939, %v6278
      %v7253 = vsel %vm506, %v5940, %v6280
      %v7254 = vsel %vm506, %v5941, %v6282
      %v7255 = vsel %vm506, %v5942, %v6284
      %v7256 = vsel %vm506, %v5943, %v6286
      %v7257 = vsel %vm506, %v5944, %v6288
      %v7258 = vsel %vm506, %v5945, %v6290
      %v7259 = vsel %vm506, %v5946, %v6292
      %v7260 = vsel %vm506, %v5947, %v6294
      %v7261 = vsel %vm506, %v5948, %v6296
      %v7262 = vsel %vm506, %v5949, %v6298
      %v7263 = vsel %vm506, %v5950, %v6300
      %v7264 = vsel %vm506, %v5951, %v6302
      %v7265 = vsel %vm506, %v5952, %v6304
      %v7266 = vsel %vm506, %v5953, %v6306
      %v7267 = vsel %vm2095, %v7235, %v6372
      %v7268 = vsel %vm2095, %v7236, %v6374
      %v7269 = vsel %vm2095, %v7237, %v6376
      %v7270 = vsel %vm2095, %v7238, %v6378
      %v7271 = vsel %vm2095, %v7239, %v6380
      %v7272 = vsel %vm2095, %v7240, %v6382
      %v7273 = vsel %vm2095, %v7241, %v6384
      %v7274 = vsel %vm2095, %v7242, %v6386
      %v7275 = vsel %vm2095, %v7243, %v6388
      %v7276 = vsel %vm2095, %v7244, %v6390
      %v7277 = vsel %vm2095, %v7245, %v6392
      %v7278 = vsel %vm2095, %v7246, %v6394
      %v7279 = vsel %vm2095, %v7247, %v6396
      %v7280 = vsel %vm2095, %v7248, %v6398
      %v7281 = vsel %vm2095, %v7249, %v6400
      %v7282 = vsel %vm2095, %v7250, %v6402
      %v7283 = vsel %vm2095, %v7251, %v6404
      %v7284 = vsel %vm2095, %v7252, %v6406
      %v7285 = vsel %vm2095, %v7253, %v6408
      %v7286 = vsel %vm2095, %v7254, %v6410
      %v7287 = vsel %vm2095, %v7255, %v6412
      %v7288 = vsel %vm2095, %v7256, %v6414
      %v7289 = vsel %vm2095, %v7257, %v6416
      %v7290 = vsel %vm2095, %v7258, %v6418
      %v7291 = vsel %vm2095, %v7259, %v6420
      %v7292 = vsel %vm2095, %v7260, %v6422
      %v7293 = vsel %vm2095, %v7261, %v6424
      %v7294 = vsel %vm2095, %v7262, %v6426
      %v7295 = vsel %vm2095, %v7263, %v6428
      %v7296 = vsel %vm2095, %v7264, %v6430
      %v7297 = vsel %vm2095, %v7265, %v6432
      %v7298 = vsel %vm2095, %v7266, %v6434
      %v7299 = vsel %vm2161, %v7267, %v6500
      %v7300 = vsel %vm2161, %v7268, %v6502
      %v7301 = vsel %vm2161, %v7269, %v6504
      %v7302 = vsel %vm2161, %v7270, %v6506
      %v7303 = vsel %vm2161, %v7271, %v6508
      %v7304 = vsel %vm2161, %v7272, %v6510
      %v7305 = vsel %vm2161, %v7273, %v6512
      %v7306 = vsel %vm2161, %v7274, %v6514
      %v7307 = vsel %vm2161, %v7275, %v6516
      %v7308 = vsel %vm2161, %v7276, %v6518
      %v7309 = vsel %vm2161, %v7277, %v6520
      %v7310 = vsel %vm2161, %v7278, %v6522
      %v7311 = vsel %vm2161, %v7279, %v6524
      %v7312 = vsel %vm2161, %v7280, %v6526
      %v7313 = vsel %vm2161, %v7281, %v6528
      %v7314 = vsel %vm2161, %v7282, %v6530
      %v7315 = vsel %vm2161, %v7283, %v6532
      %v7316 = vsel %vm2161, %v7284, %v6534
      %v7317 = vsel %vm2161, %v7285, %v6536
      %v7318 = vsel %vm2161, %v7286, %v6538
      %v7319 = vsel %vm2161, %v7287, %v6540
      %v7320 = vsel %vm2161, %v7288, %v6542
      %v7321 = vsel %vm2161, %v7289, %v6544
      %v7322 = vsel %vm2161, %v7290, %v6546
      %v7323 = vsel %vm2161, %v7291, %v6548
      %v7324 = vsel %vm2161, %v7292, %v6550
      %v7325 = vsel %vm2161, %v7293, %v6552
      %v7326 = vsel %vm2161, %v7294, %v6554
      %v7327 = vsel %vm2161, %v7295, %v6556
      %v7328 = vsel %vm2161, %v7296, %v6558
      %v7329 = vsel %vm2161, %v7297, %v6560
      %v7330 = vsel %vm2161, %v7298, %v6562
      %v7331 = vsel %vm579, %v7299, %v6628
      %v7332 = vsel %vm579, %v7300, %v6630
      %v7333 = vsel %vm579, %v7301, %v6632
      %v7334 = vsel %vm579, %v7302, %v6634
      %v7335 = vsel %vm579, %v7303, %v6636
      %v7336 = vsel %vm579, %v7304, %v6638
      %v7337 = vsel %vm579, %v7305, %v6640
      %v7338 = vsel %vm579, %v7306, %v6642
      %v7339 = vsel %vm579, %v7307, %v6644
      %v7340 = vsel %vm579, %v7308, %v6646
      %v7341 = vsel %vm579, %v7309, %v6648
      %v7342 = vsel %vm579, %v7310, %v6650
      %v7343 = vsel %vm579, %v7311, %v6652
      %v7344 = vsel %vm579, %v7312, %v6654
      %v7345 = vsel %vm579, %v7313, %v6656
      %v7346 = vsel %vm579, %v7314, %v6658
      %v7347 = vsel %vm579, %v7315, %v6660
      %v7348 = vsel %vm579, %v7316, %v6662
      %v7349 = vsel %vm579, %v7317, %v6664
      %v7350 = vsel %vm579, %v7318, %v6666
      %v7351 = vsel %vm579, %v7319, %v6668
      %v7352 = vsel %vm579, %v7320, %v6670
      %v7353 = vsel %vm579, %v7321, %v6672
      %v7354 = vsel %vm579, %v7322, %v6674
      %v7355 = vsel %vm579, %v7323, %v6676
      %v7356 = vsel %vm579, %v7324, %v6678
      %v7357 = vsel %vm579, %v7325, %v6680
      %v7358 = vsel %vm579, %v7326, %v6682
      %v7359 = vsel %vm579, %v7327, %v6684
      %v7360 = vsel %vm579, %v7328, %v6686
      %v7361 = vsel %vm579, %v7329, %v6688
      %v7362 = vsel %vm579, %v7330, %v6690
      %vm7363 = vcmask 326656
      %v7364 = vsel %vm7363, %v7331, %v6756
      %v7365 = vsel %vm7363, %v7332, %v6758
      %v7366 = vsel %vm7363, %v7333, %v6760
      %v7367 = vsel %vm7363, %v7334, %v6762
      %v7368 = vsel %vm7363, %v7335, %v6764
      %v7369 = vsel %vm7363, %v7336, %v6766
      %v7370 = vsel %vm7363, %v7337, %v6768
      %v7371 = vsel %vm7363, %v7338, %v6770
      %v7372 = vsel %vm7363, %v7339, %v6772
      %v7373 = vsel %vm7363, %v7340, %v6774
      %v7374 = vsel %vm7363, %v7341, %v6776
      %v7375 = vsel %vm7363, %v7342, %v6778
      %v7376 = vsel %vm7363, %v7343, %v6780
      %v7377 = vsel %vm7363, %v7344, %v6782
      %v7378 = vsel %vm7363, %v7345, %v6784
      %v7379 = vsel %vm7363, %v7346, %v6786
      %v7380 = vsel %vm7363, %v7347, %v6788
      %v7381 = vsel %vm7363, %v7348, %v6790
      %v7382 = vsel %vm7363, %v7349, %v6792
      %v7383 = vsel %vm7363, %v7350, %v6794
      %v7384 = vsel %vm7363, %v7351, %v6796
      %v7385 = vsel %vm7363, %v7352, %v6798
      %v7386 = vsel %vm7363, %v7353, %v6800
      %v7387 = vsel %vm7363, %v7354, %v6802
      %v7388 = vsel %vm7363, %v7355, %v6804
      %v7389 = vsel %vm7363, %v7356, %v6806
      %v7390 = vsel %vm7363, %v7357, %v6808
      %v7391 = vsel %vm7363, %v7358, %v6810
      %v7392 = vsel %vm7363, %v7359, %v6812
      %v7393 = vsel %vm7363, %v7360, %v6814
      %v7394 = vsel %vm7363, %v7361, %v6816
      %v7395 = vsel %vm7363, %v7362, %v6818
      %vm7396 = vcmask 392192
      %v7397 = vsel %vm7396, %v7364, %v6884
      %v7398 = vsel %vm7396, %v7365, %v6886
      %v7399 = vsel %vm7396, %v7366, %v6888
      %v7400 = vsel %vm7396, %v7367, %v6890
      %v7401 = vsel %vm7396, %v7368, %v6892
      %v7402 = vsel %vm7396, %v7369, %v6894
      %v7403 = vsel %vm7396, %v7370, %v6896
      %v7404 = vsel %vm7396, %v7371, %v6898
      %v7405 = vsel %vm7396, %v7372, %v6900
      %v7406 = vsel %vm7396, %v7373, %v6902
      %v7407 = vsel %vm7396, %v7374, %v6904
      %v7408 = vsel %vm7396, %v7375, %v6906
      %v7409 = vsel %vm7396, %v7376, %v6908
      %v7410 = vsel %vm7396, %v7377, %v6910
      %v7411 = vsel %vm7396, %v7378, %v6912
      %v7412 = vsel %vm7396, %v7379, %v6914
      %v7413 = vsel %vm7396, %v7380, %v6916
      %v7414 = vsel %vm7396, %v7381, %v6918
      %v7415 = vsel %vm7396, %v7382, %v6920
      %v7416 = vsel %vm7396, %v7383, %v6922
      %v7417 = vsel %vm7396, %v7384, %v6924
      %v7418 = vsel %vm7396, %v7385, %v6926
      %v7419 = vsel %vm7396, %v7386, %v6928
      %v7420 = vsel %vm7396, %v7387, %v6930
      %v7421 = vsel %vm7396, %v7388, %v6932
      %v7422 = vsel %vm7396, %v7389, %v6934
      %v7423 = vsel %vm7396, %v7390, %v6936
      %v7424 = vsel %vm7396, %v7391, %v6938
      %v7425 = vsel %vm7396, %v7392, %v6940
      %v7426 = vsel %vm7396, %v7393, %v6942
      %v7427 = vsel %vm7396, %v7394, %v6944
      %v7428 = vsel %vm7396, %v7395, %v6946
      %vm7429 = vcmask 457728
      %v7430 = vsel %vm7429, %v7397, %v7012
      %v7431 = vsel %vm7429, %v7398, %v7014
      %v7432 = vsel %vm7429, %v7399, %v7016
      %v7433 = vsel %vm7429, %v7400, %v7018
      %v7434 = vsel %vm7429, %v7401, %v7020
      %v7435 = vsel %vm7429, %v7402, %v7022
      %v7436 = vsel %vm7429, %v7403, %v7024
      %v7437 = vsel %vm7429, %v7404, %v7026
      %v7438 = vsel %vm7429, %v7405, %v7028
      %v7439 = vsel %vm7429, %v7406, %v7030
      %v7440 = vsel %vm7429, %v7407, %v7032
      %v7441 = vsel %vm7429, %v7408, %v7034
      %v7442 = vsel %vm7429, %v7409, %v7036
      %v7443 = vsel %vm7429, %v7410, %v7038
      %v7444 = vsel %vm7429, %v7411, %v7040
      %v7445 = vsel %vm7429, %v7412, %v7042
      %v7446 = vsel %vm7429, %v7413, %v7044
      %v7447 = vsel %vm7429, %v7414, %v7046
      %v7448 = vsel %vm7429, %v7415, %v7048
      %v7449 = vsel %vm7429, %v7416, %v7050
      %v7450 = vsel %vm7429, %v7417, %v7052
      %v7451 = vsel %vm7429, %v7418, %v7054
      %v7452 = vsel %vm7429, %v7419, %v7056
      %v7453 = vsel %vm7429, %v7420, %v7058
      %v7454 = vsel %vm7429, %v7421, %v7060
      %v7455 = vsel %vm7429, %v7422, %v7062
      %v7456 = vsel %vm7429, %v7423, %v7064
      %v7457 = vsel %vm7429, %v7424, %v7066
      %v7458 = vsel %vm7429, %v7425, %v7068
      %v7459 = vsel %vm7429, %v7426, %v7070
      %v7460 = vsel %vm7429, %v7427, %v7072
      %v7461 = vsel %vm7429, %v7428, %v7074
      %v7462 = vsel %vm3595, %v7430, %v7140
      %v7463 = vsel %vm3595, %v7431, %v7142
      %v7464 = vsel %vm3595, %v7432, %v7144
      %v7465 = vsel %vm3595, %v7433, %v7146
      %v7466 = vsel %vm3595, %v7434, %v7148
      %v7467 = vsel %vm3595, %v7435, %v7150
      %v7468 = vsel %vm3595, %v7436, %v7152
      %v7469 = vsel %vm3595, %v7437, %v7154
      %v7470 = vsel %vm3595, %v7438, %v7156
      %v7471 = vsel %vm3595, %v7439, %v7158
      %v7472 = vsel %vm3595, %v7440, %v7160
      %v7473 = vsel %vm3595, %v7441, %v7162
      %v7474 = vsel %vm3595, %v7442, %v7164
      %v7475 = vsel %vm3595, %v7443, %v7166
      %v7476 = vsel %vm3595, %v7444, %v7168
      %v7477 = vsel %vm3595, %v7445, %v7170
      %v7478 = vsel %vm3595, %v7446, %v7172
      %v7479 = vsel %vm3595, %v7447, %v7174
      %v7480 = vsel %vm3595, %v7448, %v7176
      %v7481 = vsel %vm3595, %v7449, %v7178
      %v7482 = vsel %vm3595, %v7450, %v7180
      %v7483 = vsel %vm3595, %v7451, %v7182
      %v7484 = vsel %vm3595, %v7452, %v7184
      %v7485 = vsel %vm3595, %v7453, %v7186
      %v7486 = vsel %vm3595, %v7454, %v7188
      %v7487 = vsel %vm3595, %v7455, %v7190
      %v7488 = vsel %vm3595, %v7456, %v7192
      %v7489 = vsel %vm3595, %v7457, %v7194
      %v7490 = vsel %vm3595, %v7458, %v7196
      %v7491 = vsel %vm3595, %v7459, %v7198
      %v7492 = vsel %vm3595, %v7460, %v7200
      %v7493 = vsel %vm3595, %v7461, %v7202
      %v7494 = vpack.c.bf16 %v7463, %v7462
      %v7495 = vpack.c.bf16 %v7465, %v7464
      %v7496 = vpack.c.bf16 %v7467, %v7466
      %v7497 = vpack.c.bf16 %v7469, %v7468
      %v7498 = vpack.c.bf16 %v7471, %v7470
      %v7499 = vpack.c.bf16 %v7473, %v7472
      %v7500 = vpack.c.bf16 %v7475, %v7474
      %v7501 = vpack.c.bf16 %v7477, %v7476
      %v7502 = vpack.c.bf16 %v7479, %v7478
      %v7503 = vpack.c.bf16 %v7481, %v7480
      %v7504 = vpack.c.bf16 %v7483, %v7482
      %v7505 = vpack.c.bf16 %v7485, %v7484
      %v7506 = vpack.c.bf16 %v7487, %v7486
      %v7507 = vpack.c.bf16 %v7489, %v7488
      %v7508 = vpack.c.bf16 %v7491, %v7490
      %v7509 = vpack.c.bf16 %v7493, %v7492
      %v7510 = vld [vmem:[%s6] sm:$0xf]
      %v7511 = vld [vmem:[%s6 + $0x4] sm:$0xf]
      %v7512 = vld [vmem:[%s6 + $0x8] sm:$0xf]
      %v7513 = vld [vmem:[%s6 + $0xc] sm:$0xf]
      %v7514 = vld [vmem:[%s6 + $0x10] sm:$0xf]
      %v7515 = vld [vmem:[%s6 + $0x14] sm:$0xf]
      %v7516 = vld [vmem:[%s6 + $0x18] sm:$0xf]
      %v7517 = vld [vmem:[%s6 + $0x1c] sm:$0xf]
      %v7518 = vld [vmem:[%s6 + $0x20] sm:$0xf]
      %v7528 = vunpack.c.l.b16 %v7510
      %v7529 = vunpack.c.l.b16 %v7511
      %v7530 = vunpack.c.l.b16 %v7512
      %v7531 = vunpack.c.l.b16 %v7513
      %v7532 = vunpack.c.l.b16 %v7514
      %v7533 = vunpack.c.l.b16 %v7515
      %v7534 = vunpack.c.l.b16 %v7516
      %v7535 = vunpack.c.l.b16 %v7517
      %v7536 = vunpack.c.l.b16 %v7518
      %v7537 = vpack.c.b16 %v7529, %v7528
      %v7538 = vpack.c.b16 %v7531, %v7530
      %v7539 = vpack.c.b16 %v7533, %v7532
      %v7540 = vpack.c.b16 %v7535, %v7534
      %v7541 = vpack.c.b16 %v7536, %v7536
      %vm7546 = vcmask 588800
      %v7548 = vsel %vm7546, %v7494, 0
      %v7551 = vsel %vm7546, %v7495, 0
      %v7554 = vsel %vm7546, %v7496, 0
      %v7557 = vsel %vm7546, %v7497, 0
      %v7560 = vsel %vm7546, %v7498, 0
      %v7563 = vsel %vm7546, %v7499, 0
      %v7566 = vsel %vm7546, %v7500, 0
      %v7569 = vsel %vm7546, %v7501, 0
      %v7572 = vsel %vm7546, %v7502, 0
      %v7575 = vsel %vm7546, %v7503, 0
      %v7578 = vsel %vm7546, %v7504, 0
      %v7581 = vsel %vm7546, %v7505, 0
      %v7584 = vsel %vm7546, %v7506, 0
      %v7587 = vsel %vm7546, %v7507, 0
      %v7590 = vsel %vm7546, %v7508, 0
      %v7593 = vsel %vm7546, %v7509, 0
      %vm7595 = vcmask 1043456
      %v7597 = vsel %vm7595, %v7541, 0
      %7599 = vmatpush.bf16.msra.mxu0 0
      %7600 = vmatpush.bf16.msra.mxu0 0
      %7601 = vmatpush.bf16.msra.mxu0 0
      %7602 = vmatpush.bf16.msra.mxu0 %v7597
      %7603 = vmatpush.bf16.msra.mxu0 %v7540
      %7604 = vmatpush.bf16.msra.mxu0 %v7539
      %7605 = vmatpush.bf16.msra.mxu0 %v7538
      %7606 = vmatpush.bf16.msra.mxu0 %v7537
      %7607 = vmatmul.bf16.gmra.mxu0 %v7548
      %v7608 = vpop.f32.mrf.mxu0
      %v7609 = vadd.f32 0.0, %v7608
      %v7610 = vpop.f32.mrf.mxu0
      %v7611 = vadd.f32 0.0, %v7610
      %7612 = vmatmul.bf16.gmra.mxu0 %v7551
      %v7613 = vpop.f32.mrf.mxu0
      %v7614 = vadd.f32 0.0, %v7613
      %v7615 = vpop.f32.mrf.mxu0
      %v7616 = vadd.f32 0.0, %v7615
      %7617 = vmatmul.bf16.gmra.mxu0 %v7554
      %v7618 = vpop.f32.mrf.mxu0
      %v7619 = vadd.f32 0.0, %v7618
      %v7620 = vpop.f32.mrf.mxu0
      %v7621 = vadd.f32 0.0, %v7620
      %7622 = vmatmul.bf16.gmra.mxu0 %v7557
      %v7623 = vpop.f32.mrf.mxu0
      %v7624 = vadd.f32 0.0, %v7623
      %v7625 = vpop.f32.mrf.mxu0
      %v7626 = vadd.f32 0.0, %v7625
      %7627 = vmatmul.bf16.gmra.mxu0 %v7560
      %v7628 = vpop.f32.mrf.mxu0
      %v7629 = vadd.f32 0.0, %v7628
      %v7630 = vpop.f32.mrf.mxu0
      %v7631 = vadd.f32 0.0, %v7630
      %7632 = vmatmul.bf16.gmra.mxu0 %v7563
      %v7633 = vpop.f32.mrf.mxu0
      %v7634 = vadd.f32 0.0, %v7633
      %v7635 = vpop.f32.mrf.mxu0
      %v7636 = vadd.f32 0.0, %v7635
      %7637 = vmatmul.bf16.gmra.mxu0 %v7566
      %v7638 = vpop.f32.mrf.mxu0
      %v7639 = vadd.f32 0.0, %v7638
      %v7640 = vpop.f32.mrf.mxu0
      %v7641 = vadd.f32 0.0, %v7640
      %7642 = vmatmul.bf16.gmra.mxu0 %v7569
      %v7643 = vpop.f32.mrf.mxu0
      %v7644 = vadd.f32 0.0, %v7643
      %v7645 = vpop.f32.mrf.mxu0
      %v7646 = vadd.f32 0.0, %v7645
      %7647 = vmatmul.bf16.gmra.mxu0 %v7572
      %v7648 = vpop.f32.mrf.mxu0
      %v7649 = vadd.f32 0.0, %v7648
      %v7650 = vpop.f32.mrf.mxu0
      %v7651 = vadd.f32 0.0, %v7650
      %7652 = vmatmul.bf16.gmra.mxu0 %v7575
      %v7653 = vpop.f32.mrf.mxu0
      %v7654 = vadd.f32 0.0, %v7653
      %v7655 = vpop.f32.mrf.mxu0
      %v7656 = vadd.f32 0.0, %v7655
      %7657 = vmatmul.bf16.gmra.mxu0 %v7578
      %v7658 = vpop.f32.mrf.mxu0
      %v7659 = vadd.f32 0.0, %v7658
      %v7660 = vpop.f32.mrf.mxu0
      %v7661 = vadd.f32 0.0, %v7660
      %7662 = vmatmul.bf16.gmra.mxu0 %v7581
      %v7663 = vpop.f32.mrf.mxu0
      %v7664 = vadd.f32 0.0, %v7663
      %v7665 = vpop.f32.mrf.mxu0
      %v7666 = vadd.f32 0.0, %v7665
      %7667 = vmatmul.bf16.gmra.mxu0 %v7584
      %v7668 = vpop.f32.mrf.mxu0
      %v7669 = vadd.f32 0.0, %v7668
      %v7670 = vpop.f32.mrf.mxu0
      %v7671 = vadd.f32 0.0, %v7670
      %7672 = vmatmul.bf16.gmra.mxu0 %v7587
      %v7673 = vpop.f32.mrf.mxu0
      %v7674 = vadd.f32 0.0, %v7673
      %v7675 = vpop.f32.mrf.mxu0
      %v7676 = vadd.f32 0.0, %v7675
      %7677 = vmatmul.bf16.gmra.mxu0 %v7590
      %v7678 = vpop.f32.mrf.mxu0
      %v7679 = vadd.f32 0.0, %v7678
      %v7680 = vpop.f32.mrf.mxu0
      %v7681 = vadd.f32 0.0, %v7680
      %7682 = vmatmul.bf16.gmra.mxu0 %v7593
      %v7683 = vpop.f32.mrf.mxu0
      %v7684 = vadd.f32 0.0, %v7683
      %v7685 = vpop.f32.mrf.mxu0
      %v7686 = vadd.f32 0.0, %v7685
      %7687 = vdwg.mxu0
      %v7693 = vunpack.c.l.b16 %v5917
      %v7694 = vunpack.c.l.b16 %v5918
      %v7695 = vunpack.c.l.b16 %v5919
      %v7696 = vunpack.c.l.b16 %v5920
      %v7697 = vunpack.c.l.b16 %v5921
      %v7698 = vpack.c.b16 %v7694, %v7693
      %v7699 = vpack.c.b16 %v7696, %v7695
      %v7700 = vpack.c.b16 %v7697, %v7697
      %v7704 = vsel %vm2299, %v5901, 0
      %v7707 = vsel %vm2299, %v5902, 0
      %v7710 = vsel %vm2299, %v5903, 0
      %v7713 = vsel %vm2299, %v5904, 0
      %v7716 = vsel %vm2299, %v5905, 0
      %v7719 = vsel %vm2299, %v5906, 0
      %v7722 = vsel %vm2299, %v5907, 0
      %v7725 = vsel %vm2299, %v5908, 0
      %v7728 = vsel %vm2299, %v5909, 0
      %v7731 = vsel %vm2299, %v5910, 0
      %v7734 = vsel %vm2299, %v5911, 0
      %v7737 = vsel %vm2299, %v5912, 0
      %v7740 = vsel %vm2299, %v5913, 0
      %v7743 = vsel %vm2299, %v5914, 0
      %v7746 = vsel %vm2299, %v5915, 0
      %v7749 = vsel %vm2299, %v5916, 0
      %v7752 = vsel %vm2348, %v7700, 0
      %7754 = vmatpush.bf16.msra.mxu0 0
      %7755 = vmatpush.bf16.msra.mxu0 0
      %7756 = vmatpush.bf16.msra.mxu0 0
      %7757 = vmatpush.bf16.msra.mxu0 0
      %7758 = vmatpush.bf16.msra.mxu0 0
      %7759 = vmatpush.bf16.msra.mxu0 %v7752
      %7760 = vmatpush.bf16.msra.mxu0 %v7699
      %7761 = vmatpush.bf16.msra.mxu0 %v7698
      %7762 = vmatmul.bf16.gmra.mxu0 %v7704
      %v7763 = vpop.f32.mrf.mxu0
      %v7764 = vadd.f32 %v7609, %v7763
      %v7765 = vpop.f32.mrf.mxu0
      %v7766 = vadd.f32 %v7611, %v7765
      %7767 = vmatmul.bf16.gmra.mxu0 %v7707
      %v7768 = vpop.f32.mrf.mxu0
      %v7769 = vadd.f32 %v7614, %v7768
      %v7770 = vpop.f32.mrf.mxu0
      %v7771 = vadd.f32 %v7616, %v7770
      %7772 = vmatmul.bf16.gmra.mxu0 %v7710
      %v7773 = vpop.f32.mrf.mxu0
      %v7774 = vadd.f32 %v7619, %v7773
      %v7775 = vpop.f32.mrf.mxu0
      %v7776 = vadd.f32 %v7621, %v7775
      %7777 = vmatmul.bf16.gmra.mxu0 %v7713
      %v7778 = vpop.f32.mrf.mxu0
      %v7779 = vadd.f32 %v7624, %v7778
      %v7780 = vpop.f32.mrf.mxu0
      %v7781 = vadd.f32 %v7626, %v7780
      %7782 = vmatmul.bf16.gmra.mxu0 %v7716
      %v7783 = vpop.f32.mrf.mxu0
      %v7784 = vadd.f32 %v7629, %v7783
      %v7785 = vpop.f32.mrf.mxu0
      %v7786 = vadd.f32 %v7631, %v7785
      %7787 = vmatmul.bf16.gmra.mxu0 %v7719
      %v7788 = vpop.f32.mrf.mxu0
      %v7789 = vadd.f32 %v7634, %v7788
      %v7790 = vpop.f32.mrf.mxu0
      %v7791 = vadd.f32 %v7636, %v7790
      %7792 = vmatmul.bf16.gmra.mxu0 %v7722
      %v7793 = vpop.f32.mrf.mxu0
      %v7794 = vadd.f32 %v7639, %v7793
      %v7795 = vpop.f32.mrf.mxu0
      %v7796 = vadd.f32 %v7641, %v7795
      %7797 = vmatmul.bf16.gmra.mxu0 %v7725
      %v7798 = vpop.f32.mrf.mxu0
      %v7799 = vadd.f32 %v7644, %v7798
      %v7800 = vpop.f32.mrf.mxu0
      %v7801 = vadd.f32 %v7646, %v7800
      %7802 = vmatmul.bf16.gmra.mxu0 %v7728
      %v7803 = vpop.f32.mrf.mxu0
      %v7804 = vadd.f32 %v7649, %v7803
      %v7805 = vpop.f32.mrf.mxu0
      %v7806 = vadd.f32 %v7651, %v7805
      %7807 = vmatmul.bf16.gmra.mxu0 %v7731
      %v7808 = vpop.f32.mrf.mxu0
      %v7809 = vadd.f32 %v7654, %v7808
      %v7810 = vpop.f32.mrf.mxu0
      %v7811 = vadd.f32 %v7656, %v7810
      %7812 = vmatmul.bf16.gmra.mxu0 %v7734
      %v7813 = vpop.f32.mrf.mxu0
      %v7814 = vadd.f32 %v7659, %v7813
      %v7815 = vpop.f32.mrf.mxu0
      %v7816 = vadd.f32 %v7661, %v7815
      %7817 = vmatmul.bf16.gmra.mxu0 %v7737
      %v7818 = vpop.f32.mrf.mxu0
      %v7819 = vadd.f32 %v7664, %v7818
      %v7820 = vpop.f32.mrf.mxu0
      %v7821 = vadd.f32 %v7666, %v7820
      %7822 = vmatmul.bf16.gmra.mxu0 %v7740
      %v7823 = vpop.f32.mrf.mxu0
      %v7824 = vadd.f32 %v7669, %v7823
      %v7825 = vpop.f32.mrf.mxu0
      %v7826 = vadd.f32 %v7671, %v7825
      %7827 = vmatmul.bf16.gmra.mxu0 %v7743
      %v7828 = vpop.f32.mrf.mxu0
      %v7829 = vadd.f32 %v7674, %v7828
      %v7830 = vpop.f32.mrf.mxu0
      %v7831 = vadd.f32 %v7676, %v7830
      %7832 = vmatmul.bf16.gmra.mxu0 %v7746
      %v7833 = vpop.f32.mrf.mxu0
      %v7834 = vadd.f32 %v7679, %v7833
      %v7835 = vpop.f32.mrf.mxu0
      %v7836 = vadd.f32 %v7681, %v7835
      %7837 = vmatmul.bf16.gmra.mxu0 %v7749
      %v7838 = vpop.f32.mrf.mxu0
      %v7839 = vadd.f32 %v7684, %v7838
      %v7840 = vpop.f32.mrf.mxu0
      %v7841 = vadd.f32 %v7686, %v7840
      %7842 = vdwg.mxu0
      %v7843 = vld [vmem:[%s7] sm:$0x1]
      %v7845 = vperm.slane %v7843, 0
      %v7847 = vadd.f32 %v7764, %v7845
      %v7848 = vadd.f32 %v7766, %v7845
      %v7849 = vadd.f32 %v7769, %v7845
      %v7850 = vadd.f32 %v7771, %v7845
      %v7851 = vadd.f32 %v7774, %v7845
      %v7852 = vadd.f32 %v7776, %v7845
      %v7853 = vadd.f32 %v7779, %v7845
      %v7854 = vadd.f32 %v7781, %v7845
      %v7855 = vadd.f32 %v7784, %v7845
      %v7856 = vadd.f32 %v7786, %v7845
      %v7857 = vadd.f32 %v7789, %v7845
      %v7858 = vadd.f32 %v7791, %v7845
      %v7859 = vadd.f32 %v7794, %v7845
      %v7860 = vadd.f32 %v7796, %v7845
      %v7861 = vadd.f32 %v7799, %v7845
      %v7862 = vadd.f32 %v7801, %v7845
      %v7863 = vadd.f32 %v7804, %v7845
      %v7864 = vadd.f32 %v7806, %v7845
      %v7865 = vadd.f32 %v7809, %v7845
      %v7866 = vadd.f32 %v7811, %v7845
      %v7867 = vadd.f32 %v7814, %v7845
      %v7868 = vadd.f32 %v7816, %v7845
      %v7869 = vadd.f32 %v7819, %v7845
      %v7870 = vadd.f32 %v7821, %v7845
      %v7871 = vadd.f32 %v7824, %v7845
      %v7872 = vadd.f32 %v7826, %v7845
      %v7873 = vadd.f32 %v7829, %v7845
      %v7874 = vadd.f32 %v7831, %v7845
      %v7875 = vadd.f32 %v7834, %v7845
      %v7876 = vadd.f32 %v7836, %v7845
      %v7877 = vadd.f32 %v7839, %v7845
      %v7878 = vadd.f32 %v7841, %v7845
      %v7879 = vmax.f32 %v7847, 0.0
      %v7880 = vmax.f32 %v7848, 0.0
      %v7881 = vmax.f32 %v7849, 0.0
      %v7882 = vmax.f32 %v7850, 0.0
      %v7883 = vmax.f32 %v7851, 0.0
      %v7884 = vmax.f32 %v7852, 0.0
      %v7885 = vmax.f32 %v7853, 0.0
      %v7886 = vmax.f32 %v7854, 0.0
      %v7887 = vmax.f32 %v7855, 0.0
      %v7888 = vmax.f32 %v7856, 0.0
      %v7889 = vmax.f32 %v7857, 0.0
      %v7890 = vmax.f32 %v7858, 0.0
      %v7891 = vmax.f32 %v7859, 0.0
      %v7892 = vmax.f32 %v7860, 0.0
      %v7893 = vmax.f32 %v7861, 0.0
      %v7894 = vmax.f32 %v7862, 0.0
      %v7895 = vmax.f32 %v7863, 0.0
      %v7896 = vmax.f32 %v7864, 0.0
      %v7897 = vmax.f32 %v7865, 0.0
      %v7898 = vmax.f32 %v7866, 0.0
      %v7899 = vmax.f32 %v7867, 0.0
      %v7900 = vmax.f32 %v7868, 0.0
      %v7901 = vmax.f32 %v7869, 0.0
      %v7902 = vmax.f32 %v7870, 0.0
      %v7903 = vmax.f32 %v7871, 0.0
      %v7904 = vmax.f32 %v7872, 0.0
      %v7905 = vmax.f32 %v7873, 0.0
      %v7906 = vmax.f32 %v7874, 0.0
      %v7907 = vmax.f32 %v7875, 0.0
      %v7908 = vmax.f32 %v7876, 0.0
      %v7909 = vmax.f32 %v7877, 0.0
      %v7910 = vmax.f32 %v7878, 0.0
      %7911 = vst.msk [vmem:[%s2473 + $0x8] sm:$0xff] %vm579, %v7879
      %7912 = vst.msk [vmem:[%s2473 + $0x10] sm:$0xff] %vm579, %v7880
      %7913 = vst.msk [vmem:[%s2473 + $0x28] sm:$0xff] %vm579, %v7881
      %7914 = vst.msk [vmem:[%s2473 + $0x30] sm:$0xff] %vm579, %v7882
      %7915 = vst.msk [vmem:[%s2473 + $0x48] sm:$0xff] %vm579, %v7883
      %7916 = vst.msk [vmem:[%s2473 + $0x50] sm:$0xff] %vm579, %v7884
      %7917 = vst.msk [vmem:[%s2473 + $0x68] sm:$0xff] %vm579, %v7885
      %7918 = vst.msk [vmem:[%s2473 + $0x70] sm:$0xff] %vm579, %v7886
      %7919 = vst.msk [vmem:[%s2473 + $0x88] sm:$0xff] %vm579, %v7887
      %7920 = vst.msk [vmem:[%s2473 + $0x90] sm:$0xff] %vm579, %v7888
      %7921 = vst.msk [vmem:[%s2473 + $0xa8] sm:$0xff] %vm579, %v7889
      %7922 = vst.msk [vmem:[%s2473 + $0xb0] sm:$0xff] %vm579, %v7890
      %7923 = vst.msk [vmem:[%s2473 + $0xc8] sm:$0xff] %vm579, %v7891
      %7924 = vst.msk [vmem:[%s2473 + $0xd0] sm:$0xff] %vm579, %v7892
      %7925 = vst.msk [vmem:[%s2473 + $0xe8] sm:$0xff] %vm579, %v7893
      %7926 = vst.msk [vmem:[%s2473 + $0xf0] sm:$0xff] %vm579, %v7894
      %7927 = vst.msk [vmem:[%s2473 + $0x108] sm:$0xff] %vm579, %v7895
      %7928 = vst.msk [vmem:[%s2473 + $0x110] sm:$0xff] %vm579, %v7896
      %7929 = vst.msk [vmem:[%s2473 + $0x128] sm:$0xff] %vm579, %v7897
      %7930 = vst.msk [vmem:[%s2473 + $0x130] sm:$0xff] %vm579, %v7898
      %7931 = vst.msk [vmem:[%s2473 + $0x148] sm:$0xff] %vm579, %v7899
      %7932 = vst.msk [vmem:[%s2473 + $0x150] sm:$0xff] %vm579, %v7900
      %7933 = vst.msk [vmem:[%s2473 + $0x168] sm:$0xff] %vm579, %v7901
      %7934 = vst.msk [vmem:[%s2473 + $0x170] sm:$0xff] %vm579, %v7902
      %7935 = vst.msk [vmem:[%s2473 + $0x188] sm:$0xff] %vm579, %v7903
      %7936 = vst.msk [vmem:[%s2473 + $0x190] sm:$0xff] %vm579, %v7904
      %7937 = vst.msk [vmem:[%s2473 + $0x1a8] sm:$0xff] %vm579, %v7905
      %7938 = vst.msk [vmem:[%s2473 + $0x1b0] sm:$0xff] %vm579, %v7906
      %7939 = vst.msk [vmem:[%s2473 + $0x1c8] sm:$0xff] %vm579, %v7907
      %7940 = vst.msk [vmem:[%s2473 + $0x1d0] sm:$0xff] %vm579, %v7908
      %7941 = vst.msk [vmem:[%s2473 + $0x1e8] sm:$0xff] %vm579, %v7909
      %7942 = vst.msk [vmem:[%s2473 + $0x1f0] sm:$0xff] %vm579, %v7910
      %v7943 = vld [vmem:[#allocation4 + $0x7] sm:$0xff]
      %v7944 = vld [vmem:[#allocation4 + $0xf] sm:$0xff]
      %v7945 = vld [vmem:[#allocation4 + $0x27] sm:$0xff]
      %v7946 = vld [vmem:[#allocation4 + $0x2f] sm:$0xff]
      %v7947 = vld [vmem:[#allocation4 + $0x47] sm:$0xff]
      %v7948 = vld [vmem:[#allocation4 + $0x4f] sm:$0xff]
      %v7949 = vld [vmem:[#allocation4 + $0x67] sm:$0xff]
      %v7950 = vld [vmem:[#allocation4 + $0x6f] sm:$0xff]
      %v7951 = vld [vmem:[#allocation4 + $0x87] sm:$0xff]
      %v7952 = vld [vmem:[#allocation4 + $0x8f] sm:$0xff]
      %v7953 = vld [vmem:[#allocation4 + $0xa7] sm:$0xff]
      %v7954 = vld [vmem:[#allocation4 + $0xaf] sm:$0xff]
      %v7955 = vld [vmem:[#allocation4 + $0xc7] sm:$0xff]
      %v7956 = vld [vmem:[#allocation4 + $0xcf] sm:$0xff]
      %v7957 = vld [vmem:[#allocation4 + $0xe7] sm:$0xff]
      %v7958 = vld [vmem:[#allocation4 + $0xef] sm:$0xff]
      %v7959 = vld [vmem:[#allocation4 + $0x107] sm:$0xff]
      %v7960 = vld [vmem:[#allocation4 + $0x10f] sm:$0xff]
      %v7961 = vld [vmem:[#allocation4 + $0x127] sm:$0xff]
      %v7962 = vld [vmem:[#allocation4 + $0x12f] sm:$0xff]
      %v7963 = vld [vmem:[#allocation4 + $0x147] sm:$0xff]
      %v7964 = vld [vmem:[#allocation4 + $0x14f] sm:$0xff]
      %v7965 = vld [vmem:[#allocation4 + $0x167] sm:$0xff]
      %v7966 = vld [vmem:[#allocation4 + $0x16f] sm:$0xff]
      %v7967 = vld [vmem:[#allocation4 + $0x187] sm:$0xff]
      %v7968 = vld [vmem:[#allocation4 + $0x18f] sm:$0xff]
      %v7969 = vld [vmem:[#allocation4 + $0x1a7] sm:$0xff]
      %v7970 = vld [vmem:[#allocation4 + $0x1af] sm:$0xff]
      %v7971 = vld [vmem:[#allocation4 + $0x1c7] sm:$0xff]
      %v7972 = vld [vmem:[#allocation4 + $0x1cf] sm:$0xff]
      %v7973 = vld [vmem:[#allocation4 + $0x1e7] sm:$0xff]
      %v7974 = vld [vmem:[#allocation4 + $0x1ef] sm:$0xff]
      %v7975 = vld [vmem:[#allocation4 + $0x8] sm:$0xff]
      %v7976 = vld [vmem:[#allocation4 + $0x10] sm:$0xff]
      %v7977 = vld [vmem:[#allocation4 + $0x28] sm:$0xff]
      %v7978 = vld [vmem:[#allocation4 + $0x30] sm:$0xff]
      %v7979 = vld [vmem:[#allocation4 + $0x48] sm:$0xff]
      %v7980 = vld [vmem:[#allocation4 + $0x50] sm:$0xff]
      %v7981 = vld [vmem:[#allocation4 + $0x68] sm:$0xff]
      %v7982 = vld [vmem:[#allocation4 + $0x70] sm:$0xff]
      %v7983 = vld [vmem:[#allocation4 + $0x88] sm:$0xff]
      %v7984 = vld [vmem:[#allocation4 + $0x90] sm:$0xff]
      %v7985 = vld [vmem:[#allocation4 + $0xa8] sm:$0xff]
      %v7986 = vld [vmem:[#allocation4 + $0xb0] sm:$0xff]
      %v7987 = vld [vmem:[#allocation4 + $0xc8] sm:$0xff]
      %v7988 = vld [vmem:[#allocation4 + $0xd0] sm:$0xff]
      %v7989 = vld [vmem:[#allocation4 + $0xe8] sm:$0xff]
      %v7990 = vld [vmem:[#allocation4 + $0xf0] sm:$0xff]
      %v7991 = vld [vmem:[#allocation4 + $0x108] sm:$0xff]
      %v7992 = vld [vmem:[#allocation4 + $0x110] sm:$0xff]
      %v7993 = vld [vmem:[#allocation4 + $0x128] sm:$0xff]
      %v7994 = vld [vmem:[#allocation4 + $0x130] sm:$0xff]
      %v7995 = vld [vmem:[#allocation4 + $0x148] sm:$0xff]
      %v7996 = vld [vmem:[#allocation4 + $0x150] sm:$0xff]
      %v7997 = vld [vmem:[#allocation4 + $0x168] sm:$0xff]
      %v7998 = vld [vmem:[#allocation4 + $0x170] sm:$0xff]
      %v7999 = vld [vmem:[#allocation4 + $0x188] sm:$0xff]
      %v8000 = vld [vmem:[#allocation4 + $0x190] sm:$0xff]
      %v8001 = vld [vmem:[#allocation4 + $0x1a8] sm:$0xff]
      %v8002 = vld [vmem:[#allocation4 + $0x1b0] sm:$0xff]
      %v8003 = vld [vmem:[#allocation4 + $0x1c8] sm:$0xff]
      %v8004 = vld [vmem:[#allocation4 + $0x1d0] sm:$0xff]
      %v8005 = vld [vmem:[#allocation4 + $0x1e8] sm:$0xff]
      %v8006 = vld [vmem:[#allocation4 + $0x1f0] sm:$0xff]
      %v8007 = vld [vmem:[#allocation4 + $0x9] sm:$0xff]
      %v8008 = vld [vmem:[#allocation4 + $0x11] sm:$0xff]
      %v8009 = vld [vmem:[#allocation4 + $0x29] sm:$0xff]
      %v8010 = vld [vmem:[#allocation4 + $0x31] sm:$0xff]
      %v8011 = vld [vmem:[#allocation4 + $0x49] sm:$0xff]
      %v8012 = vld [vmem:[#allocation4 + $0x51] sm:$0xff]
      %v8013 = vld [vmem:[#allocation4 + $0x69] sm:$0xff]
      %v8014 = vld [vmem:[#allocation4 + $0x71] sm:$0xff]
      %v8015 = vld [vmem:[#allocation4 + $0x89] sm:$0xff]
      %v8016 = vld [vmem:[#allocation4 + $0x91] sm:$0xff]
      %v8017 = vld [vmem:[#allocation4 + $0xa9] sm:$0xff]
      %v8018 = vld [vmem:[#allocation4 + $0xb1] sm:$0xff]
      %v8019 = vld [vmem:[#allocation4 + $0xc9] sm:$0xff]
      %v8020 = vld [vmem:[#allocation4 + $0xd1] sm:$0xff]
      %v8021 = vld [vmem:[#allocation4 + $0xe9] sm:$0xff]
      %v8022 = vld [vmem:[#allocation4 + $0xf1] sm:$0xff]
      %v8023 = vld [vmem:[#allocation4 + $0x109] sm:$0xff]
      %v8024 = vld [vmem:[#allocation4 + $0x111] sm:$0xff]
      %v8025 = vld [vmem:[#allocation4 + $0x129] sm:$0xff]
      %v8026 = vld [vmem:[#allocation4 + $0x131] sm:$0xff]
      %v8027 = vld [vmem:[#allocation4 + $0x149] sm:$0xff]
      %v8028 = vld [vmem:[#allocation4 + $0x151] sm:$0xff]
      %v8029 = vld [vmem:[#allocation4 + $0x169] sm:$0xff]
      %v8030 = vld [vmem:[#allocation4 + $0x171] sm:$0xff]
      %v8031 = vld [vmem:[#allocation4 + $0x189] sm:$0xff]
      %v8032 = vld [vmem:[#allocation4 + $0x191] sm:$0xff]
      %v8033 = vld [vmem:[#allocation4 + $0x1a9] sm:$0xff]
      %v8034 = vld [vmem:[#allocation4 + $0x1b1] sm:$0xff]
      %v8035 = vld [vmem:[#allocation4 + $0x1c9] sm:$0xff]
      %v8036 = vld [vmem:[#allocation4 + $0x1d1] sm:$0xff]
      %v8037 = vld [vmem:[#allocation4 + $0x1e9] sm:$0xff]
      %v8038 = vld [vmem:[#allocation4 + $0x1f1] sm:$0xff]
      %v8039 = vld [vmem:[%s2473 + $0x7] sm:$0xff]
      %v8040 = vld [vmem:[%s2473 + $0xf] sm:$0xff]
      %v8041 = vld [vmem:[%s2473 + $0x27] sm:$0xff]
      %v8042 = vld [vmem:[%s2473 + $0x2f] sm:$0xff]
      %v8043 = vld [vmem:[%s2473 + $0x47] sm:$0xff]
      %v8044 = vld [vmem:[%s2473 + $0x4f] sm:$0xff]
      %v8045 = vld [vmem:[%s2473 + $0x67] sm:$0xff]
      %v8046 = vld [vmem:[%s2473 + $0x6f] sm:$0xff]
      %v8047 = vld [vmem:[%s2473 + $0x87] sm:$0xff]
      %v8048 = vld [vmem:[%s2473 + $0x8f] sm:$0xff]
      %v8049 = vld [vmem:[%s2473 + $0xa7] sm:$0xff]
      %v8050 = vld [vmem:[%s2473 + $0xaf] sm:$0xff]
      %v8051 = vld [vmem:[%s2473 + $0xc7] sm:$0xff]
      %v8052 = vld [vmem:[%s2473 + $0xcf] sm:$0xff]
      %v8053 = vld [vmem:[%s2473 + $0xe7] sm:$0xff]
      %v8054 = vld [vmem:[%s2473 + $0xef] sm:$0xff]
      %v8055 = vld [vmem:[%s2473 + $0x107] sm:$0xff]
      %v8056 = vld [vmem:[%s2473 + $0x10f] sm:$0xff]
      %v8057 = vld [vmem:[%s2473 + $0x127] sm:$0xff]
      %v8058 = vld [vmem:[%s2473 + $0x12f] sm:$0xff]
      %v8059 = vld [vmem:[%s2473 + $0x147] sm:$0xff]
      %v8060 = vld [vmem:[%s2473 + $0x14f] sm:$0xff]
      %v8061 = vld [vmem:[%s2473 + $0x167] sm:$0xff]
      %v8062 = vld [vmem:[%s2473 + $0x16f] sm:$0xff]
      %v8063 = vld [vmem:[%s2473 + $0x187] sm:$0xff]
      %v8064 = vld [vmem:[%s2473 + $0x18f] sm:$0xff]
      %v8065 = vld [vmem:[%s2473 + $0x1a7] sm:$0xff]
      %v8066 = vld [vmem:[%s2473 + $0x1af] sm:$0xff]
      %v8067 = vld [vmem:[%s2473 + $0x1c7] sm:$0xff]
      %v8068 = vld [vmem:[%s2473 + $0x1cf] sm:$0xff]
      %v8069 = vld [vmem:[%s2473 + $0x1e7] sm:$0xff]
      %v8070 = vld [vmem:[%s2473 + $0x1ef] sm:$0xff]
      %v8071 = vld [vmem:[%s2473 + $0x8] sm:$0xff]
      %v8072 = vld [vmem:[%s2473 + $0x10] sm:$0xff]
      %v8073 = vld [vmem:[%s2473 + $0x28] sm:$0xff]
      %v8074 = vld [vmem:[%s2473 + $0x30] sm:$0xff]
      %v8075 = vld [vmem:[%s2473 + $0x48] sm:$0xff]
      %v8076 = vld [vmem:[%s2473 + $0x50] sm:$0xff]
      %v8077 = vld [vmem:[%s2473 + $0x68] sm:$0xff]
      %v8078 = vld [vmem:[%s2473 + $0x70] sm:$0xff]
      %v8079 = vld [vmem:[%s2473 + $0x88] sm:$0xff]
      %v8080 = vld [vmem:[%s2473 + $0x90] sm:$0xff]
      %v8081 = vld [vmem:[%s2473 + $0xa8] sm:$0xff]
      %v8082 = vld [vmem:[%s2473 + $0xb0] sm:$0xff]
      %v8083 = vld [vmem:[%s2473 + $0xc8] sm:$0xff]
      %v8084 = vld [vmem:[%s2473 + $0xd0] sm:$0xff]
      %v8085 = vld [vmem:[%s2473 + $0xe8] sm:$0xff]
      %v8086 = vld [vmem:[%s2473 + $0xf0] sm:$0xff]
      %v8087 = vld [vmem:[%s2473 + $0x108] sm:$0xff]
      %v8088 = vld [vmem:[%s2473 + $0x110] sm:$0xff]
      %v8089 = vld [vmem:[%s2473 + $0x128] sm:$0xff]
      %v8090 = vld [vmem:[%s2473 + $0x130] sm:$0xff]
      %v8091 = vld [vmem:[%s2473 + $0x148] sm:$0xff]
      %v8092 = vld [vmem:[%s2473 + $0x150] sm:$0xff]
      %v8093 = vld [vmem:[%s2473 + $0x168] sm:$0xff]
      %v8094 = vld [vmem:[%s2473 + $0x170] sm:$0xff]
      %v8095 = vld [vmem:[%s2473 + $0x188] sm:$0xff]
      %v8096 = vld [vmem:[%s2473 + $0x190] sm:$0xff]
      %v8097 = vld [vmem:[%s2473 + $0x1a8] sm:$0xff]
      %v8098 = vld [vmem:[%s2473 + $0x1b0] sm:$0xff]
      %v8099 = vld [vmem:[%s2473 + $0x1c8] sm:$0xff]
      %v8100 = vld [vmem:[%s2473 + $0x1d0] sm:$0xff]
      %v8101 = vld [vmem:[%s2473 + $0x1e8] sm:$0xff]
      %v8102 = vld [vmem:[%s2473 + $0x1f0] sm:$0xff]
      %v8103 = vld [vmem:[%s2473 + $0x9] sm:$0xff]
      %v8104 = vld [vmem:[%s2473 + $0x11] sm:$0xff]
      %v8105 = vld [vmem:[%s2473 + $0x29] sm:$0xff]
      %v8106 = vld [vmem:[%s2473 + $0x31] sm:$0xff]
      %v8107 = vld [vmem:[%s2473 + $0x49] sm:$0xff]
      %v8108 = vld [vmem:[%s2473 + $0x51] sm:$0xff]
      %v8109 = vld [vmem:[%s2473 + $0x69] sm:$0xff]
      %v8110 = vld [vmem:[%s2473 + $0x71] sm:$0xff]
      %v8111 = vld [vmem:[%s2473 + $0x89] sm:$0xff]
      %v8112 = vld [vmem:[%s2473 + $0x91] sm:$0xff]
      %v8113 = vld [vmem:[%s2473 + $0xa9] sm:$0xff]
      %v8114 = vld [vmem:[%s2473 + $0xb1] sm:$0xff]
      %v8115 = vld [vmem:[%s2473 + $0xc9] sm:$0xff]
      %v8116 = vld [vmem:[%s2473 + $0xd1] sm:$0xff]
      %v8117 = vld [vmem:[%s2473 + $0xe9] sm:$0xff]
      %v8118 = vld [vmem:[%s2473 + $0xf1] sm:$0xff]
      %v8119 = vld [vmem:[%s2473 + $0x109] sm:$0xff]
      %v8120 = vld [vmem:[%s2473 + $0x111] sm:$0xff]
      %v8121 = vld [vmem:[%s2473 + $0x129] sm:$0xff]
      %v8122 = vld [vmem:[%s2473 + $0x131] sm:$0xff]
      %v8123 = vld [vmem:[%s2473 + $0x149] sm:$0xff]
      %v8124 = vld [vmem:[%s2473 + $0x151] sm:$0xff]
      %v8125 = vld [vmem:[%s2473 + $0x169] sm:$0xff]
      %v8126 = vld [vmem:[%s2473 + $0x171] sm:$0xff]
      %v8127 = vld [vmem:[%s2473 + $0x189] sm:$0xff]
      %v8128 = vld [vmem:[%s2473 + $0x191] sm:$0xff]
      %v8129 = vld [vmem:[%s2473 + $0x1a9] sm:$0xff]
      %v8130 = vld [vmem:[%s2473 + $0x1b1] sm:$0xff]
      %v8131 = vld [vmem:[%s2473 + $0x1c9] sm:$0xff]
      %v8132 = vld [vmem:[%s2473 + $0x1d1] sm:$0xff]
      %v8133 = vld [vmem:[%s2473 + $0x1e9] sm:$0xff]
      %v8134 = vld [vmem:[%s2473 + $0x1f1] sm:$0xff]
      %v8135 = vld [vmem:[%s2698 + $0x7] sm:$0xff]
      %v8136 = vld [vmem:[%s2698 + $0xf] sm:$0xff]
      %v8137 = vld [vmem:[%s2698 + $0x27] sm:$0xff]
      %v8138 = vld [vmem:[%s2698 + $0x2f] sm:$0xff]
      %v8139 = vld [vmem:[%s2698 + $0x47] sm:$0xff]
      %v8140 = vld [vmem:[%s2698 + $0x4f] sm:$0xff]
      %v8141 = vld [vmem:[%s2698 + $0x67] sm:$0xff]
      %v8142 = vld [vmem:[%s2698 + $0x6f] sm:$0xff]
      %v8143 = vld [vmem:[%s2698 + $0x87] sm:$0xff]
      %v8144 = vld [vmem:[%s2698 + $0x8f] sm:$0xff]
      %v8145 = vld [vmem:[%s2698 + $0xa7] sm:$0xff]
      %v8146 = vld [vmem:[%s2698 + $0xaf] sm:$0xff]
      %v8147 = vld [vmem:[%s2698 + $0xc7] sm:$0xff]
      %v8148 = vld [vmem:[%s2698 + $0xcf] sm:$0xff]
      %v8149 = vld [vmem:[%s2698 + $0xe7] sm:$0xff]
      %v8150 = vld [vmem:[%s2698 + $0xef] sm:$0xff]
      %v8151 = vld [vmem:[%s2698 + $0x107] sm:$0xff]
      %v8152 = vld [vmem:[%s2698 + $0x10f] sm:$0xff]
      %v8153 = vld [vmem:[%s2698 + $0x127] sm:$0xff]
      %v8154 = vld [vmem:[%s2698 + $0x12f] sm:$0xff]
      %v8155 = vld [vmem:[%s2698 + $0x147] sm:$0xff]
      %v8156 = vld [vmem:[%s2698 + $0x14f] sm:$0xff]
      %v8157 = vld [vmem:[%s2698 + $0x167] sm:$0xff]
      %v8158 = vld [vmem:[%s2698 + $0x16f] sm:$0xff]
      %v8159 = vld [vmem:[%s2698 + $0x187] sm:$0xff]
      %v8160 = vld [vmem:[%s2698 + $0x18f] sm:$0xff]
      %v8161 = vld [vmem:[%s2698 + $0x1a7] sm:$0xff]
      %v8162 = vld [vmem:[%s2698 + $0x1af] sm:$0xff]
      %v8163 = vld [vmem:[%s2698 + $0x1c7] sm:$0xff]
      %v8164 = vld [vmem:[%s2698 + $0x1cf] sm:$0xff]
      %v8165 = vld [vmem:[%s2698 + $0x1e7] sm:$0xff]
      %v8166 = vld [vmem:[%s2698 + $0x1ef] sm:$0xff]
      %v8167 = vld [vmem:[%s2698 + $0x8] sm:$0xff]
      %v8168 = vld [vmem:[%s2698 + $0x10] sm:$0xff]
      %v8169 = vld [vmem:[%s2698 + $0x28] sm:$0xff]
      %v8170 = vld [vmem:[%s2698 + $0x30] sm:$0xff]
      %v8171 = vld [vmem:[%s2698 + $0x48] sm:$0xff]
      %v8172 = vld [vmem:[%s2698 + $0x50] sm:$0xff]
      %v8173 = vld [vmem:[%s2698 + $0x68] sm:$0xff]
      %v8174 = vld [vmem:[%s2698 + $0x70] sm:$0xff]
      %v8175 = vld [vmem:[%s2698 + $0x88] sm:$0xff]
      %v8176 = vld [vmem:[%s2698 + $0x90] sm:$0xff]
      %v8177 = vld [vmem:[%s2698 + $0xa8] sm:$0xff]
      %v8178 = vld [vmem:[%s2698 + $0xb0] sm:$0xff]
      %v8179 = vld [vmem:[%s2698 + $0xc8] sm:$0xff]
      %v8180 = vld [vmem:[%s2698 + $0xd0] sm:$0xff]
      %v8181 = vld [vmem:[%s2698 + $0xe8] sm:$0xff]
      %v8182 = vld [vmem:[%s2698 + $0xf0] sm:$0xff]
      %v8183 = vld [vmem:[%s2698 + $0x108] sm:$0xff]
      %v8184 = vld [vmem:[%s2698 + $0x110] sm:$0xff]
      %v8185 = vld [vmem:[%s2698 + $0x128] sm:$0xff]
      %v8186 = vld [vmem:[%s2698 + $0x130] sm:$0xff]
      %v8187 = vld [vmem:[%s2698 + $0x148] sm:$0xff]
      %v8188 = vld [vmem:[%s2698 + $0x150] sm:$0xff]
      %v8189 = vld [vmem:[%s2698 + $0x168] sm:$0xff]
      %v8190 = vld [vmem:[%s2698 + $0x170] sm:$0xff]
      %v8191 = vld [vmem:[%s2698 + $0x188] sm:$0xff]
      %v8192 = vld [vmem:[%s2698 + $0x190] sm:$0xff]
      %v8193 = vld [vmem:[%s2698 + $0x1a8] sm:$0xff]
      %v8194 = vld [vmem:[%s2698 + $0x1b0] sm:$0xff]
      %v8195 = vld [vmem:[%s2698 + $0x1c8] sm:$0xff]
      %v8196 = vld [vmem:[%s2698 + $0x1d0] sm:$0xff]
      %v8197 = vld [vmem:[%s2698 + $0x1e8] sm:$0xff]
      %v8198 = vld [vmem:[%s2698 + $0x1f0] sm:$0xff]
      %v8199 = vld [vmem:[%s2698 + $0x9] sm:$0xff]
      %v8200 = vld [vmem:[%s2698 + $0x11] sm:$0xff]
      %v8201 = vld [vmem:[%s2698 + $0x29] sm:$0xff]
      %v8202 = vld [vmem:[%s2698 + $0x31] sm:$0xff]
      %v8203 = vld [vmem:[%s2698 + $0x49] sm:$0xff]
      %v8204 = vld [vmem:[%s2698 + $0x51] sm:$0xff]
      %v8205 = vld [vmem:[%s2698 + $0x69] sm:$0xff]
      %v8206 = vld [vmem:[%s2698 + $0x71] sm:$0xff]
      %v8207 = vld [vmem:[%s2698 + $0x89] sm:$0xff]
      %v8208 = vld [vmem:[%s2698 + $0x91] sm:$0xff]
      %v8209 = vld [vmem:[%s2698 + $0xa9] sm:$0xff]
      %v8210 = vld [vmem:[%s2698 + $0xb1] sm:$0xff]
      %v8211 = vld [vmem:[%s2698 + $0xc9] sm:$0xff]
      %v8212 = vld [vmem:[%s2698 + $0xd1] sm:$0xff]
      %v8213 = vld [vmem:[%s2698 + $0xe9] sm:$0xff]
      %v8214 = vld [vmem:[%s2698 + $0xf1] sm:$0xff]
      %v8215 = vld [vmem:[%s2698 + $0x109] sm:$0xff]
      %v8216 = vld [vmem:[%s2698 + $0x111] sm:$0xff]
      %v8217 = vld [vmem:[%s2698 + $0x129] sm:$0xff]
      %v8218 = vld [vmem:[%s2698 + $0x131] sm:$0xff]
      %v8219 = vld [vmem:[%s2698 + $0x149] sm:$0xff]
      %v8220 = vld [vmem:[%s2698 + $0x151] sm:$0xff]
      %v8221 = vld [vmem:[%s2698 + $0x169] sm:$0xff]
      %v8222 = vld [vmem:[%s2698 + $0x171] sm:$0xff]
      %v8223 = vld [vmem:[%s2698 + $0x189] sm:$0xff]
      %v8224 = vld [vmem:[%s2698 + $0x191] sm:$0xff]
      %v8225 = vld [vmem:[%s2698 + $0x1a9] sm:$0xff]
      %v8226 = vld [vmem:[%s2698 + $0x1b1] sm:$0xff]
      %v8227 = vld [vmem:[%s2698 + $0x1c9] sm:$0xff]
      %v8228 = vld [vmem:[%s2698 + $0x1d1] sm:$0xff]
      %v8229 = vld [vmem:[%s2698 + $0x1e9] sm:$0xff]
      %v8230 = vld [vmem:[%s2698 + $0x1f1] sm:$0xff]
      %8263 = vrot.lane.b32.xlu0 %v7975, 32
      %v8264 = vpop.permute.xlu0 %8263
      %8265 = vrot.lane.b32.xlu0 %v7976, 32
      %v8266 = vpop.permute.xlu0 %8265
      %8267 = vrot.lane.b32.xlu0 %v7977, 32
      %v8268 = vpop.permute.xlu0 %8267
      %8269 = vrot.lane.b32.xlu0 %v7978, 32
      %v8270 = vpop.permute.xlu0 %8269
      %8271 = vrot.lane.b32.xlu0 %v7979, 32
      %v8272 = vpop.permute.xlu0 %8271
      %8273 = vrot.lane.b32.xlu0 %v7980, 32
      %v8274 = vpop.permute.xlu0 %8273
      %8275 = vrot.lane.b32.xlu0 %v7981, 32
      %v8276 = vpop.permute.xlu0 %8275
      %8277 = vrot.lane.b32.xlu0 %v7982, 32
      %v8278 = vpop.permute.xlu0 %8277
      %8279 = vrot.lane.b32.xlu0 %v7983, 32
      %v8280 = vpop.permute.xlu0 %8279
      %8281 = vrot.lane.b32.xlu0 %v7984, 32
      %v8282 = vpop.permute.xlu0 %8281
      %8283 = vrot.lane.b32.xlu0 %v7985, 32
      %v8284 = vpop.permute.xlu0 %8283
      %8285 = vrot.lane.b32.xlu0 %v7986, 32
      %v8286 = vpop.permute.xlu0 %8285
      %8287 = vrot.lane.b32.xlu0 %v7987, 32
      %v8288 = vpop.permute.xlu0 %8287
      %8289 = vrot.lane.b32.xlu0 %v7988, 32
      %v8290 = vpop.permute.xlu0 %8289
      %8291 = vrot.lane.b32.xlu0 %v7989, 32
      %v8292 = vpop.permute.xlu0 %8291
      %8293 = vrot.lane.b32.xlu0 %v7990, 32
      %v8294 = vpop.permute.xlu0 %8293
      %8295 = vrot.lane.b32.xlu0 %v7991, 32
      %v8296 = vpop.permute.xlu0 %8295
      %8297 = vrot.lane.b32.xlu0 %v7992, 32
      %v8298 = vpop.permute.xlu0 %8297
      %8299 = vrot.lane.b32.xlu0 %v7993, 32
      %v8300 = vpop.permute.xlu0 %8299
      %8301 = vrot.lane.b32.xlu0 %v7994, 32
      %v8302 = vpop.permute.xlu0 %8301
      %8303 = vrot.lane.b32.xlu0 %v7995, 32
      %v8304 = vpop.permute.xlu0 %8303
      %8305 = vrot.lane.b32.xlu0 %v7996, 32
      %v8306 = vpop.permute.xlu0 %8305
      %8307 = vrot.lane.b32.xlu0 %v7997, 32
      %v8308 = vpop.permute.xlu0 %8307
      %8309 = vrot.lane.b32.xlu0 %v7998, 32
      %v8310 = vpop.permute.xlu0 %8309
      %8311 = vrot.lane.b32.xlu0 %v7999, 32
      %v8312 = vpop.permute.xlu0 %8311
      %8313 = vrot.lane.b32.xlu0 %v8000, 32
      %v8314 = vpop.permute.xlu0 %8313
      %8315 = vrot.lane.b32.xlu0 %v8001, 32
      %v8316 = vpop.permute.xlu0 %8315
      %8317 = vrot.lane.b32.xlu0 %v8002, 32
      %v8318 = vpop.permute.xlu0 %8317
      %8319 = vrot.lane.b32.xlu0 %v8003, 32
      %v8320 = vpop.permute.xlu0 %8319
      %8321 = vrot.lane.b32.xlu0 %v8004, 32
      %v8322 = vpop.permute.xlu0 %8321
      %8323 = vrot.lane.b32.xlu0 %v8005, 32
      %v8324 = vpop.permute.xlu0 %8323
      %8325 = vrot.lane.b32.xlu0 %v8006, 32
      %v8326 = vpop.permute.xlu0 %8325
      %8391 = vrot.lane.b32.xlu0 %v8007, 64
      %v8392 = vpop.permute.xlu0 %8391
      %8393 = vrot.lane.b32.xlu0 %v8008, 64
      %v8394 = vpop.permute.xlu0 %8393
      %8395 = vrot.lane.b32.xlu0 %v8009, 64
      %v8396 = vpop.permute.xlu0 %8395
      %8397 = vrot.lane.b32.xlu0 %v8010, 64
      %v8398 = vpop.permute.xlu0 %8397
      %8399 = vrot.lane.b32.xlu0 %v8011, 64
      %v8400 = vpop.permute.xlu0 %8399
      %8401 = vrot.lane.b32.xlu0 %v8012, 64
      %v8402 = vpop.permute.xlu0 %8401
      %8403 = vrot.lane.b32.xlu0 %v8013, 64
      %v8404 = vpop.permute.xlu0 %8403
      %8405 = vrot.lane.b32.xlu0 %v8014, 64
      %v8406 = vpop.permute.xlu0 %8405
      %8407 = vrot.lane.b32.xlu0 %v8015, 64
      %v8408 = vpop.permute.xlu0 %8407
      %8409 = vrot.lane.b32.xlu0 %v8016, 64
      %v8410 = vpop.permute.xlu0 %8409
      %8411 = vrot.lane.b32.xlu0 %v8017, 64
      %v8412 = vpop.permute.xlu0 %8411
      %8413 = vrot.lane.b32.xlu0 %v8018, 64
      %v8414 = vpop.permute.xlu0 %8413
      %8415 = vrot.lane.b32.xlu0 %v8019, 64
      %v8416 = vpop.permute.xlu0 %8415
      %8417 = vrot.lane.b32.xlu0 %v8020, 64
      %v8418 = vpop.permute.xlu0 %8417
      %8419 = vrot.lane.b32.xlu0 %v8021, 64
      %v8420 = vpop.permute.xlu0 %8419
      %8421 = vrot.lane.b32.xlu0 %v8022, 64
      %v8422 = vpop.permute.xlu0 %8421
      %8423 = vrot.lane.b32.xlu0 %v8023, 64
      %v8424 = vpop.permute.xlu0 %8423
      %8425 = vrot.lane.b32.xlu0 %v8024, 64
      %v8426 = vpop.permute.xlu0 %8425
      %8427 = vrot.lane.b32.xlu0 %v8025, 64
      %v8428 = vpop.permute.xlu0 %8427
      %8429 = vrot.lane.b32.xlu0 %v8026, 64
      %v8430 = vpop.permute.xlu0 %8429
      %8431 = vrot.lane.b32.xlu0 %v8027, 64
      %v8432 = vpop.permute.xlu0 %8431
      %8433 = vrot.lane.b32.xlu0 %v8028, 64
      %v8434 = vpop.permute.xlu0 %8433
      %8435 = vrot.lane.b32.xlu0 %v8029, 64
      %v8436 = vpop.permute.xlu0 %8435
      %8437 = vrot.lane.b32.xlu0 %v8030, 64
      %v8438 = vpop.permute.xlu0 %8437
      %8439 = vrot.lane.b32.xlu0 %v8031, 64
      %v8440 = vpop.permute.xlu0 %8439
      %8441 = vrot.lane.b32.xlu0 %v8032, 64
      %v8442 = vpop.permute.xlu0 %8441
      %8443 = vrot.lane.b32.xlu0 %v8033, 64
      %v8444 = vpop.permute.xlu0 %8443
      %8445 = vrot.lane.b32.xlu0 %v8034, 64
      %v8446 = vpop.permute.xlu0 %8445
      %8447 = vrot.lane.b32.xlu0 %v8035, 64
      %v8448 = vpop.permute.xlu0 %8447
      %8449 = vrot.lane.b32.xlu0 %v8036, 64
      %v8450 = vpop.permute.xlu0 %8449
      %8451 = vrot.lane.b32.xlu0 %v8037, 64
      %v8452 = vpop.permute.xlu0 %8451
      %8453 = vrot.lane.b32.xlu0 %v8038, 64
      %v8454 = vpop.permute.xlu0 %8453
      %8519 = vrot.lane.b32.xlu0 %v8039, 96
      %v8520 = vpop.permute.xlu0 %8519
      %8521 = vrot.lane.b32.xlu0 %v8040, 96
      %v8522 = vpop.permute.xlu0 %8521
      %8523 = vrot.lane.b32.xlu0 %v8041, 96
      %v8524 = vpop.permute.xlu0 %8523
      %8525 = vrot.lane.b32.xlu0 %v8042, 96
      %v8526 = vpop.permute.xlu0 %8525
      %8527 = vrot.lane.b32.xlu0 %v8043, 96
      %v8528 = vpop.permute.xlu0 %8527
      %8529 = vrot.lane.b32.xlu0 %v8044, 96
      %v8530 = vpop.permute.xlu0 %8529
      %8531 = vrot.lane.b32.xlu0 %v8045, 96
      %v8532 = vpop.permute.xlu0 %8531
      %8533 = vrot.lane.b32.xlu0 %v8046, 96
      %v8534 = vpop.permute.xlu0 %8533
      %8535 = vrot.lane.b32.xlu0 %v8047, 96
      %v8536 = vpop.permute.xlu0 %8535
      %8537 = vrot.lane.b32.xlu0 %v8048, 96
      %v8538 = vpop.permute.xlu0 %8537
      %8539 = vrot.lane.b32.xlu0 %v8049, 96
      %v8540 = vpop.permute.xlu0 %8539
      %8541 = vrot.lane.b32.xlu0 %v8050, 96
      %v8542 = vpop.permute.xlu0 %8541
      %8543 = vrot.lane.b32.xlu0 %v8051, 96
      %v8544 = vpop.permute.xlu0 %8543
      %8545 = vrot.lane.b32.xlu0 %v8052, 96
      %v8546 = vpop.permute.xlu0 %8545
      %8547 = vrot.lane.b32.xlu0 %v8053, 96
      %v8548 = vpop.permute.xlu0 %8547
      %8549 = vrot.lane.b32.xlu0 %v8054, 96
      %v8550 = vpop.permute.xlu0 %8549
      %8551 = vrot.lane.b32.xlu0 %v8055, 96
      %v8552 = vpop.permute.xlu0 %8551
      %8553 = vrot.lane.b32.xlu0 %v8056, 96
      %v8554 = vpop.permute.xlu0 %8553
      %8555 = vrot.lane.b32.xlu0 %v8057, 96
      %v8556 = vpop.permute.xlu0 %8555
      %8557 = vrot.lane.b32.xlu0 %v8058, 96
      %v8558 = vpop.permute.xlu0 %8557
      %8559 = vrot.lane.b32.xlu0 %v8059, 96
      %v8560 = vpop.permute.xlu0 %8559
      %8561 = vrot.lane.b32.xlu0 %v8060, 96
      %v8562 = vpop.permute.xlu0 %8561
      %8563 = vrot.lane.b32.xlu0 %v8061, 96
      %v8564 = vpop.permute.xlu0 %8563
      %8565 = vrot.lane.b32.xlu0 %v8062, 96
      %v8566 = vpop.permute.xlu0 %8565
      %8567 = vrot.lane.b32.xlu0 %v8063, 96
      %v8568 = vpop.permute.xlu0 %8567
      %8569 = vrot.lane.b32.xlu0 %v8064, 96
      %v8570 = vpop.permute.xlu0 %8569
      %8571 = vrot.lane.b32.xlu0 %v8065, 96
      %v8572 = vpop.permute.xlu0 %8571
      %8573 = vrot.lane.b32.xlu0 %v8066, 96
      %v8574 = vpop.permute.xlu0 %8573
      %8575 = vrot.lane.b32.xlu0 %v8067, 96
      %v8576 = vpop.permute.xlu0 %8575
      %8577 = vrot.lane.b32.xlu0 %v8068, 96
      %v8578 = vpop.permute.xlu0 %8577
      %8579 = vrot.lane.b32.xlu0 %v8069, 96
      %v8580 = vpop.permute.xlu0 %8579
      %8581 = vrot.lane.b32.xlu0 %v8070, 96
      %v8582 = vpop.permute.xlu0 %8581
      %8647 = vrot.lane.b32.xlu0 %v8103, 32
      %v8648 = vpop.permute.xlu0 %8647
      %8649 = vrot.lane.b32.xlu0 %v8104, 32
      %v8650 = vpop.permute.xlu0 %8649
      %8651 = vrot.lane.b32.xlu0 %v8105, 32
      %v8652 = vpop.permute.xlu0 %8651
      %8653 = vrot.lane.b32.xlu0 %v8106, 32
      %v8654 = vpop.permute.xlu0 %8653
      %8655 = vrot.lane.b32.xlu0 %v8107, 32
      %v8656 = vpop.permute.xlu0 %8655
      %8657 = vrot.lane.b32.xlu0 %v8108, 32
      %v8658 = vpop.permute.xlu0 %8657
      %8659 = vrot.lane.b32.xlu0 %v8109, 32
      %v8660 = vpop.permute.xlu0 %8659
      %8661 = vrot.lane.b32.xlu0 %v8110, 32
      %v8662 = vpop.permute.xlu0 %8661
      %8663 = vrot.lane.b32.xlu0 %v8111, 32
      %v8664 = vpop.permute.xlu0 %8663
      %8665 = vrot.lane.b32.xlu0 %v8112, 32
      %v8666 = vpop.permute.xlu0 %8665
      %8667 = vrot.lane.b32.xlu0 %v8113, 32
      %v8668 = vpop.permute.xlu0 %8667
      %8669 = vrot.lane.b32.xlu0 %v8114, 32
      %v8670 = vpop.permute.xlu0 %8669
      %8671 = vrot.lane.b32.xlu0 %v8115, 32
      %v8672 = vpop.permute.xlu0 %8671
      %8673 = vrot.lane.b32.xlu0 %v8116, 32
      %v8674 = vpop.permute.xlu0 %8673
      %8675 = vrot.lane.b32.xlu0 %v8117, 32
      %v8676 = vpop.permute.xlu0 %8675
      %8677 = vrot.lane.b32.xlu0 %v8118, 32
      %v8678 = vpop.permute.xlu0 %8677
      %8679 = vrot.lane.b32.xlu0 %v8119, 32
      %v8680 = vpop.permute.xlu0 %8679
      %8681 = vrot.lane.b32.xlu0 %v8120, 32
      %v8682 = vpop.permute.xlu0 %8681
      %8683 = vrot.lane.b32.xlu0 %v8121, 32
      %v8684 = vpop.permute.xlu0 %8683
      %8685 = vrot.lane.b32.xlu0 %v8122, 32
      %v8686 = vpop.permute.xlu0 %8685
      %8687 = vrot.lane.b32.xlu0 %v8123, 32
      %v8688 = vpop.permute.xlu0 %8687
      %8689 = vrot.lane.b32.xlu0 %v8124, 32
      %v8690 = vpop.permute.xlu0 %8689
      %8691 = vrot.lane.b32.xlu0 %v8125, 32
      %v8692 = vpop.permute.xlu0 %8691
      %8693 = vrot.lane.b32.xlu0 %v8126, 32
      %v8694 = vpop.permute.xlu0 %8693
      %8695 = vrot.lane.b32.xlu0 %v8127, 32
      %v8696 = vpop.permute.xlu0 %8695
      %8697 = vrot.lane.b32.xlu0 %v8128, 32
      %v8698 = vpop.permute.xlu0 %8697
      %8699 = vrot.lane.b32.xlu0 %v8129, 32
      %v8700 = vpop.permute.xlu0 %8699
      %8701 = vrot.lane.b32.xlu0 %v8130, 32
      %v8702 = vpop.permute.xlu0 %8701
      %8703 = vrot.lane.b32.xlu0 %v8131, 32
      %v8704 = vpop.permute.xlu0 %8703
      %8705 = vrot.lane.b32.xlu0 %v8132, 32
      %v8706 = vpop.permute.xlu0 %8705
      %8707 = vrot.lane.b32.xlu0 %v8133, 32
      %v8708 = vpop.permute.xlu0 %8707
      %8709 = vrot.lane.b32.xlu0 %v8134, 32
      %v8710 = vpop.permute.xlu0 %8709
      %8775 = vrot.lane.b32.xlu0 %v8135, 64
      %v8776 = vpop.permute.xlu0 %8775
      %8777 = vrot.lane.b32.xlu0 %v8136, 64
      %v8778 = vpop.permute.xlu0 %8777
      %8779 = vrot.lane.b32.xlu0 %v8137, 64
      %v8780 = vpop.permute.xlu0 %8779
      %8781 = vrot.lane.b32.xlu0 %v8138, 64
      %v8782 = vpop.permute.xlu0 %8781
      %8783 = vrot.lane.b32.xlu0 %v8139, 64
      %v8784 = vpop.permute.xlu0 %8783
      %8785 = vrot.lane.b32.xlu0 %v8140, 64
      %v8786 = vpop.permute.xlu0 %8785
      %8787 = vrot.lane.b32.xlu0 %v8141, 64
      %v8788 = vpop.permute.xlu0 %8787
      %8789 = vrot.lane.b32.xlu0 %v8142, 64
      %v8790 = vpop.permute.xlu0 %8789
      %8791 = vrot.lane.b32.xlu0 %v8143, 64
      %v8792 = vpop.permute.xlu0 %8791
      %8793 = vrot.lane.b32.xlu0 %v8144, 64
      %v8794 = vpop.permute.xlu0 %8793
      %8795 = vrot.lane.b32.xlu0 %v8145, 64
      %v8796 = vpop.permute.xlu0 %8795
      %8797 = vrot.lane.b32.xlu0 %v8146, 64
      %v8798 = vpop.permute.xlu0 %8797
      %8799 = vrot.lane.b32.xlu0 %v8147, 64
      %v8800 = vpop.permute.xlu0 %8799
      %8801 = vrot.lane.b32.xlu0 %v8148, 64
      %v8802 = vpop.permute.xlu0 %8801
      %8803 = vrot.lane.b32.xlu0 %v8149, 64
      %v8804 = vpop.permute.xlu0 %8803
      %8805 = vrot.lane.b32.xlu0 %v8150, 64
      %v8806 = vpop.permute.xlu0 %8805
      %8807 = vrot.lane.b32.xlu0 %v8151, 64
      %v8808 = vpop.permute.xlu0 %8807
      %8809 = vrot.lane.b32.xlu0 %v8152, 64
      %v8810 = vpop.permute.xlu0 %8809
      %8811 = vrot.lane.b32.xlu0 %v8153, 64
      %v8812 = vpop.permute.xlu0 %8811
      %8813 = vrot.lane.b32.xlu0 %v8154, 64
      %v8814 = vpop.permute.xlu0 %8813
      %8815 = vrot.lane.b32.xlu0 %v8155, 64
      %v8816 = vpop.permute.xlu0 %8815
      %8817 = vrot.lane.b32.xlu0 %v8156, 64
      %v8818 = vpop.permute.xlu0 %8817
      %8819 = vrot.lane.b32.xlu0 %v8157, 64
      %v8820 = vpop.permute.xlu0 %8819
      %8821 = vrot.lane.b32.xlu0 %v8158, 64
      %v8822 = vpop.permute.xlu0 %8821
      %8823 = vrot.lane.b32.xlu0 %v8159, 64
      %v8824 = vpop.permute.xlu0 %8823
      %8825 = vrot.lane.b32.xlu0 %v8160, 64
      %v8826 = vpop.permute.xlu0 %8825
      %8827 = vrot.lane.b32.xlu0 %v8161, 64
      %v8828 = vpop.permute.xlu0 %8827
      %8829 = vrot.lane.b32.xlu0 %v8162, 64
      %v8830 = vpop.permute.xlu0 %8829
      %8831 = vrot.lane.b32.xlu0 %v8163, 64
      %v8832 = vpop.permute.xlu0 %8831
      %8833 = vrot.lane.b32.xlu0 %v8164, 64
      %v8834 = vpop.permute.xlu0 %8833
      %8835 = vrot.lane.b32.xlu0 %v8165, 64
      %v8836 = vpop.permute.xlu0 %8835
      %8837 = vrot.lane.b32.xlu0 %v8166, 64
      %v8838 = vpop.permute.xlu0 %8837
      %8903 = vrot.lane.b32.xlu0 %v8167, 96
      %v8904 = vpop.permute.xlu0 %8903
      %8905 = vrot.lane.b32.xlu0 %v8168, 96
      %v8906 = vpop.permute.xlu0 %8905
      %8907 = vrot.lane.b32.xlu0 %v8169, 96
      %v8908 = vpop.permute.xlu0 %8907
      %8909 = vrot.lane.b32.xlu0 %v8170, 96
      %v8910 = vpop.permute.xlu0 %8909
      %8911 = vrot.lane.b32.xlu0 %v8171, 96
      %v8912 = vpop.permute.xlu0 %8911
      %8913 = vrot.lane.b32.xlu0 %v8172, 96
      %v8914 = vpop.permute.xlu0 %8913
      %8915 = vrot.lane.b32.xlu0 %v8173, 96
      %v8916 = vpop.permute.xlu0 %8915
      %8917 = vrot.lane.b32.xlu0 %v8174, 96
      %v8918 = vpop.permute.xlu0 %8917
      %8919 = vrot.lane.b32.xlu0 %v8175, 96
      %v8920 = vpop.permute.xlu0 %8919
      %8921 = vrot.lane.b32.xlu0 %v8176, 96
      %v8922 = vpop.permute.xlu0 %8921
      %8923 = vrot.lane.b32.xlu0 %v8177, 96
      %v8924 = vpop.permute.xlu0 %8923
      %8925 = vrot.lane.b32.xlu0 %v8178, 96
      %v8926 = vpop.permute.xlu0 %8925
      %8927 = vrot.lane.b32.xlu0 %v8179, 96
      %v8928 = vpop.permute.xlu0 %8927
      %8929 = vrot.lane.b32.xlu0 %v8180, 96
      %v8930 = vpop.permute.xlu0 %8929
      %8931 = vrot.lane.b32.xlu0 %v8181, 96
      %v8932 = vpop.permute.xlu0 %8931
      %8933 = vrot.lane.b32.xlu0 %v8182, 96
      %v8934 = vpop.permute.xlu0 %8933
      %8935 = vrot.lane.b32.xlu0 %v8183, 96
      %v8936 = vpop.permute.xlu0 %8935
      %8937 = vrot.lane.b32.xlu0 %v8184, 96
      %v8938 = vpop.permute.xlu0 %8937
      %8939 = vrot.lane.b32.xlu0 %v8185, 96
      %v8940 = vpop.permute.xlu0 %8939
      %8941 = vrot.lane.b32.xlu0 %v8186, 96
      %v8942 = vpop.permute.xlu0 %8941
      %8943 = vrot.lane.b32.xlu0 %v8187, 96
      %v8944 = vpop.permute.xlu0 %8943
      %8945 = vrot.lane.b32.xlu0 %v8188, 96
      %v8946 = vpop.permute.xlu0 %8945
      %8947 = vrot.lane.b32.xlu0 %v8189, 96
      %v8948 = vpop.permute.xlu0 %8947
      %8949 = vrot.lane.b32.xlu0 %v8190, 96
      %v8950 = vpop.permute.xlu0 %8949
      %8951 = vrot.lane.b32.xlu0 %v8191, 96
      %v8952 = vpop.permute.xlu0 %8951
      %8953 = vrot.lane.b32.xlu0 %v8192, 96
      %v8954 = vpop.permute.xlu0 %8953
      %8955 = vrot.lane.b32.xlu0 %v8193, 96
      %v8956 = vpop.permute.xlu0 %8955
      %8957 = vrot.lane.b32.xlu0 %v8194, 96
      %v8958 = vpop.permute.xlu0 %8957
      %8959 = vrot.lane.b32.xlu0 %v8195, 96
      %v8960 = vpop.permute.xlu0 %8959
      %8961 = vrot.lane.b32.xlu0 %v8196, 96
      %v8962 = vpop.permute.xlu0 %8961
      %8963 = vrot.lane.b32.xlu0 %v8197, 96
      %v8964 = vpop.permute.xlu0 %8963
      %8965 = vrot.lane.b32.xlu0 %v8198, 96
      %v8966 = vpop.permute.xlu0 %8965
      %v8999 = vsel %vm579, %v7943, %v8264
      %v9000 = vsel %vm579, %v7944, %v8266
      %v9001 = vsel %vm579, %v7945, %v8268
      %v9002 = vsel %vm579, %v7946, %v8270
      %v9003 = vsel %vm579, %v7947, %v8272
      %v9004 = vsel %vm579, %v7948, %v8274
      %v9005 = vsel %vm579, %v7949, %v8276
      %v9006 = vsel %vm579, %v7950, %v8278
      %v9007 = vsel %vm579, %v7951, %v8280
      %v9008 = vsel %vm579, %v7952, %v8282
      %v9009 = vsel %vm579, %v7953, %v8284
      %v9010 = vsel %vm579, %v7954, %v8286
      %v9011 = vsel %vm579, %v7955, %v8288
      %v9012 = vsel %vm579, %v7956, %v8290
      %v9013 = vsel %vm579, %v7957, %v8292
      %v9014 = vsel %vm579, %v7958, %v8294
      %v9015 = vsel %vm579, %v7959, %v8296
      %v9016 = vsel %vm579, %v7960, %v8298
      %v9017 = vsel %vm579, %v7961, %v8300
      %v9018 = vsel %vm579, %v7962, %v8302
      %v9019 = vsel %vm579, %v7963, %v8304
      %v9020 = vsel %vm579, %v7964, %v8306
      %v9021 = vsel %vm579, %v7965, %v8308
      %v9022 = vsel %vm579, %v7966, %v8310
      %v9023 = vsel %vm579, %v7967, %v8312
      %v9024 = vsel %vm579, %v7968, %v8314
      %v9025 = vsel %vm579, %v7969, %v8316
      %v9026 = vsel %vm579, %v7970, %v8318
      %v9027 = vsel %vm579, %v7971, %v8320
      %v9028 = vsel %vm579, %v7972, %v8322
      %v9029 = vsel %vm579, %v7973, %v8324
      %v9030 = vsel %vm579, %v7974, %v8326
      %v9031 = vsel %vm3595, %v8999, %v8392
      %v9032 = vsel %vm3595, %v9000, %v8394
      %v9033 = vsel %vm3595, %v9001, %v8396
      %v9034 = vsel %vm3595, %v9002, %v8398
      %v9035 = vsel %vm3595, %v9003, %v8400
      %v9036 = vsel %vm3595, %v9004, %v8402
      %v9037 = vsel %vm3595, %v9005, %v8404
      %v9038 = vsel %vm3595, %v9006, %v8406
      %v9039 = vsel %vm3595, %v9007, %v8408
      %v9040 = vsel %vm3595, %v9008, %v8410
      %v9041 = vsel %vm3595, %v9009, %v8412
      %v9042 = vsel %vm3595, %v9010, %v8414
      %v9043 = vsel %vm3595, %v9011, %v8416
      %v9044 = vsel %vm3595, %v9012, %v8418
      %v9045 = vsel %vm3595, %v9013, %v8420
      %v9046 = vsel %vm3595, %v9014, %v8422
      %v9047 = vsel %vm3595, %v9015, %v8424
      %v9048 = vsel %vm3595, %v9016, %v8426
      %v9049 = vsel %vm3595, %v9017, %v8428
      %v9050 = vsel %vm3595, %v9018, %v8430
      %v9051 = vsel %vm3595, %v9019, %v8432
      %v9052 = vsel %vm3595, %v9020, %v8434
      %v9053 = vsel %vm3595, %v9021, %v8436
      %v9054 = vsel %vm3595, %v9022, %v8438
      %v9055 = vsel %vm3595, %v9023, %v8440
      %v9056 = vsel %vm3595, %v9024, %v8442
      %v9057 = vsel %vm3595, %v9025, %v8444
      %v9058 = vsel %vm3595, %v9026, %v8446
      %v9059 = vsel %vm3595, %v9027, %v8448
      %v9060 = vsel %vm3595, %v9028, %v8450
      %v9061 = vsel %vm3595, %v9029, %v8452
      %v9062 = vsel %vm3595, %v9030, %v8454
      %v9063 = vsel %vm3628, %v9031, %v8520
      %v9064 = vsel %vm3628, %v9032, %v8522
      %v9065 = vsel %vm3628, %v9033, %v8524
      %v9066 = vsel %vm3628, %v9034, %v8526
      %v9067 = vsel %vm3628, %v9035, %v8528
      %v9068 = vsel %vm3628, %v9036, %v8530
      %v9069 = vsel %vm3628, %v9037, %v8532
      %v9070 = vsel %vm3628, %v9038, %v8534
      %v9071 = vsel %vm3628, %v9039, %v8536
      %v9072 = vsel %vm3628, %v9040, %v8538
      %v9073 = vsel %vm3628, %v9041, %v8540
      %v9074 = vsel %vm3628, %v9042, %v8542
      %v9075 = vsel %vm3628, %v9043, %v8544
      %v9076 = vsel %vm3628, %v9044, %v8546
      %v9077 = vsel %vm3628, %v9045, %v8548
      %v9078 = vsel %vm3628, %v9046, %v8550
      %v9079 = vsel %vm3628, %v9047, %v8552
      %v9080 = vsel %vm3628, %v9048, %v8554
      %v9081 = vsel %vm3628, %v9049, %v8556
      %v9082 = vsel %vm3628, %v9050, %v8558
      %v9083 = vsel %vm3628, %v9051, %v8560
      %v9084 = vsel %vm3628, %v9052, %v8562
      %v9085 = vsel %vm3628, %v9053, %v8564
      %v9086 = vsel %vm3628, %v9054, %v8566
      %v9087 = vsel %vm3628, %v9055, %v8568
      %v9088 = vsel %vm3628, %v9056, %v8570
      %v9089 = vsel %vm3628, %v9057, %v8572
      %v9090 = vsel %vm3628, %v9058, %v8574
      %v9091 = vsel %vm3628, %v9059, %v8576
      %v9092 = vsel %vm3628, %v9060, %v8578
      %v9093 = vsel %vm3628, %v9061, %v8580
      %v9094 = vsel %vm3628, %v9062, %v8582
      %v9095 = vsel %vm579, %v8071, %v8648
      %v9096 = vsel %vm579, %v8072, %v8650
      %v9097 = vsel %vm579, %v8073, %v8652
      %v9098 = vsel %vm579, %v8074, %v8654
      %v9099 = vsel %vm579, %v8075, %v8656
      %v9100 = vsel %vm579, %v8076, %v8658
      %v9101 = vsel %vm579, %v8077, %v8660
      %v9102 = vsel %vm579, %v8078, %v8662
      %v9103 = vsel %vm579, %v8079, %v8664
      %v9104 = vsel %vm579, %v8080, %v8666
      %v9105 = vsel %vm579, %v8081, %v8668
      %v9106 = vsel %vm579, %v8082, %v8670
      %v9107 = vsel %vm579, %v8083, %v8672
      %v9108 = vsel %vm579, %v8084, %v8674
      %v9109 = vsel %vm579, %v8085, %v8676
      %v9110 = vsel %vm579, %v8086, %v8678
      %v9111 = vsel %vm579, %v8087, %v8680
      %v9112 = vsel %vm579, %v8088, %v8682
      %v9113 = vsel %vm579, %v8089, %v8684
      %v9114 = vsel %vm579, %v8090, %v8686
      %v9115 = vsel %vm579, %v8091, %v8688
      %v9116 = vsel %vm579, %v8092, %v8690
      %v9117 = vsel %vm579, %v8093, %v8692
      %v9118 = vsel %vm579, %v8094, %v8694
      %v9119 = vsel %vm579, %v8095, %v8696
      %v9120 = vsel %vm579, %v8096, %v8698
      %v9121 = vsel %vm579, %v8097, %v8700
      %v9122 = vsel %vm579, %v8098, %v8702
      %v9123 = vsel %vm579, %v8099, %v8704
      %v9124 = vsel %vm579, %v8100, %v8706
      %v9125 = vsel %vm579, %v8101, %v8708
      %v9126 = vsel %vm579, %v8102, %v8710
      %v9127 = vsel %vm3595, %v9095, %v8776
      %v9128 = vsel %vm3595, %v9096, %v8778
      %v9129 = vsel %vm3595, %v9097, %v8780
      %v9130 = vsel %vm3595, %v9098, %v8782
      %v9131 = vsel %vm3595, %v9099, %v8784
      %v9132 = vsel %vm3595, %v9100, %v8786
      %v9133 = vsel %vm3595, %v9101, %v8788
      %v9134 = vsel %vm3595, %v9102, %v8790
      %v9135 = vsel %vm3595, %v9103, %v8792
      %v9136 = vsel %vm3595, %v9104, %v8794
      %v9137 = vsel %vm3595, %v9105, %v8796
      %v9138 = vsel %vm3595, %v9106, %v8798
      %v9139 = vsel %vm3595, %v9107, %v8800
      %v9140 = vsel %vm3595, %v9108, %v8802
      %v9141 = vsel %vm3595, %v9109, %v8804
      %v9142 = vsel %vm3595, %v9110, %v8806
      %v9143 = vsel %vm3595, %v9111, %v8808
      %v9144 = vsel %vm3595, %v9112, %v8810
      %v9145 = vsel %vm3595, %v9113, %v8812
      %v9146 = vsel %vm3595, %v9114, %v8814
      %v9147 = vsel %vm3595, %v9115, %v8816
      %v9148 = vsel %vm3595, %v9116, %v8818
      %v9149 = vsel %vm3595, %v9117, %v8820
      %v9150 = vsel %vm3595, %v9118, %v8822
      %v9151 = vsel %vm3595, %v9119, %v8824
      %v9152 = vsel %vm3595, %v9120, %v8826
      %v9153 = vsel %vm3595, %v9121, %v8828
      %v9154 = vsel %vm3595, %v9122, %v8830
      %v9155 = vsel %vm3595, %v9123, %v8832
      %v9156 = vsel %vm3595, %v9124, %v8834
      %v9157 = vsel %vm3595, %v9125, %v8836
      %v9158 = vsel %vm3595, %v9126, %v8838
      %v9159 = vsel %vm3628, %v9127, %v8904
      %v9160 = vsel %vm3628, %v9128, %v8906
      %v9161 = vsel %vm3628, %v9129, %v8908
      %v9162 = vsel %vm3628, %v9130, %v8910
      %v9163 = vsel %vm3628, %v9131, %v8912
      %v9164 = vsel %vm3628, %v9132, %v8914
      %v9165 = vsel %vm3628, %v9133, %v8916
      %v9166 = vsel %vm3628, %v9134, %v8918
      %v9167 = vsel %vm3628, %v9135, %v8920
      %v9168 = vsel %vm3628, %v9136, %v8922
      %v9169 = vsel %vm3628, %v9137, %v8924
      %v9170 = vsel %vm3628, %v9138, %v8926
      %v9171 = vsel %vm3628, %v9139, %v8928
      %v9172 = vsel %vm3628, %v9140, %v8930
      %v9173 = vsel %vm3628, %v9141, %v8932
      %v9174 = vsel %vm3628, %v9142, %v8934
      %v9175 = vsel %vm3628, %v9143, %v8936
      %v9176 = vsel %vm3628, %v9144, %v8938
      %v9177 = vsel %vm3628, %v9145, %v8940
      %v9178 = vsel %vm3628, %v9146, %v8942
      %v9179 = vsel %vm3628, %v9147, %v8944
      %v9180 = vsel %vm3628, %v9148, %v8946
      %v9181 = vsel %vm3628, %v9149, %v8948
      %v9182 = vsel %vm3628, %v9150, %v8950
      %v9183 = vsel %vm3628, %v9151, %v8952
      %v9184 = vsel %vm3628, %v9152, %v8954
      %v9185 = vsel %vm3628, %v9153, %v8956
      %v9186 = vsel %vm3628, %v9154, %v8958
      %v9187 = vsel %vm3628, %v9155, %v8960
      %v9188 = vsel %vm3628, %v9156, %v8962
      %v9189 = vsel %vm3628, %v9157, %v8964
      %v9190 = vsel %vm3628, %v9158, %v8966
      %v9191 = vpack.c.bf16 %v9064, %v9063
      %v9192 = vpack.c.bf16 %v9160, %v9159
      %v9193 = vpack.c.bf16 %v8200, %v8199
      %v9194 = vpack.c.bf16 %v9066, %v9065
      %v9195 = vpack.c.bf16 %v9162, %v9161
      %v9196 = vpack.c.bf16 %v8202, %v8201
      %v9197 = vpack.c.bf16 %v9068, %v9067
      %v9198 = vpack.c.bf16 %v9164, %v9163
      %v9199 = vpack.c.bf16 %v8204, %v8203
      %v9200 = vpack.c.bf16 %v9070, %v9069
      %v9201 = vpack.c.bf16 %v9166, %v9165
      %v9202 = vpack.c.bf16 %v8206, %v8205
      %v9203 = vpack.c.bf16 %v9072, %v9071
      %v9204 = vpack.c.bf16 %v9168, %v9167
      %v9205 = vpack.c.bf16 %v8208, %v8207
      %v9206 = vpack.c.bf16 %v9074, %v9073
      %v9207 = vpack.c.bf16 %v9170, %v9169
      %v9208 = vpack.c.bf16 %v8210, %v8209
      %v9209 = vpack.c.bf16 %v9076, %v9075
      %v9210 = vpack.c.bf16 %v9172, %v9171
      %v9211 = vpack.c.bf16 %v8212, %v8211
      %v9212 = vpack.c.bf16 %v9078, %v9077
      %v9213 = vpack.c.bf16 %v9174, %v9173
      %v9214 = vpack.c.bf16 %v8214, %v8213
      %v9215 = vpack.c.bf16 %v9080, %v9079
      %v9216 = vpack.c.bf16 %v9176, %v9175
      %v9217 = vpack.c.bf16 %v8216, %v8215
      %v9218 = vpack.c.bf16 %v9082, %v9081
      %v9219 = vpack.c.bf16 %v9178, %v9177
      %v9220 = vpack.c.bf16 %v8218, %v8217
      %v9221 = vpack.c.bf16 %v9084, %v9083
      %v9222 = vpack.c.bf16 %v9180, %v9179
      %v9223 = vpack.c.bf16 %v8220, %v8219
      %v9224 = vpack.c.bf16 %v9086, %v9085
      %v9225 = vpack.c.bf16 %v9182, %v9181
      %v9226 = vpack.c.bf16 %v8222, %v8221
      %v9227 = vpack.c.bf16 %v9088, %v9087
      %v9228 = vpack.c.bf16 %v9184, %v9183
      %v9229 = vpack.c.bf16 %v8224, %v8223
      %v9230 = vpack.c.bf16 %v9090, %v9089
      %v9231 = vpack.c.bf16 %v9186, %v9185
      %v9232 = vpack.c.bf16 %v8226, %v8225
      %v9233 = vpack.c.bf16 %v9092, %v9091
      %v9234 = vpack.c.bf16 %v9188, %v9187
      %v9235 = vpack.c.bf16 %v8228, %v8227
      %v9236 = vpack.c.bf16 %v9094, %v9093
      %v9237 = vpack.c.bf16 %v9190, %v9189
      %v9238 = vpack.c.bf16 %v8230, %v8229
      %v9239 = vld [vmem:[%s8] sm:$0xf]
      %v9240 = vld [vmem:[%s8 + $0x4] sm:$0xf]
      %v9241 = vld [vmem:[%s8 + $0x8] sm:$0xf]
      %v9242 = vld [vmem:[%s8 + $0xc] sm:$0xf]
      %v9243 = vld [vmem:[%s8 + $0x10] sm:$0xf]
      %v9244 = vld [vmem:[%s8 + $0x14] sm:$0xf]
      %v9245 = vld [vmem:[%s8 + $0x18] sm:$0xf]
      %v9246 = vld [vmem:[%s8 + $0x1c] sm:$0xf]
      %v9247 = vld [vmem:[%s8 + $0x20] sm:$0xf]
      %v9248 = vld [vmem:[%s8 + $0x24] sm:$0xf]
      %v9249 = vld [vmem:[%s8 + $0x28] sm:$0xf]
      %v9250 = vld [vmem:[%s8 + $0x2c] sm:$0xf]
      %v9251 = vld [vmem:[%s8 + $0x30] sm:$0xf]
      %v9252 = vld [vmem:[%s8 + $0x34] sm:$0xf]
      %v9253 = vld [vmem:[%s8 + $0x38] sm:$0xf]
      %v9254 = vld [vmem:[%s8 + $0x3c] sm:$0xf]
      %v9255 = vld [vmem:[%s8 + $0x40] sm:$0xf]
      %v9256 = vld [vmem:[%s8 + $0x44] sm:$0xf]
      %v9257 = vld [vmem:[%s8 + $0x48] sm:$0xf]
      %v9258 = vld [vmem:[%s8 + $0x4c] sm:$0xf]
      %v9259 = vld [vmem:[%s8 + $0x50] sm:$0xf]
      %v9260 = vld [vmem:[%s8 + $0x54] sm:$0xf]
      %v9261 = vld [vmem:[%s8 + $0x58] sm:$0xf]
      %v9262 = vld [vmem:[%s8 + $0x5c] sm:$0xf]
      %v9263 = vld [vmem:[%s8 + $0x60] sm:$0xf]
      %v9264 = vld [vmem:[%s8 + $0x64] sm:$0xf]
      %v9265 = vld [vmem:[%s8 + $0x68] sm:$0xf]
      %v9266 = vld [vmem:[%s8 + $0x6c] sm:$0xf]
      %v9267 = vld [vmem:[%s8 + $0x70] sm:$0xf]
      %v9268 = vld [vmem:[%s8 + $0x74] sm:$0xf]
      %v9269 = vld [vmem:[%s8 + $0x78] sm:$0xf]
      %v9270 = vld [vmem:[%s8 + $0x7c] sm:$0xf]
      %v9271 = vld [vmem:[%s8 + $0x80] sm:$0xf]
      %v9272 = vld [vmem:[%s8 + $0x84] sm:$0xf]
      %v9273 = vld [vmem:[%s8 + $0x88] sm:$0xf]
      %v9274 = vld [vmem:[%s8 + $0x8c] sm:$0xf]
      %v9275 = vld [vmem:[%s9] sm:$0x1]
      %v9277 = vperm.slane %v9275, 0
      %v9315 = vunpack.c.l.b16 %v9239
      %v9316 = vunpack.c.l.b16 %v9240
      %v9317 = vunpack.c.l.b16 %v9241
      %v9318 = vunpack.c.l.b16 %v9242
      %v9319 = vunpack.c.l.b16 %v9243
      %v9320 = vunpack.c.l.b16 %v9244
      %v9321 = vunpack.c.l.b16 %v9245
      %v9322 = vunpack.c.l.b16 %v9246
      %v9323 = vunpack.c.l.b16 %v9247
      %v9324 = vunpack.c.l.b16 %v9248
      %v9325 = vunpack.c.l.b16 %v9249
      %v9326 = vunpack.c.l.b16 %v9250
      %v9327 = vunpack.c.l.b16 %v9251
      %v9328 = vunpack.c.l.b16 %v9252
      %v9329 = vunpack.c.l.b16 %v9253
      %v9330 = vunpack.c.l.b16 %v9254
      %v9331 = vunpack.c.l.b16 %v9255
      %v9332 = vunpack.c.l.b16 %v9256
      %v9333 = vunpack.c.l.b16 %v9257
      %v9334 = vunpack.c.l.b16 %v9258
      %v9335 = vunpack.c.l.b16 %v9259
      %v9336 = vunpack.c.l.b16 %v9260
      %v9337 = vunpack.c.l.b16 %v9261
      %v9338 = vunpack.c.l.b16 %v9262
      %v9339 = vunpack.c.l.b16 %v9263
      %v9340 = vunpack.c.l.b16 %v9264
      %v9341 = vunpack.c.l.b16 %v9265
      %v9342 = vunpack.c.l.b16 %v9266
      %v9343 = vunpack.c.l.b16 %v9267
      %v9344 = vunpack.c.l.b16 %v9268
      %v9345 = vunpack.c.l.b16 %v9269
      %v9346 = vunpack.c.l.b16 %v9270
      %v9347 = vunpack.c.l.b16 %v9271
      %v9348 = vunpack.c.l.b16 %v9272
      %v9349 = vunpack.c.l.b16 %v9273
      %v9350 = vunpack.c.l.b16 %v9274
      %v9351 = vpack.c.b16 %v9316, %v9315
      %v9352 = vpack.c.b16 %v9318, %v9317
      %v9353 = vpack.c.b16 %v9320, %v9319
      %v9354 = vpack.c.b16 %v9322, %v9321
      %v9355 = vpack.c.b16 %v9324, %v9323
      %v9356 = vpack.c.b16 %v9326, %v9325
      %v9357 = vpack.c.b16 %v9328, %v9327
      %v9358 = vpack.c.b16 %v9330, %v9329
      %v9359 = vpack.c.b16 %v9332, %v9331
      %v9360 = vpack.c.b16 %v9334, %v9333
      %v9361 = vpack.c.b16 %v9336, %v9335
      %v9362 = vpack.c.b16 %v9338, %v9337
      %v9363 = vpack.c.b16 %v9340, %v9339
      %v9364 = vpack.c.b16 %v9342, %v9341
      %v9365 = vpack.c.b16 %v9344, %v9343
      %v9366 = vpack.c.b16 %v9346, %v9345
      %v9367 = vpack.c.b16 %v9348, %v9347
      %v9368 = vpack.c.b16 %v9350, %v9349
      %v9388 = vsel %vm579, %v9193, 0
      %v9391 = vsel %vm579, %v9196, 0
      %v9394 = vsel %vm579, %v9199, 0
      %v9397 = vsel %vm579, %v9202, 0
      %v9400 = vsel %vm579, %v9205, 0
      %v9403 = vsel %vm579, %v9208, 0
      %v9406 = vsel %vm579, %v9211, 0
      %v9409 = vsel %vm579, %v9214, 0
      %v9412 = vsel %vm579, %v9217, 0
      %v9415 = vsel %vm579, %v9220, 0
      %v9418 = vsel %vm579, %v9223, 0
      %v9421 = vsel %vm579, %v9226, 0
      %v9424 = vsel %vm579, %v9229, 0
      %v9427 = vsel %vm579, %v9232, 0
      %v9430 = vsel %vm579, %v9235, 0
      %v9433 = vsel %vm579, %v9238, 0
      %9435 = vmatpush.bf16.msra.mxu0 %v9358
      %9436 = vmatpush.bf16.msra.mxu0 %v9357
      %9437 = vmatpush.bf16.msra.mxu0 %v9356
      %9438 = vmatpush.bf16.msra.mxu0 %v9355
      %9439 = vmatpush.bf16.msra.mxu0 %v9354
      %9440 = vmatpush.bf16.msra.mxu0 %v9353
      %9441 = vmatpush.bf16.msra.mxu0 %v9352
      %9442 = vmatpush.bf16.msra.mxu0 %v9351
      %9443 = vmatmul.bf16.gmra.mxu0 %v9191
      %v9444 = vpop.f32.mrf.mxu0
      %v9445 = vadd.f32 %v9277, %v9444
      %v9446 = vpop.f32.mrf.mxu0
      %v9447 = vadd.f32 %v9277, %v9446
      %9448 = vmatmul.bf16.gmra.mxu0 %v9194
      %v9449 = vpop.f32.mrf.mxu0
      %v9450 = vadd.f32 %v9277, %v9449
      %v9451 = vpop.f32.mrf.mxu0
      %v9452 = vadd.f32 %v9277, %v9451
      %9453 = vmatmul.bf16.gmra.mxu0 %v9197
      %v9454 = vpop.f32.mrf.mxu0
      %v9455 = vadd.f32 %v9277, %v9454
      %v9456 = vpop.f32.mrf.mxu0
      %v9457 = vadd.f32 %v9277, %v9456
      %9458 = vmatmul.bf16.gmra.mxu0 %v9200
      %v9459 = vpop.f32.mrf.mxu0
      %v9460 = vadd.f32 %v9277, %v9459
      %v9461 = vpop.f32.mrf.mxu0
      %v9462 = vadd.f32 %v9277, %v9461
      %9463 = vmatmul.bf16.gmra.mxu0 %v9203
      %v9464 = vpop.f32.mrf.mxu0
      %v9465 = vadd.f32 %v9277, %v9464
      %v9466 = vpop.f32.mrf.mxu0
      %v9467 = vadd.f32 %v9277, %v9466
      %9468 = vmatmul.bf16.gmra.mxu0 %v9206
      %v9469 = vpop.f32.mrf.mxu0
      %v9470 = vadd.f32 %v9277, %v9469
      %v9471 = vpop.f32.mrf.mxu0
      %v9472 = vadd.f32 %v9277, %v9471
      %9473 = vmatmul.bf16.gmra.mxu0 %v9209
      %v9474 = vpop.f32.mrf.mxu0
      %v9475 = vadd.f32 %v9277, %v9474
      %v9476 = vpop.f32.mrf.mxu0
      %v9477 = vadd.f32 %v9277, %v9476
      %9478 = vmatmul.bf16.gmra.mxu0 %v9212
      %v9479 = vpop.f32.mrf.mxu0
      %v9480 = vadd.f32 %v9277, %v9479
      %v9481 = vpop.f32.mrf.mxu0
      %v9482 = vadd.f32 %v9277, %v9481
      %9483 = vmatmul.bf16.gmra.mxu0 %v9215
      %v9484 = vpop.f32.mrf.mxu0
      %v9485 = vadd.f32 %v9277, %v9484
      %v9486 = vpop.f32.mrf.mxu0
      %v9487 = vadd.f32 %v9277, %v9486
      %9488 = vmatmul.bf16.gmra.mxu0 %v9218
      %v9489 = vpop.f32.mrf.mxu0
      %v9490 = vadd.f32 %v9277, %v9489
      %v9491 = vpop.f32.mrf.mxu0
      %v9492 = vadd.f32 %v9277, %v9491
      %9493 = vmatmul.bf16.gmra.mxu0 %v9221
      %v9494 = vpop.f32.mrf.mxu0
      %v9495 = vadd.f32 %v9277, %v9494
      %v9496 = vpop.f32.mrf.mxu0
      %v9497 = vadd.f32 %v9277, %v9496
      %9498 = vmatmul.bf16.gmra.mxu0 %v9224
      %v9499 = vpop.f32.mrf.mxu0
      %v9500 = vadd.f32 %v9277, %v9499
      %v9501 = vpop.f32.mrf.mxu0
      %v9502 = vadd.f32 %v9277, %v9501
      %9503 = vmatmul.bf16.gmra.mxu0 %v9227
      %v9504 = vpop.f32.mrf.mxu0
      %v9505 = vadd.f32 %v9277, %v9504
      %v9506 = vpop.f32.mrf.mxu0
      %v9507 = vadd.f32 %v9277, %v9506
      %9508 = vmatmul.bf16.gmra.mxu0 %v9230
      %v9509 = vpop.f32.mrf.mxu0
      %v9510 = vadd.f32 %v9277, %v9509
      %v9511 = vpop.f32.mrf.mxu0
      %v9512 = vadd.f32 %v9277, %v9511
      %9513 = vmatmul.bf16.gmra.mxu0 %v9233
      %v9514 = vpop.f32.mrf.mxu0
      %v9515 = vadd.f32 %v9277, %v9514
      %v9516 = vpop.f32.mrf.mxu0
      %v9517 = vadd.f32 %v9277, %v9516
      %9518 = vmatmul.bf16.gmra.mxu0 %v9236
      %v9519 = vpop.f32.mrf.mxu0
      %v9520 = vadd.f32 %v9277, %v9519
      %v9521 = vpop.f32.mrf.mxu0
      %v9522 = vadd.f32 %v9277, %v9521
      %9523 = vdwg.mxu0
      %9524 = vmatpush.bf16.msra.mxu0 %v9366
      %9525 = vmatpush.bf16.msra.mxu0 %v9365
      %9526 = vmatpush.bf16.msra.mxu0 %v9364
      %9527 = vmatpush.bf16.msra.mxu0 %v9363
      %9528 = vmatpush.bf16.msra.mxu0 %v9362
      %9529 = vmatpush.bf16.msra.mxu0 %v9361
      %9530 = vmatpush.bf16.msra.mxu0 %v9360
      %9531 = vmatpush.bf16.msra.mxu0 %v9359
      %9532 = vmatmul.bf16.gmra.mxu0 %v9192
      %v9533 = vpop.f32.mrf.mxu0
      %v9534 = vadd.f32 %v9445, %v9533
      %v9535 = vpop.f32.mrf.mxu0
      %v9536 = vadd.f32 %v9447, %v9535
      %9537 = vmatmul.bf16.gmra.mxu0 %v9195
      %v9538 = vpop.f32.mrf.mxu0
      %v9539 = vadd.f32 %v9450, %v9538
      %v9540 = vpop.f32.mrf.mxu0
      %v9541 = vadd.f32 %v9452, %v9540
      %9542 = vmatmul.bf16.gmra.mxu0 %v9198
      %v9543 = vpop.f32.mrf.mxu0
      %v9544 = vadd.f32 %v9455, %v9543
      %v9545 = vpop.f32.mrf.mxu0
      %v9546 = vadd.f32 %v9457, %v9545
      %9547 = vmatmul.bf16.gmra.mxu0 %v9201
      %v9548 = vpop.f32.mrf.mxu0
      %v9549 = vadd.f32 %v9460, %v9548
      %v9550 = vpop.f32.mrf.mxu0
      %v9551 = vadd.f32 %v9462, %v9550
      %9552 = vmatmul.bf16.gmra.mxu0 %v9204
      %v9553 = vpop.f32.mrf.mxu0
      %v9554 = vadd.f32 %v9465, %v9553
      %v9555 = vpop.f32.mrf.mxu0
      %v9556 = vadd.f32 %v9467, %v9555
      %9557 = vmatmul.bf16.gmra.mxu0 %v9207
      %v9558 = vpop.f32.mrf.mxu0
      %v9559 = vadd.f32 %v9470, %v9558
      %v9560 = vpop.f32.mrf.mxu0
      %v9561 = vadd.f32 %v9472, %v9560
      %9562 = vmatmul.bf16.gmra.mxu0 %v9210
      %v9563 = vpop.f32.mrf.mxu0
      %v9564 = vadd.f32 %v9475, %v9563
      %v9565 = vpop.f32.mrf.mxu0
      %v9566 = vadd.f32 %v9477, %v9565
      %9567 = vmatmul.bf16.gmra.mxu0 %v9213
      %v9568 = vpop.f32.mrf.mxu0
      %v9569 = vadd.f32 %v9480, %v9568
      %v9570 = vpop.f32.mrf.mxu0
      %v9571 = vadd.f32 %v9482, %v9570
      %9572 = vmatmul.bf16.gmra.mxu0 %v9216
      %v9573 = vpop.f32.mrf.mxu0
      %v9574 = vadd.f32 %v9485, %v9573
      %v9575 = vpop.f32.mrf.mxu0
      %v9576 = vadd.f32 %v9487, %v9575
      %9577 = vmatmul.bf16.gmra.mxu0 %v9219
      %v9578 = vpop.f32.mrf.mxu0
      %v9579 = vadd.f32 %v9490, %v9578
      %v9580 = vpop.f32.mrf.mxu0
      %v9581 = vadd.f32 %v9492, %v9580
      %9582 = vmatmul.bf16.gmra.mxu0 %v9222
      %v9583 = vpop.f32.mrf.mxu0
      %v9584 = vadd.f32 %v9495, %v9583
      %v9585 = vpop.f32.mrf.mxu0
      %v9586 = vadd.f32 %v9497, %v9585
      %9587 = vmatmul.bf16.gmra.mxu0 %v9225
      %v9588 = vpop.f32.mrf.mxu0
      %v9589 = vadd.f32 %v9500, %v9588
      %v9590 = vpop.f32.mrf.mxu0
      %v9591 = vadd.f32 %v9502, %v9590
      %9592 = vmatmul.bf16.gmra.mxu0 %v9228
      %v9593 = vpop.f32.mrf.mxu0
      %v9594 = vadd.f32 %v9505, %v9593
      %v9595 = vpop.f32.mrf.mxu0
      %v9596 = vadd.f32 %v9507, %v9595
      %9597 = vmatmul.bf16.gmra.mxu0 %v9231
      %v9598 = vpop.f32.mrf.mxu0
      %v9599 = vadd.f32 %v9510, %v9598
      %v9600 = vpop.f32.mrf.mxu0
      %v9601 = vadd.f32 %v9512, %v9600
      %9602 = vmatmul.bf16.gmra.mxu0 %v9234
      %v9603 = vpop.f32.mrf.mxu0
      %v9604 = vadd.f32 %v9515, %v9603
      %v9605 = vpop.f32.mrf.mxu0
      %v9606 = vadd.f32 %v9517, %v9605
      %9607 = vmatmul.bf16.gmra.mxu0 %v9237
      %v9608 = vpop.f32.mrf.mxu0
      %v9609 = vadd.f32 %v9520, %v9608
      %v9610 = vpop.f32.mrf.mxu0
      %v9611 = vadd.f32 %v9522, %v9610
      %9612 = vdwg.mxu0
      %9613 = vmatpush.bf16.msra.mxu0 0
      %9614 = vmatpush.bf16.msra.mxu0 0
      %9615 = vmatpush.bf16.msra.mxu0 0
      %9616 = vmatpush.bf16.msra.mxu0 0
      %9617 = vmatpush.bf16.msra.mxu0 0
      %9618 = vmatpush.bf16.msra.mxu0 0
      %9619 = vmatpush.bf16.msra.mxu0 %v9368
      %9620 = vmatpush.bf16.msra.mxu0 %v9367
      %9621 = vmatmul.bf16.gmra.mxu0 %v9388
      %v9622 = vpop.f32.mrf.mxu0
      %v9623 = vadd.f32 %v9534, %v9622
      %v9624 = vpop.f32.mrf.mxu0
      %v9625 = vadd.f32 %v9536, %v9624
      %9626 = vmatmul.bf16.gmra.mxu0 %v9391
      %v9627 = vpop.f32.mrf.mxu0
      %v9628 = vadd.f32 %v9539, %v9627
      %v9629 = vpop.f32.mrf.mxu0
      %v9630 = vadd.f32 %v9541, %v9629
      %9631 = vmatmul.bf16.gmra.mxu0 %v9394
      %v9632 = vpop.f32.mrf.mxu0
      %v9633 = vadd.f32 %v9544, %v9632
      %v9634 = vpop.f32.mrf.mxu0
      %v9635 = vadd.f32 %v9546, %v9634
      %9636 = vmatmul.bf16.gmra.mxu0 %v9397
      %v9637 = vpop.f32.mrf.mxu0
      %v9638 = vadd.f32 %v9549, %v9637
      %v9639 = vpop.f32.mrf.mxu0
      %v9640 = vadd.f32 %v9551, %v9639
      %9641 = vmatmul.bf16.gmra.mxu0 %v9400
      %v9642 = vpop.f32.mrf.mxu0
      %v9643 = vadd.f32 %v9554, %v9642
      %v9644 = vpop.f32.mrf.mxu0
      %v9645 = vadd.f32 %v9556, %v9644
      %9646 = vmatmul.bf16.gmra.mxu0 %v9403
      %v9647 = vpop.f32.mrf.mxu0
      %v9648 = vadd.f32 %v9559, %v9647
      %v9649 = vpop.f32.mrf.mxu0
      %v9650 = vadd.f32 %v9561, %v9649
      %9651 = vmatmul.bf16.gmra.mxu0 %v9406
      %v9652 = vpop.f32.mrf.mxu0
      %v9653 = vadd.f32 %v9564, %v9652
      %v9654 = vpop.f32.mrf.mxu0
      %v9655 = vadd.f32 %v9566, %v9654
      %9656 = vmatmul.bf16.gmra.mxu0 %v9409
      %v9657 = vpop.f32.mrf.mxu0
      %v9658 = vadd.f32 %v9569, %v9657
      %v9659 = vpop.f32.mrf.mxu0
      %v9660 = vadd.f32 %v9571, %v9659
      %9661 = vmatmul.bf16.gmra.mxu0 %v9412
      %v9662 = vpop.f32.mrf.mxu0
      %v9663 = vadd.f32 %v9574, %v9662
      %v9664 = vpop.f32.mrf.mxu0
      %v9665 = vadd.f32 %v9576, %v9664
      %9666 = vmatmul.bf16.gmra.mxu0 %v9415
      %v9667 = vpop.f32.mrf.mxu0
      %v9668 = vadd.f32 %v9579, %v9667
      %v9669 = vpop.f32.mrf.mxu0
      %v9670 = vadd.f32 %v9581, %v9669
      %9671 = vmatmul.bf16.gmra.mxu0 %v9418
      %v9672 = vpop.f32.mrf.mxu0
      %v9673 = vadd.f32 %v9584, %v9672
      %v9674 = vpop.f32.mrf.mxu0
      %v9675 = vadd.f32 %v9586, %v9674
      %9676 = vmatmul.bf16.gmra.mxu0 %v9421
      %v9677 = vpop.f32.mrf.mxu0
      %v9678 = vadd.f32 %v9589, %v9677
      %v9679 = vpop.f32.mrf.mxu0
      %v9680 = vadd.f32 %v9591, %v9679
      %9681 = vmatmul.bf16.gmra.mxu0 %v9424
      %v9682 = vpop.f32.mrf.mxu0
      %v9683 = vadd.f32 %v9594, %v9682
      %v9684 = vpop.f32.mrf.mxu0
      %v9685 = vadd.f32 %v9596, %v9684
      %9686 = vmatmul.bf16.gmra.mxu0 %v9427
      %v9687 = vpop.f32.mrf.mxu0
      %v9688 = vadd.f32 %v9599, %v9687
      %v9689 = vpop.f32.mrf.mxu0
      %v9690 = vadd.f32 %v9601, %v9689
      %9691 = vmatmul.bf16.gmra.mxu0 %v9430
      %v9692 = vpop.f32.mrf.mxu0
      %v9693 = vadd.f32 %v9604, %v9692
      %v9694 = vpop.f32.mrf.mxu0
      %v9695 = vadd.f32 %v9606, %v9694
      %9696 = vmatmul.bf16.gmra.mxu0 %v9433
      %v9697 = vpop.f32.mrf.mxu0
      %v9698 = vadd.f32 %v9609, %v9697
      %v9699 = vpop.f32.mrf.mxu0
      %v9700 = vadd.f32 %v9611, %v9699
      %9701 = vdwg.mxu0
      %v9702 = vadd.f32 %v9623, %v401
      %v9703 = vadd.f32 %v9625, %v402
      %v9704 = vadd.f32 %v9628, %v403
      %v9705 = vadd.f32 %v9630, %v404
      %v9706 = vadd.f32 %v9633, %v405
      %v9707 = vadd.f32 %v9635, %v406
      %v9708 = vadd.f32 %v9638, %v407
      %v9709 = vadd.f32 %v9640, %v408
      %v9710 = vadd.f32 %v9643, %v409
      %v9711 = vadd.f32 %v9645, %v410
      %v9712 = vadd.f32 %v9648, %v411
      %v9713 = vadd.f32 %v9650, %v412
      %v9714 = vadd.f32 %v9653, %v413
      %v9715 = vadd.f32 %v9655, %v414
      %v9716 = vadd.f32 %v9658, %v415
      %v9717 = vadd.f32 %v9660, %v416
      %v9718 = vadd.f32 %v9663, %v417
      %v9719 = vadd.f32 %v9665, %v418
      %v9720 = vadd.f32 %v9668, %v419
      %v9721 = vadd.f32 %v9670, %v420
      %v9722 = vadd.f32 %v9673, %v421
      %v9723 = vadd.f32 %v9675, %v422
      %v9724 = vadd.f32 %v9678, %v423
      %v9725 = vadd.f32 %v9680, %v424
      %v9726 = vadd.f32 %v9683, %v425
      %v9727 = vadd.f32 %v9685, %v426
      %v9728 = vadd.f32 %v9688, %v427
      %v9729 = vadd.f32 %v9690, %v428
      %v9730 = vadd.f32 %v9693, %v429
      %v9731 = vadd.f32 %v9695, %v430
      %v9732 = vadd.f32 %v9698, %v431
      %v9733 = vadd.f32 %v9700, %v432
      %9734 = vst.msk [vmem:[%s394] sm:$0xff] %vm433, %v9702
      %9735 = vst.msk [vmem:[%s394 + $0x8] sm:$0xff] %vm433, %v9703
      %9736 = vst.msk [vmem:[%s394 + $0x10] sm:$0xff] %vm433, %v9704
      %9737 = vst.msk [vmem:[%s394 + $0x18] sm:$0xff] %vm433, %v9705
      %9738 = vst.msk [vmem:[%s394 + $0x20] sm:$0xff] %vm433, %v9706
      %9739 = vst.msk [vmem:[%s394 + $0x28] sm:$0xff] %vm433, %v9707
      %9740 = vst.msk [vmem:[%s394 + $0x30] sm:$0xff] %vm433, %v9708
      %9741 = vst.msk [vmem:[%s394 + $0x38] sm:$0xff] %vm433, %v9709
      %9742 = vst.msk [vmem:[%s394 + $0x40] sm:$0xff] %vm433, %v9710
      %9743 = vst.msk [vmem:[%s394 + $0x48] sm:$0xff] %vm433, %v9711
      %9744 = vst.msk [vmem:[%s394 + $0x50] sm:$0xff] %vm433, %v9712
      %9745 = vst.msk [vmem:[%s394 + $0x58] sm:$0xff] %vm433, %v9713
      %9746 = vst.msk [vmem:[%s394 + $0x60] sm:$0xff] %vm433, %v9714
      %9747 = vst.msk [vmem:[%s394 + $0x68] sm:$0xff] %vm433, %v9715
      %9748 = vst.msk [vmem:[%s394 + $0x70] sm:$0xff] %vm433, %v9716
      %9749 = vst.msk [vmem:[%s394 + $0x78] sm:$0xff] %vm433, %v9717
      %9750 = vst.msk [vmem:[%s394 + $0x80] sm:$0xff] %vm433, %v9718
      %9751 = vst.msk [vmem:[%s394 + $0x88] sm:$0xff] %vm433, %v9719
      %9752 = vst.msk [vmem:[%s394 + $0x90] sm:$0xff] %vm433, %v9720
      %9753 = vst.msk [vmem:[%s394 + $0x98] sm:$0xff] %vm433, %v9721
      %9754 = vst.msk [vmem:[%s394 + $0xa0] sm:$0xff] %vm433, %v9722
      %9755 = vst.msk [vmem:[%s394 + $0xa8] sm:$0xff] %vm433, %v9723
      %9756 = vst.msk [vmem:[%s394 + $0xb0] sm:$0xff] %vm433, %v9724
      %9757 = vst.msk [vmem:[%s394 + $0xb8] sm:$0xff] %vm433, %v9725
      %9758 = vst.msk [vmem:[%s394 + $0xc0] sm:$0xff] %vm433, %v9726
      %9759 = vst.msk [vmem:[%s394 + $0xc8] sm:$0xff] %vm433, %v9727
      %9760 = vst.msk [vmem:[%s394 + $0xd0] sm:$0xff] %vm433, %v9728
      %9761 = vst.msk [vmem:[%s394 + $0xd8] sm:$0xff] %vm433, %v9729
      %9762 = vst.msk [vmem:[%s394 + $0xe0] sm:$0xff] %vm433, %v9730
      %9763 = vst.msk [vmem:[%s394 + $0xe8] sm:$0xff] %vm433, %v9731
      %9764 = vst.msk [vmem:[%s394 + $0xf0] sm:$0xff] %vm433, %v9732
      %9765 = vst.msk [vmem:[%s394 + $0xf8] sm:$0xff] %vm433, %v9733
      %p9766 = scmp.lt.s32.totalorder %s23, 1
      %s9767 = scalar_select %p9766, %s23, 1
      %s9768 = smul.addr %s9767, 32
      %s9769 = smul.addr %s9768, 8
      %s9770 = scalar_lea.vmem %s10, %s9769
      %p9771 = scmp.lt.s32.totalorder %s23, 1
      %s9772 = scalar_select %p9771, %s23, 1
      %s9773 = smul.addr %s9772, 32
      %s9774 = smul.addr %s9773, 8
      %s9775 = scalar_lea.vmem %s11, %s9774
      // Predicated region
      $region61: #{deblur_sr_resdnet_forward.1} parent=59 // pred_check
        %p9776 = pneg %p256
      $region62: #{deblur_sr_resdnet_forward.1} parent=59 // pred_check_branch
        %9778 = sbr.rel (%p9776) target = $region64
      $region63: #{deblur_sr_resdnet_forward.1} parent=59 // pred_region
        _
      $region64: #{deblur_sr_resdnet_forward.1} parent=59 // pred_fallthru
        _
      // Predicated region
      $region65: #{deblur_sr_resdnet_forward.1} parent=59 // pred_check
        %p9779 = pneg %p282
      $region66: #{deblur_sr_resdnet_forward.1} parent=59 // pred_check_branch
        %9781 = sbr.rel (%p9779) target = $region68
      $region67: #{deblur_sr_resdnet_forward.1} parent=59 // pred_region
        _
      $region68: #{deblur_sr_resdnet_forward.1} parent=59 // pred_fallthru
        _
    $region60: #{deblur_sr_resdnet_forward.1} parent=5 // pred_fallthru
      _
    %p9782 = scmp.le.s32.totalorder 2, %s18
    // Predicated region
    $region69: #{deblur_sr_resdnet_forward.1} parent=5 // pred_check
      %p9783 = pneg %p9782
    $region70: #{deblur_sr_resdnet_forward.1} parent=5 // pred_check_branch
      %9785 = sbr.rel (%p9783) target = $region72
    $region71: #{deblur_sr_resdnet_forward.1} parent=5 // pred_region
      %s9786 = ssub.s32 %s18, 2
      // Predicated region
      $region73: #{deblur_sr_resdnet_forward.1} parent=71 // pred_check
        %p9787 = pneg %p262
      $region74: #{deblur_sr_resdnet_forward.1} parent=71 // pred_check_branch
        %9789 = sbr.rel (%p9787) target = $region76
      $region75: #{deblur_sr_resdnet_forward.1} parent=71 // pred_region
        %p9790 = scmp.lt.s32.totalorder %s24, 1
        %s9791 = scalar_select %p9790, %s24, 1
        %s9792 = smul.addr %s9791, 32
        %s9793 = smul.addr %s9792, 8
        %s9794 = scalar_lea.vmem %s10, %s9793
      $region76: #{deblur_sr_resdnet_forward.1} parent=71 // pred_fallthru
        _
      // Predicated region
      $region77: #{deblur_sr_resdnet_forward.1} parent=71 // pred_check
        %p9795 = pneg %p288
      $region78: #{deblur_sr_resdnet_forward.1} parent=71 // pred_check_branch
        %9797 = sbr.rel (%p9795) target = $region80
      $region79: #{deblur_sr_resdnet_forward.1} parent=71 // pred_region
        %p9798 = scmp.lt.s32.totalorder %s24, 1
        %s9799 = scalar_select %p9798, %s24, 1
        %s9800 = smul.addr %s9799, 32
        %s9801 = smul.addr %s9800, 8
        %s9802 = scalar_lea.vmem %s11, %s9801
      $region80: #{deblur_sr_resdnet_forward.1} parent=71 // pred_fallthru
        _
    $region72: #{deblur_sr_resdnet_forward.1} parent=5 // pred_fallthru
      _
  $region6: #{deblur_sr_resdnet_forward.1} parent=0 // loop_footer
    %s22 = sadd.s32 1, %s18
  $region7: #{deblur_sr_resdnet_forward.1} parent=0 // loop_footer_branch
    %17 = sbr.rel target = $region3
  $region8: #{deblur_sr_resdnet_forward.1} parent=0 // loop_exit
    _

</llo_original>
